<compile_context>
chip_gen: v7x
topology: tpu7x:2x2x1
jax: 0.10.0
libtpu: 0.0.40
codegen_flags: <defaults>
</compile_context>

<pallas_src>
import numpy as np
import jax
import jax.numpy as jnp
from jax.experimental import pallas as pl
from jax.experimental.pallas import tpu as pltpu

PAD_L = 2  # zero columns on the left of the data inside each padded row


# ----------------------------------------------------------------------------
# layout helpers (wrapper-side glue)
# ----------------------------------------------------------------------------
def _round_up(v, m):
    return -(-v // m) * m


def _wp(W):
    # padded row stride: >=2 zero cols each side, multiple of 8 (sublane align)
    return _round_up(W + 2 * PAD_L, 8)


def _to_padded_flat(x_nchw):
    B, C, H, W = x_nchw.shape
    Wp = _wp(W)
    x = jnp.transpose(x_nchw, (0, 2, 3, 1))                       # NHWC
    x = jnp.pad(x, ((0, 0), (0, 0), (PAD_L, Wp - W - PAD_L), (0, 0)))
    return x.astype(jnp.bfloat16).reshape(B, H * Wp, C)


def _from_padded_flat(xk, H, W):
    B, _, C = xk.shape
    Wp = _wp(W)
    x = xk.reshape(B, H, Wp, C)[:, :, PAD_L:PAD_L + W, :]
    return jnp.transpose(x, (0, 3, 1, 2)).astype(jnp.float32)     # NCHW f32


def _col_mask(TH, Wp, W):
    col = np.arange(Wp)
    keep = ((col >= PAD_L) & (col < PAD_L + W)).astype(np.float32)
    return jnp.asarray(np.tile(keep, TH).reshape(TH * Wp, 1))


def _pick_row_tile(H, Wp, cin, cout_tile, budget=1 << 20, max_rows=1024):
    """Largest row tile TH (divisor of H) whose working set fits the budget."""
    best = 1
    for th in range(1, H + 1):
        if H % th:
            continue
        n = th * Wp
        if n > max_rows:
            continue
        need = (4 * n * (cin + cout_tile)          # bf16 in+out, double-buffered
                + n * max(cout_tile, 128) * 4      # f32 accumulator (lane padded)
                + (n + 4 * Wp) * cin * 2)          # bf16 padded scratch copy
        if need <= budget:
            best = th
    return best


def _pick_pool_tile(Ho, Wp_in, C, budget=1 << 19):
    best = 1
    for th in range(1, Ho + 1):
        if Ho % th:
            continue
        if th * Wp_in * C * 2 * 4 <= budget:
            best = th
    return best


# ----------------------------------------------------------------------------
# fused 3x3 conv + folded BN + LeakyReLU
# ----------------------------------------------------------------------------
def _conv3x3_call(xk, w_bf, bias, H, W):
    B, _, Cin = xk.shape
    Cout = w_bf.shape[0]
    Wp = _wp(W)
    CT = min(Cout, 256)                 # output-channel tile (bounds VMEM)
    J = Cout // CT
    TH = _pick_row_tile(H, Wp, Cin, CT)
    T = H // TH
    N = TH * Wp
    S0 = 8                              # aligned slack before the padded window
    SCR = S0 + (TH + 2) * Wp + 8

    # 9 taps, pre-transposed for x @ w, bf16
    w9 = jnp.stack([jnp.transpose(w_bf[:, :, ky, kx], (1, 0))
                    for ky in range(3) for kx in range(3)], axis=0)
    b2 = bias.reshape(1, Cout).astype(jnp.float32)
    colmask = _col_mask(TH, Wp, W)

    def kernel(top_ref, body_ref, bot_ref, w_ref, b_ref, m_ref, o_ref, scr):
        t = pl.program_id(2)
        tl = pl.num_programs(2) - 1

        # tiny slack regions (never hold real data, keep them zero)
        scr[0:S0, :] = jnp.zeros((S0, Cin), jnp.bfloat16)
        scr[S0 + (TH + 2) * Wp:SCR, :] = jnp.zeros((8, Cin), jnp.bfloat16)

        # halo row above (zeros at the image top)
        @pl.when(t == 0)
        def _():
            scr[S0:S0 + Wp, :] = jnp.zeros((Wp, Cin), jnp.bfloat16)

        @pl.when(t > 0)
        def _():
            scr[S0:S0 + Wp, :] = top_ref[0]

        # body rows
        scr[S0 + Wp:S0 + (TH + 1) * Wp, :] = body_ref[0]

        # halo row below (zeros at the image bottom)
        @pl.when(t == tl)
        def _():
            scr[S0 + (TH + 1) * Wp:S0 + (TH + 2) * Wp, :] = (
                jnp.zeros((Wp, Cin), jnp.bfloat16))

        @pl.when(t < tl)
        def _():
            scr[S0 + (TH + 1) * Wp:S0 + (TH + 2) * Wp, :] = bot_ref[0]

        # 3x3 conv as 9 shifted, unmasked MXU matmuls (f32 accumulation)
        acc = jnp.zeros((N, CT), jnp.float32)
        for ky in range(3):
            for kx in range(3):
                start = S0 + ky * Wp + kx - 1
                v = scr[start:start + N, :]
                acc = acc + jnp.dot(v, w_ref[ky * 3 + kx],
                                    preferred_element_type=jnp.float32)

        y = acc + b_ref[...]
        y = jnp.where(y >= 0, y, 0.1 * y)
        # keep the padded-column contract (pad columns stay exactly zero)
        y = jnp.where(m_ref[...] != 0.0, y, 0.0)
        o_ref[0] = y.astype(o_ref.dtype)

    return pl.pallas_call(
        kernel,
        out_shape=jax.ShapeDtypeStruct((B, H * Wp, Cout), jnp.bfloat16),
        grid=(B, J, T),
        in_specs=[
            pl.BlockSpec((1, Wp, Cin),
                         lambda b, j, t: (b, jnp.maximum(t * TH - 1, 0), 0)),
            pl.BlockSpec((1, N, Cin), lambda b, j, t: (b, t, 0)),
            pl.BlockSpec((1, Wp, Cin),
                         lambda b, j, t: (b, jnp.minimum(t * TH + TH, H - 1), 0)),
            pl.BlockSpec((9, Cin, CT), lambda b, j, t: (0, 0, j)),
            pl.BlockSpec((1, CT), lambda b, j, t: (0, j)),
            pl.BlockSpec((N, 1), lambda b, j, t: (0, 0)),
        ],
        out_specs=pl.BlockSpec((1, N, CT), lambda b, j, t: (b, t, j)),
        scratch_shapes=[pltpu.VMEM((SCR, Cin), jnp.bfloat16)],
        compiler_params=pltpu.CompilerParams(
            dimension_semantics=("parallel", "parallel", "parallel")),
    )(xk, xk, xk, w9, b2, colmask)


# ----------------------------------------------------------------------------
# fused 1x1 conv + folded BN + LeakyReLU
# ----------------------------------------------------------------------------
def _conv1x1_call(xk, w_bf, bias, H, W):
    B, _, Cin = xk.shape
    Cout = w_bf.shape[0]
    Wp = _wp(W)
    TH = _pick_row_tile(H, Wp, Cin, Cout)
    T = H // TH
    N = TH * Wp

    w2 = jnp.transpose(w_bf[:, :, 0, 0], (1, 0))          # (Cin, Cout) bf16
    b2 = bias.reshape(1, Cout).astype(jnp.float32)
    colmask = _col_mask(TH, Wp, W)

    def kernel(x_ref, w_ref, b_ref, m_ref, o_ref):
        x = x_ref[0]
        acc = jnp.dot(x, w_ref[...], preferred_element_type=jnp.float32)
        y = acc + b_ref[...]
        y = jnp.where(y >= 0, y, 0.1 * y)
        y = jnp.where(m_ref[...] != 0.0, y, 0.0)
        o_ref[0] = y.astype(o_ref.dtype)

    return pl.pallas_call(
        kernel,
        out_shape=jax.ShapeDtypeStruct((B, H * Wp, Cout), jnp.bfloat16),
        grid=(B, T),
        in_specs=[
            pl.BlockSpec((1, N, Cin), lambda b, t: (b, t, 0)),
            pl.BlockSpec((Cin, Cout), lambda b, t: (0, 0)),
            pl.BlockSpec((1, Cout), lambda b, t: (0, 0)),
            pl.BlockSpec((N, 1), lambda b, t: (0, 0)),
        ],
        out_specs=pl.BlockSpec((1, N, Cout), lambda b, t: (b, t, 0)),
        compiler_params=pltpu.CompilerParams(
            dimension_semantics=("parallel", "parallel")),
    )(xk, w2, b2, colmask)


# ----------------------------------------------------------------------------
# 2x2 max pool, stride 2
# ----------------------------------------------------------------------------
def _maxpool_call(xk, H, W):
    B, _, C = xk.shape
    Wp_in = _wp(W)
    Ho, Wo = H // 2, W // 2
    Wp_out = _wp(Wo)
    Wh = Wp_in // 2
    L = min(Wh, Wp_out - 1)

    # free reshapes: fold row parity into its own axis, column parity into lanes
    xv = xk.reshape(B * Ho, 2, Wh, 2 * C)
    THo = _pick_pool_tile(Ho, Wp_in, C)
    G = (B * Ho) // THo

    def kernel(x_ref, o_ref):
        x = x_ref[...]                                  # (THo, 2, Wh, 2C)
        m = jnp.maximum(x[:, 0], x[:, 1])               # row-pair max
        core = jnp.maximum(m[:, :, :C], m[:, :, C:])    # col-pair max (lanes)
        o_ref[:, 1:1 + L, :] = core[:, :L, :].astype(o_ref.dtype)
        o_ref[:, 0:1, :] = jnp.zeros((THo, 1, C), o_ref.dtype)
        if 1 + L < Wp_out:
            o_ref[:, 1 + L:Wp_out, :] = jnp.zeros((THo, Wp_out - 1 - L, C),
                                                  o_ref.dtype)

    out = pl.pallas_call(
        kernel,
        out_shape=jax.ShapeDtypeStruct((B * Ho, Wp_out, C), jnp.bfloat16),
        grid=(G,),
        in_specs=[pl.BlockSpec((THo, 2, Wh, 2 * C), lambda i: (i, 0, 0, 0))],
        out_specs=pl.BlockSpec((THo, Wp_out, C), lambda i: (i, 0, 0)),
        compiler_params=pltpu.CompilerParams(dimension_semantics=("parallel",)),
    )(xv)
    return out.reshape(B, Ho * Wp_out, C), Ho, Wo


# ----------------------------------------------------------------------------
# full Darknet19 forward (default out_levels=(1,2,3,4,5), num_classes=None)
# ----------------------------------------------------------------------------
def darknet19_forward(x_nchw, conv1_p, stages_p):
    _, _, H, W = x_nchw.shape
    xk = _to_padded_flat(x_nchw)

    _, w, b = conv1_p
    xk = _conv3x3_call(xk, w, b, H, W)                  # conv1 (3 -> 32)

    outs = []
    for stage in stages_p:
        xk, H, W = _maxpool_call(xk, H, W)
        for (k, w, b) in stage:
            if k == 3:
                xk = _conv3x3_call(xk, w, b, H, W)
            else:
                xk = _conv1x1_call(xk, w, b, H, W)
        outs.append(_from_padded_flat(xk, H, W))
    return tuple(outs)


# ----------------------------------------------------------------------------
# pure-JAX reference (same bf16 weights / bf16 activation rounding, f32 accum)
# ----------------------------------------------------------------------------
def reference_forward(x_nchw, conv1_p, stages_p):
    def conv(x, w_bf, b, k):
        pad = [(1, 1), (1, 1)] if k == 3 else [(0, 0), (0, 0)]
        y = jax.lax.conv_general_dilated(
            x.astype(jnp.bfloat16), w_bf, (1, 1), pad,
            dimension_numbers=("NCHW", "OIHW", "NCHW"),
            preferred_element_type=jnp.float32)
        y = y + b[None, :, None, None]
        y = jnp.where(y >= 0, y, 0.1 * y)
        return y.astype(jnp.bfloat16).astype(jnp.float32)

    def pool(x):
        B, C, H, W = x.shape
        return jnp.max(x.reshape(B, C, H // 2, 2, W // 2, 2), axis=(3, 5))

    outs = []
    k, w, b = conv1_p
    y = conv(x_nchw, w, b, k)
    for stage in stages_p:
        y = pool(y)
        for (k, w, b) in stage:
            y = conv(y, w, b, k)
        outs.append(y)
    return tuple(outs)


# ----------------------------------------------------------------------------
# parameter construction (kaiming conv weights, randomized eval-mode BN, folded)
# ----------------------------------------------------------------------------
def _make_layer_params(key, spec):
    k, cin, cout = spec
    key, sub = jax.random.split(key)
    ks = jax.random.split(sub, 5)
    fan_in = cin * k * k
    w = jax.random.normal(ks[0], (cout, cin, k, k), jnp.float32) * np.sqrt(2.0 / fan_in)
    gamma = 1.0 + 0.1 * jax.random.normal(ks[1], (cout,), jnp.float32)
    beta = 0.1 * jax.random.normal(ks[2], (cout,), jnp.float32)
    mean = 0.1 * jax.random.normal(ks[3], (cout,), jnp.float32)
    var = jax.random.uniform(ks[4], (cout,), jnp.float32, minval=0.5, maxval=1.5)
    s = gamma / jnp.sqrt(var + 1e-5)
    w_f = (w * s[:, None, None, None]).astype(jnp.bfloat16)   # folded conv+BN
    b_f = (beta - mean * s).astype(jnp.float32)
    return key, (k, w_f, b_f)


STAGE_DEFS = [
    [(3, 32, 64)],
    [(3, 64, 128), (1, 128, 64), (3, 64, 128)],
    [(3, 128, 256), (1, 256, 128), (3, 128, 256)],
    [(3, 256, 512), (1, 512, 256), (3, 256, 512), (1, 512, 256), (3, 256, 512)],
    [(3, 512, 1024), (1, 1024, 512), (3, 512, 1024), (1, 1024, 512), (3, 512, 1024)],
]


if __name__ == "__main__":
    B, CIN, H0, W0 = 2, 3, 32, 32

    key = jax.random.PRNGKey(0)
    key, kx = jax.random.split(key)
    x = jax.random.normal(kx, (B, CIN, H0, W0), dtype=jnp.float32)

    key, conv1_p = _make_layer_params(key, (3, CIN, 32))
    stages_p = []
    for sd in STAGE_DEFS:
        layers = []
        for d in sd:
            key, p = _make_layer_params(key, d)
            layers.append(p)
        stages_p.append(layers)

    outs = darknet19_forward(x, conv1_p, stages_p)
    outs = jax.block_until_ready(outs)

    refs = reference_forward(x, conv1_p, stages_p)

    expected_shapes = [(B, 64, 16, 16), (B, 128, 8, 8), (B, 256, 4, 4),
                       (B, 512, 2, 2), (B, 1024, 1, 1)]
    assert len(outs) == 5
    for o, r, es in zip(outs, refs, expected_shapes):
        assert o.shape == es and r.shape == es, (o.shape, r.shape, es)
        assert jnp.allclose(o, r, atol=5e-2, rtol=5e-2), (
            float(jnp.max(jnp.abs(o - r))))

    print("KERNEL_OK")
</pallas_src>

<mosaic_0001>
module attributes {stable_mosaic.version = 11 : i64} {
  func.func @kernel(%arg0: i32, %arg1: i32, %arg2: i32, %arg3: memref<1x40x3xbf16, #tpu.memory_space<vmem>>, %arg4: memref<1x640x3xbf16, #tpu.memory_space<vmem>>, %arg5: memref<1x40x3xbf16, #tpu.memory_space<vmem>>, %arg6: memref<9x3x32xbf16, #tpu.memory_space<vmem>>, %arg7: memref<1x32xf32, #tpu.memory_space<vmem>>, %arg8: memref<640x1xf32, #tpu.memory_space<vmem>>, %arg9: memref<1x640x32xbf16, #tpu.memory_space<vmem>>, %arg10: memref<736x3xbf16, #tpu.memory_space<vmem>>) attributes {dimension_semantics = [#tpu.dimension_semantics<parallel>, #tpu.dimension_semantics<parallel>, #tpu.dimension_semantics<parallel>], iteration_bounds = array<i64: 2, 1, 2>, scalar_prefetch = 0 : i64, scratch_operands = 1 : i64, tpu.core_type = #tpu.core_type<tc>, window_params = [{transform_indices = @transform_0, window_bounds = array<i64: 1, 40, 3>}, {transform_indices = @transform_1, window_bounds = array<i64: 1, 640, 3>}, {transform_indices = @transform_2, window_bounds = array<i64: 1, 40, 3>}, {transform_indices = @transform_3, window_bounds = array<i64: 9, 3, 32>}, {transform_indices = @transform_4, window_bounds = array<i64: 1, 32>}, {pipeline_mode = #tpu.pipeline_mode<synchronous>, transform_indices = @transform_5, window_bounds = array<i64: 640, 1>}, {transform_indices = @transform_6, window_bounds = array<i64: 1, 640, 32>}]} {
    %cst = arith.constant 0.000000e+00 : bf16
    %0 = vector.broadcast %cst : bf16 to vector<8x3xbf16>
    %c0 = arith.constant 0 : index
    %c0_0 = arith.constant 0 : index
    %1 = vector.load %arg10[%c0, %c0_0] : memref<736x3xbf16, #tpu.memory_space<vmem>>, vector<8x3xbf16>
    tpu.vector_store %arg10[%c0, %c0_0], %0 {strides = array<i32>} : memref<736x3xbf16, #tpu.memory_space<vmem>>, vector<8x3xbf16>,
    %cst_1 = arith.constant 0.000000e+00 : bf16
    %2 = vector.broadcast %cst_1 : bf16 to vector<8x3xbf16>
    %c728 = arith.constant 728 : index
    %c0_2 = arith.constant 0 : index
    %3 = vector.load %arg10[%c728, %c0_2] : memref<736x3xbf16, #tpu.memory_space<vmem>>, vector<8x3xbf16>
    tpu.vector_store %arg10[%c728, %c0_2], %2 {strides = array<i32>} : memref<736x3xbf16, #tpu.memory_space<vmem>>, vector<8x3xbf16>,
    %c0_i32 = arith.constant 0 : i32
    %4 = arith.cmpi eq, %arg2, %c0_i32 : i32
    %5 = arith.extui %4 : i1 to i32
    %c0_i32_3 = arith.constant 0 : i32
    %6 = arith.cmpi ne, %5, %c0_i32_3 : i32
    scf.if %6 {
      %cst_65 = arith.constant 0.000000e+00 : bf16
      %84 = vector.broadcast %cst_65 : bf16 to vector<40x3xbf16>
      %c8_66 = arith.constant 8 : index
      %c0_67 = arith.constant 0 : index
      %85 = vector.load %arg10[%c8_66, %c0_67] : memref<736x3xbf16, #tpu.memory_space<vmem>>, vector<40x3xbf16>
      tpu.vector_store %arg10[%c8_66, %c0_67], %84 {strides = array<i32>} : memref<736x3xbf16, #tpu.memory_space<vmem>>, vector<40x3xbf16>,
    } else {
    }
    %c0_i32_4 = arith.constant 0 : i32
    %7 = arith.cmpi sgt, %arg2, %c0_i32_4 : i32
    %8 = arith.extui %7 : i1 to i32
    %c0_i32_5 = arith.constant 0 : i32
    %9 = arith.cmpi ne, %8, %c0_i32_5 : i32
    scf.if %9 {
      %c0_65 = arith.constant 0 : index
      %c0_66 = arith.constant 0 : index
      %c0_67 = arith.constant 0 : index
      %84 = vector.load %arg3[%c0_65, %c0_66, %c0_67] : memref<1x40x3xbf16, #tpu.memory_space<vmem>>, vector<1x40x3xbf16>
      %85 = vector.shape_cast %84 : vector<1x40x3xbf16> to vector<40x3xbf16>
      %c8_68 = arith.constant 8 : index
      %c0_69 = arith.constant 0 : index
      %86 = vector.load %arg10[%c8_68, %c0_69] : memref<736x3xbf16, #tpu.memory_space<vmem>>, vector<40x3xbf16>
      tpu.vector_store %arg10[%c8_68, %c0_69], %85 {strides = array<i32>} : memref<736x3xbf16, #tpu.memory_space<vmem>>, vector<40x3xbf16>,
    } else {
    }
    %c0_6 = arith.constant 0 : index
    %c0_7 = arith.constant 0 : index
    %c0_8 = arith.constant 0 : index
    %10 = vector.load %arg4[%c0_6, %c0_7, %c0_8] : memref<1x640x3xbf16, #tpu.memory_space<vmem>>, vector<1x640x3xbf16>
    %11 = vector.shape_cast %10 : vector<1x640x3xbf16> to vector<640x3xbf16>
    %c48 = arith.constant 48 : index
    %c0_9 = arith.constant 0 : index
    %12 = vector.load %arg10[%c48, %c0_9] : memref<736x3xbf16, #tpu.memory_space<vmem>>, vector<640x3xbf16>
    tpu.vector_store %arg10[%c48, %c0_9], %11 {strides = array<i32>} : memref<736x3xbf16, #tpu.memory_space<vmem>>, vector<640x3xbf16>,
    %c1_i32 = arith.constant 1 : i32
    %13 = arith.cmpi eq, %arg2, %c1_i32 : i32
    %14 = arith.extui %13 : i1 to i32
    %c0_i32_10 = arith.constant 0 : i32
    %15 = arith.cmpi ne, %14, %c0_i32_10 : i32
    scf.if %15 {
      %cst_65 = arith.constant 0.000000e+00 : bf16
      %84 = vector.broadcast %cst_65 : bf16 to vector<40x3xbf16>
      %c688 = arith.constant 688 : index
      %c0_66 = arith.constant 0 : index
      %85 = vector.load %arg10[%c688, %c0_66] : memref<736x3xbf16, #tpu.memory_space<vmem>>, vector<40x3xbf16>
      tpu.vector_store %arg10[%c688, %c0_66], %84 {strides = array<i32>} : memref<736x3xbf16, #tpu.memory_space<vmem>>, vector<40x3xbf16>,
    } else {
    }
    %c1_i32_11 = arith.constant 1 : i32
    %16 = arith.cmpi slt, %arg2, %c1_i32_11 : i32
    %17 = arith.extui %16 : i1 to i32
    %c0_i32_12 = arith.constant 0 : i32
    %18 = arith.cmpi ne, %17, %c0_i32_12 : i32
    scf.if %18 {
      %c0_65 = arith.constant 0 : index
      %c0_66 = arith.constant 0 : index
      %c0_67 = arith.constant 0 : index
      %84 = vector.load %arg5[%c0_65, %c0_66, %c0_67] : memref<1x40x3xbf16, #tpu.memory_space<vmem>>, vector<1x40x3xbf16>
      %85 = vector.shape_cast %84 : vector<1x40x3xbf16> to vector<40x3xbf16>
      %c688 = arith.constant 688 : index
      %c0_68 = arith.constant 0 : index
      %86 = vector.load %arg10[%c688, %c0_68] : memref<736x3xbf16, #tpu.memory_space<vmem>>, vector<40x3xbf16>
      tpu.vector_store %arg10[%c688, %c0_68], %85 {strides = array<i32>} : memref<736x3xbf16, #tpu.memory_space<vmem>>, vector<40x3xbf16>,
    } else {
    }
    %cst_13 = arith.constant 0.000000e+00 : f32
    %19 = vector.broadcast %cst_13 : f32 to vector<640x32xf32>
    %c7 = arith.constant 7 : index
    %c0_14 = arith.constant 0 : index
    %20 = vector.load %arg10[%c7, %c0_14] : memref<736x3xbf16, #tpu.memory_space<vmem>>, vector<640x3xbf16>
    %c0_15 = arith.constant 0 : index
    %c0_16 = arith.constant 0 : index
    %c0_17 = arith.constant 0 : index
    %21 = vector.load %arg6[%c0_15, %c0_16, %c0_17] : memref<9x3x32xbf16, #tpu.memory_space<vmem>>, vector<1x3x32xbf16>
    %22 = vector.shape_cast %21 : vector<1x3x32xbf16> to vector<3x32xbf16>
    %cst_18 = arith.constant dense<0.000000e+00> : vector<640x32xf32>
    %23 = tpu.matmul %20, %22, %cst_18 {dimension_numbers = #tpu.dot_dimension_numbers<[1], [0], [0], [1], [0, 0, 1, 1], [], []>} : vector<640x3xbf16>, vector<3x32xbf16>, vector<640x32xf32> -> vector<640x32xf32>
    %24 = arith.addf %19, %23 : vector<640x32xf32>
    %c8 = arith.constant 8 : index
    %c0_19 = arith.constant 0 : index
    %25 = vector.load %arg10[%c8, %c0_19] : memref<736x3xbf16, #tpu.memory_space<vmem>>, vector<640x3xbf16>
    %c1 = arith.constant 1 : index
    %c0_20 = arith.constant 0 : index
    %c0_21 = arith.constant 0 : index
    %26 = vector.load %arg6[%c1, %c0_20, %c0_21] : memref<9x3x32xbf16, #tpu.memory_space<vmem>>, vector<1x3x32xbf16>
    %27 = vector.shape_cast %26 : vector<1x3x32xbf16> to vector<3x32xbf16>
    %cst_22 = arith.constant dense<0.000000e+00> : vector<640x32xf32>
    %28 = tpu.matmul %25, %27, %cst_22 {dimension_numbers = #tpu.dot_dimension_numbers<[1], [0], [0], [1], [0, 0, 1, 1], [], []>} : vector<640x3xbf16>, vector<3x32xbf16>, vector<640x32xf32> -> vector<640x32xf32>
    %29 = arith.addf %24, %28 : vector<640x32xf32>
    %c9 = arith.constant 9 : index
    %c0_23 = arith.constant 0 : index
    %30 = vector.load %arg10[%c9, %c0_23] : memref<736x3xbf16, #tpu.memory_space<vmem>>, vector<640x3xbf16>
    %c2 = arith.constant 2 : index
    %c0_24 = arith.constant 0 : index
    %c0_25 = arith.constant 0 : index
    %31 = vector.load %arg6[%c2, %c0_24, %c0_25] : memref<9x3x32xbf16, #tpu.memory_space<vmem>>, vector<1x3x32xbf16>
    %32 = vector.shape_cast %31 : vector<1x3x32xbf16> to vector<3x32xbf16>
    %cst_26 = arith.constant dense<0.000000e+00> : vector<640x32xf32>
    %33 = tpu.matmul %30, %32, %cst_26 {dimension_numbers = #tpu.dot_dimension_numbers<[1], [0], [0], [1], [0, 0, 1, 1], [], []>} : vector<640x3xbf16>, vector<3x32xbf16>, vector<640x32xf32> -> vector<640x32xf32>
    %34 = arith.addf %29, %33 : vector<640x32xf32>
    %c47 = arith.constant 47 : index
    %c0_27 = arith.constant 0 : index
    %35 = vector.load %arg10[%c47, %c0_27] : memref<736x3xbf16, #tpu.memory_space<vmem>>, vector<640x3xbf16>
    %c3 = arith.constant 3 : index
    %c0_28 = arith.constant 0 : index
    %c0_29 = arith.constant 0 : index
    %36 = vector.load %arg6[%c3, %c0_28, %c0_29] : memref<9x3x32xbf16, #tpu.memory_space<vmem>>, vector<1x3x32xbf16>
    %37 = vector.shape_cast %36 : vector<1x3x32xbf16> to vector<3x32xbf16>
    %cst_30 = arith.constant dense<0.000000e+00> : vector<640x32xf32>
    %38 = tpu.matmul %35, %37, %cst_30 {dimension_numbers = #tpu.dot_dimension_numbers<[1], [0], [0], [1], [0, 0, 1, 1], [], []>} : vector<640x3xbf16>, vector<3x32xbf16>, vector<640x32xf32> -> vector<640x32xf32>
    %39 = arith.addf %34, %38 : vector<640x32xf32>
    %c48_31 = arith.constant 48 : index
    %c0_32 = arith.constant 0 : index
    %40 = vector.load %arg10[%c48_31, %c0_32] : memref<736x3xbf16, #tpu.memory_space<vmem>>, vector<640x3xbf16>
    %c4 = arith.constant 4 : index
    %c0_33 = arith.constant 0 : index
    %c0_34 = arith.constant 0 : index
    %41 = vector.load %arg6[%c4, %c0_33, %c0_34] : memref<9x3x32xbf16, #tpu.memory_space<vmem>>, vector<1x3x32xbf16>
    %42 = vector.shape_cast %41 : vector<1x3x32xbf16> to vector<3x32xbf16>
    %cst_35 = arith.constant dense<0.000000e+00> : vector<640x32xf32>
    %43 = tpu.matmul %40, %42, %cst_35 {dimension_numbers = #tpu.dot_dimension_numbers<[1], [0], [0], [1], [0, 0, 1, 1], [], []>} : vector<640x3xbf16>, vector<3x32xbf16>, vector<640x32xf32> -> vector<640x32xf32>
    %44 = arith.addf %39, %43 : vector<640x32xf32>
    %c49 = arith.constant 49 : index
    %c0_36 = arith.constant 0 : index
    %45 = vector.load %arg10[%c49, %c0_36] : memref<736x3xbf16, #tpu.memory_space<vmem>>, vector<640x3xbf16>
    %c5 = arith.constant 5 : index
    %c0_37 = arith.constant 0 : index
    %c0_38 = arith.constant 0 : index
    %46 = vector.load %arg6[%c5, %c0_37, %c0_38] : memref<9x3x32xbf16, #tpu.memory_space<vmem>>, vector<1x3x32xbf16>
    %47 = vector.shape_cast %46 : vector<1x3x32xbf16> to vector<3x32xbf16>
    %cst_39 = arith.constant dense<0.000000e+00> : vector<640x32xf32>
    %48 = tpu.matmul %45, %47, %cst_39 {dimension_numbers = #tpu.dot_dimension_numbers<[1], [0], [0], [1], [0, 0, 1, 1], [], []>} : vector<640x3xbf16>, vector<3x32xbf16>, vector<640x32xf32> -> vector<640x32xf32>
    %49 = arith.addf %44, %48 : vector<640x32xf32>
    %c87 = arith.constant 87 : index
    %c0_40 = arith.constant 0 : index
    %50 = vector.load %arg10[%c87, %c0_40] : memref<736x3xbf16, #tpu.memory_space<vmem>>, vector<640x3xbf16>
    %c6 = arith.constant 6 : index
    %c0_41 = arith.constant 0 : index
    %c0_42 = arith.constant 0 : index
    %51 = vector.load %arg6[%c6, %c0_41, %c0_42] : memref<9x3x32xbf16, #tpu.memory_space<vmem>>, vector<1x3x32xbf16>
    %52 = vector.shape_cast %51 : vector<1x3x32xbf16> to vector<3x32xbf16>
    %cst_43 = arith.constant dense<0.000000e+00> : vector<640x32xf32>
    %53 = tpu.matmul %50, %52, %cst_43 {dimension_numbers = #tpu.dot_dimension_numbers<[1], [0], [0], [1], [0, 0, 1, 1], [], []>} : vector<640x3xbf16>, vector<3x32xbf16>, vector<640x32xf32> -> vector<640x32xf32>
    %54 = arith.addf %49, %53 : vector<640x32xf32>
    %c88 = arith.constant 88 : index
    %c0_44 = arith.constant 0 : index
    %55 = vector.load %arg10[%c88, %c0_44] : memref<736x3xbf16, #tpu.memory_space<vmem>>, vector<640x3xbf16>
    %c7_45 = arith.constant 7 : index
    %c0_46 = arith.constant 0 : index
    %c0_47 = arith.constant 0 : index
    %56 = vector.load %arg6[%c7_45, %c0_46, %c0_47] : memref<9x3x32xbf16, #tpu.memory_space<vmem>>, vector<1x3x32xbf16>
    %57 = vector.shape_cast %56 : vector<1x3x32xbf16> to vector<3x32xbf16>
    %cst_48 = arith.constant dense<0.000000e+00> : vector<640x32xf32>
    %58 = tpu.matmul %55, %57, %cst_48 {dimension_numbers = #tpu.dot_dimension_numbers<[1], [0], [0], [1], [0, 0, 1, 1], [], []>} : vector<640x3xbf16>, vector<3x32xbf16>, vector<640x32xf32> -> vector<640x32xf32>
    %59 = arith.addf %54, %58 : vector<640x32xf32>
    %c89 = arith.constant 89 : index
    %c0_49 = arith.constant 0 : index
    %60 = vector.load %arg10[%c89, %c0_49] : memref<736x3xbf16, #tpu.memory_space<vmem>>, vector<640x3xbf16>
    %c8_50 = arith.constant 8 : index
    %c0_51 = arith.constant 0 : index
    %c0_52 = arith.constant 0 : index
    %61 = vector.load %arg6[%c8_50, %c0_51, %c0_52] : memref<9x3x32xbf16, #tpu.memory_space<vmem>>, vector<1x3x32xbf16>
    %62 = vector.shape_cast %61 : vector<1x3x32xbf16> to vector<3x32xbf16>
    %cst_53 = arith.constant dense<0.000000e+00> : vector<640x32xf32>
    %63 = tpu.matmul %60, %62, %cst_53 {dimension_numbers = #tpu.dot_dimension_numbers<[1], [0], [0], [1], [0, 0, 1, 1], [], []>} : vector<640x3xbf16>, vector<3x32xbf16>, vector<640x32xf32> -> vector<640x32xf32>
    %64 = arith.addf %59, %63 : vector<640x32xf32>
    %c0_54 = arith.constant 0 : index
    %c0_55 = arith.constant 0 : index
    %65 = vector.load %arg7[%c0_54, %c0_55] : memref<1x32xf32, #tpu.memory_space<vmem>>, vector<1x32xf32>
    %66 = vector.broadcast %65 : vector<1x32xf32> to vector<640x32xf32>
    %67 = arith.addf %64, %66 : vector<640x32xf32>
    %cst_56 = arith.constant 0.000000e+00 : f32
    %68 = vector.broadcast %cst_56 : f32 to vector<640x32xf32>
    %69 = arith.cmpf oge, %67, %68 : vector<640x32xf32>
    %cst_57 = arith.constant 1.000000e-01 : f32
    %70 = vector.broadcast %cst_57 : f32 to vector<640x32xf32>
    %71 = arith.mulf %70, %67 : vector<640x32xf32>
    %72 = arith.select %69, %67, %71 : vector<640x32xi1>, vector<640x32xf32>
    %c0_58 = arith.constant 0 : index
    %c0_59 = arith.constant 0 : index
    %73 = vector.load %arg8[%c0_58, %c0_59] : memref<640x1xf32, #tpu.memory_space<vmem>>, vector<640x1xf32>
    %cst_60 = arith.constant 0.000000e+00 : f32
    %74 = vector.broadcast %cst_60 : f32 to vector<640x1xf32>
    %75 = arith.cmpf one, %73, %74 : vector<640x1xf32>
    %cst_61 = arith.constant 0.000000e+00 : f32
    %76 = vector.shape_cast %75 : vector<640x1xi1> to vector<640x1xi1>
    %77 = vector.broadcast %76 : vector<640x1xi1> to vector<640x32xi1>
    %78 = vector.broadcast %cst_61 : f32 to vector<640x32xf32>
    %79 = arith.select %77, %72, %78 : vector<640x32xi1>, vector<640x32xf32>
    %80 = arith.truncf %79 : vector<640x32xf32> to vector<640x32xbf16>
    %c0_62 = arith.constant 0 : index
    %c0_63 = arith.constant 0 : index
    %c0_64 = arith.constant 0 : index
    %81 = vector.load %arg9[%c0_62, %c0_63, %c0_64] : memref<1x640x32xbf16, #tpu.memory_space<vmem>>, vector<1x640x32xbf16>
    %82 = vector.shape_cast %81 : vector<1x640x32xbf16> to vector<640x32xbf16>
    %83 = vector.shape_cast %80 : vector<640x32xbf16> to vector<1x640x32xbf16>
    tpu.vector_store %arg9[%c0_62, %c0_63, %c0_64], %83 {strides = array<i32>} : memref<1x640x32xbf16, #tpu.memory_space<vmem>>, vector<1x640x32xbf16>,
    return
  }
  func.func @transform_0(%arg0: i32, %arg1: i32, %arg2: i32) -> (i32, i32, i32) {
    %c16_i32 = arith.constant 16 : i32
    %0 = arith.muli %arg2, %c16_i32 : i32
    %c1_i32 = arith.constant 1 : i32
    %1 = arith.subi %0, %c1_i32 : i32
    %c0_i32 = arith.constant 0 : i32
    %2 = arith.maxsi %1, %c0_i32 : i32
    %c0_i32_0 = arith.constant 0 : i32
    %c0_i32_1 = arith.constant 0 : i32
    return %arg0, %2, %c0_i32_0 : i32, i32, i32
  }
  func.func @transform_1(%arg0: i32, %arg1: i32, %arg2: i32) -> (i32, i32, i32) {
    %c0_i32 = arith.constant 0 : i32
    %c0_i32_0 = arith.constant 0 : i32
    return %arg0, %arg2, %c0_i32 : i32, i32, i32
  }
  func.func @transform_2(%arg0: i32, %arg1: i32, %arg2: i32) -> (i32, i32, i32) {
    %c16_i32 = arith.constant 16 : i32
    %0 = arith.muli %arg2, %c16_i32 : i32
    %c16_i32_0 = arith.constant 16 : i32
    %1 = arith.addi %0, %c16_i32_0 : i32
    %c31_i32 = arith.constant 31 : i32
    %2 = arith.minsi %1, %c31_i32 : i32
    %c0_i32 = arith.constant 0 : i32
    %c0_i32_1 = arith.constant 0 : i32
    return %arg0, %2, %c0_i32 : i32, i32, i32
  }
  func.func @transform_3(%arg0: i32, %arg1: i32, %arg2: i32) -> (i32, i32, i32) {
    %c0_i32 = arith.constant 0 : i32
    %c0_i32_0 = arith.constant 0 : i32
    %c0_i32_1 = arith.constant 0 : i32
    return %c0_i32, %c0_i32_0, %arg1 : i32, i32, i32
  }
  func.func @transform_4(%arg0: i32, %arg1: i32, %arg2: i32) -> (i32, i32) {
    %c0_i32 = arith.constant 0 : i32
    %c0_i32_0 = arith.constant 0 : i32
    return %c0_i32, %arg1 : i32, i32
  }
  func.func @transform_5(%arg0: i32, %arg1: i32, %arg2: i32) -> (i32, i32) {
    %c0_i32 = arith.constant 0 : i32
    %c0_i32_0 = arith.constant 0 : i32
    %c0_i32_1 = arith.constant 0 : i32
    return %c0_i32, %c0_i32_0 : i32, i32
  }
  func.func @transform_6(%arg0: i32, %arg1: i32, %arg2: i32) -> (i32, i32, i32) {
    %c0_i32 = arith.constant 0 : i32
    return %arg0, %arg2, %arg1 : i32, i32, i32
  }
}

</mosaic_0001>

<llo_original>
// kernel: tpu_custom_call.1
$region0: #{tpu_custom_call.1}
  #allocation0 [shape = 'u32[]', space=smem, size = 0x4, offset = 0x4, fixed_abs, tag = 'smem constant byte address 0x4 - core index']
  #allocation1 [shape = 'u32[144,128]{1,0:T(1,128)}', space=vmem, size = 0x12000, scoped, tag = 'internal scratch']
  #allocation2 [shape = 'bf16[736,3]{1,0:T(16,128)(2,1)}', space=vmem, size = 0x2e000, scoped, tag = 'scratch operand']
  %s0 = inlined_call_operand.vmem [shape: bf16[2,1280,3], index: 0, kind: input, shape index: {}]
  %s1 = inlined_call_operand.vmem [shape: bf16[2,1280,3], index: 1, kind: input, shape index: {}]
  %s2 = inlined_call_operand.vmem [shape: bf16[2,1280,3], index: 2, kind: input, shape index: {}]
  %s3 = inlined_call_operand.vmem [shape: bf16[9,3,32], index: 3, kind: input, shape index: {}]
  %s4 = inlined_call_operand.vmem [shape: f32[1,32], index: 4, kind: input, shape index: {}]
  %s5 = inlined_call_operand.vmem [shape: f32[640,1], index: 5, kind: input, shape index: {}]
  %s6 = inlined_call_operand.vmem [shape: bf16[2,1280,32], index: 6, kind: output, shape index: {}]
  %s7 = sld [smem:[#allocation0]]
  $region73: #{tpu_custom_call.1} parent=0
    _
  %s9 = ssub.s32 1, %s7
  %s10 = scalar_select 0, %s9, %s7
  loop: start=0, step=1, limit=6
  $region2: #{tpu_custom_call.1} parent=0 // loop_pre_header
    _
  $region3: #{tpu_custom_call.1} parent=0 // loop_header
    %s12 = sphi 0, %s16
    %p13 = scmp.ge.s32.totalorder %s12, 6
    %s19 = sphi 0, %s38
    %s20 = sphi 0, %s34
    %s21 = sphi 0, %s30
    %s22 = sphi 0, %s19
    %s23 = sphi 0, %s20
    %s24 = sphi 0, %s21
    %s25 = sphi 0, %s22
    %s26 = sphi 0, %s23
    %s27 = sphi 0, %s24
    %s51 = sphi 0, %s53
    %s54 = sphi 0, %s51
    %s55 = sphi 0, %s54
    %s71 = sphi 0, %s55
    %s79 = sphi 0, %s81
    %s82 = sphi 0, %s79
    %s83 = sphi 0, %s82
    %s99 = sphi 0, %s83
    %s115 = sphi 0, %s117
    %s118 = sphi 0, %s115
    %s119 = sphi 0, %s118
    %s135 = sphi 0, %s119
    %s141 = sphi 0, %s143
    %s144 = sphi 0, %s141
    %s145 = sphi 0, %s144
    %s161 = sphi 0, %s145
    %s167 = sphi 0, %s169
    %s170 = sphi 0, %s167
    %s171 = sphi 0, %s170
    %s187 = sphi 0, %s171
    %s191 = sphi 0, %s191
    %s193 = sphi 0, %s191
    %s194 = sphi 0, %s193
    %s208 = sphi 0, %s194
    %s218 = sphi 0, %s220
    %s221 = sphi 0, %s218
    %s222 = sphi 0, %s221
    %s238 = sphi 0, %s222
  $region4: #{tpu_custom_call.1} parent=0 // loop_header_branch
    %15 = sbr.rel (%p13) target = $region8
  $region5: #{tpu_custom_call.1} parent=0 // loop_body
    %s17 = ssub.s32 %s12, 1
    %s18 = ssub.s32 %s12, 2
    %s28 = sadd.s32 1, %s21
    %p29 = scmp.ge.s32.totalorder %s28, 2
    %s30 = scalar_select %p29, 0, %s28
    %s31 = sadd.s32 1, %s20
    %s32 = scalar_select %p29, %s31, %s20
    %p33 = scmp.ge.s32.totalorder %s32, 1
    %s34 = scalar_select %p33, 0, %s32
    %s35 = sadd.s32 1, %s19
    %s36 = scalar_select %p33, %s35, %s19
    %p37 = scmp.ge.s32.totalorder %s36, 2
    %s38 = scalar_select %p37, 0, %s36
    %s39 = smul.u32 %s21, 16
    %s40 = ssub.s32 %s39, 1
    %p41 = scmp.gt.s32.totalorder %s40, 0
    %s42 = scalar_select %p41, %s40, 0
    %s43 = smul.u32 %s30, 16
    %s44 = ssub.s32 %s43, 1
    %p45 = scmp.gt.s32.totalorder %s44, 0
    %s46 = scalar_select %p45, %s44, 0
    %s47 = ssub.s32 %s19, %s38
    %s48 = ssub.s32 %s42, %s46
    %s49 = sor.u32 %s47, %s48
    %p50 = scmp.eq.s32.totalorder %s49, 0
    %s52 = sadd.s32 %s51, 1
    %s53 = scalar_select %p50, %s51, %s52
    %p56 = pneg %p50
    %p57 = scmp.eq.s32.totalorder %s12, 3
    %p58 = por %p56, %p57
    %p59 = scmp.ne.s32.totalorder %s51, %s54
    %p60 = scmp.eq.s32.totalorder %s12, 0
    %p61 = por %p59, %p60
    %p62 = scmp.ne.s32.totalorder %s51, %s54
    %p63 = scmp.eq.s32.totalorder %s17, 3
    %p64 = por %p62, %p63
    %p65 = scmp.ne.s32.totalorder %s54, %s55
    %p66 = scmp.eq.s32.totalorder %s17, 0
    %p67 = por %p65, %p66
    %p68 = scmp.ne.s32.totalorder %s54, %s55
    %p69 = scmp.eq.s32.totalorder %s18, 3
    %p70 = por %p68, %p69
    %p72 = scmp.ne.s32.totalorder %s55, %s71
    %p73 = scmp.eq.s32.totalorder %s18, 0
    %p74 = por %p72, %p73
    %s75 = ssub.s32 %s19, %s38
    %s76 = ssub.s32 %s21, %s30
    %s77 = sor.u32 %s75, %s76
    %p78 = scmp.eq.s32.totalorder %s77, 0
    %s80 = sadd.s32 %s79, 1
    %s81 = scalar_select %p78, %s79, %s80
    %p84 = pneg %p78
    %p85 = scmp.eq.s32.totalorder %s12, 3
    %p86 = por %p84, %p85
    %p87 = scmp.ne.s32.totalorder %s79, %s82
    %p88 = scmp.eq.s32.totalorder %s12, 0
    %p89 = por %p87, %p88
    %p90 = scmp.ne.s32.totalorder %s79, %s82
    %p91 = scmp.eq.s32.totalorder %s17, 3
    %p92 = por %p90, %p91
    %p93 = scmp.ne.s32.totalorder %s82, %s83
    %p94 = scmp.eq.s32.totalorder %s17, 0
    %p95 = por %p93, %p94
    %p96 = scmp.ne.s32.totalorder %s82, %s83
    %p97 = scmp.eq.s32.totalorder %s18, 3
    %p98 = por %p96, %p97
    %p100 = scmp.ne.s32.totalorder %s83, %s99
    %p101 = scmp.eq.s32.totalorder %s18, 0
    %p102 = por %p100, %p101
    %s103 = smul.u32 %s21, 16
    %s104 = sadd.s32 %s103, 16
    %p105 = scmp.lt.s32.totalorder %s104, 31
    %s106 = scalar_select %p105, %s104, 31
    %s107 = smul.u32 %s30, 16
    %s108 = sadd.s32 %s107, 16
    %p109 = scmp.lt.s32.totalorder %s108, 31
    %s110 = scalar_select %p109, %s108, 31
    %s111 = ssub.s32 %s19, %s38
    %s112 = ssub.s32 %s106, %s110
    %s113 = sor.u32 %s111, %s112
    %p114 = scmp.eq.s32.totalorder %s113, 0
    %s116 = sadd.s32 %s115, 1
    %s117 = scalar_select %p114, %s115, %s116
    %p120 = pneg %p114
    %p121 = scmp.eq.s32.totalorder %s12, 3
    %p122 = por %p120, %p121
    %p123 = scmp.ne.s32.totalorder %s115, %s118
    %p124 = scmp.eq.s32.totalorder %s12, 0
    %p125 = por %p123, %p124
    %p126 = scmp.ne.s32.totalorder %s115, %s118
    %p127 = scmp.eq.s32.totalorder %s17, 3
    %p128 = por %p126, %p127
    %p129 = scmp.ne.s32.totalorder %s118, %s119
    %p130 = scmp.eq.s32.totalorder %s17, 0
    %p131 = por %p129, %p130
    %p132 = scmp.ne.s32.totalorder %s118, %s119
    %p133 = scmp.eq.s32.totalorder %s18, 3
    %p134 = por %p132, %p133
    %p136 = scmp.ne.s32.totalorder %s119, %s135
    %p137 = scmp.eq.s32.totalorder %s18, 0
    %p138 = por %p136, %p137
    %s139 = ssub.s32 %s20, %s34
    %p140 = scmp.eq.s32.totalorder %s139, 0
    %s142 = sadd.s32 %s141, 1
    %s143 = scalar_select %p140, %s141, %s142
    %p146 = pneg %p140
    %p147 = scmp.eq.s32.totalorder %s12, 3
    %p148 = por %p146, %p147
    %p149 = scmp.ne.s32.totalorder %s141, %s144
    %p150 = scmp.eq.s32.totalorder %s12, 0
    %p151 = por %p149, %p150
    %p152 = scmp.ne.s32.totalorder %s141, %s144
    %p153 = scmp.eq.s32.totalorder %s17, 3
    %p154 = por %p152, %p153
    %p155 = scmp.ne.s32.totalorder %s144, %s145
    %p156 = scmp.eq.s32.totalorder %s17, 0
    %p157 = por %p155, %p156
    %p158 = scmp.ne.s32.totalorder %s144, %s145
    %p159 = scmp.eq.s32.totalorder %s18, 3
    %p160 = por %p158, %p159
    %p162 = scmp.ne.s32.totalorder %s145, %s161
    %p163 = scmp.eq.s32.totalorder %s18, 0
    %p164 = por %p162, %p163
    %s165 = ssub.s32 %s20, %s34
    %p166 = scmp.eq.s32.totalorder %s165, 0
    %s168 = sadd.s32 %s167, 1
    %s169 = scalar_select %p166, %s167, %s168
    %p172 = pneg %p166
    %p173 = scmp.eq.s32.totalorder %s12, 3
    %p174 = por %p172, %p173
    %p175 = scmp.ne.s32.totalorder %s167, %s170
    %p176 = scmp.eq.s32.totalorder %s12, 0
    %p177 = por %p175, %p176
    %p178 = scmp.ne.s32.totalorder %s167, %s170
    %p179 = scmp.eq.s32.totalorder %s17, 3
    %p180 = por %p178, %p179
    %p181 = scmp.ne.s32.totalorder %s170, %s171
    %p182 = scmp.eq.s32.totalorder %s17, 0
    %p183 = por %p181, %p182
    %p184 = scmp.ne.s32.totalorder %s170, %s171
    %p185 = scmp.eq.s32.totalorder %s18, 3
    %p186 = por %p184, %p185
    %p188 = scmp.ne.s32.totalorder %s171, %s187
    %p189 = scmp.eq.s32.totalorder %s18, 0
    %p190 = por %p188, %p189
    %s192 = sadd.s32 %s191, 1
    %p195 = scmp.eq.s32.totalorder %s12, 3
    %p196 = scmp.ne.s32.totalorder %s191, %s193
    %p197 = scmp.eq.s32.totalorder %s12, 0
    %p198 = por %p196, %p197
    %p199 = scmp.ne.s32.totalorder %s191, %s193
    %p200 = scmp.eq.s32.totalorder %s17, 3
    %p201 = por %p199, %p200
    %p202 = scmp.ne.s32.totalorder %s193, %s194
    %p203 = scmp.eq.s32.totalorder %s17, 0
    %p204 = por %p202, %p203
    %p205 = scmp.ne.s32.totalorder %s193, %s194
    %p206 = scmp.eq.s32.totalorder %s18, 3
    %p207 = por %p205, %p206
    %p209 = scmp.ne.s32.totalorder %s194, %s208
    %p210 = scmp.eq.s32.totalorder %s18, 0
    %p211 = por %p209, %p210
    %s212 = ssub.s32 %s19, %s38
    %s213 = ssub.s32 %s21, %s30
    %s214 = sor.u32 %s212, %s213
    %s215 = ssub.s32 %s20, %s34
    %s216 = sor.u32 %s214, %s215
    %p217 = scmp.eq.s32.totalorder %s216, 0
    %s219 = sadd.s32 %s218, 1
    %s220 = scalar_select %p217, %s218, %s219
    %p223 = pneg %p217
    %p224 = scmp.eq.s32.totalorder %s12, 3
    %p225 = por %p223, %p224
    %p226 = scmp.ne.s32.totalorder %s218, %s221
    %p227 = scmp.eq.s32.totalorder %s12, 0
    %p228 = por %p226, %p227
    %p229 = scmp.ne.s32.totalorder %s218, %s221
    %p230 = scmp.eq.s32.totalorder %s17, 3
    %p231 = por %p229, %p230
    %p232 = scmp.ne.s32.totalorder %s221, %s222
    %p233 = scmp.eq.s32.totalorder %s17, 0
    %p234 = por %p232, %p233
    %p235 = scmp.ne.s32.totalorder %s221, %s222
    %p236 = scmp.eq.s32.totalorder %s18, 3
    %p237 = por %p235, %p236
    %p239 = scmp.ne.s32.totalorder %s222, %s238
    %p240 = scmp.eq.s32.totalorder %s18, 0
    %p241 = por %p239, %p240
    %p242 = scmp.le.s32.totalorder 1, %s12
    %p243 = scmp.lt.s32.totalorder %s12, 5
    %p244 = pnand %p242, %p243
    %p245 = pneg %p244
    // Predicated region
    $region9: #{tpu_custom_call.1} parent=5 // pred_check
      _
    $region10: #{tpu_custom_call.1} parent=5 // pred_check_branch
      %247 = sbr.rel (%p244) target = $region12
    $region11: #{tpu_custom_call.1} parent=5 // pred_region
      %s248 = ssub.s32 %s12, 1
      // Predicated region
      $region13: #{tpu_custom_call.1} parent=11 // pred_check
        %p249 = pneg %p157
      $region14: #{tpu_custom_call.1} parent=11 // pred_check_branch
        %251 = sbr.rel (%p249) target = $region16
      $region15: #{tpu_custom_call.1} parent=11 // pred_region
        %p252 = scmp.lt.s32.totalorder %s23, 0
        %s253 = scalar_select %p252, %s23, 0
        %s254 = smul.addr %s253, 2
        %s255 = scalar_lea.vmem %s3, %s254
      $region16: #{tpu_custom_call.1} parent=11 // pred_fallthru
        _
      // Predicated region
      $region17: #{tpu_custom_call.1} parent=11 // pred_check
        %p256 = pneg %p183
      $region18: #{tpu_custom_call.1} parent=11 // pred_check_branch
        %258 = sbr.rel (%p256) target = $region20
      $region19: #{tpu_custom_call.1} parent=11 // pred_region
        %p259 = scmp.lt.s32.totalorder %s23, 0
        %s260 = scalar_select %p259, %s23, 0
        %s261 = scalar_lea.vmem %s4, %s260
      $region20: #{tpu_custom_call.1} parent=11 // pred_fallthru
        _
      // Predicated region
      $region21: #{tpu_custom_call.1} parent=11 // pred_check
        %p262 = pneg %p204
      $region22: #{tpu_custom_call.1} parent=11 // pred_check_branch
        %264 = sbr.rel (%p262) target = $region24
      $region23: #{tpu_custom_call.1} parent=11 // pred_region
        _
      $region24: #{tpu_custom_call.1} parent=11 // pred_fallthru
        _
    $region12: #{tpu_custom_call.1} parent=5 // pred_fallthru
      _
    %p265 = scmp.lt.s32.totalorder %s12, 4
    // Predicated region
    $region25: #{tpu_custom_call.1} parent=5 // pred_check
      %p266 = pneg %p265
    $region26: #{tpu_custom_call.1} parent=5 // pred_check_branch
      %268 = sbr.rel (%p266) target = $region28
    $region27: #{tpu_custom_call.1} parent=5 // pred_region
      // Predicated region
      $region29: #{tpu_custom_call.1} parent=27 // pred_check
        %p269 = pneg %p61
      $region30: #{tpu_custom_call.1} parent=27 // pred_check_branch
        %271 = sbr.rel (%p269) target = $region32
      $region31: #{tpu_custom_call.1} parent=27 // pred_region
        %s272 = smul.u32 %s21, 16
        %s273 = ssub.s32 %s272, 1
        %p274 = scmp.gt.s32.totalorder %s273, 0
        %s275 = scalar_select %p274, %s273, 0
        %s276 = smul.u32 5, %s275
        %p277 = scmp.lt.s32.totalorder %s19, 1
        %s278 = scalar_select %p277, %s19, 1
        %p279 = scmp.lt.s32.totalorder %s276, 159
        %s280 = scalar_select %p279, %s276, 159
        %s281 = smul.addr %s278, 160
        %s282 = sadd.s32 %s280, %s281
        %s283 = smul.addr %s282, 4
        %s284 = scalar_lea.vmem %s0, %s283
        %s285 = smul.u32 %s21, 16
        %s286 = ssub.s32 %s285, 1
        %p287 = scmp.gt.s32.totalorder %s286, 0
        %s288 = scalar_select %p287, %s286, 0
        %s289 = smul.u32 5, %s288
      $region32: #{tpu_custom_call.1} parent=27 // pred_fallthru
        _
      // Predicated region
      $region33: #{tpu_custom_call.1} parent=27 // pred_check
        %p290 = pneg %p89
      $region34: #{tpu_custom_call.1} parent=27 // pred_check_branch
        %292 = sbr.rel (%p290) target = $region36
      $region35: #{tpu_custom_call.1} parent=27 // pred_region
        %s293 = smul.u32 80, %s21
        %p294 = scmp.lt.s32.totalorder %s19, 1
        %s295 = scalar_select %p294, %s19, 1
        %p296 = scmp.lt.s32.totalorder %s293, 159
        %s297 = scalar_select %p296, %s293, 159
        %s298 = smul.addr %s295, 160
        %s299 = sadd.s32 %s297, %s298
        %s300 = smul.addr %s299, 4
        %s301 = scalar_lea.vmem %s1, %s300
        %s302 = smul.u32 80, %s21
      $region36: #{tpu_custom_call.1} parent=27 // pred_fallthru
        _
      // Predicated region
      $region37: #{tpu_custom_call.1} parent=27 // pred_check
        %p303 = pneg %p125
      $region38: #{tpu_custom_call.1} parent=27 // pred_check_branch
        %305 = sbr.rel (%p303) target = $region40
      $region39: #{tpu_custom_call.1} parent=27 // pred_region
        %s306 = smul.u32 %s21, 16
        %s307 = sadd.s32 %s306, 16
        %p308 = scmp.lt.s32.totalorder %s307, 31
        %s309 = scalar_select %p308, %s307, 31
        %s310 = smul.u32 5, %s309
        %p311 = scmp.lt.s32.totalorder %s19, 1
        %s312 = scalar_select %p311, %s19, 1
        %p313 = scmp.lt.s32.totalorder %s310, 159
        %s314 = scalar_select %p313, %s310, 159
        %s315 = smul.addr %s312, 160
        %s316 = sadd.s32 %s314, %s315
        %s317 = smul.addr %s316, 4
        %s318 = scalar_lea.vmem %s2, %s317
        %s319 = smul.u32 %s21, 16
        %s320 = sadd.s32 %s319, 16
        %p321 = scmp.lt.s32.totalorder %s320, 31
        %s322 = scalar_select %p321, %s320, 31
        %s323 = smul.u32 5, %s322
      $region40: #{tpu_custom_call.1} parent=27 // pred_fallthru
        _
    $region28: #{tpu_custom_call.1} parent=5 // pred_fallthru
      _
    %p324 = scmp.le.s32.totalorder 1, %s12
    %p325 = scmp.lt.s32.totalorder %s12, 5
    %p326 = pnand %p324, %p325
    %p327 = pneg %p326
    // Predicated region
    $region41: #{tpu_custom_call.1} parent=5 // pred_check
      _
    $region42: #{tpu_custom_call.1} parent=5 // pred_check_branch
      %329 = sbr.rel (%p326) target = $region44
    $region43: #{tpu_custom_call.1} parent=5 // pred_region
      %s330 = ssub.s32 %s12, 1
      %s331 = smul.u32 %s24, 16
      %s332 = ssub.s32 %s331, 1
      %p333 = scmp.gt.s32.totalorder %s332, 0
      %s334 = scalar_select %p333, %s332, 0
      %s335 = smul.u32 5, %s334
      %p336 = scmp.lt.s32.totalorder %s22, 1
      %s337 = scalar_select %p336, %s22, 1
      %p338 = scmp.lt.s32.totalorder %s335, 159
      %s339 = scalar_select %p338, %s335, 159
      %s340 = smul.addr %s337, 160
      %s341 = sadd.s32 %s339, %s340
      %s342 = smul.addr %s341, 4
      %s343 = scalar_lea.vmem %s0, %s342
      %p344 = pneg %p67
      %p345 = pneg %p64
      %s346 = smul.u32 80, %s24
      %p347 = scmp.lt.s32.totalorder %s22, 1
      %s348 = scalar_select %p347, %s22, 1
      %p349 = scmp.lt.s32.totalorder %s346, 159
      %s350 = scalar_select %p349, %s346, 159
      %s351 = smul.addr %s348, 160
      %s352 = sadd.s32 %s350, %s351
      %s353 = smul.addr %s352, 4
      %s354 = scalar_lea.vmem %s1, %s353
      %p355 = pneg %p95
      %p356 = pneg %p92
      %s357 = smul.u32 %s24, 16
      %s358 = sadd.s32 %s357, 16
      %p359 = scmp.lt.s32.totalorder %s358, 31
      %s360 = scalar_select %p359, %s358, 31
      %s361 = smul.u32 5, %s360
      %p362 = scmp.lt.s32.totalorder %s22, 1
      %s363 = scalar_select %p362, %s22, 1
      %p364 = scmp.lt.s32.totalorder %s361, 159
      %s365 = scalar_select %p364, %s361, 159
      %s366 = smul.addr %s363, 160
      %s367 = sadd.s32 %s365, %s366
      %s368 = smul.addr %s367, 4
      %s369 = scalar_lea.vmem %s2, %s368
      %p370 = pneg %p131
      %p371 = pneg %p128
      %p372 = scmp.lt.s32.totalorder %s23, 0
      %s373 = scalar_select %p372, %s23, 0
      %s374 = smul.addr %s373, 2
      %s375 = scalar_lea.vmem %s3, %s374
      %p376 = pneg %p157
      %p377 = pneg %p154
      %p378 = scmp.lt.s32.totalorder %s23, 0
      %s379 = scalar_select %p378, %s23, 0
      %s380 = scalar_lea.vmem %s4, %s379
      %p381 = pneg %p183
      %p382 = pneg %p180
      %p383 = pneg %p204
      %p384 = pneg %p201
      %p385 = pneg %p234
      %p386 = pneg %p231
      %s387 = smul.u32 80, %s24
      %p388 = scmp.lt.s32.totalorder %s22, 1
      %s389 = scalar_select %p388, %s22, 1
      %p390 = scmp.lt.s32.totalorder %s387, 159
      %s391 = scalar_select %p390, %s387, 159
      %p392 = scmp.lt.s32.totalorder %s23, 0
      %s393 = scalar_select %p392, %s23, 0
      %s394 = sadd.s32 %s393, %s391
      %s395 = smul.addr %s389, 160
      %s396 = sadd.s32 %s394, %s395
      %s397 = smul.addr %s396, 4
      %s398 = scalar_lea.vmem %s6, %s397
      %s399 = smul.u32 %s24, 16
      %s400 = ssub.s32 %s399, 1
      %p401 = scmp.gt.s32.totalorder %s400, 0
      %s402 = scalar_select %p401, %s400, 0
      %s403 = smul.u32 5, %s402
      %p404 = scmp.lt.s32.totalorder %s22, 1
      %s405 = scalar_select %p404, %s22, 1
      %p406 = scmp.lt.s32.totalorder %s403, 159
      %s407 = scalar_select %p406, %s403, 159
      %s408 = smul.addr %s405, 160
      %s409 = sadd.s32 %s407, %s408
      %s410 = smul.addr %s409, 4
      %s411 = scalar_lea.vmem %s0, %s410
      %s412 = smul.u32 %s24, 16
      %s413 = ssub.s32 %s412, 1
      %p414 = scmp.gt.s32.totalorder %s413, 0
      %s415 = scalar_select %p414, %s413, 0
      %s416 = smul.u32 5, %s415
      %s417 = smul.u32 80, %s24
      %p418 = scmp.lt.s32.totalorder %s22, 1
      %s419 = scalar_select %p418, %s22, 1
      %p420 = scmp.lt.s32.totalorder %s417, 159
      %s421 = scalar_select %p420, %s417, 159
      %s422 = smul.addr %s419, 160
      %s423 = sadd.s32 %s421, %s422
      %s424 = smul.addr %s423, 4
      %s425 = scalar_lea.vmem %s1, %s424
      %s426 = smul.u32 80, %s24
      %s427 = smul.u32 %s24, 16
      %s428 = sadd.s32 %s427, 16
      %p429 = scmp.lt.s32.totalorder %s428, 31
      %s430 = scalar_select %p429, %s428, 31
      %s431 = smul.u32 5, %s430
      %p432 = scmp.lt.s32.totalorder %s22, 1
      %s433 = scalar_select %p432, %s22, 1
      %p434 = scmp.lt.s32.totalorder %s431, 159
      %s435 = scalar_select %p434, %s431, 159
      %s436 = smul.addr %s433, 160
      %s437 = sadd.s32 %s435, %s436
      %s438 = smul.addr %s437, 4
      %s439 = scalar_lea.vmem %s2, %s438
      %s440 = smul.u32 %s24, 16
      %s441 = sadd.s32 %s440, 16
      %p442 = scmp.lt.s32.totalorder %s441, 31
      %s443 = scalar_select %p442, %s441, 31
      %s444 = smul.u32 5, %s443
      %p445 = scmp.lt.s32.totalorder %s23, 0
      %s446 = scalar_select %p445, %s23, 0
      %s447 = smul.addr %s446, 2
      %s448 = scalar_lea.vmem %s3, %s447
      %p449 = scmp.lt.s32.totalorder %s23, 0
      %s450 = scalar_select %p449, %s23, 0
      %s451 = scalar_lea.vmem %s4, %s450
      %s452 = smul.u32 80, %s24
      %p453 = scmp.lt.s32.totalorder %s22, 1
      %s454 = scalar_select %p453, %s22, 1
      %p455 = scmp.lt.s32.totalorder %s452, 159
      %s456 = scalar_select %p455, %s452, 159
      %p457 = scmp.lt.s32.totalorder %s23, 0
      %s458 = scalar_select %p457, %s23, 0
      %s459 = sadd.s32 %s458, %s456
      %s460 = smul.addr %s454, 160
      %s461 = sadd.s32 %s459, %s460
      %s462 = smul.addr %s461, 4
      %s463 = scalar_lea.vmem %s6, %s462
      %s464 = smul.u32 80, %s24
      %vm466 = vcmask 19456
      %467 = vst.msk [vmem:[#allocation2] sm:$0xf] %vm466, 0
      %vm468 = vcmask 23556
      %469 = vst.msk [vmem:[#allocation2 + $0x168] sm:$0xf0] %vm468, 0
      %p470 = scmp.eq.s32.totalorder %s24, 0
      // Predicated region
      $region45: #{tpu_custom_call.1} parent=43 // pred_check
        %p471 = pneg %p470
      $region46: #{tpu_custom_call.1} parent=43 // pred_check_branch
        %473 = sbr.rel (%p471) target = $region48
      $region47: #{tpu_custom_call.1} parent=43 // pred_region
        %474 = vst.msk [vmem:[#allocation2] sm:$0xf0] %vm468, 0
        %vm475 = vcmask 23552
        %476 = vst.msk [vmem:[#allocation2 + $0x8] sm:$0xff] %vm475, 0
        %477 = vst.msk [vmem:[#allocation2 + $0x10] sm:$0xff] %vm475, 0
      $region48: #{tpu_custom_call.1} parent=43 // pred_fallthru
        _
      %p478 = scmp.gt.s32.totalorder %s24, 0
      // Predicated region
      $region49: #{tpu_custom_call.1} parent=43 // pred_check
        %p479 = pneg %p478
      $region50: #{tpu_custom_call.1} parent=43 // pred_check_branch
        %481 = sbr.rel (%p479) target = $region52
      $region51: #{tpu_custom_call.1} parent=43 // pred_region
        %v482 = vld [vmem:[%s411] sm:$0xf]
        %v483 = vld [vmem:[%s411 + $0x4] sm:$0xf]
        %v484 = vld [vmem:[%s411 + $0x8] sm:$0xf]
        %v485 = vld [vmem:[%s411 + $0xc] sm:$0xf]
        %v486 = vld [vmem:[%s411 + $0x10] sm:$0xf]
        %v492 = vunpack.c.l.b16 %v482
        %v493 = vunpack.c.l.b16 %v483
        %v494 = vunpack.c.l.b16 %v484
        %v495 = vunpack.c.l.b16 %v485
        %v496 = vunpack.c.l.b16 %v486
        %v497 = vpack.c.b16 %v492, %v492
        %v498 = vpack.c.b16 %v494, %v493
        %v499 = vpack.c.b16 %v496, %v495
        %503 = vst.msk [vmem:[#allocation2] sm:$0xf0] %vm468, %v497
        %vm504 = vcmask 23552
        %505 = vst.msk [vmem:[#allocation2 + $0x8] sm:$0xff] %vm504, %v498
        %506 = vst.msk [vmem:[#allocation2 + $0x10] sm:$0xff] %vm504, %v499
      $region52: #{tpu_custom_call.1} parent=43 // pred_fallthru
        _
      %v507 = vld [vmem:[%s425] sm:$0xf]
      %v508 = vld [vmem:[%s425 + $0x4] sm:$0xf]
      %v509 = vld [vmem:[%s425 + $0x8] sm:$0xf]
      %v510 = vld [vmem:[%s425 + $0xc] sm:$0xf]
      %v511 = vld [vmem:[%s425 + $0x10] sm:$0xf]
      %v512 = vld [vmem:[%s425 + $0x14] sm:$0xf]
      %v513 = vld [vmem:[%s425 + $0x18] sm:$0xf]
      %v514 = vld [vmem:[%s425 + $0x1c] sm:$0xf]
      %v515 = vld [vmem:[%s425 + $0x20] sm:$0xf]
      %v516 = vld [vmem:[%s425 + $0x24] sm:$0xf]
      %v517 = vld [vmem:[%s425 + $0x28] sm:$0xf]
      %v518 = vld [vmem:[%s425 + $0x2c] sm:$0xf]
      %v519 = vld [vmem:[%s425 + $0x30] sm:$0xf]
      %v520 = vld [vmem:[%s425 + $0x34] sm:$0xf]
      %v521 = vld [vmem:[%s425 + $0x38] sm:$0xf]
      %v522 = vld [vmem:[%s425 + $0x3c] sm:$0xf]
      %v523 = vld [vmem:[%s425 + $0x40] sm:$0xf]
      %v524 = vld [vmem:[%s425 + $0x44] sm:$0xf]
      %v525 = vld [vmem:[%s425 + $0x48] sm:$0xf]
      %v526 = vld [vmem:[%s425 + $0x4c] sm:$0xf]
      %v527 = vld [vmem:[%s425 + $0x50] sm:$0xf]
      %v528 = vld [vmem:[%s425 + $0x54] sm:$0xf]
      %v529 = vld [vmem:[%s425 + $0x58] sm:$0xf]
      %v530 = vld [vmem:[%s425 + $0x5c] sm:$0xf]
      %v531 = vld [vmem:[%s425 + $0x60] sm:$0xf]
      %v532 = vld [vmem:[%s425 + $0x64] sm:$0xf]
      %v533 = vld [vmem:[%s425 + $0x68] sm:$0xf]
      %v534 = vld [vmem:[%s425 + $0x6c] sm:$0xf]
      %v535 = vld [vmem:[%s425 + $0x70] sm:$0xf]
      %v536 = vld [vmem:[%s425 + $0x74] sm:$0xf]
      %v537 = vld [vmem:[%s425 + $0x78] sm:$0xf]
      %v538 = vld [vmem:[%s425 + $0x7c] sm:$0xf]
      %v539 = vld [vmem:[%s425 + $0x80] sm:$0xf]
      %v540 = vld [vmem:[%s425 + $0x84] sm:$0xf]
      %v541 = vld [vmem:[%s425 + $0x88] sm:$0xf]
      %v542 = vld [vmem:[%s425 + $0x8c] sm:$0xf]
      %v543 = vld [vmem:[%s425 + $0x90] sm:$0xf]
      %v544 = vld [vmem:[%s425 + $0x94] sm:$0xf]
      %v545 = vld [vmem:[%s425 + $0x98] sm:$0xf]
      %v546 = vld [vmem:[%s425 + $0x9c] sm:$0xf]
      %v547 = vld [vmem:[%s425 + $0xa0] sm:$0xf]
      %v548 = vld [vmem:[%s425 + $0xa4] sm:$0xf]
      %v549 = vld [vmem:[%s425 + $0xa8] sm:$0xf]
      %v550 = vld [vmem:[%s425 + $0xac] sm:$0xf]
      %v551 = vld [vmem:[%s425 + $0xb0] sm:$0xf]
      %v552 = vld [vmem:[%s425 + $0xb4] sm:$0xf]
      %v553 = vld [vmem:[%s425 + $0xb8] sm:$0xf]
      %v554 = vld [vmem:[%s425 + $0xbc] sm:$0xf]
      %v555 = vld [vmem:[%s425 + $0xc0] sm:$0xf]
      %v556 = vld [vmem:[%s425 + $0xc4] sm:$0xf]
      %v557 = vld [vmem:[%s425 + $0xc8] sm:$0xf]
      %v558 = vld [vmem:[%s425 + $0xcc] sm:$0xf]
      %v559 = vld [vmem:[%s425 + $0xd0] sm:$0xf]
      %v560 = vld [vmem:[%s425 + $0xd4] sm:$0xf]
      %v561 = vld [vmem:[%s425 + $0xd8] sm:$0xf]
      %v562 = vld [vmem:[%s425 + $0xdc] sm:$0xf]
      %v563 = vld [vmem:[%s425 + $0xe0] sm:$0xf]
      %v564 = vld [vmem:[%s425 + $0xe4] sm:$0xf]
      %v565 = vld [vmem:[%s425 + $0xe8] sm:$0xf]
      %v566 = vld [vmem:[%s425 + $0xec] sm:$0xf]
      %v567 = vld [vmem:[%s425 + $0xf0] sm:$0xf]
      %v568 = vld [vmem:[%s425 + $0xf4] sm:$0xf]
      %v569 = vld [vmem:[%s425 + $0xf8] sm:$0xf]
      %v570 = vld [vmem:[%s425 + $0xfc] sm:$0xf]
      %v571 = vld [vmem:[%s425 + $0x100] sm:$0xf]
      %v572 = vld [vmem:[%s425 + $0x104] sm:$0xf]
      %v573 = vld [vmem:[%s425 + $0x108] sm:$0xf]
      %v574 = vld [vmem:[%s425 + $0x10c] sm:$0xf]
      %v575 = vld [vmem:[%s425 + $0x110] sm:$0xf]
      %v576 = vld [vmem:[%s425 + $0x114] sm:$0xf]
      %v577 = vld [vmem:[%s425 + $0x118] sm:$0xf]
      %v578 = vld [vmem:[%s425 + $0x11c] sm:$0xf]
      %v579 = vld [vmem:[%s425 + $0x120] sm:$0xf]
      %v580 = vld [vmem:[%s425 + $0x124] sm:$0xf]
      %v581 = vld [vmem:[%s425 + $0x128] sm:$0xf]
      %v582 = vld [vmem:[%s425 + $0x12c] sm:$0xf]
      %v583 = vld [vmem:[%s425 + $0x130] sm:$0xf]
      %v584 = vld [vmem:[%s425 + $0x134] sm:$0xf]
      %v585 = vld [vmem:[%s425 + $0x138] sm:$0xf]
      %v586 = vld [vmem:[%s425 + $0x13c] sm:$0xf]
      %v667 = vunpack.c.l.b16 %v507
      %v668 = vunpack.c.l.b16 %v508
      %v669 = vunpack.c.l.b16 %v509
      %v670 = vunpack.c.l.b16 %v510
      %v671 = vunpack.c.l.b16 %v511
      %v672 = vunpack.c.l.b16 %v512
      %v673 = vunpack.c.l.b16 %v513
      %v674 = vunpack.c.l.b16 %v514
      %v675 = vunpack.c.l.b16 %v515
      %v676 = vunpack.c.l.b16 %v516
      %v677 = vunpack.c.l.b16 %v517
      %v678 = vunpack.c.l.b16 %v518
      %v679 = vunpack.c.l.b16 %v519
      %v680 = vunpack.c.l.b16 %v520
      %v681 = vunpack.c.l.b16 %v521
      %v682 = vunpack.c.l.b16 %v522
      %v683 = vunpack.c.l.b16 %v523
      %v684 = vunpack.c.l.b16 %v524
      %v685 = vunpack.c.l.b16 %v525
      %v686 = vunpack.c.l.b16 %v526
      %v687 = vunpack.c.l.b16 %v527
      %v688 = vunpack.c.l.b16 %v528
      %v689 = vunpack.c.l.b16 %v529
      %v690 = vunpack.c.l.b16 %v530
      %v691 = vunpack.c.l.b16 %v531
      %v692 = vunpack.c.l.b16 %v532
      %v693 = vunpack.c.l.b16 %v533
      %v694 = vunpack.c.l.b16 %v534
      %v695 = vunpack.c.l.b16 %v535
      %v696 = vunpack.c.l.b16 %v536
      %v697 = vunpack.c.l.b16 %v537
      %v698 = vunpack.c.l.b16 %v538
      %v699 = vunpack.c.l.b16 %v539
      %v700 = vunpack.c.l.b16 %v540
      %v701 = vunpack.c.l.b16 %v541
      %v702 = vunpack.c.l.b16 %v542
      %v703 = vunpack.c.l.b16 %v543
      %v704 = vunpack.c.l.b16 %v544
      %v705 = vunpack.c.l.b16 %v545
      %v706 = vunpack.c.l.b16 %v546
      %v707 = vunpack.c.l.b16 %v547
      %v708 = vunpack.c.l.b16 %v548
      %v709 = vunpack.c.l.b16 %v549
      %v710 = vunpack.c.l.b16 %v550
      %v711 = vunpack.c.l.b16 %v551
      %v712 = vunpack.c.l.b16 %v552
      %v713 = vunpack.c.l.b16 %v553
      %v714 = vunpack.c.l.b16 %v554
      %v715 = vunpack.c.l.b16 %v555
      %v716 = vunpack.c.l.b16 %v556
      %v717 = vunpack.c.l.b16 %v557
      %v718 = vunpack.c.l.b16 %v558
      %v719 = vunpack.c.l.b16 %v559
      %v720 = vunpack.c.l.b16 %v560
      %v721 = vunpack.c.l.b16 %v561
      %v722 = vunpack.c.l.b16 %v562
      %v723 = vunpack.c.l.b16 %v563
      %v724 = vunpack.c.l.b16 %v564
      %v725 = vunpack.c.l.b16 %v565
      %v726 = vunpack.c.l.b16 %v566
      %v727 = vunpack.c.l.b16 %v567
      %v728 = vunpack.c.l.b16 %v568
      %v729 = vunpack.c.l.b16 %v569
      %v730 = vunpack.c.l.b16 %v570
      %v731 = vunpack.c.l.b16 %v571
      %v732 = vunpack.c.l.b16 %v572
      %v733 = vunpack.c.l.b16 %v573
      %v734 = vunpack.c.l.b16 %v574
      %v735 = vunpack.c.l.b16 %v575
      %v736 = vunpack.c.l.b16 %v576
      %v737 = vunpack.c.l.b16 %v577
      %v738 = vunpack.c.l.b16 %v578
      %v739 = vunpack.c.l.b16 %v579
      %v740 = vunpack.c.l.b16 %v580
      %v741 = vunpack.c.l.b16 %v581
      %v742 = vunpack.c.l.b16 %v582
      %v743 = vunpack.c.l.b16 %v583
      %v744 = vunpack.c.l.b16 %v584
      %v745 = vunpack.c.l.b16 %v585
      %v746 = vunpack.c.l.b16 %v586
      %v747 = vpack.c.b16 %v668, %v667
      %v748 = vpack.c.b16 %v670, %v669
      %v749 = vpack.c.b16 %v672, %v671
      %v750 = vpack.c.b16 %v674, %v673
      %v751 = vpack.c.b16 %v676, %v675
      %v752 = vpack.c.b16 %v678, %v677
      %v753 = vpack.c.b16 %v680, %v679
      %v754 = vpack.c.b16 %v682, %v681
      %v755 = vpack.c.b16 %v684, %v683
      %v756 = vpack.c.b16 %v686, %v685
      %v757 = vpack.c.b16 %v688, %v687
      %v758 = vpack.c.b16 %v690, %v689
      %v759 = vpack.c.b16 %v692, %v691
      %v760 = vpack.c.b16 %v694, %v693
      %v761 = vpack.c.b16 %v696, %v695
      %v762 = vpack.c.b16 %v698, %v697
      %v763 = vpack.c.b16 %v700, %v699
      %v764 = vpack.c.b16 %v702, %v701
      %v765 = vpack.c.b16 %v704, %v703
      %v766 = vpack.c.b16 %v706, %v705
      %v767 = vpack.c.b16 %v708, %v707
      %v768 = vpack.c.b16 %v710, %v709
      %v769 = vpack.c.b16 %v712, %v711
      %v770 = vpack.c.b16 %v714, %v713
      %v771 = vpack.c.b16 %v716, %v715
      %v772 = vpack.c.b16 %v718, %v717
      %v773 = vpack.c.b16 %v720, %v719
      %v774 = vpack.c.b16 %v722, %v721
      %v775 = vpack.c.b16 %v724, %v723
      %v776 = vpack.c.b16 %v726, %v725
      %v777 = vpack.c.b16 %v728, %v727
      %v778 = vpack.c.b16 %v730, %v729
      %v779 = vpack.c.b16 %v732, %v731
      %v780 = vpack.c.b16 %v734, %v733
      %v781 = vpack.c.b16 %v736, %v735
      %v782 = vpack.c.b16 %v738, %v737
      %v783 = vpack.c.b16 %v740, %v739
      %v784 = vpack.c.b16 %v742, %v741
      %v785 = vpack.c.b16 %v744, %v743
      %v786 = vpack.c.b16 %v746, %v745
      %vm827 = vcmask 23552
      %828 = vst.msk [vmem:[#allocation2 + $0x18] sm:$0xff] %vm827, %v747
      %829 = vst.msk [vmem:[#allocation2 + $0x20] sm:$0xff] %vm827, %v748
      %830 = vst.msk [vmem:[#allocation2 + $0x28] sm:$0xff] %vm827, %v749
      %831 = vst.msk [vmem:[#allocation2 + $0x30] sm:$0xff] %vm827, %v750
      %832 = vst.msk [vmem:[#allocation2 + $0x38] sm:$0xff] %vm827, %v751
      %833 = vst.msk [vmem:[#allocation2 + $0x40] sm:$0xff] %vm827, %v752
      %834 = vst.msk [vmem:[#allocation2 + $0x48] sm:$0xff] %vm827, %v753
      %835 = vst.msk [vmem:[#allocation2 + $0x50] sm:$0xff] %vm827, %v754
      %836 = vst.msk [vmem:[#allocation2 + $0x58] sm:$0xff] %vm827, %v755
      %837 = vst.msk [vmem:[#allocation2 + $0x60] sm:$0xff] %vm827, %v756
      %838 = vst.msk [vmem:[#allocation2 + $0x68] sm:$0xff] %vm827, %v757
      %839 = vst.msk [vmem:[#allocation2 + $0x70] sm:$0xff] %vm827, %v758
      %840 = vst.msk [vmem:[#allocation2 + $0x78] sm:$0xff] %vm827, %v759
      %841 = vst.msk [vmem:[#allocation2 + $0x80] sm:$0xff] %vm827, %v760
      %842 = vst.msk [vmem:[#allocation2 + $0x88] sm:$0xff] %vm827, %v761
      %843 = vst.msk [vmem:[#allocation2 + $0x90] sm:$0xff] %vm827, %v762
      %844 = vst.msk [vmem:[#allocation2 + $0x98] sm:$0xff] %vm827, %v763
      %845 = vst.msk [vmem:[#allocation2 + $0xa0] sm:$0xff] %vm827, %v764
      %846 = vst.msk [vmem:[#allocation2 + $0xa8] sm:$0xff] %vm827, %v765
      %847 = vst.msk [vmem:[#allocation2 + $0xb0] sm:$0xff] %vm827, %v766
      %848 = vst.msk [vmem:[#allocation2 + $0xb8] sm:$0xff] %vm827, %v767
      %849 = vst.msk [vmem:[#allocation2 + $0xc0] sm:$0xff] %vm827, %v768
      %850 = vst.msk [vmem:[#allocation2 + $0xc8] sm:$0xff] %vm827, %v769
      %851 = vst.msk [vmem:[#allocation2 + $0xd0] sm:$0xff] %vm827, %v770
      %852 = vst.msk [vmem:[#allocation2 + $0xd8] sm:$0xff] %vm827, %v771
      %853 = vst.msk [vmem:[#allocation2 + $0xe0] sm:$0xff] %vm827, %v772
      %854 = vst.msk [vmem:[#allocation2 + $0xe8] sm:$0xff] %vm827, %v773
      %855 = vst.msk [vmem:[#allocation2 + $0xf0] sm:$0xff] %vm827, %v774
      %856 = vst.msk [vmem:[#allocation2 + $0xf8] sm:$0xff] %vm827, %v775
      %857 = vst.msk [vmem:[#allocation2 + $0x100] sm:$0xff] %vm827, %v776
      %858 = vst.msk [vmem:[#allocation2 + $0x108] sm:$0xff] %vm827, %v777
      %859 = vst.msk [vmem:[#allocation2 + $0x110] sm:$0xff] %vm827, %v778
      %860 = vst.msk [vmem:[#allocation2 + $0x118] sm:$0xff] %vm827, %v779
      %861 = vst.msk [vmem:[#allocation2 + $0x120] sm:$0xff] %vm827, %v780
      %862 = vst.msk [vmem:[#allocation2 + $0x128] sm:$0xff] %vm827, %v781
      %863 = vst.msk [vmem:[#allocation2 + $0x130] sm:$0xff] %vm827, %v782
      %864 = vst.msk [vmem:[#allocation2 + $0x138] sm:$0xff] %vm827, %v783
      %865 = vst.msk [vmem:[#allocation2 + $0x140] sm:$0xff] %vm827, %v784
      %866 = vst.msk [vmem:[#allocation2 + $0x148] sm:$0xff] %vm827, %v785
      %867 = vst.msk [vmem:[#allocation2 + $0x150] sm:$0xff] %vm827, %v786
      %p868 = scmp.eq.s32.totalorder %s24, 1
      // Predicated region
      $region53: #{tpu_custom_call.1} parent=43 // pred_check
        %p869 = pneg %p868
      $region54: #{tpu_custom_call.1} parent=43 // pred_check_branch
        %871 = sbr.rel (%p869) target = $region56
      $region55: #{tpu_custom_call.1} parent=43 // pred_region
        %872 = vst.msk [vmem:[#allocation2 + $0x158] sm:$0xff] %vm827, 0
        %873 = vst.msk [vmem:[#allocation2 + $0x160] sm:$0xff] %vm827, 0
        %874 = vst.msk [vmem:[#allocation2 + $0x168] sm:$0xf] %vm466, 0
      $region56: #{tpu_custom_call.1} parent=43 // pred_fallthru
        _
      %p875 = scmp.lt.s32.totalorder %s24, 1
      // Predicated region
      $region57: #{tpu_custom_call.1} parent=43 // pred_check
        %p876 = pneg %p875
      $region58: #{tpu_custom_call.1} parent=43 // pred_check_branch
        %878 = sbr.rel (%p876) target = $region60
      $region59: #{tpu_custom_call.1} parent=43 // pred_region
        %v879 = vld [vmem:[%s439] sm:$0xf]
        %v880 = vld [vmem:[%s439 + $0x4] sm:$0xf]
        %v881 = vld [vmem:[%s439 + $0x8] sm:$0xf]
        %v882 = vld [vmem:[%s439 + $0xc] sm:$0xf]
        %v883 = vld [vmem:[%s439 + $0x10] sm:$0xf]
        %v889 = vunpack.c.l.b16 %v879
        %v890 = vunpack.c.l.b16 %v880
        %v891 = vunpack.c.l.b16 %v881
        %v892 = vunpack.c.l.b16 %v882
        %v893 = vunpack.c.l.b16 %v883
        %v894 = vpack.c.b16 %v890, %v889
        %v895 = vpack.c.b16 %v892, %v891
        %v896 = vpack.c.b16 %v893, %v893
        %900 = vst.msk [vmem:[#allocation2 + $0x158] sm:$0xff] %vm827, %v894
        %901 = vst.msk [vmem:[#allocation2 + $0x160] sm:$0xff] %vm827, %v895
        %902 = vst.msk [vmem:[#allocation2 + $0x168] sm:$0xf] %vm466, %v896
      $region60: #{tpu_custom_call.1} parent=43 // pred_fallthru
        _
      %v903 = vld [vmem:[#allocation2] sm:$0xf8]
      %v904 = vld [vmem:[#allocation2 + $0x8] sm:$0xff]
      %v905 = vld [vmem:[#allocation2 + $0x10] sm:$0xff]
      %v906 = vld [vmem:[#allocation2 + $0x18] sm:$0xff]
      %v907 = vld [vmem:[#allocation2 + $0x20] sm:$0xff]
      %v908 = vld [vmem:[#allocation2 + $0x28] sm:$0xff]
      %v909 = vld [vmem:[#allocation2 + $0x30] sm:$0xff]
      %v910 = vld [vmem:[#allocation2 + $0x38] sm:$0xff]
      %v911 = vld [vmem:[#allocation2 + $0x40] sm:$0xff]
      %v912 = vld [vmem:[#allocation2 + $0x48] sm:$0xff]
      %v913 = vld [vmem:[#allocation2 + $0x50] sm:$0xff]
      %v914 = vld [vmem:[#allocation2 + $0x58] sm:$0xff]
      %v915 = vld [vmem:[#allocation2 + $0x60] sm:$0xff]
      %v916 = vld [vmem:[#allocation2 + $0x68] sm:$0xff]
      %v917 = vld [vmem:[#allocation2 + $0x70] sm:$0xff]
      %v918 = vld [vmem:[#allocation2 + $0x78] sm:$0xff]
      %v919 = vld [vmem:[#allocation2 + $0x80] sm:$0xff]
      %v920 = vld [vmem:[#allocation2 + $0x88] sm:$0xff]
      %v921 = vld [vmem:[#allocation2 + $0x90] sm:$0xff]
      %v922 = vld [vmem:[#allocation2 + $0x98] sm:$0xff]
      %v923 = vld [vmem:[#allocation2 + $0xa0] sm:$0xff]
      %v924 = vld [vmem:[#allocation2 + $0xa8] sm:$0xff]
      %v925 = vld [vmem:[#allocation2 + $0xb0] sm:$0xff]
      %v926 = vld [vmem:[#allocation2 + $0xb8] sm:$0xff]
      %v927 = vld [vmem:[#allocation2 + $0xc0] sm:$0xff]
      %v928 = vld [vmem:[#allocation2 + $0xc8] sm:$0xff]
      %v929 = vld [vmem:[#allocation2 + $0xd0] sm:$0xff]
      %v930 = vld [vmem:[#allocation2 + $0xd8] sm:$0xff]
      %v931 = vld [vmem:[#allocation2 + $0xe0] sm:$0xff]
      %v932 = vld [vmem:[#allocation2 + $0xe8] sm:$0xff]
      %v933 = vld [vmem:[#allocation2 + $0xf0] sm:$0xff]
      %v934 = vld [vmem:[#allocation2 + $0xf8] sm:$0xff]
      %v935 = vld [vmem:[#allocation2 + $0x100] sm:$0xff]
      %v936 = vld [vmem:[#allocation2 + $0x108] sm:$0xff]
      %v937 = vld [vmem:[#allocation2 + $0x110] sm:$0xff]
      %v938 = vld [vmem:[#allocation2 + $0x118] sm:$0xff]
      %v939 = vld [vmem:[#allocation2 + $0x120] sm:$0xff]
      %v940 = vld [vmem:[#allocation2 + $0x128] sm:$0xff]
      %v941 = vld [vmem:[#allocation2 + $0x130] sm:$0xff]
      %v942 = vld [vmem:[#allocation2 + $0x138] sm:$0xff]
      %v943 = vld [vmem:[#allocation2 + $0x140] sm:$0xf]
      %v944 = vld [vmem:[%s448] sm:$0x3]
      %v945 = vld [vmem:[#allocation2] sm:$0xf0]
      %s946 = scalar_lea.vmem %s448, 2
      %v947 = vld [vmem:[%s946] sm:$0x3]
      %vm989 = vcmask 1043456
      %v990 = vrot.slane %v945, 4
      %v991 = vrot.slane %v904, 4
      %v992 = vsel %vm989, %v990, %v991
      %v993 = vrot.slane %v905, 4
      %v994 = vsel %vm989, %v991, %v993
      %v995 = vrot.slane %v906, 4
      %v996 = vsel %vm989, %v993, %v995
      %v997 = vrot.slane %v907, 4
      %v998 = vsel %vm989, %v995, %v997
      %v999 = vrot.slane %v908, 4
      %v1000 = vsel %vm989, %v997, %v999
      %v1001 = vrot.slane %v909, 4
      %v1002 = vsel %vm989, %v999, %v1001
      %v1003 = vrot.slane %v910, 4
      %v1004 = vsel %vm989, %v1001, %v1003
      %v1005 = vrot.slane %v911, 4
      %v1006 = vsel %vm989, %v1003, %v1005
      %v1007 = vrot.slane %v912, 4
      %v1008 = vsel %vm989, %v1005, %v1007
      %v1009 = vrot.slane %v913, 4
      %v1010 = vsel %vm989, %v1007, %v1009
      %v1011 = vrot.slane %v914, 4
      %v1012 = vsel %vm989, %v1009, %v1011
      %v1013 = vrot.slane %v915, 4
      %v1014 = vsel %vm989, %v1011, %v1013
      %v1015 = vrot.slane %v916, 4
      %v1016 = vsel %vm989, %v1013, %v1015
      %v1017 = vrot.slane %v917, 4
      %v1018 = vsel %vm989, %v1015, %v1017
      %v1019 = vrot.slane %v918, 4
      %v1020 = vsel %vm989, %v1017, %v1019
      %v1021 = vrot.slane %v919, 4
      %v1022 = vsel %vm989, %v1019, %v1021
      %v1023 = vrot.slane %v920, 4
      %v1024 = vsel %vm989, %v1021, %v1023
      %v1025 = vrot.slane %v921, 4
      %v1026 = vsel %vm989, %v1023, %v1025
      %v1027 = vrot.slane %v922, 4
      %v1028 = vsel %vm989, %v1025, %v1027
      %v1029 = vrot.slane %v923, 4
      %v1030 = vsel %vm989, %v1027, %v1029
      %v1031 = vrot.slane %v924, 4
      %v1032 = vsel %vm989, %v1029, %v1031
      %v1033 = vrot.slane %v925, 4
      %v1034 = vsel %vm989, %v1031, %v1033
      %v1035 = vrot.slane %v926, 4
      %v1036 = vsel %vm989, %v1033, %v1035
      %v1037 = vrot.slane %v927, 4
      %v1038 = vsel %vm989, %v1035, %v1037
      %v1039 = vrot.slane %v928, 4
      %v1040 = vsel %vm989, %v1037, %v1039
      %v1041 = vrot.slane %v929, 4
      %v1042 = vsel %vm989, %v1039, %v1041
      %v1043 = vrot.slane %v930, 4
      %v1044 = vsel %vm989, %v1041, %v1043
      %v1045 = vrot.slane %v931, 4
      %v1046 = vsel %vm989, %v1043, %v1045
      %v1047 = vrot.slane %v932, 4
      %v1048 = vsel %vm989, %v1045, %v1047
      %v1049 = vrot.slane %v933, 4
      %v1050 = vsel %vm989, %v1047, %v1049
      %v1051 = vrot.slane %v934, 4
      %v1052 = vsel %vm989, %v1049, %v1051
      %v1053 = vrot.slane %v935, 4
      %v1054 = vsel %vm989, %v1051, %v1053
      %v1055 = vrot.slane %v936, 4
      %v1056 = vsel %vm989, %v1053, %v1055
      %v1057 = vrot.slane %v937, 4
      %v1058 = vsel %vm989, %v1055, %v1057
      %v1059 = vrot.slane %v938, 4
      %v1060 = vsel %vm989, %v1057, %v1059
      %v1061 = vrot.slane %v939, 4
      %v1062 = vsel %vm989, %v1059, %v1061
      %v1063 = vrot.slane %v940, 4
      %v1064 = vsel %vm989, %v1061, %v1063
      %v1065 = vrot.slane %v941, 4
      %v1066 = vsel %vm989, %v1063, %v1065
      %v1067 = vrot.slane %v942, 4
      %v1068 = vsel %vm989, %v1065, %v1067
      %v1069 = vrot.slane %v943, 4
      %v1070 = vsel %vm989, %v1067, %v1069
      %v1072 = vsel %vm827, %v992, 0
      %v1075 = vsel %vm827, %v994, 0
      %v1078 = vsel %vm827, %v996, 0
      %v1081 = vsel %vm827, %v998, 0
      %v1084 = vsel %vm827, %v1000, 0
      %v1087 = vsel %vm827, %v1002, 0
      %v1090 = vsel %vm827, %v1004, 0
      %v1093 = vsel %vm827, %v1006, 0
      %v1096 = vsel %vm827, %v1008, 0
      %v1099 = vsel %vm827, %v1010, 0
      %v1102 = vsel %vm827, %v1012, 0
      %v1105 = vsel %vm827, %v1014, 0
      %v1108 = vsel %vm827, %v1016, 0
      %v1111 = vsel %vm827, %v1018, 0
      %v1114 = vsel %vm827, %v1020, 0
      %v1117 = vsel %vm827, %v1022, 0
      %v1120 = vsel %vm827, %v1024, 0
      %v1123 = vsel %vm827, %v1026, 0
      %v1126 = vsel %vm827, %v1028, 0
      %v1129 = vsel %vm827, %v1030, 0
      %v1132 = vsel %vm827, %v1032, 0
      %v1135 = vsel %vm827, %v1034, 0
      %v1138 = vsel %vm827, %v1036, 0
      %v1141 = vsel %vm827, %v1038, 0
      %v1144 = vsel %vm827, %v1040, 0
      %v1147 = vsel %vm827, %v1042, 0
      %v1150 = vsel %vm827, %v1044, 0
      %v1153 = vsel %vm827, %v1046, 0
      %v1156 = vsel %vm827, %v1048, 0
      %v1159 = vsel %vm827, %v1050, 0
      %v1162 = vsel %vm827, %v1052, 0
      %v1165 = vsel %vm827, %v1054, 0
      %v1168 = vsel %vm827, %v1056, 0
      %v1171 = vsel %vm827, %v1058, 0
      %v1174 = vsel %vm827, %v1060, 0
      %v1177 = vsel %vm827, %v1062, 0
      %v1180 = vsel %vm827, %v1064, 0
      %v1183 = vsel %vm827, %v1066, 0
      %v1186 = vsel %vm827, %v1068, 0
      %v1189 = vsel %vm827, %v1070, 0
      %vm1191 = vcmask 1040384
      %vm1192 = vcmask 1041408
      %v1193 = vsel %vm1191, 4294967295, 65535
      %v1194 = vsel %vm1192, %v1193, 0
      %v1196 = vand.u32 %v947, %v1194
      %1198 = vmatprep.subr.bf16.mxu0 0
      %1199 = vmatpush1.bf16.msra.mxu0 %v1196
      %1200 = vmatprep.subr.bf16.mxu0 0
      %1201 = vmatpush1.bf16.msra.mxu0 0
      %1202 = vmatprep.subr.bf16.mxu0 0
      %1203 = vmatpush1.bf16.msra.mxu0 0
      %1204 = vmatprep.subr.bf16.mxu0 0
      %1205 = vmatpush1.bf16.msra.mxu0 0
      %1206 = vmatprep.subr.bf16.mxu0 0
      %1207 = vmatpush1.bf16.msra.mxu0 0
      %1208 = vmatprep.subr.bf16.mxu0 0
      %1209 = vmatpush1.bf16.msra.mxu0 0
      %1210 = vmatprep.subr.bf16.mxu0 0
      %1211 = vmatpush1.bf16.msra.mxu0 0
      %1212 = vmatprep.subr.bf16.mxu0 0
      %1213 = vmatpush1.bf16.msra.mxu0 0
      %1214 = vmatprep.subr.bf16.mxu0 0
      %1215 = vmatpush1.bf16.msra.mxu0 0
      %1216 = vmatprep.subr.bf16.mxu0 0
      %1217 = vmatpush1.bf16.msra.mxu0 0
      %1218 = vmatprep.subr.bf16.mxu0 0
      %1219 = vmatpush1.bf16.msra.mxu0 0
      %1220 = vmatprep.subr.bf16.mxu0 0
      %1221 = vmatpush1.bf16.msra.mxu0 0
      %1222 = vmatprep.subr.bf16.mxu0 0
      %1223 = vmatpush1.bf16.msra.mxu0 0
      %1224 = vmatprep.subr.bf16.mxu0 0
      %1225 = vmatpush1.bf16.msra.mxu0 0
      %1226 = vmatprep.subr.bf16.mxu0 0
      %1227 = vmatpush1.bf16.msra.mxu0 0
      %1228 = vmatprep.subr.bf16.mxu0 0
      %1229 = vmatpush1.bf16.msra.mxu0 0
      %1230 = vmatprep.mubr.bf16.mxu0 0
      %1231 = vmatmul.mubr.bf16.gmra.mrb[0].mxu0 %v1072
      %v1232 = vpop.f32.mrb[0].mxu0
      %v1233 = vadd.f32 0.0, %v1232
      %v1234 = vpop.f32.mrb[0].mxu0
      %v1235 = vpop.f32.mrb[0].mxu0
      %v1236 = vadd.f32 0.0, %v1235
      %v1237 = vpop.f32.mrb[0].mxu0
      %1238 = vmatprep.mubr.bf16.mxu0 0
      %1239 = vmatmul.mubr.bf16.gmra.mrb[0].mxu0 %v1075
      %v1240 = vpop.f32.mrb[0].mxu0
      %v1241 = vadd.f32 0.0, %v1240
      %v1242 = vpop.f32.mrb[0].mxu0
      %v1243 = vpop.f32.mrb[0].mxu0
      %v1244 = vadd.f32 0.0, %v1243
      %v1245 = vpop.f32.mrb[0].mxu0
      %1246 = vmatprep.mubr.bf16.mxu0 0
      %1247 = vmatmul.mubr.bf16.gmra.mrb[0].mxu0 %v1078
      %v1248 = vpop.f32.mrb[0].mxu0
      %v1249 = vadd.f32 0.0, %v1248
      %v1250 = vpop.f32.mrb[0].mxu0
      %v1251 = vpop.f32.mrb[0].mxu0
      %v1252 = vadd.f32 0.0, %v1251
      %v1253 = vpop.f32.mrb[0].mxu0
      %1254 = vmatprep.mubr.bf16.mxu0 0
      %1255 = vmatmul.mubr.bf16.gmra.mrb[0].mxu0 %v1081
      %v1256 = vpop.f32.mrb[0].mxu0
      %v1257 = vadd.f32 0.0, %v1256
      %v1258 = vpop.f32.mrb[0].mxu0
      %v1259 = vpop.f32.mrb[0].mxu0
      %v1260 = vadd.f32 0.0, %v1259
      %v1261 = vpop.f32.mrb[0].mxu0
      %1262 = vmatprep.mubr.bf16.mxu0 0
      %1263 = vmatmul.mubr.bf16.gmra.mrb[0].mxu0 %v1084
      %v1264 = vpop.f32.mrb[0].mxu0
      %v1265 = vadd.f32 0.0, %v1264
      %v1266 = vpop.f32.mrb[0].mxu0
      %v1267 = vpop.f32.mrb[0].mxu0
      %v1268 = vadd.f32 0.0, %v1267
      %v1269 = vpop.f32.mrb[0].mxu0
      %1270 = vmatprep.mubr.bf16.mxu0 0
      %1271 = vmatmul.mubr.bf16.gmra.mrb[0].mxu0 %v1087
      %v1272 = vpop.f32.mrb[0].mxu0
      %v1273 = vadd.f32 0.0, %v1272
      %v1274 = vpop.f32.mrb[0].mxu0
      %v1275 = vpop.f32.mrb[0].mxu0
      %v1276 = vadd.f32 0.0, %v1275
      %v1277 = vpop.f32.mrb[0].mxu0
      %1278 = vmatprep.mubr.bf16.mxu0 0
      %1279 = vmatmul.mubr.bf16.gmra.mrb[0].mxu0 %v1090
      %v1280 = vpop.f32.mrb[0].mxu0
      %v1281 = vadd.f32 0.0, %v1280
      %v1282 = vpop.f32.mrb[0].mxu0
      %v1283 = vpop.f32.mrb[0].mxu0
      %v1284 = vadd.f32 0.0, %v1283
      %v1285 = vpop.f32.mrb[0].mxu0
      %1286 = vmatprep.mubr.bf16.mxu0 0
      %1287 = vmatmul.mubr.bf16.gmra.mrb[0].mxu0 %v1093
      %v1288 = vpop.f32.mrb[0].mxu0
      %v1289 = vadd.f32 0.0, %v1288
      %v1290 = vpop.f32.mrb[0].mxu0
      %v1291 = vpop.f32.mrb[0].mxu0
      %v1292 = vadd.f32 0.0, %v1291
      %v1293 = vpop.f32.mrb[0].mxu0
      %1294 = vmatprep.mubr.bf16.mxu0 0
      %1295 = vmatmul.mubr.bf16.gmra.mrb[0].mxu0 %v1096
      %v1296 = vpop.f32.mrb[0].mxu0
      %v1297 = vadd.f32 0.0, %v1296
      %v1298 = vpop.f32.mrb[0].mxu0
      %v1299 = vpop.f32.mrb[0].mxu0
      %v1300 = vadd.f32 0.0, %v1299
      %v1301 = vpop.f32.mrb[0].mxu0
      %1302 = vmatprep.mubr.bf16.mxu0 0
      %1303 = vmatmul.mubr.bf16.gmra.mrb[0].mxu0 %v1099
      %v1304 = vpop.f32.mrb[0].mxu0
      %v1305 = vadd.f32 0.0, %v1304
      %v1306 = vpop.f32.mrb[0].mxu0
      %v1307 = vpop.f32.mrb[0].mxu0
      %v1308 = vadd.f32 0.0, %v1307
      %v1309 = vpop.f32.mrb[0].mxu0
      %1310 = vmatprep.mubr.bf16.mxu0 0
      %1311 = vmatmul.mubr.bf16.gmra.mrb[0].mxu0 %v1102
      %v1312 = vpop.f32.mrb[0].mxu0
      %v1313 = vadd.f32 0.0, %v1312
      %v1314 = vpop.f32.mrb[0].mxu0
      %v1315 = vpop.f32.mrb[0].mxu0
      %v1316 = vadd.f32 0.0, %v1315
      %v1317 = vpop.f32.mrb[0].mxu0
      %1318 = vmatprep.mubr.bf16.mxu0 0
      %1319 = vmatmul.mubr.bf16.gmra.mrb[0].mxu0 %v1105
      %v1320 = vpop.f32.mrb[0].mxu0
      %v1321 = vadd.f32 0.0, %v1320
      %v1322 = vpop.f32.mrb[0].mxu0
      %v1323 = vpop.f32.mrb[0].mxu0
      %v1324 = vadd.f32 0.0, %v1323
      %v1325 = vpop.f32.mrb[0].mxu0
      %1326 = vmatprep.mubr.bf16.mxu0 0
      %1327 = vmatmul.mubr.bf16.gmra.mrb[0].mxu0 %v1108
      %v1328 = vpop.f32.mrb[0].mxu0
      %v1329 = vadd.f32 0.0, %v1328
      %v1330 = vpop.f32.mrb[0].mxu0
      %v1331 = vpop.f32.mrb[0].mxu0
      %v1332 = vadd.f32 0.0, %v1331
      %v1333 = vpop.f32.mrb[0].mxu0
      %1334 = vmatprep.mubr.bf16.mxu0 0
      %1335 = vmatmul.mubr.bf16.gmra.mrb[0].mxu0 %v1111
      %v1336 = vpop.f32.mrb[0].mxu0
      %v1337 = vadd.f32 0.0, %v1336
      %v1338 = vpop.f32.mrb[0].mxu0
      %v1339 = vpop.f32.mrb[0].mxu0
      %v1340 = vadd.f32 0.0, %v1339
      %v1341 = vpop.f32.mrb[0].mxu0
      %1342 = vmatprep.mubr.bf16.mxu0 0
      %1343 = vmatmul.mubr.bf16.gmra.mrb[0].mxu0 %v1114
      %v1344 = vpop.f32.mrb[0].mxu0
      %v1345 = vadd.f32 0.0, %v1344
      %v1346 = vpop.f32.mrb[0].mxu0
      %v1347 = vpop.f32.mrb[0].mxu0
      %v1348 = vadd.f32 0.0, %v1347
      %v1349 = vpop.f32.mrb[0].mxu0
      %1350 = vmatprep.mubr.bf16.mxu0 0
      %1351 = vmatmul.mubr.bf16.gmra.mrb[0].mxu0 %v1117
      %v1352 = vpop.f32.mrb[0].mxu0
      %v1353 = vadd.f32 0.0, %v1352
      %v1354 = vpop.f32.mrb[0].mxu0
      %v1355 = vpop.f32.mrb[0].mxu0
      %v1356 = vadd.f32 0.0, %v1355
      %v1357 = vpop.f32.mrb[0].mxu0
      %1358 = vmatprep.mubr.bf16.mxu0 0
      %1359 = vmatmul.mubr.bf16.gmra.mrb[0].mxu0 %v1120
      %v1360 = vpop.f32.mrb[0].mxu0
      %v1361 = vadd.f32 0.0, %v1360
      %v1362 = vpop.f32.mrb[0].mxu0
      %v1363 = vpop.f32.mrb[0].mxu0
      %v1364 = vadd.f32 0.0, %v1363
      %v1365 = vpop.f32.mrb[0].mxu0
      %1366 = vmatprep.mubr.bf16.mxu0 0
      %1367 = vmatmul.mubr.bf16.gmra.mrb[0].mxu0 %v1123
      %v1368 = vpop.f32.mrb[0].mxu0
      %v1369 = vadd.f32 0.0, %v1368
      %v1370 = vpop.f32.mrb[0].mxu0
      %v1371 = vpop.f32.mrb[0].mxu0
      %v1372 = vadd.f32 0.0, %v1371
      %v1373 = vpop.f32.mrb[0].mxu0
      %1374 = vmatprep.mubr.bf16.mxu0 0
      %1375 = vmatmul.mubr.bf16.gmra.mrb[0].mxu0 %v1126
      %v1376 = vpop.f32.mrb[0].mxu0
      %v1377 = vadd.f32 0.0, %v1376
      %v1378 = vpop.f32.mrb[0].mxu0
      %v1379 = vpop.f32.mrb[0].mxu0
      %v1380 = vadd.f32 0.0, %v1379
      %v1381 = vpop.f32.mrb[0].mxu0
      %1382 = vmatprep.mubr.bf16.mxu0 0
      %1383 = vmatmul.mubr.bf16.gmra.mrb[0].mxu0 %v1129
      %v1384 = vpop.f32.mrb[0].mxu0
      %v1385 = vadd.f32 0.0, %v1384
      %v1386 = vpop.f32.mrb[0].mxu0
      %v1387 = vpop.f32.mrb[0].mxu0
      %v1388 = vadd.f32 0.0, %v1387
      %v1389 = vpop.f32.mrb[0].mxu0
      %1390 = vmatprep.mubr.bf16.mxu0 0
      %1391 = vmatmul.mubr.bf16.gmra.mrb[0].mxu0 %v1132
      %v1392 = vpop.f32.mrb[0].mxu0
      %v1393 = vadd.f32 0.0, %v1392
      %v1394 = vpop.f32.mrb[0].mxu0
      %v1395 = vpop.f32.mrb[0].mxu0
      %v1396 = vadd.f32 0.0, %v1395
      %v1397 = vpop.f32.mrb[0].mxu0
      %1398 = vmatprep.mubr.bf16.mxu0 0
      %1399 = vmatmul.mubr.bf16.gmra.mrb[0].mxu0 %v1135
      %v1400 = vpop.f32.mrb[0].mxu0
      %v1401 = vadd.f32 0.0, %v1400
      %v1402 = vpop.f32.mrb[0].mxu0
      %v1403 = vpop.f32.mrb[0].mxu0
      %v1404 = vadd.f32 0.0, %v1403
      %v1405 = vpop.f32.mrb[0].mxu0
      %1406 = vmatprep.mubr.bf16.mxu0 0
      %1407 = vmatmul.mubr.bf16.gmra.mrb[0].mxu0 %v1138
      %v1408 = vpop.f32.mrb[0].mxu0
      %v1409 = vadd.f32 0.0, %v1408
      %v1410 = vpop.f32.mrb[0].mxu0
      %v1411 = vpop.f32.mrb[0].mxu0
      %v1412 = vadd.f32 0.0, %v1411
      %v1413 = vpop.f32.mrb[0].mxu0
      %1414 = vmatprep.mubr.bf16.mxu0 0
      %1415 = vmatmul.mubr.bf16.gmra.mrb[0].mxu0 %v1141
      %v1416 = vpop.f32.mrb[0].mxu0
      %v1417 = vadd.f32 0.0, %v1416
      %v1418 = vpop.f32.mrb[0].mxu0
      %v1419 = vpop.f32.mrb[0].mxu0
      %v1420 = vadd.f32 0.0, %v1419
      %v1421 = vpop.f32.mrb[0].mxu0
      %1422 = vmatprep.mubr.bf16.mxu0 0
      %1423 = vmatmul.mubr.bf16.gmra.mrb[0].mxu0 %v1144
      %v1424 = vpop.f32.mrb[0].mxu0
      %v1425 = vadd.f32 0.0, %v1424
      %v1426 = vpop.f32.mrb[0].mxu0
      %v1427 = vpop.f32.mrb[0].mxu0
      %v1428 = vadd.f32 0.0, %v1427
      %v1429 = vpop.f32.mrb[0].mxu0
      %1430 = vmatprep.mubr.bf16.mxu0 0
      %1431 = vmatmul.mubr.bf16.gmra.mrb[0].mxu0 %v1147
      %v1432 = vpop.f32.mrb[0].mxu0
      %v1433 = vadd.f32 0.0, %v1432
      %v1434 = vpop.f32.mrb[0].mxu0
      %v1435 = vpop.f32.mrb[0].mxu0
      %v1436 = vadd.f32 0.0, %v1435
      %v1437 = vpop.f32.mrb[0].mxu0
      %1438 = vmatprep.mubr.bf16.mxu0 0
      %1439 = vmatmul.mubr.bf16.gmra.mrb[0].mxu0 %v1150
      %v1440 = vpop.f32.mrb[0].mxu0
      %v1441 = vadd.f32 0.0, %v1440
      %v1442 = vpop.f32.mrb[0].mxu0
      %v1443 = vpop.f32.mrb[0].mxu0
      %v1444 = vadd.f32 0.0, %v1443
      %v1445 = vpop.f32.mrb[0].mxu0
      %1446 = vmatprep.mubr.bf16.mxu0 0
      %1447 = vmatmul.mubr.bf16.gmra.mrb[0].mxu0 %v1153
      %v1448 = vpop.f32.mrb[0].mxu0
      %v1449 = vadd.f32 0.0, %v1448
      %v1450 = vpop.f32.mrb[0].mxu0
      %v1451 = vpop.f32.mrb[0].mxu0
      %v1452 = vadd.f32 0.0, %v1451
      %v1453 = vpop.f32.mrb[0].mxu0
      %1454 = vmatprep.mubr.bf16.mxu0 0
      %1455 = vmatmul.mubr.bf16.gmra.mrb[0].mxu0 %v1156
      %v1456 = vpop.f32.mrb[0].mxu0
      %v1457 = vadd.f32 0.0, %v1456
      %v1458 = vpop.f32.mrb[0].mxu0
      %v1459 = vpop.f32.mrb[0].mxu0
      %v1460 = vadd.f32 0.0, %v1459
      %v1461 = vpop.f32.mrb[0].mxu0
      %1462 = vmatprep.mubr.bf16.mxu0 0
      %1463 = vmatmul.mubr.bf16.gmra.mrb[0].mxu0 %v1159
      %v1464 = vpop.f32.mrb[0].mxu0
      %v1465 = vadd.f32 0.0, %v1464
      %v1466 = vpop.f32.mrb[0].mxu0
      %v1467 = vpop.f32.mrb[0].mxu0
      %v1468 = vadd.f32 0.0, %v1467
      %v1469 = vpop.f32.mrb[0].mxu0
      %1470 = vmatprep.mubr.bf16.mxu0 0
      %1471 = vmatmul.mubr.bf16.gmra.mrb[0].mxu0 %v1162
      %v1472 = vpop.f32.mrb[0].mxu0
      %v1473 = vadd.f32 0.0, %v1472
      %v1474 = vpop.f32.mrb[0].mxu0
      %v1475 = vpop.f32.mrb[0].mxu0
      %v1476 = vadd.f32 0.0, %v1475
      %v1477 = vpop.f32.mrb[0].mxu0
      %1478 = vmatprep.mubr.bf16.mxu0 0
      %1479 = vmatmul.mubr.bf16.gmra.mrb[0].mxu0 %v1165
      %v1480 = vpop.f32.mrb[0].mxu0
      %v1481 = vadd.f32 0.0, %v1480
      %v1482 = vpop.f32.mrb[0].mxu0
      %v1483 = vpop.f32.mrb[0].mxu0
      %v1484 = vadd.f32 0.0, %v1483
      %v1485 = vpop.f32.mrb[0].mxu0
      %1486 = vmatprep.mubr.bf16.mxu0 0
      %1487 = vmatmul.mubr.bf16.gmra.mrb[0].mxu0 %v1168
      %v1488 = vpop.f32.mrb[0].mxu0
      %v1489 = vadd.f32 0.0, %v1488
      %v1490 = vpop.f32.mrb[0].mxu0
      %v1491 = vpop.f32.mrb[0].mxu0
      %v1492 = vadd.f32 0.0, %v1491
      %v1493 = vpop.f32.mrb[0].mxu0
      %1494 = vmatprep.mubr.bf16.mxu0 0
      %1495 = vmatmul.mubr.bf16.gmra.mrb[0].mxu0 %v1171
      %v1496 = vpop.f32.mrb[0].mxu0
      %v1497 = vadd.f32 0.0, %v1496
      %v1498 = vpop.f32.mrb[0].mxu0
      %v1499 = vpop.f32.mrb[0].mxu0
      %v1500 = vadd.f32 0.0, %v1499
      %v1501 = vpop.f32.mrb[0].mxu0
      %1502 = vmatprep.mubr.bf16.mxu0 0
      %1503 = vmatmul.mubr.bf16.gmra.mrb[0].mxu0 %v1174
      %v1504 = vpop.f32.mrb[0].mxu0
      %v1505 = vadd.f32 0.0, %v1504
      %v1506 = vpop.f32.mrb[0].mxu0
      %v1507 = vpop.f32.mrb[0].mxu0
      %v1508 = vadd.f32 0.0, %v1507
      %v1509 = vpop.f32.mrb[0].mxu0
      %1510 = vmatprep.mubr.bf16.mxu0 0
      %1511 = vmatmul.mubr.bf16.gmra.mrb[0].mxu0 %v1177
      %v1512 = vpop.f32.mrb[0].mxu0
      %v1513 = vadd.f32 0.0, %v1512
      %v1514 = vpop.f32.mrb[0].mxu0
      %v1515 = vpop.f32.mrb[0].mxu0
      %v1516 = vadd.f32 0.0, %v1515
      %v1517 = vpop.f32.mrb[0].mxu0
      %1518 = vmatprep.mubr.bf16.mxu0 0
      %1519 = vmatmul.mubr.bf16.gmra.mrb[0].mxu0 %v1180
      %v1520 = vpop.f32.mrb[0].mxu0
      %v1521 = vadd.f32 0.0, %v1520
      %v1522 = vpop.f32.mrb[0].mxu0
      %v1523 = vpop.f32.mrb[0].mxu0
      %v1524 = vadd.f32 0.0, %v1523
      %v1525 = vpop.f32.mrb[0].mxu0
      %1526 = vmatprep.mubr.bf16.mxu0 0
      %1527 = vmatmul.mubr.bf16.gmra.mrb[0].mxu0 %v1183
      %v1528 = vpop.f32.mrb[0].mxu0
      %v1529 = vadd.f32 0.0, %v1528
      %v1530 = vpop.f32.mrb[0].mxu0
      %v1531 = vpop.f32.mrb[0].mxu0
      %v1532 = vadd.f32 0.0, %v1531
      %v1533 = vpop.f32.mrb[0].mxu0
      %1534 = vmatprep.mubr.bf16.mxu0 0
      %1535 = vmatmul.mubr.bf16.gmra.mrb[0].mxu0 %v1186
      %v1536 = vpop.f32.mrb[0].mxu0
      %v1537 = vadd.f32 0.0, %v1536
      %v1538 = vpop.f32.mrb[0].mxu0
      %v1539 = vpop.f32.mrb[0].mxu0
      %v1540 = vadd.f32 0.0, %v1539
      %v1541 = vpop.f32.mrb[0].mxu0
      %1542 = vmatprep.mubr.bf16.mxu0 0
      %1543 = vmatmul.mubr.bf16.gmra.mrb[0].mxu0 %v1189
      %v1544 = vpop.f32.mrb[0].mxu0
      %v1545 = vadd.f32 0.0, %v1544
      %v1546 = vpop.f32.mrb[0].mxu0
      %v1547 = vpop.f32.mrb[0].mxu0
      %v1548 = vadd.f32 0.0, %v1547
      %v1549 = vpop.f32.mrb[0].mxu0
      %1550 = vdwg.mxu0
      %vm1551 = vsmask.f32 4352
      %v1553 = vshrl.u32 %v903, 16
      %v1555 = vrot.slane %v1553, 3
      %v1556 = vshll.u32 %v903, 16
      %v1558 = vrot.slane %v1556, 4
      %v1559 = vor.u32 %v1555, %v1558
      %v1561 = vshrl.u32 %v904, 16
      %v1563 = vrot.slane %v1561, 3
      %v1564 = vshll.u32 %v904, 16
      %v1566 = vrot.slane %v1564, 4
      %v1567 = vor.u32 %v1563, %v1566
      %v1568 = vsel %vm1551, %v1559, %v1567
      %v1570 = vshrl.u32 %v905, 16
      %v1572 = vrot.slane %v1570, 3
      %v1573 = vshll.u32 %v905, 16
      %v1575 = vrot.slane %v1573, 4
      %v1576 = vor.u32 %v1572, %v1575
      %v1577 = vsel %vm1551, %v1567, %v1576
      %v1579 = vshrl.u32 %v906, 16
      %v1581 = vrot.slane %v1579, 3
      %v1582 = vshll.u32 %v906, 16
      %v1584 = vrot.slane %v1582, 4
      %v1585 = vor.u32 %v1581, %v1584
      %v1586 = vsel %vm1551, %v1576, %v1585
      %v1588 = vshrl.u32 %v907, 16
      %v1590 = vrot.slane %v1588, 3
      %v1591 = vshll.u32 %v907, 16
      %v1593 = vrot.slane %v1591, 4
      %v1594 = vor.u32 %v1590, %v1593
      %v1595 = vsel %vm1551, %v1585, %v1594
      %v1597 = vshrl.u32 %v908, 16
      %v1599 = vrot.slane %v1597, 3
      %v1600 = vshll.u32 %v908, 16
      %v1602 = vrot.slane %v1600, 4
      %v1603 = vor.u32 %v1599, %v1602
      %v1604 = vsel %vm1551, %v1594, %v1603
      %v1606 = vshrl.u32 %v909, 16
      %v1608 = vrot.slane %v1606, 3
      %v1609 = vshll.u32 %v909, 16
      %v1611 = vrot.slane %v1609, 4
      %v1612 = vor.u32 %v1608, %v1611
      %v1613 = vsel %vm1551, %v1603, %v1612
      %v1615 = vshrl.u32 %v910, 16
      %v1617 = vrot.slane %v1615, 3
      %v1618 = vshll.u32 %v910, 16
      %v1620 = vrot.slane %v1618, 4
      %v1621 = vor.u32 %v1617, %v1620
      %v1622 = vsel %vm1551, %v1612, %v1621
      %v1624 = vshrl.u32 %v911, 16
      %v1626 = vrot.slane %v1624, 3
      %v1627 = vshll.u32 %v911, 16
      %v1629 = vrot.slane %v1627, 4
      %v1630 = vor.u32 %v1626, %v1629
      %v1631 = vsel %vm1551, %v1621, %v1630
      %v1633 = vshrl.u32 %v912, 16
      %v1635 = vrot.slane %v1633, 3
      %v1636 = vshll.u32 %v912, 16
      %v1638 = vrot.slane %v1636, 4
      %v1639 = vor.u32 %v1635, %v1638
      %v1640 = vsel %vm1551, %v1630, %v1639
      %v1642 = vshrl.u32 %v913, 16
      %v1644 = vrot.slane %v1642, 3
      %v1645 = vshll.u32 %v913, 16
      %v1647 = vrot.slane %v1645, 4
      %v1648 = vor.u32 %v1644, %v1647
      %v1649 = vsel %vm1551, %v1639, %v1648
      %v1651 = vshrl.u32 %v914, 16
      %v1653 = vrot.slane %v1651, 3
      %v1654 = vshll.u32 %v914, 16
      %v1656 = vrot.slane %v1654, 4
      %v1657 = vor.u32 %v1653, %v1656
      %v1658 = vsel %vm1551, %v1648, %v1657
      %v1660 = vshrl.u32 %v915, 16
      %v1662 = vrot.slane %v1660, 3
      %v1663 = vshll.u32 %v915, 16
      %v1665 = vrot.slane %v1663, 4
      %v1666 = vor.u32 %v1662, %v1665
      %v1667 = vsel %vm1551, %v1657, %v1666
      %v1669 = vshrl.u32 %v916, 16
      %v1671 = vrot.slane %v1669, 3
      %v1672 = vshll.u32 %v916, 16
      %v1674 = vrot.slane %v1672, 4
      %v1675 = vor.u32 %v1671, %v1674
      %v1676 = vsel %vm1551, %v1666, %v1675
      %v1678 = vshrl.u32 %v917, 16
      %v1680 = vrot.slane %v1678, 3
      %v1681 = vshll.u32 %v917, 16
      %v1683 = vrot.slane %v1681, 4
      %v1684 = vor.u32 %v1680, %v1683
      %v1685 = vsel %vm1551, %v1675, %v1684
      %v1687 = vshrl.u32 %v918, 16
      %v1689 = vrot.slane %v1687, 3
      %v1690 = vshll.u32 %v918, 16
      %v1692 = vrot.slane %v1690, 4
      %v1693 = vor.u32 %v1689, %v1692
      %v1694 = vsel %vm1551, %v1684, %v1693
      %v1696 = vshrl.u32 %v919, 16
      %v1698 = vrot.slane %v1696, 3
      %v1699 = vshll.u32 %v919, 16
      %v1701 = vrot.slane %v1699, 4
      %v1702 = vor.u32 %v1698, %v1701
      %v1703 = vsel %vm1551, %v1693, %v1702
      %v1705 = vshrl.u32 %v920, 16
      %v1707 = vrot.slane %v1705, 3
      %v1708 = vshll.u32 %v920, 16
      %v1710 = vrot.slane %v1708, 4
      %v1711 = vor.u32 %v1707, %v1710
      %v1712 = vsel %vm1551, %v1702, %v1711
      %v1714 = vshrl.u32 %v921, 16
      %v1716 = vrot.slane %v1714, 3
      %v1717 = vshll.u32 %v921, 16
      %v1719 = vrot.slane %v1717, 4
      %v1720 = vor.u32 %v1716, %v1719
      %v1721 = vsel %vm1551, %v1711, %v1720
      %v1723 = vshrl.u32 %v922, 16
      %v1725 = vrot.slane %v1723, 3
      %v1726 = vshll.u32 %v922, 16
      %v1728 = vrot.slane %v1726, 4
      %v1729 = vor.u32 %v1725, %v1728
      %v1730 = vsel %vm1551, %v1720, %v1729
      %v1732 = vshrl.u32 %v923, 16
      %v1734 = vrot.slane %v1732, 3
      %v1735 = vshll.u32 %v923, 16
      %v1737 = vrot.slane %v1735, 4
      %v1738 = vor.u32 %v1734, %v1737
      %v1739 = vsel %vm1551, %v1729, %v1738
      %v1741 = vshrl.u32 %v924, 16
      %v1743 = vrot.slane %v1741, 3
      %v1744 = vshll.u32 %v924, 16
      %v1746 = vrot.slane %v1744, 4
      %v1747 = vor.u32 %v1743, %v1746
      %v1748 = vsel %vm1551, %v1738, %v1747
      %v1750 = vshrl.u32 %v925, 16
      %v1752 = vrot.slane %v1750, 3
      %v1753 = vshll.u32 %v925, 16
      %v1755 = vrot.slane %v1753, 4
      %v1756 = vor.u32 %v1752, %v1755
      %v1757 = vsel %vm1551, %v1747, %v1756
      %v1759 = vshrl.u32 %v926, 16
      %v1761 = vrot.slane %v1759, 3
      %v1762 = vshll.u32 %v926, 16
      %v1764 = vrot.slane %v1762, 4
      %v1765 = vor.u32 %v1761, %v1764
      %v1766 = vsel %vm1551, %v1756, %v1765
      %v1768 = vshrl.u32 %v927, 16
      %v1770 = vrot.slane %v1768, 3
      %v1771 = vshll.u32 %v927, 16
      %v1773 = vrot.slane %v1771, 4
      %v1774 = vor.u32 %v1770, %v1773
      %v1775 = vsel %vm1551, %v1765, %v1774
      %v1777 = vshrl.u32 %v928, 16
      %v1779 = vrot.slane %v1777, 3
      %v1780 = vshll.u32 %v928, 16
      %v1782 = vrot.slane %v1780, 4
      %v1783 = vor.u32 %v1779, %v1782
      %v1784 = vsel %vm1551, %v1774, %v1783
      %v1786 = vshrl.u32 %v929, 16
      %v1788 = vrot.slane %v1786, 3
      %v1789 = vshll.u32 %v929, 16
      %v1791 = vrot.slane %v1789, 4
      %v1792 = vor.u32 %v1788, %v1791
      %v1793 = vsel %vm1551, %v1783, %v1792
      %v1795 = vshrl.u32 %v930, 16
      %v1797 = vrot.slane %v1795, 3
      %v1798 = vshll.u32 %v930, 16
      %v1800 = vrot.slane %v1798, 4
      %v1801 = vor.u32 %v1797, %v1800
      %v1802 = vsel %vm1551, %v1792, %v1801
      %v1804 = vshrl.u32 %v931, 16
      %v1806 = vrot.slane %v1804, 3
      %v1807 = vshll.u32 %v931, 16
      %v1809 = vrot.slane %v1807, 4
      %v1810 = vor.u32 %v1806, %v1809
      %v1811 = vsel %vm1551, %v1801, %v1810
      %v1813 = vshrl.u32 %v932, 16
      %v1815 = vrot.slane %v1813, 3
      %v1816 = vshll.u32 %v932, 16
      %v1818 = vrot.slane %v1816, 4
      %v1819 = vor.u32 %v1815, %v1818
      %v1820 = vsel %vm1551, %v1810, %v1819
      %v1822 = vshrl.u32 %v933, 16
      %v1824 = vrot.slane %v1822, 3
      %v1825 = vshll.u32 %v933, 16
      %v1827 = vrot.slane %v1825, 4
      %v1828 = vor.u32 %v1824, %v1827
      %v1829 = vsel %vm1551, %v1819, %v1828
      %v1831 = vshrl.u32 %v934, 16
      %v1833 = vrot.slane %v1831, 3
      %v1834 = vshll.u32 %v934, 16
      %v1836 = vrot.slane %v1834, 4
      %v1837 = vor.u32 %v1833, %v1836
      %v1838 = vsel %vm1551, %v1828, %v1837
      %v1840 = vshrl.u32 %v935, 16
      %v1842 = vrot.slane %v1840, 3
      %v1843 = vshll.u32 %v935, 16
      %v1845 = vrot.slane %v1843, 4
      %v1846 = vor.u32 %v1842, %v1845
      %v1847 = vsel %vm1551, %v1837, %v1846
      %v1849 = vshrl.u32 %v936, 16
      %v1851 = vrot.slane %v1849, 3
      %v1852 = vshll.u32 %v936, 16
      %v1854 = vrot.slane %v1852, 4
      %v1855 = vor.u32 %v1851, %v1854
      %v1856 = vsel %vm1551, %v1846, %v1855
      %v1858 = vshrl.u32 %v937, 16
      %v1860 = vrot.slane %v1858, 3
      %v1861 = vshll.u32 %v937, 16
      %v1863 = vrot.slane %v1861, 4
      %v1864 = vor.u32 %v1860, %v1863
      %v1865 = vsel %vm1551, %v1855, %v1864
      %v1867 = vshrl.u32 %v938, 16
      %v1869 = vrot.slane %v1867, 3
      %v1870 = vshll.u32 %v938, 16
      %v1872 = vrot.slane %v1870, 4
      %v1873 = vor.u32 %v1869, %v1872
      %v1874 = vsel %vm1551, %v1864, %v1873
      %v1876 = vshrl.u32 %v939, 16
      %v1878 = vrot.slane %v1876, 3
      %v1879 = vshll.u32 %v939, 16
      %v1881 = vrot.slane %v1879, 4
      %v1882 = vor.u32 %v1878, %v1881
      %v1883 = vsel %vm1551, %v1873, %v1882
      %v1885 = vshrl.u32 %v940, 16
      %v1887 = vrot.slane %v1885, 3
      %v1888 = vshll.u32 %v940, 16
      %v1890 = vrot.slane %v1888, 4
      %v1891 = vor.u32 %v1887, %v1890
      %v1892 = vsel %vm1551, %v1882, %v1891
      %v1894 = vshrl.u32 %v941, 16
      %v1896 = vrot.slane %v1894, 3
      %v1897 = vshll.u32 %v941, 16
      %v1899 = vrot.slane %v1897, 4
      %v1900 = vor.u32 %v1896, %v1899
      %v1901 = vsel %vm1551, %v1891, %v1900
      %v1903 = vshrl.u32 %v942, 16
      %v1905 = vrot.slane %v1903, 3
      %v1906 = vshll.u32 %v942, 16
      %v1908 = vrot.slane %v1906, 4
      %v1909 = vor.u32 %v1905, %v1908
      %v1910 = vsel %vm1551, %v1900, %v1909
      %v1912 = vshrl.u32 %v943, 16
      %v1914 = vrot.slane %v1912, 3
      %v1915 = vshll.u32 %v943, 16
      %v1917 = vrot.slane %v1915, 4
      %v1918 = vor.u32 %v1914, %v1917
      %v1919 = vsel %vm1551, %v1909, %v1918
      %v1921 = vsel %vm827, %v1568, 0
      %v1924 = vsel %vm827, %v1577, 0
      %v1927 = vsel %vm827, %v1586, 0
      %v1930 = vsel %vm827, %v1595, 0
      %v1933 = vsel %vm827, %v1604, 0
      %v1936 = vsel %vm827, %v1613, 0
      %v1939 = vsel %vm827, %v1622, 0
      %v1942 = vsel %vm827, %v1631, 0
      %v1945 = vsel %vm827, %v1640, 0
      %v1948 = vsel %vm827, %v1649, 0
      %v1951 = vsel %vm827, %v1658, 0
      %v1954 = vsel %vm827, %v1667, 0
      %v1957 = vsel %vm827, %v1676, 0
      %v1960 = vsel %vm827, %v1685, 0
      %v1963 = vsel %vm827, %v1694, 0
      %v1966 = vsel %vm827, %v1703, 0
      %v1969 = vsel %vm827, %v1712, 0
      %v1972 = vsel %vm827, %v1721, 0
      %v1975 = vsel %vm827, %v1730, 0
      %v1978 = vsel %vm827, %v1739, 0
      %v1981 = vsel %vm827, %v1748, 0
      %v1984 = vsel %vm827, %v1757, 0
      %v1987 = vsel %vm827, %v1766, 0
      %v1990 = vsel %vm827, %v1775, 0
      %v1993 = vsel %vm827, %v1784, 0
      %v1996 = vsel %vm827, %v1793, 0
      %v1999 = vsel %vm827, %v1802, 0
      %v2002 = vsel %vm827, %v1811, 0
      %v2005 = vsel %vm827, %v1820, 0
      %v2008 = vsel %vm827, %v1829, 0
      %v2011 = vsel %vm827, %v1838, 0
      %v2014 = vsel %vm827, %v1847, 0
      %v2017 = vsel %vm827, %v1856, 0
      %v2020 = vsel %vm827, %v1865, 0
      %v2023 = vsel %vm827, %v1874, 0
      %v2026 = vsel %vm827, %v1883, 0
      %v2029 = vsel %vm827, %v1892, 0
      %v2032 = vsel %vm827, %v1901, 0
      %v2035 = vsel %vm827, %v1910, 0
      %v2038 = vsel %vm827, %v1919, 0
      %v2041 = vand.u32 %v944, %v1194
      %2043 = vmatprep.subr.bf16.mxu0 0
      %2044 = vmatpush1.bf16.msra.mxu0 %v2041
      %2045 = vmatprep.subr.bf16.mxu0 0
      %2046 = vmatpush1.bf16.msra.mxu0 0
      %2047 = vmatprep.subr.bf16.mxu0 0
      %2048 = vmatpush1.bf16.msra.mxu0 0
      %2049 = vmatprep.subr.bf16.mxu0 0
      %2050 = vmatpush1.bf16.msra.mxu0 0
      %2051 = vmatprep.subr.bf16.mxu0 0
      %2052 = vmatpush1.bf16.msra.mxu0 0
      %2053 = vmatprep.subr.bf16.mxu0 0
      %2054 = vmatpush1.bf16.msra.mxu0 0
      %2055 = vmatprep.subr.bf16.mxu0 0
      %2056 = vmatpush1.bf16.msra.mxu0 0
      %2057 = vmatprep.subr.bf16.mxu0 0
      %2058 = vmatpush1.bf16.msra.mxu0 0
      %2059 = vmatprep.subr.bf16.mxu0 0
      %2060 = vmatpush1.bf16.msra.mxu0 0
      %2061 = vmatprep.subr.bf16.mxu0 0
      %2062 = vmatpush1.bf16.msra.mxu0 0
      %2063 = vmatprep.subr.bf16.mxu0 0
      %2064 = vmatpush1.bf16.msra.mxu0 0
      %2065 = vmatprep.subr.bf16.mxu0 0
      %2066 = vmatpush1.bf16.msra.mxu0 0
      %2067 = vmatprep.subr.bf16.mxu0 0
      %2068 = vmatpush1.bf16.msra.mxu0 0
      %2069 = vmatprep.subr.bf16.mxu0 0
      %2070 = vmatpush1.bf16.msra.mxu0 0
      %2071 = vmatprep.subr.bf16.mxu0 0
      %2072 = vmatpush1.bf16.msra.mxu0 0
      %2073 = vmatprep.subr.bf16.mxu0 0
      %2074 = vmatpush1.bf16.msra.mxu0 0
      %2075 = vmatprep.mubr.bf16.mxu0 0
      %2076 = vmatmul.mubr.bf16.gmra.mrb[0].mxu0 %v1921
      %v2077 = vpop.f32.mrb[0].mxu0
      %v2078 = vadd.f32 %v1233, %v2077
      %v2079 = vpop.f32.mrb[0].mxu0
      %v2080 = vpop.f32.mrb[0].mxu0
      %v2081 = vadd.f32 %v1236, %v2080
      %v2082 = vpop.f32.mrb[0].mxu0
      %2083 = vmatprep.mubr.bf16.mxu0 0
      %2084 = vmatmul.mubr.bf16.gmra.mrb[0].mxu0 %v1924
      %v2085 = vpop.f32.mrb[0].mxu0
      %v2086 = vadd.f32 %v1241, %v2085
      %v2087 = vpop.f32.mrb[0].mxu0
      %v2088 = vpop.f32.mrb[0].mxu0
      %v2089 = vadd.f32 %v1244, %v2088
      %v2090 = vpop.f32.mrb[0].mxu0
      %2091 = vmatprep.mubr.bf16.mxu0 0
      %2092 = vmatmul.mubr.bf16.gmra.mrb[0].mxu0 %v1927
      %v2093 = vpop.f32.mrb[0].mxu0
      %v2094 = vadd.f32 %v1249, %v2093
      %v2095 = vpop.f32.mrb[0].mxu0
      %v2096 = vpop.f32.mrb[0].mxu0
      %v2097 = vadd.f32 %v1252, %v2096
      %v2098 = vpop.f32.mrb[0].mxu0
      %2099 = vmatprep.mubr.bf16.mxu0 0
      %2100 = vmatmul.mubr.bf16.gmra.mrb[0].mxu0 %v1930
      %v2101 = vpop.f32.mrb[0].mxu0
      %v2102 = vadd.f32 %v1257, %v2101
      %v2103 = vpop.f32.mrb[0].mxu0
      %v2104 = vpop.f32.mrb[0].mxu0
      %v2105 = vadd.f32 %v1260, %v2104
      %v2106 = vpop.f32.mrb[0].mxu0
      %2107 = vmatprep.mubr.bf16.mxu0 0
      %2108 = vmatmul.mubr.bf16.gmra.mrb[0].mxu0 %v1933
      %v2109 = vpop.f32.mrb[0].mxu0
      %v2110 = vadd.f32 %v1265, %v2109
      %v2111 = vpop.f32.mrb[0].mxu0
      %v2112 = vpop.f32.mrb[0].mxu0
      %v2113 = vadd.f32 %v1268, %v2112
      %v2114 = vpop.f32.mrb[0].mxu0
      %2115 = vmatprep.mubr.bf16.mxu0 0
      %2116 = vmatmul.mubr.bf16.gmra.mrb[0].mxu0 %v1936
      %v2117 = vpop.f32.mrb[0].mxu0
      %v2118 = vadd.f32 %v1273, %v2117
      %v2119 = vpop.f32.mrb[0].mxu0
      %v2120 = vpop.f32.mrb[0].mxu0
      %v2121 = vadd.f32 %v1276, %v2120
      %v2122 = vpop.f32.mrb[0].mxu0
      %2123 = vmatprep.mubr.bf16.mxu0 0
      %2124 = vmatmul.mubr.bf16.gmra.mrb[0].mxu0 %v1939
      %v2125 = vpop.f32.mrb[0].mxu0
      %v2126 = vadd.f32 %v1281, %v2125
      %v2127 = vpop.f32.mrb[0].mxu0
      %v2128 = vpop.f32.mrb[0].mxu0
      %v2129 = vadd.f32 %v1284, %v2128
      %v2130 = vpop.f32.mrb[0].mxu0
      %2131 = vmatprep.mubr.bf16.mxu0 0
      %2132 = vmatmul.mubr.bf16.gmra.mrb[0].mxu0 %v1942
      %v2133 = vpop.f32.mrb[0].mxu0
      %v2134 = vadd.f32 %v1289, %v2133
      %v2135 = vpop.f32.mrb[0].mxu0
      %v2136 = vpop.f32.mrb[0].mxu0
      %v2137 = vadd.f32 %v1292, %v2136
      %v2138 = vpop.f32.mrb[0].mxu0
      %2139 = vmatprep.mubr.bf16.mxu0 0
      %2140 = vmatmul.mubr.bf16.gmra.mrb[0].mxu0 %v1945
      %v2141 = vpop.f32.mrb[0].mxu0
      %v2142 = vadd.f32 %v1297, %v2141
      %v2143 = vpop.f32.mrb[0].mxu0
      %v2144 = vpop.f32.mrb[0].mxu0
      %v2145 = vadd.f32 %v1300, %v2144
      %v2146 = vpop.f32.mrb[0].mxu0
      %2147 = vmatprep.mubr.bf16.mxu0 0
      %2148 = vmatmul.mubr.bf16.gmra.mrb[0].mxu0 %v1948
      %v2149 = vpop.f32.mrb[0].mxu0
      %v2150 = vadd.f32 %v1305, %v2149
      %v2151 = vpop.f32.mrb[0].mxu0
      %v2152 = vpop.f32.mrb[0].mxu0
      %v2153 = vadd.f32 %v1308, %v2152
      %v2154 = vpop.f32.mrb[0].mxu0
      %2155 = vmatprep.mubr.bf16.mxu0 0
      %2156 = vmatmul.mubr.bf16.gmra.mrb[0].mxu0 %v1951
      %v2157 = vpop.f32.mrb[0].mxu0
      %v2158 = vadd.f32 %v1313, %v2157
      %v2159 = vpop.f32.mrb[0].mxu0
      %v2160 = vpop.f32.mrb[0].mxu0
      %v2161 = vadd.f32 %v1316, %v2160
      %v2162 = vpop.f32.mrb[0].mxu0
      %2163 = vmatprep.mubr.bf16.mxu0 0
      %2164 = vmatmul.mubr.bf16.gmra.mrb[0].mxu0 %v1954
      %v2165 = vpop.f32.mrb[0].mxu0
      %v2166 = vadd.f32 %v1321, %v2165
      %v2167 = vpop.f32.mrb[0].mxu0
      %v2168 = vpop.f32.mrb[0].mxu0
      %v2169 = vadd.f32 %v1324, %v2168
      %v2170 = vpop.f32.mrb[0].mxu0
      %2171 = vmatprep.mubr.bf16.mxu0 0
      %2172 = vmatmul.mubr.bf16.gmra.mrb[0].mxu0 %v1957
      %v2173 = vpop.f32.mrb[0].mxu0
      %v2174 = vadd.f32 %v1329, %v2173
      %v2175 = vpop.f32.mrb[0].mxu0
      %v2176 = vpop.f32.mrb[0].mxu0
      %v2177 = vadd.f32 %v1332, %v2176
      %v2178 = vpop.f32.mrb[0].mxu0
      %2179 = vmatprep.mubr.bf16.mxu0 0
      %2180 = vmatmul.mubr.bf16.gmra.mrb[0].mxu0 %v1960
      %v2181 = vpop.f32.mrb[0].mxu0
      %v2182 = vadd.f32 %v1337, %v2181
      %v2183 = vpop.f32.mrb[0].mxu0
      %v2184 = vpop.f32.mrb[0].mxu0
      %v2185 = vadd.f32 %v1340, %v2184
      %v2186 = vpop.f32.mrb[0].mxu0
      %2187 = vmatprep.mubr.bf16.mxu0 0
      %2188 = vmatmul.mubr.bf16.gmra.mrb[0].mxu0 %v1963
      %v2189 = vpop.f32.mrb[0].mxu0
      %v2190 = vadd.f32 %v1345, %v2189
      %v2191 = vpop.f32.mrb[0].mxu0
      %v2192 = vpop.f32.mrb[0].mxu0
      %v2193 = vadd.f32 %v1348, %v2192
      %v2194 = vpop.f32.mrb[0].mxu0
      %2195 = vmatprep.mubr.bf16.mxu0 0
      %2196 = vmatmul.mubr.bf16.gmra.mrb[0].mxu0 %v1966
      %v2197 = vpop.f32.mrb[0].mxu0
      %v2198 = vadd.f32 %v1353, %v2197
      %v2199 = vpop.f32.mrb[0].mxu0
      %v2200 = vpop.f32.mrb[0].mxu0
      %v2201 = vadd.f32 %v1356, %v2200
      %v2202 = vpop.f32.mrb[0].mxu0
      %2203 = vmatprep.mubr.bf16.mxu0 0
      %2204 = vmatmul.mubr.bf16.gmra.mrb[0].mxu0 %v1969
      %v2205 = vpop.f32.mrb[0].mxu0
      %v2206 = vadd.f32 %v1361, %v2205
      %v2207 = vpop.f32.mrb[0].mxu0
      %v2208 = vpop.f32.mrb[0].mxu0
      %v2209 = vadd.f32 %v1364, %v2208
      %v2210 = vpop.f32.mrb[0].mxu0
      %2211 = vmatprep.mubr.bf16.mxu0 0
      %2212 = vmatmul.mubr.bf16.gmra.mrb[0].mxu0 %v1972
      %v2213 = vpop.f32.mrb[0].mxu0
      %v2214 = vadd.f32 %v1369, %v2213
      %v2215 = vpop.f32.mrb[0].mxu0
      %v2216 = vpop.f32.mrb[0].mxu0
      %v2217 = vadd.f32 %v1372, %v2216
      %v2218 = vpop.f32.mrb[0].mxu0
      %2219 = vmatprep.mubr.bf16.mxu0 0
      %2220 = vmatmul.mubr.bf16.gmra.mrb[0].mxu0 %v1975
      %v2221 = vpop.f32.mrb[0].mxu0
      %v2222 = vadd.f32 %v1377, %v2221
      %v2223 = vpop.f32.mrb[0].mxu0
      %v2224 = vpop.f32.mrb[0].mxu0
      %v2225 = vadd.f32 %v1380, %v2224
      %v2226 = vpop.f32.mrb[0].mxu0
      %2227 = vmatprep.mubr.bf16.mxu0 0
      %2228 = vmatmul.mubr.bf16.gmra.mrb[0].mxu0 %v1978
      %v2229 = vpop.f32.mrb[0].mxu0
      %v2230 = vadd.f32 %v1385, %v2229
      %v2231 = vpop.f32.mrb[0].mxu0
      %v2232 = vpop.f32.mrb[0].mxu0
      %v2233 = vadd.f32 %v1388, %v2232
      %v2234 = vpop.f32.mrb[0].mxu0
      %2235 = vmatprep.mubr.bf16.mxu0 0
      %2236 = vmatmul.mubr.bf16.gmra.mrb[0].mxu0 %v1981
      %v2237 = vpop.f32.mrb[0].mxu0
      %v2238 = vadd.f32 %v1393, %v2237
      %v2239 = vpop.f32.mrb[0].mxu0
      %v2240 = vpop.f32.mrb[0].mxu0
      %v2241 = vadd.f32 %v1396, %v2240
      %v2242 = vpop.f32.mrb[0].mxu0
      %2243 = vmatprep.mubr.bf16.mxu0 0
      %2244 = vmatmul.mubr.bf16.gmra.mrb[0].mxu0 %v1984
      %v2245 = vpop.f32.mrb[0].mxu0
      %v2246 = vadd.f32 %v1401, %v2245
      %v2247 = vpop.f32.mrb[0].mxu0
      %v2248 = vpop.f32.mrb[0].mxu0
      %v2249 = vadd.f32 %v1404, %v2248
      %v2250 = vpop.f32.mrb[0].mxu0
      %2251 = vmatprep.mubr.bf16.mxu0 0
      %2252 = vmatmul.mubr.bf16.gmra.mrb[0].mxu0 %v1987
      %v2253 = vpop.f32.mrb[0].mxu0
      %v2254 = vadd.f32 %v1409, %v2253
      %v2255 = vpop.f32.mrb[0].mxu0
      %v2256 = vpop.f32.mrb[0].mxu0
      %v2257 = vadd.f32 %v1412, %v2256
      %v2258 = vpop.f32.mrb[0].mxu0
      %2259 = vmatprep.mubr.bf16.mxu0 0
      %2260 = vmatmul.mubr.bf16.gmra.mrb[0].mxu0 %v1990
      %v2261 = vpop.f32.mrb[0].mxu0
      %v2262 = vadd.f32 %v1417, %v2261
      %v2263 = vpop.f32.mrb[0].mxu0
      %v2264 = vpop.f32.mrb[0].mxu0
      %v2265 = vadd.f32 %v1420, %v2264
      %v2266 = vpop.f32.mrb[0].mxu0
      %2267 = vmatprep.mubr.bf16.mxu0 0
      %2268 = vmatmul.mubr.bf16.gmra.mrb[0].mxu0 %v1993
      %v2269 = vpop.f32.mrb[0].mxu0
      %v2270 = vadd.f32 %v1425, %v2269
      %v2271 = vpop.f32.mrb[0].mxu0
      %v2272 = vpop.f32.mrb[0].mxu0
      %v2273 = vadd.f32 %v1428, %v2272
      %v2274 = vpop.f32.mrb[0].mxu0
      %2275 = vmatprep.mubr.bf16.mxu0 0
      %2276 = vmatmul.mubr.bf16.gmra.mrb[0].mxu0 %v1996
      %v2277 = vpop.f32.mrb[0].mxu0
      %v2278 = vadd.f32 %v1433, %v2277
      %v2279 = vpop.f32.mrb[0].mxu0
      %v2280 = vpop.f32.mrb[0].mxu0
      %v2281 = vadd.f32 %v1436, %v2280
      %v2282 = vpop.f32.mrb[0].mxu0
      %2283 = vmatprep.mubr.bf16.mxu0 0
      %2284 = vmatmul.mubr.bf16.gmra.mrb[0].mxu0 %v1999
      %v2285 = vpop.f32.mrb[0].mxu0
      %v2286 = vadd.f32 %v1441, %v2285
      %v2287 = vpop.f32.mrb[0].mxu0
      %v2288 = vpop.f32.mrb[0].mxu0
      %v2289 = vadd.f32 %v1444, %v2288
      %v2290 = vpop.f32.mrb[0].mxu0
      %2291 = vmatprep.mubr.bf16.mxu0 0
      %2292 = vmatmul.mubr.bf16.gmra.mrb[0].mxu0 %v2002
      %v2293 = vpop.f32.mrb[0].mxu0
      %v2294 = vadd.f32 %v1449, %v2293
      %v2295 = vpop.f32.mrb[0].mxu0
      %v2296 = vpop.f32.mrb[0].mxu0
      %v2297 = vadd.f32 %v1452, %v2296
      %v2298 = vpop.f32.mrb[0].mxu0
      %2299 = vmatprep.mubr.bf16.mxu0 0
      %2300 = vmatmul.mubr.bf16.gmra.mrb[0].mxu0 %v2005
      %v2301 = vpop.f32.mrb[0].mxu0
      %v2302 = vadd.f32 %v1457, %v2301
      %v2303 = vpop.f32.mrb[0].mxu0
      %v2304 = vpop.f32.mrb[0].mxu0
      %v2305 = vadd.f32 %v1460, %v2304
      %v2306 = vpop.f32.mrb[0].mxu0
      %2307 = vmatprep.mubr.bf16.mxu0 0
      %2308 = vmatmul.mubr.bf16.gmra.mrb[0].mxu0 %v2008
      %v2309 = vpop.f32.mrb[0].mxu0
      %v2310 = vadd.f32 %v1465, %v2309
      %v2311 = vpop.f32.mrb[0].mxu0
      %v2312 = vpop.f32.mrb[0].mxu0
      %v2313 = vadd.f32 %v1468, %v2312
      %v2314 = vpop.f32.mrb[0].mxu0
      %2315 = vmatprep.mubr.bf16.mxu0 0
      %2316 = vmatmul.mubr.bf16.gmra.mrb[0].mxu0 %v2011
      %v2317 = vpop.f32.mrb[0].mxu0
      %v2318 = vadd.f32 %v1473, %v2317
      %v2319 = vpop.f32.mrb[0].mxu0
      %v2320 = vpop.f32.mrb[0].mxu0
      %v2321 = vadd.f32 %v1476, %v2320
      %v2322 = vpop.f32.mrb[0].mxu0
      %2323 = vmatprep.mubr.bf16.mxu0 0
      %2324 = vmatmul.mubr.bf16.gmra.mrb[0].mxu0 %v2014
      %v2325 = vpop.f32.mrb[0].mxu0
      %v2326 = vadd.f32 %v1481, %v2325
      %v2327 = vpop.f32.mrb[0].mxu0
      %v2328 = vpop.f32.mrb[0].mxu0
      %v2329 = vadd.f32 %v1484, %v2328
      %v2330 = vpop.f32.mrb[0].mxu0
      %2331 = vmatprep.mubr.bf16.mxu0 0
      %2332 = vmatmul.mubr.bf16.gmra.mrb[0].mxu0 %v2017
      %v2333 = vpop.f32.mrb[0].mxu0
      %v2334 = vadd.f32 %v1489, %v2333
      %v2335 = vpop.f32.mrb[0].mxu0
      %v2336 = vpop.f32.mrb[0].mxu0
      %v2337 = vadd.f32 %v1492, %v2336
      %v2338 = vpop.f32.mrb[0].mxu0
      %2339 = vmatprep.mubr.bf16.mxu0 0
      %2340 = vmatmul.mubr.bf16.gmra.mrb[0].mxu0 %v2020
      %v2341 = vpop.f32.mrb[0].mxu0
      %v2342 = vadd.f32 %v1497, %v2341
      %v2343 = vpop.f32.mrb[0].mxu0
      %v2344 = vpop.f32.mrb[0].mxu0
      %v2345 = vadd.f32 %v1500, %v2344
      %v2346 = vpop.f32.mrb[0].mxu0
      %2347 = vmatprep.mubr.bf16.mxu0 0
      %2348 = vmatmul.mubr.bf16.gmra.mrb[0].mxu0 %v2023
      %v2349 = vpop.f32.mrb[0].mxu0
      %v2350 = vadd.f32 %v1505, %v2349
      %v2351 = vpop.f32.mrb[0].mxu0
      %v2352 = vpop.f32.mrb[0].mxu0
      %v2353 = vadd.f32 %v1508, %v2352
      %v2354 = vpop.f32.mrb[0].mxu0
      %2355 = vmatprep.mubr.bf16.mxu0 0
      %2356 = vmatmul.mubr.bf16.gmra.mrb[0].mxu0 %v2026
      %v2357 = vpop.f32.mrb[0].mxu0
      %v2358 = vadd.f32 %v1513, %v2357
      %v2359 = vpop.f32.mrb[0].mxu0
      %v2360 = vpop.f32.mrb[0].mxu0
      %v2361 = vadd.f32 %v1516, %v2360
      %v2362 = vpop.f32.mrb[0].mxu0
      %2363 = vmatprep.mubr.bf16.mxu0 0
      %2364 = vmatmul.mubr.bf16.gmra.mrb[0].mxu0 %v2029
      %v2365 = vpop.f32.mrb[0].mxu0
      %v2366 = vadd.f32 %v1521, %v2365
      %v2367 = vpop.f32.mrb[0].mxu0
      %v2368 = vpop.f32.mrb[0].mxu0
      %v2369 = vadd.f32 %v1524, %v2368
      %v2370 = vpop.f32.mrb[0].mxu0
      %2371 = vmatprep.mubr.bf16.mxu0 0
      %2372 = vmatmul.mubr.bf16.gmra.mrb[0].mxu0 %v2032
      %v2373 = vpop.f32.mrb[0].mxu0
      %v2374 = vadd.f32 %v1529, %v2373
      %v2375 = vpop.f32.mrb[0].mxu0
      %v2376 = vpop.f32.mrb[0].mxu0
      %v2377 = vadd.f32 %v1532, %v2376
      %v2378 = vpop.f32.mrb[0].mxu0
      %2379 = vmatprep.mubr.bf16.mxu0 0
      %2380 = vmatmul.mubr.bf16.gmra.mrb[0].mxu0 %v2035
      %v2381 = vpop.f32.mrb[0].mxu0
      %v2382 = vadd.f32 %v1537, %v2381
      %v2383 = vpop.f32.mrb[0].mxu0
      %v2384 = vpop.f32.mrb[0].mxu0
      %v2385 = vadd.f32 %v1540, %v2384
      %v2386 = vpop.f32.mrb[0].mxu0
      %2387 = vmatprep.mubr.bf16.mxu0 0
      %2388 = vmatmul.mubr.bf16.gmra.mrb[0].mxu0 %v2038
      %v2389 = vpop.f32.mrb[0].mxu0
      %v2390 = vadd.f32 %v1545, %v2389
      %v2391 = vpop.f32.mrb[0].mxu0
      %v2392 = vpop.f32.mrb[0].mxu0
      %v2393 = vadd.f32 %v1548, %v2392
      %v2394 = vpop.f32.mrb[0].mxu0
      %2395 = vdwg.mxu0
      %v2396 = vld [vmem:[#allocation2 + $0x140] sm:$0x1f]
      %s2397 = scalar_lea.vmem %s448, 4
      %v2398 = vld [vmem:[%s2397] sm:$0x3]
      %vm2399 = vsmask.f32 3328
      %v2401 = vshrl.u32 %v945, 16
      %v2403 = vrot.slane %v2401, 4
      %v2404 = vshll.u32 %v945, 16
      %v2406 = vrot.slane %v2404, 5
      %v2407 = vor.u32 %v2403, %v2406
      %v2408 = vrot.slane %v1561, 4
      %v2409 = vrot.slane %v1564, 5
      %v2410 = vor.u32 %v2408, %v2409
      %v2411 = vsel %vm2399, %v2407, %v2410
      %v2412 = vrot.slane %v1570, 4
      %v2413 = vrot.slane %v1573, 5
      %v2414 = vor.u32 %v2412, %v2413
      %v2415 = vsel %vm2399, %v2410, %v2414
      %v2416 = vrot.slane %v1579, 4
      %v2417 = vrot.slane %v1582, 5
      %v2418 = vor.u32 %v2416, %v2417
      %v2419 = vsel %vm2399, %v2414, %v2418
      %v2420 = vrot.slane %v1588, 4
      %v2421 = vrot.slane %v1591, 5
      %v2422 = vor.u32 %v2420, %v2421
      %v2423 = vsel %vm2399, %v2418, %v2422
      %v2424 = vrot.slane %v1597, 4
      %v2425 = vrot.slane %v1600, 5
      %v2426 = vor.u32 %v2424, %v2425
      %v2427 = vsel %vm2399, %v2422, %v2426
      %v2428 = vrot.slane %v1606, 4
      %v2429 = vrot.slane %v1609, 5
      %v2430 = vor.u32 %v2428, %v2429
      %v2431 = vsel %vm2399, %v2426, %v2430
      %v2432 = vrot.slane %v1615, 4
      %v2433 = vrot.slane %v1618, 5
      %v2434 = vor.u32 %v2432, %v2433
      %v2435 = vsel %vm2399, %v2430, %v2434
      %v2436 = vrot.slane %v1624, 4
      %v2437 = vrot.slane %v1627, 5
      %v2438 = vor.u32 %v2436, %v2437
      %v2439 = vsel %vm2399, %v2434, %v2438
      %v2440 = vrot.slane %v1633, 4
      %v2441 = vrot.slane %v1636, 5
      %v2442 = vor.u32 %v2440, %v2441
      %v2443 = vsel %vm2399, %v2438, %v2442
      %v2444 = vrot.slane %v1642, 4
      %v2445 = vrot.slane %v1645, 5
      %v2446 = vor.u32 %v2444, %v2445
      %v2447 = vsel %vm2399, %v2442, %v2446
      %v2448 = vrot.slane %v1651, 4
      %v2449 = vrot.slane %v1654, 5
      %v2450 = vor.u32 %v2448, %v2449
      %v2451 = vsel %vm2399, %v2446, %v2450
      %v2452 = vrot.slane %v1660, 4
      %v2453 = vrot.slane %v1663, 5
      %v2454 = vor.u32 %v2452, %v2453
      %v2455 = vsel %vm2399, %v2450, %v2454
      %v2456 = vrot.slane %v1669, 4
      %v2457 = vrot.slane %v1672, 5
      %v2458 = vor.u32 %v2456, %v2457
      %v2459 = vsel %vm2399, %v2454, %v2458
      %v2460 = vrot.slane %v1678, 4
      %v2461 = vrot.slane %v1681, 5
      %v2462 = vor.u32 %v2460, %v2461
      %v2463 = vsel %vm2399, %v2458, %v2462
      %v2464 = vrot.slane %v1687, 4
      %v2465 = vrot.slane %v1690, 5
      %v2466 = vor.u32 %v2464, %v2465
      %v2467 = vsel %vm2399, %v2462, %v2466
      %v2468 = vrot.slane %v1696, 4
      %v2469 = vrot.slane %v1699, 5
      %v2470 = vor.u32 %v2468, %v2469
      %v2471 = vsel %vm2399, %v2466, %v2470
      %v2472 = vrot.slane %v1705, 4
      %v2473 = vrot.slane %v1708, 5
      %v2474 = vor.u32 %v2472, %v2473
      %v2475 = vsel %vm2399, %v2470, %v2474
      %v2476 = vrot.slane %v1714, 4
      %v2477 = vrot.slane %v1717, 5
      %v2478 = vor.u32 %v2476, %v2477
      %v2479 = vsel %vm2399, %v2474, %v2478
      %v2480 = vrot.slane %v1723, 4
      %v2481 = vrot.slane %v1726, 5
      %v2482 = vor.u32 %v2480, %v2481
      %v2483 = vsel %vm2399, %v2478, %v2482
      %v2484 = vrot.slane %v1732, 4
      %v2485 = vrot.slane %v1735, 5
      %v2486 = vor.u32 %v2484, %v2485
      %v2487 = vsel %vm2399, %v2482, %v2486
      %v2488 = vrot.slane %v1741, 4
      %v2489 = vrot.slane %v1744, 5
      %v2490 = vor.u32 %v2488, %v2489
      %v2491 = vsel %vm2399, %v2486, %v2490
      %v2492 = vrot.slane %v1750, 4
      %v2493 = vrot.slane %v1753, 5
      %v2494 = vor.u32 %v2492, %v2493
      %v2495 = vsel %vm2399, %v2490, %v2494
      %v2496 = vrot.slane %v1759, 4
      %v2497 = vrot.slane %v1762, 5
      %v2498 = vor.u32 %v2496, %v2497
      %v2499 = vsel %vm2399, %v2494, %v2498
      %v2500 = vrot.slane %v1768, 4
      %v2501 = vrot.slane %v1771, 5
      %v2502 = vor.u32 %v2500, %v2501
      %v2503 = vsel %vm2399, %v2498, %v2502
      %v2504 = vrot.slane %v1777, 4
      %v2505 = vrot.slane %v1780, 5
      %v2506 = vor.u32 %v2504, %v2505
      %v2507 = vsel %vm2399, %v2502, %v2506
      %v2508 = vrot.slane %v1786, 4
      %v2509 = vrot.slane %v1789, 5
      %v2510 = vor.u32 %v2508, %v2509
      %v2511 = vsel %vm2399, %v2506, %v2510
      %v2512 = vrot.slane %v1795, 4
      %v2513 = vrot.slane %v1798, 5
      %v2514 = vor.u32 %v2512, %v2513
      %v2515 = vsel %vm2399, %v2510, %v2514
      %v2516 = vrot.slane %v1804, 4
      %v2517 = vrot.slane %v1807, 5
      %v2518 = vor.u32 %v2516, %v2517
      %v2519 = vsel %vm2399, %v2514, %v2518
      %v2520 = vrot.slane %v1813, 4
      %v2521 = vrot.slane %v1816, 5
      %v2522 = vor.u32 %v2520, %v2521
      %v2523 = vsel %vm2399, %v2518, %v2522
      %v2524 = vrot.slane %v1822, 4
      %v2525 = vrot.slane %v1825, 5
      %v2526 = vor.u32 %v2524, %v2525
      %v2527 = vsel %vm2399, %v2522, %v2526
      %v2528 = vrot.slane %v1831, 4
      %v2529 = vrot.slane %v1834, 5
      %v2530 = vor.u32 %v2528, %v2529
      %v2531 = vsel %vm2399, %v2526, %v2530
      %v2532 = vrot.slane %v1840, 4
      %v2533 = vrot.slane %v1843, 5
      %v2534 = vor.u32 %v2532, %v2533
      %v2535 = vsel %vm2399, %v2530, %v2534
      %v2536 = vrot.slane %v1849, 4
      %v2537 = vrot.slane %v1852, 5
      %v2538 = vor.u32 %v2536, %v2537
      %v2539 = vsel %vm2399, %v2534, %v2538
      %v2540 = vrot.slane %v1858, 4
      %v2541 = vrot.slane %v1861, 5
      %v2542 = vor.u32 %v2540, %v2541
      %v2543 = vsel %vm2399, %v2538, %v2542
      %v2544 = vrot.slane %v1867, 4
      %v2545 = vrot.slane %v1870, 5
      %v2546 = vor.u32 %v2544, %v2545
      %v2547 = vsel %vm2399, %v2542, %v2546
      %v2548 = vrot.slane %v1876, 4
      %v2549 = vrot.slane %v1879, 5
      %v2550 = vor.u32 %v2548, %v2549
      %v2551 = vsel %vm2399, %v2546, %v2550
      %v2552 = vrot.slane %v1885, 4
      %v2553 = vrot.slane %v1888, 5
      %v2554 = vor.u32 %v2552, %v2553
      %v2555 = vsel %vm2399, %v2550, %v2554
      %v2556 = vrot.slane %v1894, 4
      %v2557 = vrot.slane %v1897, 5
      %v2558 = vor.u32 %v2556, %v2557
      %v2559 = vsel %vm2399, %v2554, %v2558
      %v2560 = vrot.slane %v1903, 4
      %v2561 = vrot.slane %v1906, 5
      %v2562 = vor.u32 %v2560, %v2561
      %v2563 = vsel %vm2399, %v2558, %v2562
      %v2565 = vshrl.u32 %v2396, 16
      %v2567 = vrot.slane %v2565, 4
      %v2568 = vshll.u32 %v2396, 16
      %v2570 = vrot.slane %v2568, 5
      %v2571 = vor.u32 %v2567, %v2570
      %v2572 = vsel %vm2399, %v2562, %v2571
      %v2574 = vsel %vm827, %v2411, 0
      %v2577 = vsel %vm827, %v2415, 0
      %v2580 = vsel %vm827, %v2419, 0
      %v2583 = vsel %vm827, %v2423, 0
      %v2586 = vsel %vm827, %v2427, 0
      %v2589 = vsel %vm827, %v2431, 0
      %v2592 = vsel %vm827, %v2435, 0
      %v2595 = vsel %vm827, %v2439, 0
      %v2598 = vsel %vm827, %v2443, 0
      %v2601 = vsel %vm827, %v2447, 0
      %v2604 = vsel %vm827, %v2451, 0
      %v2607 = vsel %vm827, %v2455, 0
      %v2610 = vsel %vm827, %v2459, 0
      %v2613 = vsel %vm827, %v2463, 0
      %v2616 = vsel %vm827, %v2467, 0
      %v2619 = vsel %vm827, %v2471, 0
      %v2622 = vsel %vm827, %v2475, 0
      %v2625 = vsel %vm827, %v2479, 0
      %v2628 = vsel %vm827, %v2483, 0
      %v2631 = vsel %vm827, %v2487, 0
      %v2634 = vsel %vm827, %v2491, 0
      %v2637 = vsel %vm827, %v2495, 0
      %v2640 = vsel %vm827, %v2499, 0
      %v2643 = vsel %vm827, %v2503, 0
      %v2646 = vsel %vm827, %v2507, 0
      %v2649 = vsel %vm827, %v2511, 0
      %v2652 = vsel %vm827, %v2515, 0
      %v2655 = vsel %vm827, %v2519, 0
      %v2658 = vsel %vm827, %v2523, 0
      %v2661 = vsel %vm827, %v2527, 0
      %v2664 = vsel %vm827, %v2531, 0
      %v2667 = vsel %vm827, %v2535, 0
      %v2670 = vsel %vm827, %v2539, 0
      %v2673 = vsel %vm827, %v2543, 0
      %v2676 = vsel %vm827, %v2547, 0
      %v2679 = vsel %vm827, %v2551, 0
      %v2682 = vsel %vm827, %v2555, 0
      %v2685 = vsel %vm827, %v2559, 0
      %v2688 = vsel %vm827, %v2563, 0
      %v2691 = vsel %vm827, %v2572, 0
      %v2694 = vand.u32 %v2398, %v1194
      %2696 = vmatprep.subr.bf16.mxu0 0
      %2697 = vmatpush1.bf16.msra.mxu0 %v2694
      %2698 = vmatprep.subr.bf16.mxu0 0
      %2699 = vmatpush1.bf16.msra.mxu0 0
      %2700 = vmatprep.subr.bf16.mxu0 0
      %2701 = vmatpush1.bf16.msra.mxu0 0
      %2702 = vmatprep.subr.bf16.mxu0 0
      %2703 = vmatpush1.bf16.msra.mxu0 0
      %2704 = vmatprep.subr.bf16.mxu0 0
      %2705 = vmatpush1.bf16.msra.mxu0 0
      %2706 = vmatprep.subr.bf16.mxu0 0
      %2707 = vmatpush1.bf16.msra.mxu0 0
      %2708 = vmatprep.subr.bf16.mxu0 0
      %2709 = vmatpush1.bf16.msra.mxu0 0
      %2710 = vmatprep.subr.bf16.mxu0 0
      %2711 = vmatpush1.bf16.msra.mxu0 0
      %2712 = vmatprep.subr.bf16.mxu0 0
      %2713 = vmatpush1.bf16.msra.mxu0 0
      %2714 = vmatprep.subr.bf16.mxu0 0
      %2715 = vmatpush1.bf16.msra.mxu0 0
      %2716 = vmatprep.subr.bf16.mxu0 0
      %2717 = vmatpush1.bf16.msra.mxu0 0
      %2718 = vmatprep.subr.bf16.mxu0 0
      %2719 = vmatpush1.bf16.msra.mxu0 0
      %2720 = vmatprep.subr.bf16.mxu0 0
      %2721 = vmatpush1.bf16.msra.mxu0 0
      %2722 = vmatprep.subr.bf16.mxu0 0
      %2723 = vmatpush1.bf16.msra.mxu0 0
      %2724 = vmatprep.subr.bf16.mxu0 0
      %2725 = vmatpush1.bf16.msra.mxu0 0
      %2726 = vmatprep.subr.bf16.mxu0 0
      %2727 = vmatpush1.bf16.msra.mxu0 0
      %2728 = vmatprep.mubr.bf16.mxu0 0
      %2729 = vmatmul.mubr.bf16.gmra.mrb[0].mxu0 %v2574
      %v2730 = vpop.f32.mrb[0].mxu0
      %v2731 = vadd.f32 0.0, %v2730
      %v2732 = vpop.f32.mrb[0].mxu0
      %v2733 = vpop.f32.mrb[0].mxu0
      %v2734 = vadd.f32 0.0, %v2733
      %v2735 = vpop.f32.mrb[0].mxu0
      %2736 = vmatprep.mubr.bf16.mxu0 0
      %2737 = vmatmul.mubr.bf16.gmra.mrb[0].mxu0 %v2577
      %v2738 = vpop.f32.mrb[0].mxu0
      %v2739 = vadd.f32 0.0, %v2738
      %v2740 = vpop.f32.mrb[0].mxu0
      %v2741 = vpop.f32.mrb[0].mxu0
      %v2742 = vadd.f32 0.0, %v2741
      %v2743 = vpop.f32.mrb[0].mxu0
      %2744 = vmatprep.mubr.bf16.mxu0 0
      %2745 = vmatmul.mubr.bf16.gmra.mrb[0].mxu0 %v2580
      %v2746 = vpop.f32.mrb[0].mxu0
      %v2747 = vadd.f32 0.0, %v2746
      %v2748 = vpop.f32.mrb[0].mxu0
      %v2749 = vpop.f32.mrb[0].mxu0
      %v2750 = vadd.f32 0.0, %v2749
      %v2751 = vpop.f32.mrb[0].mxu0
      %2752 = vmatprep.mubr.bf16.mxu0 0
      %2753 = vmatmul.mubr.bf16.gmra.mrb[0].mxu0 %v2583
      %v2754 = vpop.f32.mrb[0].mxu0
      %v2755 = vadd.f32 0.0, %v2754
      %v2756 = vpop.f32.mrb[0].mxu0
      %v2757 = vpop.f32.mrb[0].mxu0
      %v2758 = vadd.f32 0.0, %v2757
      %v2759 = vpop.f32.mrb[0].mxu0
      %2760 = vmatprep.mubr.bf16.mxu0 0
      %2761 = vmatmul.mubr.bf16.gmra.mrb[0].mxu0 %v2586
      %v2762 = vpop.f32.mrb[0].mxu0
      %v2763 = vadd.f32 0.0, %v2762
      %v2764 = vpop.f32.mrb[0].mxu0
      %v2765 = vpop.f32.mrb[0].mxu0
      %v2766 = vadd.f32 0.0, %v2765
      %v2767 = vpop.f32.mrb[0].mxu0
      %2768 = vmatprep.mubr.bf16.mxu0 0
      %2769 = vmatmul.mubr.bf16.gmra.mrb[0].mxu0 %v2589
      %v2770 = vpop.f32.mrb[0].mxu0
      %v2771 = vadd.f32 0.0, %v2770
      %v2772 = vpop.f32.mrb[0].mxu0
      %v2773 = vpop.f32.mrb[0].mxu0
      %v2774 = vadd.f32 0.0, %v2773
      %v2775 = vpop.f32.mrb[0].mxu0
      %2776 = vmatprep.mubr.bf16.mxu0 0
      %2777 = vmatmul.mubr.bf16.gmra.mrb[0].mxu0 %v2592
      %v2778 = vpop.f32.mrb[0].mxu0
      %v2779 = vadd.f32 0.0, %v2778
      %v2780 = vpop.f32.mrb[0].mxu0
      %v2781 = vpop.f32.mrb[0].mxu0
      %v2782 = vadd.f32 0.0, %v2781
      %v2783 = vpop.f32.mrb[0].mxu0
      %2784 = vmatprep.mubr.bf16.mxu0 0
      %2785 = vmatmul.mubr.bf16.gmra.mrb[0].mxu0 %v2595
      %v2786 = vpop.f32.mrb[0].mxu0
      %v2787 = vadd.f32 0.0, %v2786
      %v2788 = vpop.f32.mrb[0].mxu0
      %v2789 = vpop.f32.mrb[0].mxu0
      %v2790 = vadd.f32 0.0, %v2789
      %v2791 = vpop.f32.mrb[0].mxu0
      %2792 = vmatprep.mubr.bf16.mxu0 0
      %2793 = vmatmul.mubr.bf16.gmra.mrb[0].mxu0 %v2598
      %v2794 = vpop.f32.mrb[0].mxu0
      %v2795 = vadd.f32 0.0, %v2794
      %v2796 = vpop.f32.mrb[0].mxu0
      %v2797 = vpop.f32.mrb[0].mxu0
      %v2798 = vadd.f32 0.0, %v2797
      %v2799 = vpop.f32.mrb[0].mxu0
      %2800 = vmatprep.mubr.bf16.mxu0 0
      %2801 = vmatmul.mubr.bf16.gmra.mrb[0].mxu0 %v2601
      %v2802 = vpop.f32.mrb[0].mxu0
      %v2803 = vadd.f32 0.0, %v2802
      %v2804 = vpop.f32.mrb[0].mxu0
      %v2805 = vpop.f32.mrb[0].mxu0
      %v2806 = vadd.f32 0.0, %v2805
      %v2807 = vpop.f32.mrb[0].mxu0
      %2808 = vmatprep.mubr.bf16.mxu0 0
      %2809 = vmatmul.mubr.bf16.gmra.mrb[0].mxu0 %v2604
      %v2810 = vpop.f32.mrb[0].mxu0
      %v2811 = vadd.f32 0.0, %v2810
      %v2812 = vpop.f32.mrb[0].mxu0
      %v2813 = vpop.f32.mrb[0].mxu0
      %v2814 = vadd.f32 0.0, %v2813
      %v2815 = vpop.f32.mrb[0].mxu0
      %2816 = vmatprep.mubr.bf16.mxu0 0
      %2817 = vmatmul.mubr.bf16.gmra.mrb[0].mxu0 %v2607
      %v2818 = vpop.f32.mrb[0].mxu0
      %v2819 = vadd.f32 0.0, %v2818
      %v2820 = vpop.f32.mrb[0].mxu0
      %v2821 = vpop.f32.mrb[0].mxu0
      %v2822 = vadd.f32 0.0, %v2821
      %v2823 = vpop.f32.mrb[0].mxu0
      %2824 = vmatprep.mubr.bf16.mxu0 0
      %2825 = vmatmul.mubr.bf16.gmra.mrb[0].mxu0 %v2610
      %v2826 = vpop.f32.mrb[0].mxu0
      %v2827 = vadd.f32 0.0, %v2826
      %v2828 = vpop.f32.mrb[0].mxu0
      %v2829 = vpop.f32.mrb[0].mxu0
      %v2830 = vadd.f32 0.0, %v2829
      %v2831 = vpop.f32.mrb[0].mxu0
      %2832 = vmatprep.mubr.bf16.mxu0 0
      %2833 = vmatmul.mubr.bf16.gmra.mrb[0].mxu0 %v2613
      %v2834 = vpop.f32.mrb[0].mxu0
      %v2835 = vadd.f32 0.0, %v2834
      %v2836 = vpop.f32.mrb[0].mxu0
      %v2837 = vpop.f32.mrb[0].mxu0
      %v2838 = vadd.f32 0.0, %v2837
      %v2839 = vpop.f32.mrb[0].mxu0
      %2840 = vmatprep.mubr.bf16.mxu0 0
      %2841 = vmatmul.mubr.bf16.gmra.mrb[0].mxu0 %v2616
      %v2842 = vpop.f32.mrb[0].mxu0
      %v2843 = vadd.f32 0.0, %v2842
      %v2844 = vpop.f32.mrb[0].mxu0
      %v2845 = vpop.f32.mrb[0].mxu0
      %v2846 = vadd.f32 0.0, %v2845
      %v2847 = vpop.f32.mrb[0].mxu0
      %2848 = vmatprep.mubr.bf16.mxu0 0
      %2849 = vmatmul.mubr.bf16.gmra.mrb[0].mxu0 %v2619
      %v2850 = vpop.f32.mrb[0].mxu0
      %v2851 = vadd.f32 0.0, %v2850
      %v2852 = vpop.f32.mrb[0].mxu0
      %v2853 = vpop.f32.mrb[0].mxu0
      %v2854 = vadd.f32 0.0, %v2853
      %v2855 = vpop.f32.mrb[0].mxu0
      %2856 = vmatprep.mubr.bf16.mxu0 0
      %2857 = vmatmul.mubr.bf16.gmra.mrb[0].mxu0 %v2622
      %v2858 = vpop.f32.mrb[0].mxu0
      %v2859 = vadd.f32 0.0, %v2858
      %v2860 = vpop.f32.mrb[0].mxu0
      %v2861 = vpop.f32.mrb[0].mxu0
      %v2862 = vadd.f32 0.0, %v2861
      %v2863 = vpop.f32.mrb[0].mxu0
      %2864 = vmatprep.mubr.bf16.mxu0 0
      %2865 = vmatmul.mubr.bf16.gmra.mrb[0].mxu0 %v2625
      %v2866 = vpop.f32.mrb[0].mxu0
      %v2867 = vadd.f32 0.0, %v2866
      %v2868 = vpop.f32.mrb[0].mxu0
      %v2869 = vpop.f32.mrb[0].mxu0
      %v2870 = vadd.f32 0.0, %v2869
      %v2871 = vpop.f32.mrb[0].mxu0
      %2872 = vmatprep.mubr.bf16.mxu0 0
      %2873 = vmatmul.mubr.bf16.gmra.mrb[0].mxu0 %v2628
      %v2874 = vpop.f32.mrb[0].mxu0
      %v2875 = vadd.f32 0.0, %v2874
      %v2876 = vpop.f32.mrb[0].mxu0
      %v2877 = vpop.f32.mrb[0].mxu0
      %v2878 = vadd.f32 0.0, %v2877
      %v2879 = vpop.f32.mrb[0].mxu0
      %2880 = vmatprep.mubr.bf16.mxu0 0
      %2881 = vmatmul.mubr.bf16.gmra.mrb[0].mxu0 %v2631
      %v2882 = vpop.f32.mrb[0].mxu0
      %v2883 = vadd.f32 0.0, %v2882
      %v2884 = vpop.f32.mrb[0].mxu0
      %v2885 = vpop.f32.mrb[0].mxu0
      %v2886 = vadd.f32 0.0, %v2885
      %v2887 = vpop.f32.mrb[0].mxu0
      %2888 = vmatprep.mubr.bf16.mxu0 0
      %2889 = vmatmul.mubr.bf16.gmra.mrb[0].mxu0 %v2634
      %v2890 = vpop.f32.mrb[0].mxu0
      %v2891 = vadd.f32 0.0, %v2890
      %v2892 = vpop.f32.mrb[0].mxu0
      %v2893 = vpop.f32.mrb[0].mxu0
      %v2894 = vadd.f32 0.0, %v2893
      %v2895 = vpop.f32.mrb[0].mxu0
      %2896 = vmatprep.mubr.bf16.mxu0 0
      %2897 = vmatmul.mubr.bf16.gmra.mrb[0].mxu0 %v2637
      %v2898 = vpop.f32.mrb[0].mxu0
      %v2899 = vadd.f32 0.0, %v2898
      %v2900 = vpop.f32.mrb[0].mxu0
      %v2901 = vpop.f32.mrb[0].mxu0
      %v2902 = vadd.f32 0.0, %v2901
      %v2903 = vpop.f32.mrb[0].mxu0
      %2904 = vmatprep.mubr.bf16.mxu0 0
      %2905 = vmatmul.mubr.bf16.gmra.mrb[0].mxu0 %v2640
      %v2906 = vpop.f32.mrb[0].mxu0
      %v2907 = vadd.f32 0.0, %v2906
      %v2908 = vpop.f32.mrb[0].mxu0
      %v2909 = vpop.f32.mrb[0].mxu0
      %v2910 = vadd.f32 0.0, %v2909
      %v2911 = vpop.f32.mrb[0].mxu0
      %2912 = vmatprep.mubr.bf16.mxu0 0
      %2913 = vmatmul.mubr.bf16.gmra.mrb[0].mxu0 %v2643
      %v2914 = vpop.f32.mrb[0].mxu0
      %v2915 = vadd.f32 0.0, %v2914
      %v2916 = vpop.f32.mrb[0].mxu0
      %v2917 = vpop.f32.mrb[0].mxu0
      %v2918 = vadd.f32 0.0, %v2917
      %v2919 = vpop.f32.mrb[0].mxu0
      %2920 = vmatprep.mubr.bf16.mxu0 0
      %2921 = vmatmul.mubr.bf16.gmra.mrb[0].mxu0 %v2646
      %v2922 = vpop.f32.mrb[0].mxu0
      %v2923 = vadd.f32 0.0, %v2922
      %v2924 = vpop.f32.mrb[0].mxu0
      %v2925 = vpop.f32.mrb[0].mxu0
      %v2926 = vadd.f32 0.0, %v2925
      %v2927 = vpop.f32.mrb[0].mxu0
      %2928 = vmatprep.mubr.bf16.mxu0 0
      %2929 = vmatmul.mubr.bf16.gmra.mrb[0].mxu0 %v2649
      %v2930 = vpop.f32.mrb[0].mxu0
      %v2931 = vadd.f32 0.0, %v2930
      %v2932 = vpop.f32.mrb[0].mxu0
      %v2933 = vpop.f32.mrb[0].mxu0
      %v2934 = vadd.f32 0.0, %v2933
      %v2935 = vpop.f32.mrb[0].mxu0
      %2936 = vmatprep.mubr.bf16.mxu0 0
      %2937 = vmatmul.mubr.bf16.gmra.mrb[0].mxu0 %v2652
      %v2938 = vpop.f32.mrb[0].mxu0
      %v2939 = vadd.f32 0.0, %v2938
      %v2940 = vpop.f32.mrb[0].mxu0
      %v2941 = vpop.f32.mrb[0].mxu0
      %v2942 = vadd.f32 0.0, %v2941
      %v2943 = vpop.f32.mrb[0].mxu0
      %2944 = vmatprep.mubr.bf16.mxu0 0
      %2945 = vmatmul.mubr.bf16.gmra.mrb[0].mxu0 %v2655
      %v2946 = vpop.f32.mrb[0].mxu0
      %v2947 = vadd.f32 0.0, %v2946
      %v2948 = vpop.f32.mrb[0].mxu0
      %v2949 = vpop.f32.mrb[0].mxu0
      %v2950 = vadd.f32 0.0, %v2949
      %v2951 = vpop.f32.mrb[0].mxu0
      %2952 = vmatprep.mubr.bf16.mxu0 0
      %2953 = vmatmul.mubr.bf16.gmra.mrb[0].mxu0 %v2658
      %v2954 = vpop.f32.mrb[0].mxu0
      %v2955 = vadd.f32 0.0, %v2954
      %v2956 = vpop.f32.mrb[0].mxu0
      %v2957 = vpop.f32.mrb[0].mxu0
      %v2958 = vadd.f32 0.0, %v2957
      %v2959 = vpop.f32.mrb[0].mxu0
      %2960 = vmatprep.mubr.bf16.mxu0 0
      %2961 = vmatmul.mubr.bf16.gmra.mrb[0].mxu0 %v2661
      %v2962 = vpop.f32.mrb[0].mxu0
      %v2963 = vadd.f32 0.0, %v2962
      %v2964 = vpop.f32.mrb[0].mxu0
      %v2965 = vpop.f32.mrb[0].mxu0
      %v2966 = vadd.f32 0.0, %v2965
      %v2967 = vpop.f32.mrb[0].mxu0
      %2968 = vmatprep.mubr.bf16.mxu0 0
      %2969 = vmatmul.mubr.bf16.gmra.mrb[0].mxu0 %v2664
      %v2970 = vpop.f32.mrb[0].mxu0
      %v2971 = vadd.f32 0.0, %v2970
      %v2972 = vpop.f32.mrb[0].mxu0
      %v2973 = vpop.f32.mrb[0].mxu0
      %v2974 = vadd.f32 0.0, %v2973
      %v2975 = vpop.f32.mrb[0].mxu0
      %2976 = vmatprep.mubr.bf16.mxu0 0
      %2977 = vmatmul.mubr.bf16.gmra.mrb[0].mxu0 %v2667
      %v2978 = vpop.f32.mrb[0].mxu0
      %v2979 = vadd.f32 0.0, %v2978
      %v2980 = vpop.f32.mrb[0].mxu0
      %v2981 = vpop.f32.mrb[0].mxu0
      %v2982 = vadd.f32 0.0, %v2981
      %v2983 = vpop.f32.mrb[0].mxu0
      %2984 = vmatprep.mubr.bf16.mxu0 0
      %2985 = vmatmul.mubr.bf16.gmra.mrb[0].mxu0 %v2670
      %v2986 = vpop.f32.mrb[0].mxu0
      %v2987 = vadd.f32 0.0, %v2986
      %v2988 = vpop.f32.mrb[0].mxu0
      %v2989 = vpop.f32.mrb[0].mxu0
      %v2990 = vadd.f32 0.0, %v2989
      %v2991 = vpop.f32.mrb[0].mxu0
      %2992 = vmatprep.mubr.bf16.mxu0 0
      %2993 = vmatmul.mubr.bf16.gmra.mrb[0].mxu0 %v2673
      %v2994 = vpop.f32.mrb[0].mxu0
      %v2995 = vadd.f32 0.0, %v2994
      %v2996 = vpop.f32.mrb[0].mxu0
      %v2997 = vpop.f32.mrb[0].mxu0
      %v2998 = vadd.f32 0.0, %v2997
      %v2999 = vpop.f32.mrb[0].mxu0
      %3000 = vmatprep.mubr.bf16.mxu0 0
      %3001 = vmatmul.mubr.bf16.gmra.mrb[0].mxu0 %v2676
      %v3002 = vpop.f32.mrb[0].mxu0
      %v3003 = vadd.f32 0.0, %v3002
      %v3004 = vpop.f32.mrb[0].mxu0
      %v3005 = vpop.f32.mrb[0].mxu0
      %v3006 = vadd.f32 0.0, %v3005
      %v3007 = vpop.f32.mrb[0].mxu0
      %3008 = vmatprep.mubr.bf16.mxu0 0
      %3009 = vmatmul.mubr.bf16.gmra.mrb[0].mxu0 %v2679
      %v3010 = vpop.f32.mrb[0].mxu0
      %v3011 = vadd.f32 0.0, %v3010
      %v3012 = vpop.f32.mrb[0].mxu0
      %v3013 = vpop.f32.mrb[0].mxu0
      %v3014 = vadd.f32 0.0, %v3013
      %v3015 = vpop.f32.mrb[0].mxu0
      %3016 = vmatprep.mubr.bf16.mxu0 0
      %3017 = vmatmul.mubr.bf16.gmra.mrb[0].mxu0 %v2682
      %v3018 = vpop.f32.mrb[0].mxu0
      %v3019 = vadd.f32 0.0, %v3018
      %v3020 = vpop.f32.mrb[0].mxu0
      %v3021 = vpop.f32.mrb[0].mxu0
      %v3022 = vadd.f32 0.0, %v3021
      %v3023 = vpop.f32.mrb[0].mxu0
      %3024 = vmatprep.mubr.bf16.mxu0 0
      %3025 = vmatmul.mubr.bf16.gmra.mrb[0].mxu0 %v2685
      %v3026 = vpop.f32.mrb[0].mxu0
      %v3027 = vadd.f32 0.0, %v3026
      %v3028 = vpop.f32.mrb[0].mxu0
      %v3029 = vpop.f32.mrb[0].mxu0
      %v3030 = vadd.f32 0.0, %v3029
      %v3031 = vpop.f32.mrb[0].mxu0
      %3032 = vmatprep.mubr.bf16.mxu0 0
      %3033 = vmatmul.mubr.bf16.gmra.mrb[0].mxu0 %v2688
      %v3034 = vpop.f32.mrb[0].mxu0
      %v3035 = vadd.f32 0.0, %v3034
      %v3036 = vpop.f32.mrb[0].mxu0
      %v3037 = vpop.f32.mrb[0].mxu0
      %v3038 = vadd.f32 0.0, %v3037
      %v3039 = vpop.f32.mrb[0].mxu0
      %3040 = vmatprep.mubr.bf16.mxu0 0
      %3041 = vmatmul.mubr.bf16.gmra.mrb[0].mxu0 %v2691
      %v3042 = vpop.f32.mrb[0].mxu0
      %v3043 = vadd.f32 0.0, %v3042
      %v3044 = vpop.f32.mrb[0].mxu0
      %v3045 = vpop.f32.mrb[0].mxu0
      %v3046 = vadd.f32 0.0, %v3045
      %v3047 = vpop.f32.mrb[0].mxu0
      %3048 = vdwg.mxu0
      %v3049 = vadd.f32 %v2078, %v2731
      %v3050 = vadd.f32 %v2081, %v2734
      %v3051 = vadd.f32 %v2086, %v2739
      %v3052 = vadd.f32 %v2089, %v2742
      %v3053 = vadd.f32 %v2094, %v2747
      %v3054 = vadd.f32 %v2097, %v2750
      %v3055 = vadd.f32 %v2102, %v2755
      %v3056 = vadd.f32 %v2105, %v2758
      %v3057 = vadd.f32 %v2110, %v2763
      %v3058 = vadd.f32 %v2113, %v2766
      %v3059 = vadd.f32 %v2118, %v2771
      %v3060 = vadd.f32 %v2121, %v2774
      %v3061 = vadd.f32 %v2126, %v2779
      %v3062 = vadd.f32 %v2129, %v2782
      %v3063 = vadd.f32 %v2134, %v2787
      %v3064 = vadd.f32 %v2137, %v2790
      %v3065 = vadd.f32 %v2142, %v2795
      %v3066 = vadd.f32 %v2145, %v2798
      %v3067 = vadd.f32 %v2150, %v2803
      %v3068 = vadd.f32 %v2153, %v2806
      %v3069 = vadd.f32 %v2158, %v2811
      %v3070 = vadd.f32 %v2161, %v2814
      %v3071 = vadd.f32 %v2166, %v2819
      %v3072 = vadd.f32 %v2169, %v2822
      %v3073 = vadd.f32 %v2174, %v2827
      %v3074 = vadd.f32 %v2177, %v2830
      %v3075 = vadd.f32 %v2182, %v2835
      %v3076 = vadd.f32 %v2185, %v2838
      %v3077 = vadd.f32 %v2190, %v2843
      %v3078 = vadd.f32 %v2193, %v2846
      %v3079 = vadd.f32 %v2198, %v2851
      %v3080 = vadd.f32 %v2201, %v2854
      %v3081 = vadd.f32 %v2206, %v2859
      %v3082 = vadd.f32 %v2209, %v2862
      %v3083 = vadd.f32 %v2214, %v2867
      %v3084 = vadd.f32 %v2217, %v2870
      %v3085 = vadd.f32 %v2222, %v2875
      %v3086 = vadd.f32 %v2225, %v2878
      %v3087 = vadd.f32 %v2230, %v2883
      %v3088 = vadd.f32 %v2233, %v2886
      %v3089 = vadd.f32 %v2238, %v2891
      %v3090 = vadd.f32 %v2241, %v2894
      %v3091 = vadd.f32 %v2246, %v2899
      %v3092 = vadd.f32 %v2249, %v2902
      %v3093 = vadd.f32 %v2254, %v2907
      %v3094 = vadd.f32 %v2257, %v2910
      %v3095 = vadd.f32 %v2262, %v2915
      %v3096 = vadd.f32 %v2265, %v2918
      %v3097 = vadd.f32 %v2270, %v2923
      %v3098 = vadd.f32 %v2273, %v2926
      %v3099 = vadd.f32 %v2278, %v2931
      %v3100 = vadd.f32 %v2281, %v2934
      %v3101 = vadd.f32 %v2286, %v2939
      %v3102 = vadd.f32 %v2289, %v2942
      %v3103 = vadd.f32 %v2294, %v2947
      %v3104 = vadd.f32 %v2297, %v2950
      %v3105 = vadd.f32 %v2302, %v2955
      %v3106 = vadd.f32 %v2305, %v2958
      %v3107 = vadd.f32 %v2310, %v2963
      %v3108 = vadd.f32 %v2313, %v2966
      %v3109 = vadd.f32 %v2318, %v2971
      %v3110 = vadd.f32 %v2321, %v2974
      %v3111 = vadd.f32 %v2326, %v2979
      %v3112 = vadd.f32 %v2329, %v2982
      %v3113 = vadd.f32 %v2334, %v2987
      %v3114 = vadd.f32 %v2337, %v2990
      %v3115 = vadd.f32 %v2342, %v2995
      %v3116 = vadd.f32 %v2345, %v2998
      %v3117 = vadd.f32 %v2350, %v3003
      %v3118 = vadd.f32 %v2353, %v3006
      %v3119 = vadd.f32 %v2358, %v3011
      %v3120 = vadd.f32 %v2361, %v3014
      %v3121 = vadd.f32 %v2366, %v3019
      %v3122 = vadd.f32 %v2369, %v3022
      %v3123 = vadd.f32 %v2374, %v3027
      %v3124 = vadd.f32 %v2377, %v3030
      %v3125 = vadd.f32 %v2382, %v3035
      %v3126 = vadd.f32 %v2385, %v3038
      %v3127 = vadd.f32 %v2390, %v3043
      %v3128 = vadd.f32 %v2393, %v3046
      %v3129 = vld [vmem:[#allocation2 + $0x10] sm:$0x80]
      %v3130 = vld [vmem:[#allocation2 + $0x18] sm:$0xff]
      %v3131 = vld [vmem:[#allocation2 + $0x20] sm:$0xff]
      %v3132 = vld [vmem:[#allocation2 + $0x28] sm:$0xff]
      %v3133 = vld [vmem:[#allocation2 + $0x30] sm:$0xff]
      %v3134 = vld [vmem:[#allocation2 + $0x38] sm:$0xff]
      %v3135 = vld [vmem:[#allocation2 + $0x40] sm:$0xff]
      %v3136 = vld [vmem:[#allocation2 + $0x48] sm:$0xff]
      %v3137 = vld [vmem:[#allocation2 + $0x50] sm:$0xff]
      %v3138 = vld [vmem:[#allocation2 + $0x58] sm:$0xff]
      %v3139 = vld [vmem:[#allocation2 + $0x60] sm:$0xff]
      %v3140 = vld [vmem:[#allocation2 + $0x68] sm:$0xff]
      %v3141 = vld [vmem:[#allocation2 + $0x70] sm:$0xff]
      %v3142 = vld [vmem:[#allocation2 + $0x78] sm:$0xff]
      %v3143 = vld [vmem:[#allocation2 + $0x80] sm:$0xff]
      %v3144 = vld [vmem:[#allocation2 + $0x88] sm:$0xff]
      %v3145 = vld [vmem:[#allocation2 + $0x90] sm:$0xff]
      %v3146 = vld [vmem:[#allocation2 + $0x98] sm:$0xff]
      %v3147 = vld [vmem:[#allocation2 + $0xa0] sm:$0xff]
      %v3148 = vld [vmem:[#allocation2 + $0xa8] sm:$0xff]
      %v3149 = vld [vmem:[#allocation2 + $0xb0] sm:$0xff]
      %v3150 = vld [vmem:[#allocation2 + $0xb8] sm:$0xff]
      %v3151 = vld [vmem:[#allocation2 + $0xc0] sm:$0xff]
      %v3152 = vld [vmem:[#allocation2 + $0xc8] sm:$0xff]
      %v3153 = vld [vmem:[#allocation2 + $0xd0] sm:$0xff]
      %v3154 = vld [vmem:[#allocation2 + $0xd8] sm:$0xff]
      %v3155 = vld [vmem:[#allocation2 + $0xe0] sm:$0xff]
      %v3156 = vld [vmem:[#allocation2 + $0xe8] sm:$0xff]
      %v3157 = vld [vmem:[#allocation2 + $0xf0] sm:$0xff]
      %v3158 = vld [vmem:[#allocation2 + $0xf8] sm:$0xff]
      %v3159 = vld [vmem:[#allocation2 + $0x100] sm:$0xff]
      %v3160 = vld [vmem:[#allocation2 + $0x108] sm:$0xff]
      %v3161 = vld [vmem:[#allocation2 + $0x110] sm:$0xff]
      %v3162 = vld [vmem:[#allocation2 + $0x118] sm:$0xff]
      %v3163 = vld [vmem:[#allocation2 + $0x120] sm:$0xff]
      %v3164 = vld [vmem:[#allocation2 + $0x128] sm:$0xff]
      %v3165 = vld [vmem:[#allocation2 + $0x130] sm:$0xff]
      %v3166 = vld [vmem:[#allocation2 + $0x138] sm:$0xff]
      %v3167 = vld [vmem:[#allocation2 + $0x140] sm:$0xff]
      %v3168 = vld [vmem:[#allocation2 + $0x148] sm:$0xff]
      %v3169 = vld [vmem:[#allocation2 + $0x150] sm:$0xff]
      %s3170 = scalar_lea.vmem %s448, 6
      %v3171 = vld [vmem:[%s3170] sm:$0x3]
      %vm3172 = vsmask.f32 256
      %v3174 = vshrl.u32 %v3129, 16
      %v3176 = vrot.slane %v3174, 7
      %v3178 = vshrl.u32 %v3130, 16
      %v3180 = vrot.slane %v3178, 7
      %v3181 = vshll.u32 %v3130, 16
      %v3183 = vor.u32 %v3180, %v3181
      %v3184 = vsel %vm3172, %v3176, %v3183
      %v3186 = vshrl.u32 %v3131, 16
      %v3188 = vrot.slane %v3186, 7
      %v3189 = vshll.u32 %v3131, 16
      %v3191 = vor.u32 %v3188, %v3189
      %v3192 = vsel %vm3172, %v3180, %v3191
      %v3194 = vshrl.u32 %v3132, 16
      %v3196 = vrot.slane %v3194, 7
      %v3197 = vshll.u32 %v3132, 16
      %v3199 = vor.u32 %v3196, %v3197
      %v3200 = vsel %vm3172, %v3188, %v3199
      %v3202 = vshrl.u32 %v3133, 16
      %v3204 = vrot.slane %v3202, 7
      %v3205 = vshll.u32 %v3133, 16
      %v3207 = vor.u32 %v3204, %v3205
      %v3208 = vsel %vm3172, %v3196, %v3207
      %v3210 = vshrl.u32 %v3134, 16
      %v3212 = vrot.slane %v3210, 7
      %v3213 = vshll.u32 %v3134, 16
      %v3215 = vor.u32 %v3212, %v3213
      %v3216 = vsel %vm3172, %v3204, %v3215
      %v3218 = vshrl.u32 %v3135, 16
      %v3220 = vrot.slane %v3218, 7
      %v3221 = vshll.u32 %v3135, 16
      %v3223 = vor.u32 %v3220, %v3221
      %v3224 = vsel %vm3172, %v3212, %v3223
      %v3226 = vshrl.u32 %v3136, 16
      %v3228 = vrot.slane %v3226, 7
      %v3229 = vshll.u32 %v3136, 16
      %v3231 = vor.u32 %v3228, %v3229
      %v3232 = vsel %vm3172, %v3220, %v3231
      %v3234 = vshrl.u32 %v3137, 16
      %v3236 = vrot.slane %v3234, 7
      %v3237 = vshll.u32 %v3137, 16
      %v3239 = vor.u32 %v3236, %v3237
      %v3240 = vsel %vm3172, %v3228, %v3239
      %v3242 = vshrl.u32 %v3138, 16
      %v3244 = vrot.slane %v3242, 7
      %v3245 = vshll.u32 %v3138, 16
      %v3247 = vor.u32 %v3244, %v3245
      %v3248 = vsel %vm3172, %v3236, %v3247
      %v3250 = vshrl.u32 %v3139, 16
      %v3252 = vrot.slane %v3250, 7
      %v3253 = vshll.u32 %v3139, 16
      %v3255 = vor.u32 %v3252, %v3253
      %v3256 = vsel %vm3172, %v3244, %v3255
      %v3258 = vshrl.u32 %v3140, 16
      %v3260 = vrot.slane %v3258, 7
      %v3261 = vshll.u32 %v3140, 16
      %v3263 = vor.u32 %v3260, %v3261
      %v3264 = vsel %vm3172, %v3252, %v3263
      %v3266 = vshrl.u32 %v3141, 16
      %v3268 = vrot.slane %v3266, 7
      %v3269 = vshll.u32 %v3141, 16
      %v3271 = vor.u32 %v3268, %v3269
      %v3272 = vsel %vm3172, %v3260, %v3271
      %v3274 = vshrl.u32 %v3142, 16
      %v3276 = vrot.slane %v3274, 7
      %v3277 = vshll.u32 %v3142, 16
      %v3279 = vor.u32 %v3276, %v3277
      %v3280 = vsel %vm3172, %v3268, %v3279
      %v3282 = vshrl.u32 %v3143, 16
      %v3284 = vrot.slane %v3282, 7
      %v3285 = vshll.u32 %v3143, 16
      %v3287 = vor.u32 %v3284, %v3285
      %v3288 = vsel %vm3172, %v3276, %v3287
      %v3290 = vshrl.u32 %v3144, 16
      %v3292 = vrot.slane %v3290, 7
      %v3293 = vshll.u32 %v3144, 16
      %v3295 = vor.u32 %v3292, %v3293
      %v3296 = vsel %vm3172, %v3284, %v3295
      %v3298 = vshrl.u32 %v3145, 16
      %v3300 = vrot.slane %v3298, 7
      %v3301 = vshll.u32 %v3145, 16
      %v3303 = vor.u32 %v3300, %v3301
      %v3304 = vsel %vm3172, %v3292, %v3303
      %v3306 = vshrl.u32 %v3146, 16
      %v3308 = vrot.slane %v3306, 7
      %v3309 = vshll.u32 %v3146, 16
      %v3311 = vor.u32 %v3308, %v3309
      %v3312 = vsel %vm3172, %v3300, %v3311
      %v3314 = vshrl.u32 %v3147, 16
      %v3316 = vrot.slane %v3314, 7
      %v3317 = vshll.u32 %v3147, 16
      %v3319 = vor.u32 %v3316, %v3317
      %v3320 = vsel %vm3172, %v3308, %v3319
      %v3322 = vshrl.u32 %v3148, 16
      %v3324 = vrot.slane %v3322, 7
      %v3325 = vshll.u32 %v3148, 16
      %v3327 = vor.u32 %v3324, %v3325
      %v3328 = vsel %vm3172, %v3316, %v3327
      %v3330 = vshrl.u32 %v3149, 16
      %v3332 = vrot.slane %v3330, 7
      %v3333 = vshll.u32 %v3149, 16
      %v3335 = vor.u32 %v3332, %v3333
      %v3336 = vsel %vm3172, %v3324, %v3335
      %v3338 = vshrl.u32 %v3150, 16
      %v3340 = vrot.slane %v3338, 7
      %v3341 = vshll.u32 %v3150, 16
      %v3343 = vor.u32 %v3340, %v3341
      %v3344 = vsel %vm3172, %v3332, %v3343
      %v3346 = vshrl.u32 %v3151, 16
      %v3348 = vrot.slane %v3346, 7
      %v3349 = vshll.u32 %v3151, 16
      %v3351 = vor.u32 %v3348, %v3349
      %v3352 = vsel %vm3172, %v3340, %v3351
      %v3354 = vshrl.u32 %v3152, 16
      %v3356 = vrot.slane %v3354, 7
      %v3357 = vshll.u32 %v3152, 16
      %v3359 = vor.u32 %v3356, %v3357
      %v3360 = vsel %vm3172, %v3348, %v3359
      %v3362 = vshrl.u32 %v3153, 16
      %v3364 = vrot.slane %v3362, 7
      %v3365 = vshll.u32 %v3153, 16
      %v3367 = vor.u32 %v3364, %v3365
      %v3368 = vsel %vm3172, %v3356, %v3367
      %v3370 = vshrl.u32 %v3154, 16
      %v3372 = vrot.slane %v3370, 7
      %v3373 = vshll.u32 %v3154, 16
      %v3375 = vor.u32 %v3372, %v3373
      %v3376 = vsel %vm3172, %v3364, %v3375
      %v3378 = vshrl.u32 %v3155, 16
      %v3380 = vrot.slane %v3378, 7
      %v3381 = vshll.u32 %v3155, 16
      %v3383 = vor.u32 %v3380, %v3381
      %v3384 = vsel %vm3172, %v3372, %v3383
      %v3386 = vshrl.u32 %v3156, 16
      %v3388 = vrot.slane %v3386, 7
      %v3389 = vshll.u32 %v3156, 16
      %v3391 = vor.u32 %v3388, %v3389
      %v3392 = vsel %vm3172, %v3380, %v3391
      %v3394 = vshrl.u32 %v3157, 16
      %v3396 = vrot.slane %v3394, 7
      %v3397 = vshll.u32 %v3157, 16
      %v3399 = vor.u32 %v3396, %v3397
      %v3400 = vsel %vm3172, %v3388, %v3399
      %v3402 = vshrl.u32 %v3158, 16
      %v3404 = vrot.slane %v3402, 7
      %v3405 = vshll.u32 %v3158, 16
      %v3407 = vor.u32 %v3404, %v3405
      %v3408 = vsel %vm3172, %v3396, %v3407
      %v3410 = vshrl.u32 %v3159, 16
      %v3412 = vrot.slane %v3410, 7
      %v3413 = vshll.u32 %v3159, 16
      %v3415 = vor.u32 %v3412, %v3413
      %v3416 = vsel %vm3172, %v3404, %v3415
      %v3418 = vshrl.u32 %v3160, 16
      %v3420 = vrot.slane %v3418, 7
      %v3421 = vshll.u32 %v3160, 16
      %v3423 = vor.u32 %v3420, %v3421
      %v3424 = vsel %vm3172, %v3412, %v3423
      %v3426 = vshrl.u32 %v3161, 16
      %v3428 = vrot.slane %v3426, 7
      %v3429 = vshll.u32 %v3161, 16
      %v3431 = vor.u32 %v3428, %v3429
      %v3432 = vsel %vm3172, %v3420, %v3431
      %v3434 = vshrl.u32 %v3162, 16
      %v3436 = vrot.slane %v3434, 7
      %v3437 = vshll.u32 %v3162, 16
      %v3439 = vor.u32 %v3436, %v3437
      %v3440 = vsel %vm3172, %v3428, %v3439
      %v3442 = vshrl.u32 %v3163, 16
      %v3444 = vrot.slane %v3442, 7
      %v3445 = vshll.u32 %v3163, 16
      %v3447 = vor.u32 %v3444, %v3445
      %v3448 = vsel %vm3172, %v3436, %v3447
      %v3450 = vshrl.u32 %v3164, 16
      %v3452 = vrot.slane %v3450, 7
      %v3453 = vshll.u32 %v3164, 16
      %v3455 = vor.u32 %v3452, %v3453
      %v3456 = vsel %vm3172, %v3444, %v3455
      %v3458 = vshrl.u32 %v3165, 16
      %v3460 = vrot.slane %v3458, 7
      %v3461 = vshll.u32 %v3165, 16
      %v3463 = vor.u32 %v3460, %v3461
      %v3464 = vsel %vm3172, %v3452, %v3463
      %v3466 = vshrl.u32 %v3166, 16
      %v3468 = vrot.slane %v3466, 7
      %v3469 = vshll.u32 %v3166, 16
      %v3471 = vor.u32 %v3468, %v3469
      %v3472 = vsel %vm3172, %v3460, %v3471
      %v3474 = vshrl.u32 %v3167, 16
      %v3476 = vrot.slane %v3474, 7
      %v3477 = vshll.u32 %v3167, 16
      %v3479 = vor.u32 %v3476, %v3477
      %v3480 = vsel %vm3172, %v3468, %v3479
      %v3482 = vshrl.u32 %v3168, 16
      %v3484 = vrot.slane %v3482, 7
      %v3485 = vshll.u32 %v3168, 16
      %v3487 = vor.u32 %v3484, %v3485
      %v3488 = vsel %vm3172, %v3476, %v3487
      %v3490 = vshrl.u32 %v3169, 16
      %v3492 = vrot.slane %v3490, 7
      %v3493 = vshll.u32 %v3169, 16
      %v3495 = vor.u32 %v3492, %v3493
      %v3496 = vsel %vm3172, %v3484, %v3495
      %v3498 = vsel %vm827, %v3184, 0
      %v3501 = vsel %vm827, %v3192, 0
      %v3504 = vsel %vm827, %v3200, 0
      %v3507 = vsel %vm827, %v3208, 0
      %v3510 = vsel %vm827, %v3216, 0
      %v3513 = vsel %vm827, %v3224, 0
      %v3516 = vsel %vm827, %v3232, 0
      %v3519 = vsel %vm827, %v3240, 0
      %v3522 = vsel %vm827, %v3248, 0
      %v3525 = vsel %vm827, %v3256, 0
      %v3528 = vsel %vm827, %v3264, 0
      %v3531 = vsel %vm827, %v3272, 0
      %v3534 = vsel %vm827, %v3280, 0
      %v3537 = vsel %vm827, %v3288, 0
      %v3540 = vsel %vm827, %v3296, 0
      %v3543 = vsel %vm827, %v3304, 0
      %v3546 = vsel %vm827, %v3312, 0
      %v3549 = vsel %vm827, %v3320, 0
      %v3552 = vsel %vm827, %v3328, 0
      %v3555 = vsel %vm827, %v3336, 0
      %v3558 = vsel %vm827, %v3344, 0
      %v3561 = vsel %vm827, %v3352, 0
      %v3564 = vsel %vm827, %v3360, 0
      %v3567 = vsel %vm827, %v3368, 0
      %v3570 = vsel %vm827, %v3376, 0
      %v3573 = vsel %vm827, %v3384, 0
      %v3576 = vsel %vm827, %v3392, 0
      %v3579 = vsel %vm827, %v3400, 0
      %v3582 = vsel %vm827, %v3408, 0
      %v3585 = vsel %vm827, %v3416, 0
      %v3588 = vsel %vm827, %v3424, 0
      %v3591 = vsel %vm827, %v3432, 0
      %v3594 = vsel %vm827, %v3440, 0
      %v3597 = vsel %vm827, %v3448, 0
      %v3600 = vsel %vm827, %v3456, 0
      %v3603 = vsel %vm827, %v3464, 0
      %v3606 = vsel %vm827, %v3472, 0
      %v3609 = vsel %vm827, %v3480, 0
      %v3612 = vsel %vm827, %v3488, 0
      %v3615 = vsel %vm827, %v3496, 0
      %v3618 = vand.u32 %v3171, %v1194
      %3620 = vmatprep.subr.bf16.mxu0 0
      %3621 = vmatpush1.bf16.msra.mxu0 %v3618
      %3622 = vmatprep.subr.bf16.mxu0 0
      %3623 = vmatpush1.bf16.msra.mxu0 0
      %3624 = vmatprep.subr.bf16.mxu0 0
      %3625 = vmatpush1.bf16.msra.mxu0 0
      %3626 = vmatprep.subr.bf16.mxu0 0
      %3627 = vmatpush1.bf16.msra.mxu0 0
      %3628 = vmatprep.subr.bf16.mxu0 0
      %3629 = vmatpush1.bf16.msra.mxu0 0
      %3630 = vmatprep.subr.bf16.mxu0 0
      %3631 = vmatpush1.bf16.msra.mxu0 0
      %3632 = vmatprep.subr.bf16.mxu0 0
      %3633 = vmatpush1.bf16.msra.mxu0 0
      %3634 = vmatprep.subr.bf16.mxu0 0
      %3635 = vmatpush1.bf16.msra.mxu0 0
      %3636 = vmatprep.subr.bf16.mxu0 0
      %3637 = vmatpush1.bf16.msra.mxu0 0
      %3638 = vmatprep.subr.bf16.mxu0 0
      %3639 = vmatpush1.bf16.msra.mxu0 0
      %3640 = vmatprep.subr.bf16.mxu0 0
      %3641 = vmatpush1.bf16.msra.mxu0 0
      %3642 = vmatprep.subr.bf16.mxu0 0
      %3643 = vmatpush1.bf16.msra.mxu0 0
      %3644 = vmatprep.subr.bf16.mxu0 0
      %3645 = vmatpush1.bf16.msra.mxu0 0
      %3646 = vmatprep.subr.bf16.mxu0 0
      %3647 = vmatpush1.bf16.msra.mxu0 0
      %3648 = vmatprep.subr.bf16.mxu0 0
      %3649 = vmatpush1.bf16.msra.mxu0 0
      %3650 = vmatprep.subr.bf16.mxu0 0
      %3651 = vmatpush1.bf16.msra.mxu0 0
      %3652 = vmatprep.mubr.bf16.mxu0 0
      %3653 = vmatmul.mubr.bf16.gmra.mrb[0].mxu0 %v3498
      %v3654 = vpop.f32.mrb[0].mxu0
      %v3655 = vadd.f32 0.0, %v3654
      %v3656 = vpop.f32.mrb[0].mxu0
      %v3657 = vpop.f32.mrb[0].mxu0
      %v3658 = vadd.f32 0.0, %v3657
      %v3659 = vpop.f32.mrb[0].mxu0
      %3660 = vmatprep.mubr.bf16.mxu0 0
      %3661 = vmatmul.mubr.bf16.gmra.mrb[0].mxu0 %v3501
      %v3662 = vpop.f32.mrb[0].mxu0
      %v3663 = vadd.f32 0.0, %v3662
      %v3664 = vpop.f32.mrb[0].mxu0
      %v3665 = vpop.f32.mrb[0].mxu0
      %v3666 = vadd.f32 0.0, %v3665
      %v3667 = vpop.f32.mrb[0].mxu0
      %3668 = vmatprep.mubr.bf16.mxu0 0
      %3669 = vmatmul.mubr.bf16.gmra.mrb[0].mxu0 %v3504
      %v3670 = vpop.f32.mrb[0].mxu0
      %v3671 = vadd.f32 0.0, %v3670
      %v3672 = vpop.f32.mrb[0].mxu0
      %v3673 = vpop.f32.mrb[0].mxu0
      %v3674 = vadd.f32 0.0, %v3673
      %v3675 = vpop.f32.mrb[0].mxu0
      %3676 = vmatprep.mubr.bf16.mxu0 0
      %3677 = vmatmul.mubr.bf16.gmra.mrb[0].mxu0 %v3507
      %v3678 = vpop.f32.mrb[0].mxu0
      %v3679 = vadd.f32 0.0, %v3678
      %v3680 = vpop.f32.mrb[0].mxu0
      %v3681 = vpop.f32.mrb[0].mxu0
      %v3682 = vadd.f32 0.0, %v3681
      %v3683 = vpop.f32.mrb[0].mxu0
      %3684 = vmatprep.mubr.bf16.mxu0 0
      %3685 = vmatmul.mubr.bf16.gmra.mrb[0].mxu0 %v3510
      %v3686 = vpop.f32.mrb[0].mxu0
      %v3687 = vadd.f32 0.0, %v3686
      %v3688 = vpop.f32.mrb[0].mxu0
      %v3689 = vpop.f32.mrb[0].mxu0
      %v3690 = vadd.f32 0.0, %v3689
      %v3691 = vpop.f32.mrb[0].mxu0
      %3692 = vmatprep.mubr.bf16.mxu0 0
      %3693 = vmatmul.mubr.bf16.gmra.mrb[0].mxu0 %v3513
      %v3694 = vpop.f32.mrb[0].mxu0
      %v3695 = vadd.f32 0.0, %v3694
      %v3696 = vpop.f32.mrb[0].mxu0
      %v3697 = vpop.f32.mrb[0].mxu0
      %v3698 = vadd.f32 0.0, %v3697
      %v3699 = vpop.f32.mrb[0].mxu0
      %3700 = vmatprep.mubr.bf16.mxu0 0
      %3701 = vmatmul.mubr.bf16.gmra.mrb[0].mxu0 %v3516
      %v3702 = vpop.f32.mrb[0].mxu0
      %v3703 = vadd.f32 0.0, %v3702
      %v3704 = vpop.f32.mrb[0].mxu0
      %v3705 = vpop.f32.mrb[0].mxu0
      %v3706 = vadd.f32 0.0, %v3705
      %v3707 = vpop.f32.mrb[0].mxu0
      %3708 = vmatprep.mubr.bf16.mxu0 0
      %3709 = vmatmul.mubr.bf16.gmra.mrb[0].mxu0 %v3519
      %v3710 = vpop.f32.mrb[0].mxu0
      %v3711 = vadd.f32 0.0, %v3710
      %v3712 = vpop.f32.mrb[0].mxu0
      %v3713 = vpop.f32.mrb[0].mxu0
      %v3714 = vadd.f32 0.0, %v3713
      %v3715 = vpop.f32.mrb[0].mxu0
      %3716 = vmatprep.mubr.bf16.mxu0 0
      %3717 = vmatmul.mubr.bf16.gmra.mrb[0].mxu0 %v3522
      %v3718 = vpop.f32.mrb[0].mxu0
      %v3719 = vadd.f32 0.0, %v3718
      %v3720 = vpop.f32.mrb[0].mxu0
      %v3721 = vpop.f32.mrb[0].mxu0
      %v3722 = vadd.f32 0.0, %v3721
      %v3723 = vpop.f32.mrb[0].mxu0
      %3724 = vmatprep.mubr.bf16.mxu0 0
      %3725 = vmatmul.mubr.bf16.gmra.mrb[0].mxu0 %v3525
      %v3726 = vpop.f32.mrb[0].mxu0
      %v3727 = vadd.f32 0.0, %v3726
      %v3728 = vpop.f32.mrb[0].mxu0
      %v3729 = vpop.f32.mrb[0].mxu0
      %v3730 = vadd.f32 0.0, %v3729
      %v3731 = vpop.f32.mrb[0].mxu0
      %3732 = vmatprep.mubr.bf16.mxu0 0
      %3733 = vmatmul.mubr.bf16.gmra.mrb[0].mxu0 %v3528
      %v3734 = vpop.f32.mrb[0].mxu0
      %v3735 = vadd.f32 0.0, %v3734
      %v3736 = vpop.f32.mrb[0].mxu0
      %v3737 = vpop.f32.mrb[0].mxu0
      %v3738 = vadd.f32 0.0, %v3737
      %v3739 = vpop.f32.mrb[0].mxu0
      %3740 = vmatprep.mubr.bf16.mxu0 0
      %3741 = vmatmul.mubr.bf16.gmra.mrb[0].mxu0 %v3531
      %v3742 = vpop.f32.mrb[0].mxu0
      %v3743 = vadd.f32 0.0, %v3742
      %v3744 = vpop.f32.mrb[0].mxu0
      %v3745 = vpop.f32.mrb[0].mxu0
      %v3746 = vadd.f32 0.0, %v3745
      %v3747 = vpop.f32.mrb[0].mxu0
      %3748 = vmatprep.mubr.bf16.mxu0 0
      %3749 = vmatmul.mubr.bf16.gmra.mrb[0].mxu0 %v3534
      %v3750 = vpop.f32.mrb[0].mxu0
      %v3751 = vadd.f32 0.0, %v3750
      %v3752 = vpop.f32.mrb[0].mxu0
      %v3753 = vpop.f32.mrb[0].mxu0
      %v3754 = vadd.f32 0.0, %v3753
      %v3755 = vpop.f32.mrb[0].mxu0
      %3756 = vmatprep.mubr.bf16.mxu0 0
      %3757 = vmatmul.mubr.bf16.gmra.mrb[0].mxu0 %v3537
      %v3758 = vpop.f32.mrb[0].mxu0
      %v3759 = vadd.f32 0.0, %v3758
      %v3760 = vpop.f32.mrb[0].mxu0
      %v3761 = vpop.f32.mrb[0].mxu0
      %v3762 = vadd.f32 0.0, %v3761
      %v3763 = vpop.f32.mrb[0].mxu0
      %3764 = vmatprep.mubr.bf16.mxu0 0
      %3765 = vmatmul.mubr.bf16.gmra.mrb[0].mxu0 %v3540
      %v3766 = vpop.f32.mrb[0].mxu0
      %v3767 = vadd.f32 0.0, %v3766
      %v3768 = vpop.f32.mrb[0].mxu0
      %v3769 = vpop.f32.mrb[0].mxu0
      %v3770 = vadd.f32 0.0, %v3769
      %v3771 = vpop.f32.mrb[0].mxu0
      %3772 = vmatprep.mubr.bf16.mxu0 0
      %3773 = vmatmul.mubr.bf16.gmra.mrb[0].mxu0 %v3543
      %v3774 = vpop.f32.mrb[0].mxu0
      %v3775 = vadd.f32 0.0, %v3774
      %v3776 = vpop.f32.mrb[0].mxu0
      %v3777 = vpop.f32.mrb[0].mxu0
      %v3778 = vadd.f32 0.0, %v3777
      %v3779 = vpop.f32.mrb[0].mxu0
      %3780 = vmatprep.mubr.bf16.mxu0 0
      %3781 = vmatmul.mubr.bf16.gmra.mrb[0].mxu0 %v3546
      %v3782 = vpop.f32.mrb[0].mxu0
      %v3783 = vadd.f32 0.0, %v3782
      %v3784 = vpop.f32.mrb[0].mxu0
      %v3785 = vpop.f32.mrb[0].mxu0
      %v3786 = vadd.f32 0.0, %v3785
      %v3787 = vpop.f32.mrb[0].mxu0
      %3788 = vmatprep.mubr.bf16.mxu0 0
      %3789 = vmatmul.mubr.bf16.gmra.mrb[0].mxu0 %v3549
      %v3790 = vpop.f32.mrb[0].mxu0
      %v3791 = vadd.f32 0.0, %v3790
      %v3792 = vpop.f32.mrb[0].mxu0
      %v3793 = vpop.f32.mrb[0].mxu0
      %v3794 = vadd.f32 0.0, %v3793
      %v3795 = vpop.f32.mrb[0].mxu0
      %3796 = vmatprep.mubr.bf16.mxu0 0
      %3797 = vmatmul.mubr.bf16.gmra.mrb[0].mxu0 %v3552
      %v3798 = vpop.f32.mrb[0].mxu0
      %v3799 = vadd.f32 0.0, %v3798
      %v3800 = vpop.f32.mrb[0].mxu0
      %v3801 = vpop.f32.mrb[0].mxu0
      %v3802 = vadd.f32 0.0, %v3801
      %v3803 = vpop.f32.mrb[0].mxu0
      %3804 = vmatprep.mubr.bf16.mxu0 0
      %3805 = vmatmul.mubr.bf16.gmra.mrb[0].mxu0 %v3555
      %v3806 = vpop.f32.mrb[0].mxu0
      %v3807 = vadd.f32 0.0, %v3806
      %v3808 = vpop.f32.mrb[0].mxu0
      %v3809 = vpop.f32.mrb[0].mxu0
      %v3810 = vadd.f32 0.0, %v3809
      %v3811 = vpop.f32.mrb[0].mxu0
      %3812 = vmatprep.mubr.bf16.mxu0 0
      %3813 = vmatmul.mubr.bf16.gmra.mrb[0].mxu0 %v3558
      %v3814 = vpop.f32.mrb[0].mxu0
      %v3815 = vadd.f32 0.0, %v3814
      %v3816 = vpop.f32.mrb[0].mxu0
      %v3817 = vpop.f32.mrb[0].mxu0
      %v3818 = vadd.f32 0.0, %v3817
      %v3819 = vpop.f32.mrb[0].mxu0
      %3820 = vmatprep.mubr.bf16.mxu0 0
      %3821 = vmatmul.mubr.bf16.gmra.mrb[0].mxu0 %v3561
      %v3822 = vpop.f32.mrb[0].mxu0
      %v3823 = vadd.f32 0.0, %v3822
      %v3824 = vpop.f32.mrb[0].mxu0
      %v3825 = vpop.f32.mrb[0].mxu0
      %v3826 = vadd.f32 0.0, %v3825
      %v3827 = vpop.f32.mrb[0].mxu0
      %3828 = vmatprep.mubr.bf16.mxu0 0
      %3829 = vmatmul.mubr.bf16.gmra.mrb[0].mxu0 %v3564
      %v3830 = vpop.f32.mrb[0].mxu0
      %v3831 = vadd.f32 0.0, %v3830
      %v3832 = vpop.f32.mrb[0].mxu0
      %v3833 = vpop.f32.mrb[0].mxu0
      %v3834 = vadd.f32 0.0, %v3833
      %v3835 = vpop.f32.mrb[0].mxu0
      %3836 = vmatprep.mubr.bf16.mxu0 0
      %3837 = vmatmul.mubr.bf16.gmra.mrb[0].mxu0 %v3567
      %v3838 = vpop.f32.mrb[0].mxu0
      %v3839 = vadd.f32 0.0, %v3838
      %v3840 = vpop.f32.mrb[0].mxu0
      %v3841 = vpop.f32.mrb[0].mxu0
      %v3842 = vadd.f32 0.0, %v3841
      %v3843 = vpop.f32.mrb[0].mxu0
      %3844 = vmatprep.mubr.bf16.mxu0 0
      %3845 = vmatmul.mubr.bf16.gmra.mrb[0].mxu0 %v3570
      %v3846 = vpop.f32.mrb[0].mxu0
      %v3847 = vadd.f32 0.0, %v3846
      %v3848 = vpop.f32.mrb[0].mxu0
      %v3849 = vpop.f32.mrb[0].mxu0
      %v3850 = vadd.f32 0.0, %v3849
      %v3851 = vpop.f32.mrb[0].mxu0
      %3852 = vmatprep.mubr.bf16.mxu0 0
      %3853 = vmatmul.mubr.bf16.gmra.mrb[0].mxu0 %v3573
      %v3854 = vpop.f32.mrb[0].mxu0
      %v3855 = vadd.f32 0.0, %v3854
      %v3856 = vpop.f32.mrb[0].mxu0
      %v3857 = vpop.f32.mrb[0].mxu0
      %v3858 = vadd.f32 0.0, %v3857
      %v3859 = vpop.f32.mrb[0].mxu0
      %3860 = vmatprep.mubr.bf16.mxu0 0
      %3861 = vmatmul.mubr.bf16.gmra.mrb[0].mxu0 %v3576
      %v3862 = vpop.f32.mrb[0].mxu0
      %v3863 = vadd.f32 0.0, %v3862
      %v3864 = vpop.f32.mrb[0].mxu0
      %v3865 = vpop.f32.mrb[0].mxu0
      %v3866 = vadd.f32 0.0, %v3865
      %v3867 = vpop.f32.mrb[0].mxu0
      %3868 = vmatprep.mubr.bf16.mxu0 0
      %3869 = vmatmul.mubr.bf16.gmra.mrb[0].mxu0 %v3579
      %v3870 = vpop.f32.mrb[0].mxu0
      %v3871 = vadd.f32 0.0, %v3870
      %v3872 = vpop.f32.mrb[0].mxu0
      %v3873 = vpop.f32.mrb[0].mxu0
      %v3874 = vadd.f32 0.0, %v3873
      %v3875 = vpop.f32.mrb[0].mxu0
      %3876 = vmatprep.mubr.bf16.mxu0 0
      %3877 = vmatmul.mubr.bf16.gmra.mrb[0].mxu0 %v3582
      %v3878 = vpop.f32.mrb[0].mxu0
      %v3879 = vadd.f32 0.0, %v3878
      %v3880 = vpop.f32.mrb[0].mxu0
      %v3881 = vpop.f32.mrb[0].mxu0
      %v3882 = vadd.f32 0.0, %v3881
      %v3883 = vpop.f32.mrb[0].mxu0
      %3884 = vmatprep.mubr.bf16.mxu0 0
      %3885 = vmatmul.mubr.bf16.gmra.mrb[0].mxu0 %v3585
      %v3886 = vpop.f32.mrb[0].mxu0
      %v3887 = vadd.f32 0.0, %v3886
      %v3888 = vpop.f32.mrb[0].mxu0
      %v3889 = vpop.f32.mrb[0].mxu0
      %v3890 = vadd.f32 0.0, %v3889
      %v3891 = vpop.f32.mrb[0].mxu0
      %3892 = vmatprep.mubr.bf16.mxu0 0
      %3893 = vmatmul.mubr.bf16.gmra.mrb[0].mxu0 %v3588
      %v3894 = vpop.f32.mrb[0].mxu0
      %v3895 = vadd.f32 0.0, %v3894
      %v3896 = vpop.f32.mrb[0].mxu0
      %v3897 = vpop.f32.mrb[0].mxu0
      %v3898 = vadd.f32 0.0, %v3897
      %v3899 = vpop.f32.mrb[0].mxu0
      %3900 = vmatprep.mubr.bf16.mxu0 0
      %3901 = vmatmul.mubr.bf16.gmra.mrb[0].mxu0 %v3591
      %v3902 = vpop.f32.mrb[0].mxu0
      %v3903 = vadd.f32 0.0, %v3902
      %v3904 = vpop.f32.mrb[0].mxu0
      %v3905 = vpop.f32.mrb[0].mxu0
      %v3906 = vadd.f32 0.0, %v3905
      %v3907 = vpop.f32.mrb[0].mxu0
      %3908 = vmatprep.mubr.bf16.mxu0 0
      %3909 = vmatmul.mubr.bf16.gmra.mrb[0].mxu0 %v3594
      %v3910 = vpop.f32.mrb[0].mxu0
      %v3911 = vadd.f32 0.0, %v3910
      %v3912 = vpop.f32.mrb[0].mxu0
      %v3913 = vpop.f32.mrb[0].mxu0
      %v3914 = vadd.f32 0.0, %v3913
      %v3915 = vpop.f32.mrb[0].mxu0
      %3916 = vmatprep.mubr.bf16.mxu0 0
      %3917 = vmatmul.mubr.bf16.gmra.mrb[0].mxu0 %v3597
      %v3918 = vpop.f32.mrb[0].mxu0
      %v3919 = vadd.f32 0.0, %v3918
      %v3920 = vpop.f32.mrb[0].mxu0
      %v3921 = vpop.f32.mrb[0].mxu0
      %v3922 = vadd.f32 0.0, %v3921
      %v3923 = vpop.f32.mrb[0].mxu0
      %3924 = vmatprep.mubr.bf16.mxu0 0
      %3925 = vmatmul.mubr.bf16.gmra.mrb[0].mxu0 %v3600
      %v3926 = vpop.f32.mrb[0].mxu0
      %v3927 = vadd.f32 0.0, %v3926
      %v3928 = vpop.f32.mrb[0].mxu0
      %v3929 = vpop.f32.mrb[0].mxu0
      %v3930 = vadd.f32 0.0, %v3929
      %v3931 = vpop.f32.mrb[0].mxu0
      %3932 = vmatprep.mubr.bf16.mxu0 0
      %3933 = vmatmul.mubr.bf16.gmra.mrb[0].mxu0 %v3603
      %v3934 = vpop.f32.mrb[0].mxu0
      %v3935 = vadd.f32 0.0, %v3934
      %v3936 = vpop.f32.mrb[0].mxu0
      %v3937 = vpop.f32.mrb[0].mxu0
      %v3938 = vadd.f32 0.0, %v3937
      %v3939 = vpop.f32.mrb[0].mxu0
      %3940 = vmatprep.mubr.bf16.mxu0 0
      %3941 = vmatmul.mubr.bf16.gmra.mrb[0].mxu0 %v3606
      %v3942 = vpop.f32.mrb[0].mxu0
      %v3943 = vadd.f32 0.0, %v3942
      %v3944 = vpop.f32.mrb[0].mxu0
      %v3945 = vpop.f32.mrb[0].mxu0
      %v3946 = vadd.f32 0.0, %v3945
      %v3947 = vpop.f32.mrb[0].mxu0
      %3948 = vmatprep.mubr.bf16.mxu0 0
      %3949 = vmatmul.mubr.bf16.gmra.mrb[0].mxu0 %v3609
      %v3950 = vpop.f32.mrb[0].mxu0
      %v3951 = vadd.f32 0.0, %v3950
      %v3952 = vpop.f32.mrb[0].mxu0
      %v3953 = vpop.f32.mrb[0].mxu0
      %v3954 = vadd.f32 0.0, %v3953
      %v3955 = vpop.f32.mrb[0].mxu0
      %3956 = vmatprep.mubr.bf16.mxu0 0
      %3957 = vmatmul.mubr.bf16.gmra.mrb[0].mxu0 %v3612
      %v3958 = vpop.f32.mrb[0].mxu0
      %v3959 = vadd.f32 0.0, %v3958
      %v3960 = vpop.f32.mrb[0].mxu0
      %v3961 = vpop.f32.mrb[0].mxu0
      %v3962 = vadd.f32 0.0, %v3961
      %v3963 = vpop.f32.mrb[0].mxu0
      %3964 = vmatprep.mubr.bf16.mxu0 0
      %3965 = vmatmul.mubr.bf16.gmra.mrb[0].mxu0 %v3615
      %v3966 = vpop.f32.mrb[0].mxu0
      %v3967 = vadd.f32 0.0, %v3966
      %v3968 = vpop.f32.mrb[0].mxu0
      %v3969 = vpop.f32.mrb[0].mxu0
      %v3970 = vadd.f32 0.0, %v3969
      %v3971 = vpop.f32.mrb[0].mxu0
      %3972 = vdwg.mxu0
      %v3973 = vadd.f32 %v3049, %v3655
      %v3974 = vadd.f32 %v3050, %v3658
      %v3975 = vadd.f32 %v3051, %v3663
      %v3976 = vadd.f32 %v3052, %v3666
      %v3977 = vadd.f32 %v3053, %v3671
      %v3978 = vadd.f32 %v3054, %v3674
      %v3979 = vadd.f32 %v3055, %v3679
      %v3980 = vadd.f32 %v3056, %v3682
      %v3981 = vadd.f32 %v3057, %v3687
      %v3982 = vadd.f32 %v3058, %v3690
      %v3983 = vadd.f32 %v3059, %v3695
      %v3984 = vadd.f32 %v3060, %v3698
      %v3985 = vadd.f32 %v3061, %v3703
      %v3986 = vadd.f32 %v3062, %v3706
      %v3987 = vadd.f32 %v3063, %v3711
      %v3988 = vadd.f32 %v3064, %v3714
      %v3989 = vadd.f32 %v3065, %v3719
      %v3990 = vadd.f32 %v3066, %v3722
      %v3991 = vadd.f32 %v3067, %v3727
      %v3992 = vadd.f32 %v3068, %v3730
      %v3993 = vadd.f32 %v3069, %v3735
      %v3994 = vadd.f32 %v3070, %v3738
      %v3995 = vadd.f32 %v3071, %v3743
      %v3996 = vadd.f32 %v3072, %v3746
      %v3997 = vadd.f32 %v3073, %v3751
      %v3998 = vadd.f32 %v3074, %v3754
      %v3999 = vadd.f32 %v3075, %v3759
      %v4000 = vadd.f32 %v3076, %v3762
      %v4001 = vadd.f32 %v3077, %v3767
      %v4002 = vadd.f32 %v3078, %v3770
      %v4003 = vadd.f32 %v3079, %v3775
      %v4004 = vadd.f32 %v3080, %v3778
      %v4005 = vadd.f32 %v3081, %v3783
      %v4006 = vadd.f32 %v3082, %v3786
      %v4007 = vadd.f32 %v3083, %v3791
      %v4008 = vadd.f32 %v3084, %v3794
      %v4009 = vadd.f32 %v3085, %v3799
      %v4010 = vadd.f32 %v3086, %v3802
      %v4011 = vadd.f32 %v3087, %v3807
      %v4012 = vadd.f32 %v3088, %v3810
      %v4013 = vadd.f32 %v3089, %v3815
      %v4014 = vadd.f32 %v3090, %v3818
      %v4015 = vadd.f32 %v3091, %v3823
      %v4016 = vadd.f32 %v3092, %v3826
      %v4017 = vadd.f32 %v3093, %v3831
      %v4018 = vadd.f32 %v3094, %v3834
      %v4019 = vadd.f32 %v3095, %v3839
      %v4020 = vadd.f32 %v3096, %v3842
      %v4021 = vadd.f32 %v3097, %v3847
      %v4022 = vadd.f32 %v3098, %v3850
      %v4023 = vadd.f32 %v3099, %v3855
      %v4024 = vadd.f32 %v3100, %v3858
      %v4025 = vadd.f32 %v3101, %v3863
      %v4026 = vadd.f32 %v3102, %v3866
      %v4027 = vadd.f32 %v3103, %v3871
      %v4028 = vadd.f32 %v3104, %v3874
      %v4029 = vadd.f32 %v3105, %v3879
      %v4030 = vadd.f32 %v3106, %v3882
      %v4031 = vadd.f32 %v3107, %v3887
      %v4032 = vadd.f32 %v3108, %v3890
      %v4033 = vadd.f32 %v3109, %v3895
      %v4034 = vadd.f32 %v3110, %v3898
      %v4035 = vadd.f32 %v3111, %v3903
      %v4036 = vadd.f32 %v3112, %v3906
      %v4037 = vadd.f32 %v3113, %v3911
      %v4038 = vadd.f32 %v3114, %v3914
      %v4039 = vadd.f32 %v3115, %v3919
      %v4040 = vadd.f32 %v3116, %v3922
      %v4041 = vadd.f32 %v3117, %v3927
      %v4042 = vadd.f32 %v3118, %v3930
      %v4043 = vadd.f32 %v3119, %v3935
      %v4044 = vadd.f32 %v3120, %v3938
      %v4045 = vadd.f32 %v3121, %v3943
      %v4046 = vadd.f32 %v3122, %v3946
      %v4047 = vadd.f32 %v3123, %v3951
      %v4048 = vadd.f32 %v3124, %v3954
      %v4049 = vadd.f32 %v3125, %v3959
      %v4050 = vadd.f32 %v3126, %v3962
      %v4051 = vadd.f32 %v3127, %v3967
      %v4052 = vadd.f32 %v3128, %v3970
      %s4053 = scalar_lea.vmem %s448, 8
      %v4054 = vld [vmem:[%s4053] sm:$0x3]
      %v4055 = vsel %vm827, %v3130, 0
      %v4057 = vsel %vm827, %v3131, 0
      %v4059 = vsel %vm827, %v3132, 0
      %v4061 = vsel %vm827, %v3133, 0
      %v4063 = vsel %vm827, %v3134, 0
      %v4065 = vsel %vm827, %v3135, 0
      %v4067 = vsel %vm827, %v3136, 0
      %v4069 = vsel %vm827, %v3137, 0
      %v4071 = vsel %vm827, %v3138, 0
      %v4073 = vsel %vm827, %v3139, 0
      %v4075 = vsel %vm827, %v3140, 0
      %v4077 = vsel %vm827, %v3141, 0
      %v4079 = vsel %vm827, %v3142, 0
      %v4081 = vsel %vm827, %v3143, 0
      %v4083 = vsel %vm827, %v3144, 0
      %v4085 = vsel %vm827, %v3145, 0
      %v4087 = vsel %vm827, %v3146, 0
      %v4089 = vsel %vm827, %v3147, 0
      %v4091 = vsel %vm827, %v3148, 0
      %v4093 = vsel %vm827, %v3149, 0
      %v4095 = vsel %vm827, %v3150, 0
      %v4097 = vsel %vm827, %v3151, 0
      %v4099 = vsel %vm827, %v3152, 0
      %v4101 = vsel %vm827, %v3153, 0
      %v4103 = vsel %vm827, %v3154, 0
      %v4105 = vsel %vm827, %v3155, 0
      %v4107 = vsel %vm827, %v3156, 0
      %v4109 = vsel %vm827, %v3157, 0
      %v4111 = vsel %vm827, %v3158, 0
      %v4113 = vsel %vm827, %v3159, 0
      %v4115 = vsel %vm827, %v3160, 0
      %v4117 = vsel %vm827, %v3161, 0
      %v4119 = vsel %vm827, %v3162, 0
      %v4121 = vsel %vm827, %v3163, 0
      %v4123 = vsel %vm827, %v3164, 0
      %v4125 = vsel %vm827, %v3165, 0
      %v4127 = vsel %vm827, %v3166, 0
      %v4129 = vsel %vm827, %v3167, 0
      %v4131 = vsel %vm827, %v3168, 0
      %v4133 = vsel %vm827, %v3169, 0
      %v4136 = vand.u32 %v4054, %v1194
      %4138 = vmatprep.subr.bf16.mxu0 0
      %4139 = vmatpush1.bf16.msra.mxu0 %v4136
      %4140 = vmatprep.subr.bf16.mxu0 0
      %4141 = vmatpush1.bf16.msra.mxu0 0
      %4142 = vmatprep.subr.bf16.mxu0 0
      %4143 = vmatpush1.bf16.msra.mxu0 0
      %4144 = vmatprep.subr.bf16.mxu0 0
      %4145 = vmatpush1.bf16.msra.mxu0 0
      %4146 = vmatprep.subr.bf16.mxu0 0
      %4147 = vmatpush1.bf16.msra.mxu0 0
      %4148 = vmatprep.subr.bf16.mxu0 0
      %4149 = vmatpush1.bf16.msra.mxu0 0
      %4150 = vmatprep.subr.bf16.mxu0 0
      %4151 = vmatpush1.bf16.msra.mxu0 0
      %4152 = vmatprep.subr.bf16.mxu0 0
      %4153 = vmatpush1.bf16.msra.mxu0 0
      %4154 = vmatprep.subr.bf16.mxu0 0
      %4155 = vmatpush1.bf16.msra.mxu0 0
      %4156 = vmatprep.subr.bf16.mxu0 0
      %4157 = vmatpush1.bf16.msra.mxu0 0
      %4158 = vmatprep.subr.bf16.mxu0 0
      %4159 = vmatpush1.bf16.msra.mxu0 0
      %4160 = vmatprep.subr.bf16.mxu0 0
      %4161 = vmatpush1.bf16.msra.mxu0 0
      %4162 = vmatprep.subr.bf16.mxu0 0
      %4163 = vmatpush1.bf16.msra.mxu0 0
      %4164 = vmatprep.subr.bf16.mxu0 0
      %4165 = vmatpush1.bf16.msra.mxu0 0
      %4166 = vmatprep.subr.bf16.mxu0 0
      %4167 = vmatpush1.bf16.msra.mxu0 0
      %4168 = vmatprep.subr.bf16.mxu0 0
      %4169 = vmatpush1.bf16.msra.mxu0 0
      %4170 = vmatprep.mubr.bf16.mxu0 0
      %4171 = vmatmul.mubr.bf16.gmra.mrb[0].mxu0 %v4055
      %v4172 = vpop.f32.mrb[0].mxu0
      %v4173 = vadd.f32 0.0, %v4172
      %v4174 = vpop.f32.mrb[0].mxu0
      %v4175 = vpop.f32.mrb[0].mxu0
      %v4176 = vadd.f32 0.0, %v4175
      %v4177 = vpop.f32.mrb[0].mxu0
      %4178 = vmatprep.mubr.bf16.mxu0 0
      %4179 = vmatmul.mubr.bf16.gmra.mrb[0].mxu0 %v4057
      %v4180 = vpop.f32.mrb[0].mxu0
      %v4181 = vadd.f32 0.0, %v4180
      %v4182 = vpop.f32.mrb[0].mxu0
      %v4183 = vpop.f32.mrb[0].mxu0
      %v4184 = vadd.f32 0.0, %v4183
      %v4185 = vpop.f32.mrb[0].mxu0
      %4186 = vmatprep.mubr.bf16.mxu0 0
      %4187 = vmatmul.mubr.bf16.gmra.mrb[0].mxu0 %v4059
      %v4188 = vpop.f32.mrb[0].mxu0
      %v4189 = vadd.f32 0.0, %v4188
      %v4190 = vpop.f32.mrb[0].mxu0
      %v4191 = vpop.f32.mrb[0].mxu0
      %v4192 = vadd.f32 0.0, %v4191
      %v4193 = vpop.f32.mrb[0].mxu0
      %4194 = vmatprep.mubr.bf16.mxu0 0
      %4195 = vmatmul.mubr.bf16.gmra.mrb[0].mxu0 %v4061
      %v4196 = vpop.f32.mrb[0].mxu0
      %v4197 = vadd.f32 0.0, %v4196
      %v4198 = vpop.f32.mrb[0].mxu0
      %v4199 = vpop.f32.mrb[0].mxu0
      %v4200 = vadd.f32 0.0, %v4199
      %v4201 = vpop.f32.mrb[0].mxu0
      %4202 = vmatprep.mubr.bf16.mxu0 0
      %4203 = vmatmul.mubr.bf16.gmra.mrb[0].mxu0 %v4063
      %v4204 = vpop.f32.mrb[0].mxu0
      %v4205 = vadd.f32 0.0, %v4204
      %v4206 = vpop.f32.mrb[0].mxu0
      %v4207 = vpop.f32.mrb[0].mxu0
      %v4208 = vadd.f32 0.0, %v4207
      %v4209 = vpop.f32.mrb[0].mxu0
      %4210 = vmatprep.mubr.bf16.mxu0 0
      %4211 = vmatmul.mubr.bf16.gmra.mrb[0].mxu0 %v4065
      %v4212 = vpop.f32.mrb[0].mxu0
      %v4213 = vadd.f32 0.0, %v4212
      %v4214 = vpop.f32.mrb[0].mxu0
      %v4215 = vpop.f32.mrb[0].mxu0
      %v4216 = vadd.f32 0.0, %v4215
      %v4217 = vpop.f32.mrb[0].mxu0
      %4218 = vmatprep.mubr.bf16.mxu0 0
      %4219 = vmatmul.mubr.bf16.gmra.mrb[0].mxu0 %v4067
      %v4220 = vpop.f32.mrb[0].mxu0
      %v4221 = vadd.f32 0.0, %v4220
      %v4222 = vpop.f32.mrb[0].mxu0
      %v4223 = vpop.f32.mrb[0].mxu0
      %v4224 = vadd.f32 0.0, %v4223
      %v4225 = vpop.f32.mrb[0].mxu0
      %4226 = vmatprep.mubr.bf16.mxu0 0
      %4227 = vmatmul.mubr.bf16.gmra.mrb[0].mxu0 %v4069
      %v4228 = vpop.f32.mrb[0].mxu0
      %v4229 = vadd.f32 0.0, %v4228
      %v4230 = vpop.f32.mrb[0].mxu0
      %v4231 = vpop.f32.mrb[0].mxu0
      %v4232 = vadd.f32 0.0, %v4231
      %v4233 = vpop.f32.mrb[0].mxu0
      %4234 = vmatprep.mubr.bf16.mxu0 0
      %4235 = vmatmul.mubr.bf16.gmra.mrb[0].mxu0 %v4071
      %v4236 = vpop.f32.mrb[0].mxu0
      %v4237 = vadd.f32 0.0, %v4236
      %v4238 = vpop.f32.mrb[0].mxu0
      %v4239 = vpop.f32.mrb[0].mxu0
      %v4240 = vadd.f32 0.0, %v4239
      %v4241 = vpop.f32.mrb[0].mxu0
      %4242 = vmatprep.mubr.bf16.mxu0 0
      %4243 = vmatmul.mubr.bf16.gmra.mrb[0].mxu0 %v4073
      %v4244 = vpop.f32.mrb[0].mxu0
      %v4245 = vadd.f32 0.0, %v4244
      %v4246 = vpop.f32.mrb[0].mxu0
      %v4247 = vpop.f32.mrb[0].mxu0
      %v4248 = vadd.f32 0.0, %v4247
      %v4249 = vpop.f32.mrb[0].mxu0
      %4250 = vmatprep.mubr.bf16.mxu0 0
      %4251 = vmatmul.mubr.bf16.gmra.mrb[0].mxu0 %v4075
      %v4252 = vpop.f32.mrb[0].mxu0
      %v4253 = vadd.f32 0.0, %v4252
      %v4254 = vpop.f32.mrb[0].mxu0
      %v4255 = vpop.f32.mrb[0].mxu0
      %v4256 = vadd.f32 0.0, %v4255
      %v4257 = vpop.f32.mrb[0].mxu0
      %4258 = vmatprep.mubr.bf16.mxu0 0
      %4259 = vmatmul.mubr.bf16.gmra.mrb[0].mxu0 %v4077
      %v4260 = vpop.f32.mrb[0].mxu0
      %v4261 = vadd.f32 0.0, %v4260
      %v4262 = vpop.f32.mrb[0].mxu0
      %v4263 = vpop.f32.mrb[0].mxu0
      %v4264 = vadd.f32 0.0, %v4263
      %v4265 = vpop.f32.mrb[0].mxu0
      %4266 = vmatprep.mubr.bf16.mxu0 0
      %4267 = vmatmul.mubr.bf16.gmra.mrb[0].mxu0 %v4079
      %v4268 = vpop.f32.mrb[0].mxu0
      %v4269 = vadd.f32 0.0, %v4268
      %v4270 = vpop.f32.mrb[0].mxu0
      %v4271 = vpop.f32.mrb[0].mxu0
      %v4272 = vadd.f32 0.0, %v4271
      %v4273 = vpop.f32.mrb[0].mxu0
      %4274 = vmatprep.mubr.bf16.mxu0 0
      %4275 = vmatmul.mubr.bf16.gmra.mrb[0].mxu0 %v4081
      %v4276 = vpop.f32.mrb[0].mxu0
      %v4277 = vadd.f32 0.0, %v4276
      %v4278 = vpop.f32.mrb[0].mxu0
      %v4279 = vpop.f32.mrb[0].mxu0
      %v4280 = vadd.f32 0.0, %v4279
      %v4281 = vpop.f32.mrb[0].mxu0
      %4282 = vmatprep.mubr.bf16.mxu0 0
      %4283 = vmatmul.mubr.bf16.gmra.mrb[0].mxu0 %v4083
      %v4284 = vpop.f32.mrb[0].mxu0
      %v4285 = vadd.f32 0.0, %v4284
      %v4286 = vpop.f32.mrb[0].mxu0
      %v4287 = vpop.f32.mrb[0].mxu0
      %v4288 = vadd.f32 0.0, %v4287
      %v4289 = vpop.f32.mrb[0].mxu0
      %4290 = vmatprep.mubr.bf16.mxu0 0
      %4291 = vmatmul.mubr.bf16.gmra.mrb[0].mxu0 %v4085
      %v4292 = vpop.f32.mrb[0].mxu0
      %v4293 = vadd.f32 0.0, %v4292
      %v4294 = vpop.f32.mrb[0].mxu0
      %v4295 = vpop.f32.mrb[0].mxu0
      %v4296 = vadd.f32 0.0, %v4295
      %v4297 = vpop.f32.mrb[0].mxu0
      %4298 = vmatprep.mubr.bf16.mxu0 0
      %4299 = vmatmul.mubr.bf16.gmra.mrb[0].mxu0 %v4087
      %v4300 = vpop.f32.mrb[0].mxu0
      %v4301 = vadd.f32 0.0, %v4300
      %v4302 = vpop.f32.mrb[0].mxu0
      %v4303 = vpop.f32.mrb[0].mxu0
      %v4304 = vadd.f32 0.0, %v4303
      %v4305 = vpop.f32.mrb[0].mxu0
      %4306 = vmatprep.mubr.bf16.mxu0 0
      %4307 = vmatmul.mubr.bf16.gmra.mrb[0].mxu0 %v4089
      %v4308 = vpop.f32.mrb[0].mxu0
      %v4309 = vadd.f32 0.0, %v4308
      %v4310 = vpop.f32.mrb[0].mxu0
      %v4311 = vpop.f32.mrb[0].mxu0
      %v4312 = vadd.f32 0.0, %v4311
      %v4313 = vpop.f32.mrb[0].mxu0
      %4314 = vmatprep.mubr.bf16.mxu0 0
      %4315 = vmatmul.mubr.bf16.gmra.mrb[0].mxu0 %v4091
      %v4316 = vpop.f32.mrb[0].mxu0
      %v4317 = vadd.f32 0.0, %v4316
      %v4318 = vpop.f32.mrb[0].mxu0
      %v4319 = vpop.f32.mrb[0].mxu0
      %v4320 = vadd.f32 0.0, %v4319
      %v4321 = vpop.f32.mrb[0].mxu0
      %4322 = vmatprep.mubr.bf16.mxu0 0
      %4323 = vmatmul.mubr.bf16.gmra.mrb[0].mxu0 %v4093
      %v4324 = vpop.f32.mrb[0].mxu0
      %v4325 = vadd.f32 0.0, %v4324
      %v4326 = vpop.f32.mrb[0].mxu0
      %v4327 = vpop.f32.mrb[0].mxu0
      %v4328 = vadd.f32 0.0, %v4327
      %v4329 = vpop.f32.mrb[0].mxu0
      %4330 = vmatprep.mubr.bf16.mxu0 0
      %4331 = vmatmul.mubr.bf16.gmra.mrb[0].mxu0 %v4095
      %v4332 = vpop.f32.mrb[0].mxu0
      %v4333 = vadd.f32 0.0, %v4332
      %v4334 = vpop.f32.mrb[0].mxu0
      %v4335 = vpop.f32.mrb[0].mxu0
      %v4336 = vadd.f32 0.0, %v4335
      %v4337 = vpop.f32.mrb[0].mxu0
      %4338 = vmatprep.mubr.bf16.mxu0 0
      %4339 = vmatmul.mubr.bf16.gmra.mrb[0].mxu0 %v4097
      %v4340 = vpop.f32.mrb[0].mxu0
      %v4341 = vadd.f32 0.0, %v4340
      %v4342 = vpop.f32.mrb[0].mxu0
      %v4343 = vpop.f32.mrb[0].mxu0
      %v4344 = vadd.f32 0.0, %v4343
      %v4345 = vpop.f32.mrb[0].mxu0
      %4346 = vmatprep.mubr.bf16.mxu0 0
      %4347 = vmatmul.mubr.bf16.gmra.mrb[0].mxu0 %v4099
      %v4348 = vpop.f32.mrb[0].mxu0
      %v4349 = vadd.f32 0.0, %v4348
      %v4350 = vpop.f32.mrb[0].mxu0
      %v4351 = vpop.f32.mrb[0].mxu0
      %v4352 = vadd.f32 0.0, %v4351
      %v4353 = vpop.f32.mrb[0].mxu0
      %4354 = vmatprep.mubr.bf16.mxu0 0
      %4355 = vmatmul.mubr.bf16.gmra.mrb[0].mxu0 %v4101
      %v4356 = vpop.f32.mrb[0].mxu0
      %v4357 = vadd.f32 0.0, %v4356
      %v4358 = vpop.f32.mrb[0].mxu0
      %v4359 = vpop.f32.mrb[0].mxu0
      %v4360 = vadd.f32 0.0, %v4359
      %v4361 = vpop.f32.mrb[0].mxu0
      %4362 = vmatprep.mubr.bf16.mxu0 0
      %4363 = vmatmul.mubr.bf16.gmra.mrb[0].mxu0 %v4103
      %v4364 = vpop.f32.mrb[0].mxu0
      %v4365 = vadd.f32 0.0, %v4364
      %v4366 = vpop.f32.mrb[0].mxu0
      %v4367 = vpop.f32.mrb[0].mxu0
      %v4368 = vadd.f32 0.0, %v4367
      %v4369 = vpop.f32.mrb[0].mxu0
      %4370 = vmatprep.mubr.bf16.mxu0 0
      %4371 = vmatmul.mubr.bf16.gmra.mrb[0].mxu0 %v4105
      %v4372 = vpop.f32.mrb[0].mxu0
      %v4373 = vadd.f32 0.0, %v4372
      %v4374 = vpop.f32.mrb[0].mxu0
      %v4375 = vpop.f32.mrb[0].mxu0
      %v4376 = vadd.f32 0.0, %v4375
      %v4377 = vpop.f32.mrb[0].mxu0
      %4378 = vmatprep.mubr.bf16.mxu0 0
      %4379 = vmatmul.mubr.bf16.gmra.mrb[0].mxu0 %v4107
      %v4380 = vpop.f32.mrb[0].mxu0
      %v4381 = vadd.f32 0.0, %v4380
      %v4382 = vpop.f32.mrb[0].mxu0
      %v4383 = vpop.f32.mrb[0].mxu0
      %v4384 = vadd.f32 0.0, %v4383
      %v4385 = vpop.f32.mrb[0].mxu0
      %4386 = vmatprep.mubr.bf16.mxu0 0
      %4387 = vmatmul.mubr.bf16.gmra.mrb[0].mxu0 %v4109
      %v4388 = vpop.f32.mrb[0].mxu0
      %v4389 = vadd.f32 0.0, %v4388
      %v4390 = vpop.f32.mrb[0].mxu0
      %v4391 = vpop.f32.mrb[0].mxu0
      %v4392 = vadd.f32 0.0, %v4391
      %v4393 = vpop.f32.mrb[0].mxu0
      %4394 = vmatprep.mubr.bf16.mxu0 0
      %4395 = vmatmul.mubr.bf16.gmra.mrb[0].mxu0 %v4111
      %v4396 = vpop.f32.mrb[0].mxu0
      %v4397 = vadd.f32 0.0, %v4396
      %v4398 = vpop.f32.mrb[0].mxu0
      %v4399 = vpop.f32.mrb[0].mxu0
      %v4400 = vadd.f32 0.0, %v4399
      %v4401 = vpop.f32.mrb[0].mxu0
      %4402 = vmatprep.mubr.bf16.mxu0 0
      %4403 = vmatmul.mubr.bf16.gmra.mrb[0].mxu0 %v4113
      %v4404 = vpop.f32.mrb[0].mxu0
      %v4405 = vadd.f32 0.0, %v4404
      %v4406 = vpop.f32.mrb[0].mxu0
      %v4407 = vpop.f32.mrb[0].mxu0
      %v4408 = vadd.f32 0.0, %v4407
      %v4409 = vpop.f32.mrb[0].mxu0
      %4410 = vmatprep.mubr.bf16.mxu0 0
      %4411 = vmatmul.mubr.bf16.gmra.mrb[0].mxu0 %v4115
      %v4412 = vpop.f32.mrb[0].mxu0
      %v4413 = vadd.f32 0.0, %v4412
      %v4414 = vpop.f32.mrb[0].mxu0
      %v4415 = vpop.f32.mrb[0].mxu0
      %v4416 = vadd.f32 0.0, %v4415
      %v4417 = vpop.f32.mrb[0].mxu0
      %4418 = vmatprep.mubr.bf16.mxu0 0
      %4419 = vmatmul.mubr.bf16.gmra.mrb[0].mxu0 %v4117
      %v4420 = vpop.f32.mrb[0].mxu0
      %v4421 = vadd.f32 0.0, %v4420
      %v4422 = vpop.f32.mrb[0].mxu0
      %v4423 = vpop.f32.mrb[0].mxu0
      %v4424 = vadd.f32 0.0, %v4423
      %v4425 = vpop.f32.mrb[0].mxu0
      %4426 = vmatprep.mubr.bf16.mxu0 0
      %4427 = vmatmul.mubr.bf16.gmra.mrb[0].mxu0 %v4119
      %v4428 = vpop.f32.mrb[0].mxu0
      %v4429 = vadd.f32 0.0, %v4428
      %v4430 = vpop.f32.mrb[0].mxu0
      %v4431 = vpop.f32.mrb[0].mxu0
      %v4432 = vadd.f32 0.0, %v4431
      %v4433 = vpop.f32.mrb[0].mxu0
      %4434 = vmatprep.mubr.bf16.mxu0 0
      %4435 = vmatmul.mubr.bf16.gmra.mrb[0].mxu0 %v4121
      %v4436 = vpop.f32.mrb[0].mxu0
      %v4437 = vadd.f32 0.0, %v4436
      %v4438 = vpop.f32.mrb[0].mxu0
      %v4439 = vpop.f32.mrb[0].mxu0
      %v4440 = vadd.f32 0.0, %v4439
      %v4441 = vpop.f32.mrb[0].mxu0
      %4442 = vmatprep.mubr.bf16.mxu0 0
      %4443 = vmatmul.mubr.bf16.gmra.mrb[0].mxu0 %v4123
      %v4444 = vpop.f32.mrb[0].mxu0
      %v4445 = vadd.f32 0.0, %v4444
      %v4446 = vpop.f32.mrb[0].mxu0
      %v4447 = vpop.f32.mrb[0].mxu0
      %v4448 = vadd.f32 0.0, %v4447
      %v4449 = vpop.f32.mrb[0].mxu0
      %4450 = vmatprep.mubr.bf16.mxu0 0
      %4451 = vmatmul.mubr.bf16.gmra.mrb[0].mxu0 %v4125
      %v4452 = vpop.f32.mrb[0].mxu0
      %v4453 = vadd.f32 0.0, %v4452
      %v4454 = vpop.f32.mrb[0].mxu0
      %v4455 = vpop.f32.mrb[0].mxu0
      %v4456 = vadd.f32 0.0, %v4455
      %v4457 = vpop.f32.mrb[0].mxu0
      %4458 = vmatprep.mubr.bf16.mxu0 0
      %4459 = vmatmul.mubr.bf16.gmra.mrb[0].mxu0 %v4127
      %v4460 = vpop.f32.mrb[0].mxu0
      %v4461 = vadd.f32 0.0, %v4460
      %v4462 = vpop.f32.mrb[0].mxu0
      %v4463 = vpop.f32.mrb[0].mxu0
      %v4464 = vadd.f32 0.0, %v4463
      %v4465 = vpop.f32.mrb[0].mxu0
      %4466 = vmatprep.mubr.bf16.mxu0 0
      %4467 = vmatmul.mubr.bf16.gmra.mrb[0].mxu0 %v4129
      %v4468 = vpop.f32.mrb[0].mxu0
      %v4469 = vadd.f32 0.0, %v4468
      %v4470 = vpop.f32.mrb[0].mxu0
      %v4471 = vpop.f32.mrb[0].mxu0
      %v4472 = vadd.f32 0.0, %v4471
      %v4473 = vpop.f32.mrb[0].mxu0
      %4474 = vmatprep.mubr.bf16.mxu0 0
      %4475 = vmatmul.mubr.bf16.gmra.mrb[0].mxu0 %v4131
      %v4476 = vpop.f32.mrb[0].mxu0
      %v4477 = vadd.f32 0.0, %v4476
      %v4478 = vpop.f32.mrb[0].mxu0
      %v4479 = vpop.f32.mrb[0].mxu0
      %v4480 = vadd.f32 0.0, %v4479
      %v4481 = vpop.f32.mrb[0].mxu0
      %4482 = vmatprep.mubr.bf16.mxu0 0
      %4483 = vmatmul.mubr.bf16.gmra.mrb[0].mxu0 %v4133
      %v4484 = vpop.f32.mrb[0].mxu0
      %v4485 = vadd.f32 0.0, %v4484
      %v4486 = vpop.f32.mrb[0].mxu0
      %v4487 = vpop.f32.mrb[0].mxu0
      %v4488 = vadd.f32 0.0, %v4487
      %v4489 = vpop.f32.mrb[0].mxu0
      %4490 = vdwg.mxu0
      %v4491 = vadd.f32 %v3973, %v4173
      %v4492 = vadd.f32 %v3974, %v4176
      %v4493 = vadd.f32 %v3975, %v4181
      %v4494 = vadd.f32 %v3976, %v4184
      %v4495 = vadd.f32 %v3977, %v4189
      %v4496 = vadd.f32 %v3978, %v4192
      %v4497 = vadd.f32 %v3979, %v4197
      %v4498 = vadd.f32 %v3980, %v4200
      %v4499 = vadd.f32 %v3981, %v4205
      %v4500 = vadd.f32 %v3982, %v4208
      %v4501 = vadd.f32 %v3983, %v4213
      %v4502 = vadd.f32 %v3984, %v4216
      %v4503 = vadd.f32 %v3985, %v4221
      %v4504 = vadd.f32 %v3986, %v4224
      %v4505 = vadd.f32 %v3987, %v4229
      %v4506 = vadd.f32 %v3988, %v4232
      %v4507 = vadd.f32 %v3989, %v4237
      %v4508 = vadd.f32 %v3990, %v4240
      %v4509 = vadd.f32 %v3991, %v4245
      %v4510 = vadd.f32 %v3992, %v4248
      %v4511 = vadd.f32 %v3993, %v4253
      %v4512 = vadd.f32 %v3994, %v4256
      %v4513 = vadd.f32 %v3995, %v4261
      %v4514 = vadd.f32 %v3996, %v4264
      %v4515 = vadd.f32 %v3997, %v4269
      %v4516 = vadd.f32 %v3998, %v4272
      %v4517 = vadd.f32 %v3999, %v4277
      %v4518 = vadd.f32 %v4000, %v4280
      %v4519 = vadd.f32 %v4001, %v4285
      %v4520 = vadd.f32 %v4002, %v4288
      %v4521 = vadd.f32 %v4003, %v4293
      %v4522 = vadd.f32 %v4004, %v4296
      %v4523 = vadd.f32 %v4005, %v4301
      %v4524 = vadd.f32 %v4006, %v4304
      %v4525 = vadd.f32 %v4007, %v4309
      %v4526 = vadd.f32 %v4008, %v4312
      %v4527 = vadd.f32 %v4009, %v4317
      %v4528 = vadd.f32 %v4010, %v4320
      %v4529 = vadd.f32 %v4011, %v4325
      %v4530 = vadd.f32 %v4012, %v4328
      %v4531 = vadd.f32 %v4013, %v4333
      %v4532 = vadd.f32 %v4014, %v4336
      %v4533 = vadd.f32 %v4015, %v4341
      %v4534 = vadd.f32 %v4016, %v4344
      %v4535 = vadd.f32 %v4017, %v4349
      %v4536 = vadd.f32 %v4018, %v4352
      %v4537 = vadd.f32 %v4019, %v4357
      %v4538 = vadd.f32 %v4020, %v4360
      %v4539 = vadd.f32 %v4021, %v4365
      %v4540 = vadd.f32 %v4022, %v4368
      %v4541 = vadd.f32 %v4023, %v4373
      %v4542 = vadd.f32 %v4024, %v4376
      %v4543 = vadd.f32 %v4025, %v4381
      %v4544 = vadd.f32 %v4026, %v4384
      %v4545 = vadd.f32 %v4027, %v4389
      %v4546 = vadd.f32 %v4028, %v4392
      %v4547 = vadd.f32 %v4029, %v4397
      %v4548 = vadd.f32 %v4030, %v4400
      %v4549 = vadd.f32 %v4031, %v4405
      %v4550 = vadd.f32 %v4032, %v4408
      %v4551 = vadd.f32 %v4033, %v4413
      %v4552 = vadd.f32 %v4034, %v4416
      %v4553 = vadd.f32 %v4035, %v4421
      %v4554 = vadd.f32 %v4036, %v4424
      %v4555 = vadd.f32 %v4037, %v4429
      %v4556 = vadd.f32 %v4038, %v4432
      %v4557 = vadd.f32 %v4039, %v4437
      %v4558 = vadd.f32 %v4040, %v4440
      %v4559 = vadd.f32 %v4041, %v4445
      %v4560 = vadd.f32 %v4042, %v4448
      %v4561 = vadd.f32 %v4043, %v4453
      %v4562 = vadd.f32 %v4044, %v4456
      %v4563 = vadd.f32 %v4045, %v4461
      %v4564 = vadd.f32 %v4046, %v4464
      %v4565 = vadd.f32 %v4047, %v4469
      %v4566 = vadd.f32 %v4048, %v4472
      %v4567 = vadd.f32 %v4049, %v4477
      %v4568 = vadd.f32 %v4050, %v4480
      %v4569 = vadd.f32 %v4051, %v4485
      %v4570 = vadd.f32 %v4052, %v4488
      %v4571 = vld [vmem:[#allocation2 + $0x18] sm:$0xff]
      %v4572 = vld [vmem:[#allocation2 + $0x20] sm:$0xff]
      %v4573 = vld [vmem:[#allocation2 + $0x28] sm:$0xff]
      %v4574 = vld [vmem:[#allocation2 + $0x30] sm:$0xff]
      %v4575 = vld [vmem:[#allocation2 + $0x38] sm:$0xff]
      %v4576 = vld [vmem:[#allocation2 + $0x40] sm:$0xff]
      %v4577 = vld [vmem:[#allocation2 + $0x48] sm:$0xff]
      %v4578 = vld [vmem:[#allocation2 + $0x50] sm:$0xff]
      %v4579 = vld [vmem:[#allocation2 + $0x58] sm:$0xff]
      %v4580 = vld [vmem:[#allocation2 + $0x60] sm:$0xff]
      %v4581 = vld [vmem:[#allocation2 + $0x68] sm:$0xff]
      %v4582 = vld [vmem:[#allocation2 + $0x70] sm:$0xff]
      %v4583 = vld [vmem:[#allocation2 + $0x78] sm:$0xff]
      %v4584 = vld [vmem:[#allocation2 + $0x80] sm:$0xff]
      %v4585 = vld [vmem:[#allocation2 + $0x88] sm:$0xff]
      %v4586 = vld [vmem:[#allocation2 + $0x90] sm:$0xff]
      %v4587 = vld [vmem:[#allocation2 + $0x98] sm:$0xff]
      %v4588 = vld [vmem:[#allocation2 + $0xa0] sm:$0xff]
      %v4589 = vld [vmem:[#allocation2 + $0xa8] sm:$0xff]
      %v4590 = vld [vmem:[#allocation2 + $0xb0] sm:$0xff]
      %v4591 = vld [vmem:[#allocation2 + $0xb8] sm:$0xff]
      %v4592 = vld [vmem:[#allocation2 + $0xc0] sm:$0xff]
      %v4593 = vld [vmem:[#allocation2 + $0xc8] sm:$0xff]
      %v4594 = vld [vmem:[#allocation2 + $0xd0] sm:$0xff]
      %v4595 = vld [vmem:[#allocation2 + $0xd8] sm:$0xff]
      %v4596 = vld [vmem:[#allocation2 + $0xe0] sm:$0xff]
      %v4597 = vld [vmem:[#allocation2 + $0xe8] sm:$0xff]
      %v4598 = vld [vmem:[#allocation2 + $0xf0] sm:$0xff]
      %v4599 = vld [vmem:[#allocation2 + $0xf8] sm:$0xff]
      %v4600 = vld [vmem:[#allocation2 + $0x100] sm:$0xff]
      %v4601 = vld [vmem:[#allocation2 + $0x108] sm:$0xff]
      %v4602 = vld [vmem:[#allocation2 + $0x110] sm:$0xff]
      %v4603 = vld [vmem:[#allocation2 + $0x118] sm:$0xff]
      %v4604 = vld [vmem:[#allocation2 + $0x120] sm:$0xff]
      %v4605 = vld [vmem:[#allocation2 + $0x128] sm:$0xff]
      %v4606 = vld [vmem:[#allocation2 + $0x130] sm:$0xff]
      %v4607 = vld [vmem:[#allocation2 + $0x138] sm:$0xff]
      %v4608 = vld [vmem:[#allocation2 + $0x140] sm:$0xff]
      %v4609 = vld [vmem:[#allocation2 + $0x148] sm:$0xff]
      %v4610 = vld [vmem:[#allocation2 + $0x150] sm:$0xff]
      %v4611 = vld [vmem:[#allocation2 + $0x158] sm:$0x1]
      %s4612 = scalar_lea.vmem %s448, 10
      %v4613 = vld [vmem:[%s4612] sm:$0x3]
      %vm4614 = vsmask.f32 7424
      %v4616 = vshrl.u32 %v4571, 16
      %v4618 = vshll.u32 %v4571, 16
      %v4620 = vrot.slane %v4618, 1
      %v4621 = vor.u32 %v4616, %v4620
      %v4623 = vshll.u32 %v4572, 16
      %v4625 = vrot.slane %v4623, 1
      %v4626 = vsel %vm4614, %v4621, %v4625
      %v4627 = vshrl.u32 %v4572, 16
      %v4629 = vor.u32 %v4627, %v4625
      %v4631 = vshll.u32 %v4573, 16
      %v4633 = vrot.slane %v4631, 1
      %v4634 = vsel %vm4614, %v4629, %v4633
      %v4635 = vshrl.u32 %v4573, 16
      %v4637 = vor.u32 %v4635, %v4633
      %v4639 = vshll.u32 %v4574, 16
      %v4641 = vrot.slane %v4639, 1
      %v4642 = vsel %vm4614, %v4637, %v4641
      %v4643 = vshrl.u32 %v4574, 16
      %v4645 = vor.u32 %v4643, %v4641
      %v4647 = vshll.u32 %v4575, 16
      %v4649 = vrot.slane %v4647, 1
      %v4650 = vsel %vm4614, %v4645, %v4649
      %v4651 = vshrl.u32 %v4575, 16
      %v4653 = vor.u32 %v4651, %v4649
      %v4655 = vshll.u32 %v4576, 16
      %v4657 = vrot.slane %v4655, 1
      %v4658 = vsel %vm4614, %v4653, %v4657
      %v4659 = vshrl.u32 %v4576, 16
      %v4661 = vor.u32 %v4659, %v4657
      %v4663 = vshll.u32 %v4577, 16
      %v4665 = vrot.slane %v4663, 1
      %v4666 = vsel %vm4614, %v4661, %v4665
      %v4667 = vshrl.u32 %v4577, 16
      %v4669 = vor.u32 %v4667, %v4665
      %v4671 = vshll.u32 %v4578, 16
      %v4673 = vrot.slane %v4671, 1
      %v4674 = vsel %vm4614, %v4669, %v4673
      %v4675 = vshrl.u32 %v4578, 16
      %v4677 = vor.u32 %v4675, %v4673
      %v4679 = vshll.u32 %v4579, 16
      %v4681 = vrot.slane %v4679, 1
      %v4682 = vsel %vm4614, %v4677, %v4681
      %v4683 = vshrl.u32 %v4579, 16
      %v4685 = vor.u32 %v4683, %v4681
      %v4687 = vshll.u32 %v4580, 16
      %v4689 = vrot.slane %v4687, 1
      %v4690 = vsel %vm4614, %v4685, %v4689
      %v4691 = vshrl.u32 %v4580, 16
      %v4693 = vor.u32 %v4691, %v4689
      %v4695 = vshll.u32 %v4581, 16
      %v4697 = vrot.slane %v4695, 1
      %v4698 = vsel %vm4614, %v4693, %v4697
      %v4699 = vshrl.u32 %v4581, 16
      %v4701 = vor.u32 %v4699, %v4697
      %v4703 = vshll.u32 %v4582, 16
      %v4705 = vrot.slane %v4703, 1
      %v4706 = vsel %vm4614, %v4701, %v4705
      %v4707 = vshrl.u32 %v4582, 16
      %v4709 = vor.u32 %v4707, %v4705
      %v4711 = vshll.u32 %v4583, 16
      %v4713 = vrot.slane %v4711, 1
      %v4714 = vsel %vm4614, %v4709, %v4713
      %v4715 = vshrl.u32 %v4583, 16
      %v4717 = vor.u32 %v4715, %v4713
      %v4719 = vshll.u32 %v4584, 16
      %v4721 = vrot.slane %v4719, 1
      %v4722 = vsel %vm4614, %v4717, %v4721
      %v4723 = vshrl.u32 %v4584, 16
      %v4725 = vor.u32 %v4723, %v4721
      %v4727 = vshll.u32 %v4585, 16
      %v4729 = vrot.slane %v4727, 1
      %v4730 = vsel %vm4614, %v4725, %v4729
      %v4731 = vshrl.u32 %v4585, 16
      %v4733 = vor.u32 %v4731, %v4729
      %v4735 = vshll.u32 %v4586, 16
      %v4737 = vrot.slane %v4735, 1
      %v4738 = vsel %vm4614, %v4733, %v4737
      %v4739 = vshrl.u32 %v4586, 16
      %v4741 = vor.u32 %v4739, %v4737
      %v4743 = vshll.u32 %v4587, 16
      %v4745 = vrot.slane %v4743, 1
      %v4746 = vsel %vm4614, %v4741, %v4745
      %v4747 = vshrl.u32 %v4587, 16
      %v4749 = vor.u32 %v4747, %v4745
      %v4751 = vshll.u32 %v4588, 16
      %v4753 = vrot.slane %v4751, 1
      %v4754 = vsel %vm4614, %v4749, %v4753
      %v4755 = vshrl.u32 %v4588, 16
      %v4757 = vor.u32 %v4755, %v4753
      %v4759 = vshll.u32 %v4589, 16
      %v4761 = vrot.slane %v4759, 1
      %v4762 = vsel %vm4614, %v4757, %v4761
      %v4763 = vshrl.u32 %v4589, 16
      %v4765 = vor.u32 %v4763, %v4761
      %v4767 = vshll.u32 %v4590, 16
      %v4769 = vrot.slane %v4767, 1
      %v4770 = vsel %vm4614, %v4765, %v4769
      %v4771 = vshrl.u32 %v4590, 16
      %v4773 = vor.u32 %v4771, %v4769
      %v4775 = vshll.u32 %v4591, 16
      %v4777 = vrot.slane %v4775, 1
      %v4778 = vsel %vm4614, %v4773, %v4777
      %v4779 = vshrl.u32 %v4591, 16
      %v4781 = vor.u32 %v4779, %v4777
      %v4783 = vshll.u32 %v4592, 16
      %v4785 = vrot.slane %v4783, 1
      %v4786 = vsel %vm4614, %v4781, %v4785
      %v4787 = vshrl.u32 %v4592, 16
      %v4789 = vor.u32 %v4787, %v4785
      %v4791 = vshll.u32 %v4593, 16
      %v4793 = vrot.slane %v4791, 1
      %v4794 = vsel %vm4614, %v4789, %v4793
      %v4795 = vshrl.u32 %v4593, 16
      %v4797 = vor.u32 %v4795, %v4793
      %v4799 = vshll.u32 %v4594, 16
      %v4801 = vrot.slane %v4799, 1
      %v4802 = vsel %vm4614, %v4797, %v4801
      %v4803 = vshrl.u32 %v4594, 16
      %v4805 = vor.u32 %v4803, %v4801
      %v4807 = vshll.u32 %v4595, 16
      %v4809 = vrot.slane %v4807, 1
      %v4810 = vsel %vm4614, %v4805, %v4809
      %v4811 = vshrl.u32 %v4595, 16
      %v4813 = vor.u32 %v4811, %v4809
      %v4815 = vshll.u32 %v4596, 16
      %v4817 = vrot.slane %v4815, 1
      %v4818 = vsel %vm4614, %v4813, %v4817
      %v4819 = vshrl.u32 %v4596, 16
      %v4821 = vor.u32 %v4819, %v4817
      %v4823 = vshll.u32 %v4597, 16
      %v4825 = vrot.slane %v4823, 1
      %v4826 = vsel %vm4614, %v4821, %v4825
      %v4827 = vshrl.u32 %v4597, 16
      %v4829 = vor.u32 %v4827, %v4825
      %v4831 = vshll.u32 %v4598, 16
      %v4833 = vrot.slane %v4831, 1
      %v4834 = vsel %vm4614, %v4829, %v4833
      %v4835 = vshrl.u32 %v4598, 16
      %v4837 = vor.u32 %v4835, %v4833
      %v4839 = vshll.u32 %v4599, 16
      %v4841 = vrot.slane %v4839, 1
      %v4842 = vsel %vm4614, %v4837, %v4841
      %v4843 = vshrl.u32 %v4599, 16
      %v4845 = vor.u32 %v4843, %v4841
      %v4847 = vshll.u32 %v4600, 16
      %v4849 = vrot.slane %v4847, 1
      %v4850 = vsel %vm4614, %v4845, %v4849
      %v4851 = vshrl.u32 %v4600, 16
      %v4853 = vor.u32 %v4851, %v4849
      %v4855 = vshll.u32 %v4601, 16
      %v4857 = vrot.slane %v4855, 1
      %v4858 = vsel %vm4614, %v4853, %v4857
      %v4859 = vshrl.u32 %v4601, 16
      %v4861 = vor.u32 %v4859, %v4857
      %v4863 = vshll.u32 %v4602, 16
      %v4865 = vrot.slane %v4863, 1
      %v4866 = vsel %vm4614, %v4861, %v4865
      %v4867 = vshrl.u32 %v4602, 16
      %v4869 = vor.u32 %v4867, %v4865
      %v4871 = vshll.u32 %v4603, 16
      %v4873 = vrot.slane %v4871, 1
      %v4874 = vsel %vm4614, %v4869, %v4873
      %v4875 = vshrl.u32 %v4603, 16
      %v4877 = vor.u32 %v4875, %v4873
      %v4879 = vshll.u32 %v4604, 16
      %v4881 = vrot.slane %v4879, 1
      %v4882 = vsel %vm4614, %v4877, %v4881
      %v4883 = vshrl.u32 %v4604, 16
      %v4885 = vor.u32 %v4883, %v4881
      %v4887 = vshll.u32 %v4605, 16
      %v4889 = vrot.slane %v4887, 1
      %v4890 = vsel %vm4614, %v4885, %v4889
      %v4891 = vshrl.u32 %v4605, 16
      %v4893 = vor.u32 %v4891, %v4889
      %v4895 = vshll.u32 %v4606, 16
      %v4897 = vrot.slane %v4895, 1
      %v4898 = vsel %vm4614, %v4893, %v4897
      %v4899 = vshrl.u32 %v4606, 16
      %v4901 = vor.u32 %v4899, %v4897
      %v4903 = vshll.u32 %v4607, 16
      %v4905 = vrot.slane %v4903, 1
      %v4906 = vsel %vm4614, %v4901, %v4905
      %v4907 = vshrl.u32 %v4607, 16
      %v4909 = vor.u32 %v4907, %v4905
      %v4911 = vshll.u32 %v4608, 16
      %v4913 = vrot.slane %v4911, 1
      %v4914 = vsel %vm4614, %v4909, %v4913
      %v4915 = vshrl.u32 %v4608, 16
      %v4917 = vor.u32 %v4915, %v4913
      %v4919 = vshll.u32 %v4609, 16
      %v4921 = vrot.slane %v4919, 1
      %v4922 = vsel %vm4614, %v4917, %v4921
      %v4923 = vshrl.u32 %v4609, 16
      %v4925 = vor.u32 %v4923, %v4921
      %v4927 = vshll.u32 %v4610, 16
      %v4929 = vrot.slane %v4927, 1
      %v4930 = vsel %vm4614, %v4925, %v4929
      %v4931 = vshrl.u32 %v4610, 16
      %v4933 = vor.u32 %v4931, %v4929
      %v4935 = vshll.u32 %v4611, 16
      %v4937 = vrot.slane %v4935, 1
      %v4938 = vsel %vm4614, %v4933, %v4937
      %v4940 = vsel %vm827, %v4626, 0
      %v4943 = vsel %vm827, %v4634, 0
      %v4946 = vsel %vm827, %v4642, 0
      %v4949 = vsel %vm827, %v4650, 0
      %v4952 = vsel %vm827, %v4658, 0
      %v4955 = vsel %vm827, %v4666, 0
      %v4958 = vsel %vm827, %v4674, 0
      %v4961 = vsel %vm827, %v4682, 0
      %v4964 = vsel %vm827, %v4690, 0
      %v4967 = vsel %vm827, %v4698, 0
      %v4970 = vsel %vm827, %v4706, 0
      %v4973 = vsel %vm827, %v4714, 0
      %v4976 = vsel %vm827, %v4722, 0
      %v4979 = vsel %vm827, %v4730, 0
      %v4982 = vsel %vm827, %v4738, 0
      %v4985 = vsel %vm827, %v4746, 0
      %v4988 = vsel %vm827, %v4754, 0
      %v4991 = vsel %vm827, %v4762, 0
      %v4994 = vsel %vm827, %v4770, 0
      %v4997 = vsel %vm827, %v4778, 0
      %v5000 = vsel %vm827, %v4786, 0
      %v5003 = vsel %vm827, %v4794, 0
      %v5006 = vsel %vm827, %v4802, 0
      %v5009 = vsel %vm827, %v4810, 0
      %v5012 = vsel %vm827, %v4818, 0
      %v5015 = vsel %vm827, %v4826, 0
      %v5018 = vsel %vm827, %v4834, 0
      %v5021 = vsel %vm827, %v4842, 0
      %v5024 = vsel %vm827, %v4850, 0
      %v5027 = vsel %vm827, %v4858, 0
      %v5030 = vsel %vm827, %v4866, 0
      %v5033 = vsel %vm827, %v4874, 0
      %v5036 = vsel %vm827, %v4882, 0
      %v5039 = vsel %vm827, %v4890, 0
      %v5042 = vsel %vm827, %v4898, 0
      %v5045 = vsel %vm827, %v4906, 0
      %v5048 = vsel %vm827, %v4914, 0
      %v5051 = vsel %vm827, %v4922, 0
      %v5054 = vsel %vm827, %v4930, 0
      %v5057 = vsel %vm827, %v4938, 0
      %v5060 = vand.u32 %v4613, %v1194
      %5062 = vmatprep.subr.bf16.mxu0 0
      %5063 = vmatpush1.bf16.msra.mxu0 %v5060
      %5064 = vmatprep.subr.bf16.mxu0 0
      %5065 = vmatpush1.bf16.msra.mxu0 0
      %5066 = vmatprep.subr.bf16.mxu0 0
      %5067 = vmatpush1.bf16.msra.mxu0 0
      %5068 = vmatprep.subr.bf16.mxu0 0
      %5069 = vmatpush1.bf16.msra.mxu0 0
      %5070 = vmatprep.subr.bf16.mxu0 0
      %5071 = vmatpush1.bf16.msra.mxu0 0
      %5072 = vmatprep.subr.bf16.mxu0 0
      %5073 = vmatpush1.bf16.msra.mxu0 0
      %5074 = vmatprep.subr.bf16.mxu0 0
      %5075 = vmatpush1.bf16.msra.mxu0 0
      %5076 = vmatprep.subr.bf16.mxu0 0
      %5077 = vmatpush1.bf16.msra.mxu0 0
      %5078 = vmatprep.subr.bf16.mxu0 0
      %5079 = vmatpush1.bf16.msra.mxu0 0
      %5080 = vmatprep.subr.bf16.mxu0 0
      %5081 = vmatpush1.bf16.msra.mxu0 0
      %5082 = vmatprep.subr.bf16.mxu0 0
      %5083 = vmatpush1.bf16.msra.mxu0 0
      %5084 = vmatprep.subr.bf16.mxu0 0
      %5085 = vmatpush1.bf16.msra.mxu0 0
      %5086 = vmatprep.subr.bf16.mxu0 0
      %5087 = vmatpush1.bf16.msra.mxu0 0
      %5088 = vmatprep.subr.bf16.mxu0 0
      %5089 = vmatpush1.bf16.msra.mxu0 0
      %5090 = vmatprep.subr.bf16.mxu0 0
      %5091 = vmatpush1.bf16.msra.mxu0 0
      %5092 = vmatprep.subr.bf16.mxu0 0
      %5093 = vmatpush1.bf16.msra.mxu0 0
      %5094 = vmatprep.mubr.bf16.mxu0 0
      %5095 = vmatmul.mubr.bf16.gmra.mrb[0].mxu0 %v4940
      %v5096 = vpop.f32.mrb[0].mxu0
      %v5097 = vadd.f32 0.0, %v5096
      %v5098 = vpop.f32.mrb[0].mxu0
      %v5099 = vpop.f32.mrb[0].mxu0
      %v5100 = vadd.f32 0.0, %v5099
      %v5101 = vpop.f32.mrb[0].mxu0
      %5102 = vmatprep.mubr.bf16.mxu0 0
      %5103 = vmatmul.mubr.bf16.gmra.mrb[0].mxu0 %v4943
      %v5104 = vpop.f32.mrb[0].mxu0
      %v5105 = vadd.f32 0.0, %v5104
      %v5106 = vpop.f32.mrb[0].mxu0
      %v5107 = vpop.f32.mrb[0].mxu0
      %v5108 = vadd.f32 0.0, %v5107
      %v5109 = vpop.f32.mrb[0].mxu0
      %5110 = vmatprep.mubr.bf16.mxu0 0
      %5111 = vmatmul.mubr.bf16.gmra.mrb[0].mxu0 %v4946
      %v5112 = vpop.f32.mrb[0].mxu0
      %v5113 = vadd.f32 0.0, %v5112
      %v5114 = vpop.f32.mrb[0].mxu0
      %v5115 = vpop.f32.mrb[0].mxu0
      %v5116 = vadd.f32 0.0, %v5115
      %v5117 = vpop.f32.mrb[0].mxu0
      %5118 = vmatprep.mubr.bf16.mxu0 0
      %5119 = vmatmul.mubr.bf16.gmra.mrb[0].mxu0 %v4949
      %v5120 = vpop.f32.mrb[0].mxu0
      %v5121 = vadd.f32 0.0, %v5120
      %v5122 = vpop.f32.mrb[0].mxu0
      %v5123 = vpop.f32.mrb[0].mxu0
      %v5124 = vadd.f32 0.0, %v5123
      %v5125 = vpop.f32.mrb[0].mxu0
      %5126 = vmatprep.mubr.bf16.mxu0 0
      %5127 = vmatmul.mubr.bf16.gmra.mrb[0].mxu0 %v4952
      %v5128 = vpop.f32.mrb[0].mxu0
      %v5129 = vadd.f32 0.0, %v5128
      %v5130 = vpop.f32.mrb[0].mxu0
      %v5131 = vpop.f32.mrb[0].mxu0
      %v5132 = vadd.f32 0.0, %v5131
      %v5133 = vpop.f32.mrb[0].mxu0
      %5134 = vmatprep.mubr.bf16.mxu0 0
      %5135 = vmatmul.mubr.bf16.gmra.mrb[0].mxu0 %v4955
      %v5136 = vpop.f32.mrb[0].mxu0
      %v5137 = vadd.f32 0.0, %v5136
      %v5138 = vpop.f32.mrb[0].mxu0
      %v5139 = vpop.f32.mrb[0].mxu0
      %v5140 = vadd.f32 0.0, %v5139
      %v5141 = vpop.f32.mrb[0].mxu0
      %5142 = vmatprep.mubr.bf16.mxu0 0
      %5143 = vmatmul.mubr.bf16.gmra.mrb[0].mxu0 %v4958
      %v5144 = vpop.f32.mrb[0].mxu0
      %v5145 = vadd.f32 0.0, %v5144
      %v5146 = vpop.f32.mrb[0].mxu0
      %v5147 = vpop.f32.mrb[0].mxu0
      %v5148 = vadd.f32 0.0, %v5147
      %v5149 = vpop.f32.mrb[0].mxu0
      %5150 = vmatprep.mubr.bf16.mxu0 0
      %5151 = vmatmul.mubr.bf16.gmra.mrb[0].mxu0 %v4961
      %v5152 = vpop.f32.mrb[0].mxu0
      %v5153 = vadd.f32 0.0, %v5152
      %v5154 = vpop.f32.mrb[0].mxu0
      %v5155 = vpop.f32.mrb[0].mxu0
      %v5156 = vadd.f32 0.0, %v5155
      %v5157 = vpop.f32.mrb[0].mxu0
      %5158 = vmatprep.mubr.bf16.mxu0 0
      %5159 = vmatmul.mubr.bf16.gmra.mrb[0].mxu0 %v4964
      %v5160 = vpop.f32.mrb[0].mxu0
      %v5161 = vadd.f32 0.0, %v5160
      %v5162 = vpop.f32.mrb[0].mxu0
      %v5163 = vpop.f32.mrb[0].mxu0
      %v5164 = vadd.f32 0.0, %v5163
      %v5165 = vpop.f32.mrb[0].mxu0
      %5166 = vmatprep.mubr.bf16.mxu0 0
      %5167 = vmatmul.mubr.bf16.gmra.mrb[0].mxu0 %v4967
      %v5168 = vpop.f32.mrb[0].mxu0
      %v5169 = vadd.f32 0.0, %v5168
      %v5170 = vpop.f32.mrb[0].mxu0
      %v5171 = vpop.f32.mrb[0].mxu0
      %v5172 = vadd.f32 0.0, %v5171
      %v5173 = vpop.f32.mrb[0].mxu0
      %5174 = vmatprep.mubr.bf16.mxu0 0
      %5175 = vmatmul.mubr.bf16.gmra.mrb[0].mxu0 %v4970
      %v5176 = vpop.f32.mrb[0].mxu0
      %v5177 = vadd.f32 0.0, %v5176
      %v5178 = vpop.f32.mrb[0].mxu0
      %v5179 = vpop.f32.mrb[0].mxu0
      %v5180 = vadd.f32 0.0, %v5179
      %v5181 = vpop.f32.mrb[0].mxu0
      %5182 = vmatprep.mubr.bf16.mxu0 0
      %5183 = vmatmul.mubr.bf16.gmra.mrb[0].mxu0 %v4973
      %v5184 = vpop.f32.mrb[0].mxu0
      %v5185 = vadd.f32 0.0, %v5184
      %v5186 = vpop.f32.mrb[0].mxu0
      %v5187 = vpop.f32.mrb[0].mxu0
      %v5188 = vadd.f32 0.0, %v5187
      %v5189 = vpop.f32.mrb[0].mxu0
      %5190 = vmatprep.mubr.bf16.mxu0 0
      %5191 = vmatmul.mubr.bf16.gmra.mrb[0].mxu0 %v4976
      %v5192 = vpop.f32.mrb[0].mxu0
      %v5193 = vadd.f32 0.0, %v5192
      %v5194 = vpop.f32.mrb[0].mxu0
      %v5195 = vpop.f32.mrb[0].mxu0
      %v5196 = vadd.f32 0.0, %v5195
      %v5197 = vpop.f32.mrb[0].mxu0
      %5198 = vmatprep.mubr.bf16.mxu0 0
      %5199 = vmatmul.mubr.bf16.gmra.mrb[0].mxu0 %v4979
      %v5200 = vpop.f32.mrb[0].mxu0
      %v5201 = vadd.f32 0.0, %v5200
      %v5202 = vpop.f32.mrb[0].mxu0
      %v5203 = vpop.f32.mrb[0].mxu0
      %v5204 = vadd.f32 0.0, %v5203
      %v5205 = vpop.f32.mrb[0].mxu0
      %5206 = vmatprep.mubr.bf16.mxu0 0
      %5207 = vmatmul.mubr.bf16.gmra.mrb[0].mxu0 %v4982
      %v5208 = vpop.f32.mrb[0].mxu0
      %v5209 = vadd.f32 0.0, %v5208
      %v5210 = vpop.f32.mrb[0].mxu0
      %v5211 = vpop.f32.mrb[0].mxu0
      %v5212 = vadd.f32 0.0, %v5211
      %v5213 = vpop.f32.mrb[0].mxu0
      %5214 = vmatprep.mubr.bf16.mxu0 0
      %5215 = vmatmul.mubr.bf16.gmra.mrb[0].mxu0 %v4985
      %v5216 = vpop.f32.mrb[0].mxu0
      %v5217 = vadd.f32 0.0, %v5216
      %v5218 = vpop.f32.mrb[0].mxu0
      %v5219 = vpop.f32.mrb[0].mxu0
      %v5220 = vadd.f32 0.0, %v5219
      %v5221 = vpop.f32.mrb[0].mxu0
      %5222 = vmatprep.mubr.bf16.mxu0 0
      %5223 = vmatmul.mubr.bf16.gmra.mrb[0].mxu0 %v4988
      %v5224 = vpop.f32.mrb[0].mxu0
      %v5225 = vadd.f32 0.0, %v5224
      %v5226 = vpop.f32.mrb[0].mxu0
      %v5227 = vpop.f32.mrb[0].mxu0
      %v5228 = vadd.f32 0.0, %v5227
      %v5229 = vpop.f32.mrb[0].mxu0
      %5230 = vmatprep.mubr.bf16.mxu0 0
      %5231 = vmatmul.mubr.bf16.gmra.mrb[0].mxu0 %v4991
      %v5232 = vpop.f32.mrb[0].mxu0
      %v5233 = vadd.f32 0.0, %v5232
      %v5234 = vpop.f32.mrb[0].mxu0
      %v5235 = vpop.f32.mrb[0].mxu0
      %v5236 = vadd.f32 0.0, %v5235
      %v5237 = vpop.f32.mrb[0].mxu0
      %5238 = vmatprep.mubr.bf16.mxu0 0
      %5239 = vmatmul.mubr.bf16.gmra.mrb[0].mxu0 %v4994
      %v5240 = vpop.f32.mrb[0].mxu0
      %v5241 = vadd.f32 0.0, %v5240
      %v5242 = vpop.f32.mrb[0].mxu0
      %v5243 = vpop.f32.mrb[0].mxu0
      %v5244 = vadd.f32 0.0, %v5243
      %v5245 = vpop.f32.mrb[0].mxu0
      %5246 = vmatprep.mubr.bf16.mxu0 0
      %5247 = vmatmul.mubr.bf16.gmra.mrb[0].mxu0 %v4997
      %v5248 = vpop.f32.mrb[0].mxu0
      %v5249 = vadd.f32 0.0, %v5248
      %v5250 = vpop.f32.mrb[0].mxu0
      %v5251 = vpop.f32.mrb[0].mxu0
      %v5252 = vadd.f32 0.0, %v5251
      %v5253 = vpop.f32.mrb[0].mxu0
      %5254 = vmatprep.mubr.bf16.mxu0 0
      %5255 = vmatmul.mubr.bf16.gmra.mrb[0].mxu0 %v5000
      %v5256 = vpop.f32.mrb[0].mxu0
      %v5257 = vadd.f32 0.0, %v5256
      %v5258 = vpop.f32.mrb[0].mxu0
      %v5259 = vpop.f32.mrb[0].mxu0
      %v5260 = vadd.f32 0.0, %v5259
      %v5261 = vpop.f32.mrb[0].mxu0
      %5262 = vmatprep.mubr.bf16.mxu0 0
      %5263 = vmatmul.mubr.bf16.gmra.mrb[0].mxu0 %v5003
      %v5264 = vpop.f32.mrb[0].mxu0
      %v5265 = vadd.f32 0.0, %v5264
      %v5266 = vpop.f32.mrb[0].mxu0
      %v5267 = vpop.f32.mrb[0].mxu0
      %v5268 = vadd.f32 0.0, %v5267
      %v5269 = vpop.f32.mrb[0].mxu0
      %5270 = vmatprep.mubr.bf16.mxu0 0
      %5271 = vmatmul.mubr.bf16.gmra.mrb[0].mxu0 %v5006
      %v5272 = vpop.f32.mrb[0].mxu0
      %v5273 = vadd.f32 0.0, %v5272
      %v5274 = vpop.f32.mrb[0].mxu0
      %v5275 = vpop.f32.mrb[0].mxu0
      %v5276 = vadd.f32 0.0, %v5275
      %v5277 = vpop.f32.mrb[0].mxu0
      %5278 = vmatprep.mubr.bf16.mxu0 0
      %5279 = vmatmul.mubr.bf16.gmra.mrb[0].mxu0 %v5009
      %v5280 = vpop.f32.mrb[0].mxu0
      %v5281 = vadd.f32 0.0, %v5280
      %v5282 = vpop.f32.mrb[0].mxu0
      %v5283 = vpop.f32.mrb[0].mxu0
      %v5284 = vadd.f32 0.0, %v5283
      %v5285 = vpop.f32.mrb[0].mxu0
      %5286 = vmatprep.mubr.bf16.mxu0 0
      %5287 = vmatmul.mubr.bf16.gmra.mrb[0].mxu0 %v5012
      %v5288 = vpop.f32.mrb[0].mxu0
      %v5289 = vadd.f32 0.0, %v5288
      %v5290 = vpop.f32.mrb[0].mxu0
      %v5291 = vpop.f32.mrb[0].mxu0
      %v5292 = vadd.f32 0.0, %v5291
      %v5293 = vpop.f32.mrb[0].mxu0
      %5294 = vmatprep.mubr.bf16.mxu0 0
      %5295 = vmatmul.mubr.bf16.gmra.mrb[0].mxu0 %v5015
      %v5296 = vpop.f32.mrb[0].mxu0
      %v5297 = vadd.f32 0.0, %v5296
      %v5298 = vpop.f32.mrb[0].mxu0
      %v5299 = vpop.f32.mrb[0].mxu0
      %v5300 = vadd.f32 0.0, %v5299
      %v5301 = vpop.f32.mrb[0].mxu0
      %5302 = vmatprep.mubr.bf16.mxu0 0
      %5303 = vmatmul.mubr.bf16.gmra.mrb[0].mxu0 %v5018
      %v5304 = vpop.f32.mrb[0].mxu0
      %v5305 = vadd.f32 0.0, %v5304
      %v5306 = vpop.f32.mrb[0].mxu0
      %v5307 = vpop.f32.mrb[0].mxu0
      %v5308 = vadd.f32 0.0, %v5307
      %v5309 = vpop.f32.mrb[0].mxu0
      %5310 = vmatprep.mubr.bf16.mxu0 0
      %5311 = vmatmul.mubr.bf16.gmra.mrb[0].mxu0 %v5021
      %v5312 = vpop.f32.mrb[0].mxu0
      %v5313 = vadd.f32 0.0, %v5312
      %v5314 = vpop.f32.mrb[0].mxu0
      %v5315 = vpop.f32.mrb[0].mxu0
      %v5316 = vadd.f32 0.0, %v5315
      %v5317 = vpop.f32.mrb[0].mxu0
      %5318 = vmatprep.mubr.bf16.mxu0 0
      %5319 = vmatmul.mubr.bf16.gmra.mrb[0].mxu0 %v5024
      %v5320 = vpop.f32.mrb[0].mxu0
      %v5321 = vadd.f32 0.0, %v5320
      %v5322 = vpop.f32.mrb[0].mxu0
      %v5323 = vpop.f32.mrb[0].mxu0
      %v5324 = vadd.f32 0.0, %v5323
      %v5325 = vpop.f32.mrb[0].mxu0
      %5326 = vmatprep.mubr.bf16.mxu0 0
      %5327 = vmatmul.mubr.bf16.gmra.mrb[0].mxu0 %v5027
      %v5328 = vpop.f32.mrb[0].mxu0
      %v5329 = vadd.f32 0.0, %v5328
      %v5330 = vpop.f32.mrb[0].mxu0
      %v5331 = vpop.f32.mrb[0].mxu0
      %v5332 = vadd.f32 0.0, %v5331
      %v5333 = vpop.f32.mrb[0].mxu0
      %5334 = vmatprep.mubr.bf16.mxu0 0
      %5335 = vmatmul.mubr.bf16.gmra.mrb[0].mxu0 %v5030
      %v5336 = vpop.f32.mrb[0].mxu0
      %v5337 = vadd.f32 0.0, %v5336
      %v5338 = vpop.f32.mrb[0].mxu0
      %v5339 = vpop.f32.mrb[0].mxu0
      %v5340 = vadd.f32 0.0, %v5339
      %v5341 = vpop.f32.mrb[0].mxu0
      %5342 = vmatprep.mubr.bf16.mxu0 0
      %5343 = vmatmul.mubr.bf16.gmra.mrb[0].mxu0 %v5033
      %v5344 = vpop.f32.mrb[0].mxu0
      %v5345 = vadd.f32 0.0, %v5344
      %v5346 = vpop.f32.mrb[0].mxu0
      %v5347 = vpop.f32.mrb[0].mxu0
      %v5348 = vadd.f32 0.0, %v5347
      %v5349 = vpop.f32.mrb[0].mxu0
      %5350 = vmatprep.mubr.bf16.mxu0 0
      %5351 = vmatmul.mubr.bf16.gmra.mrb[0].mxu0 %v5036
      %v5352 = vpop.f32.mrb[0].mxu0
      %v5353 = vadd.f32 0.0, %v5352
      %v5354 = vpop.f32.mrb[0].mxu0
      %v5355 = vpop.f32.mrb[0].mxu0
      %v5356 = vadd.f32 0.0, %v5355
      %v5357 = vpop.f32.mrb[0].mxu0
      %5358 = vmatprep.mubr.bf16.mxu0 0
      %5359 = vmatmul.mubr.bf16.gmra.mrb[0].mxu0 %v5039
      %v5360 = vpop.f32.mrb[0].mxu0
      %v5361 = vadd.f32 0.0, %v5360
      %v5362 = vpop.f32.mrb[0].mxu0
      %v5363 = vpop.f32.mrb[0].mxu0
      %v5364 = vadd.f32 0.0, %v5363
      %v5365 = vpop.f32.mrb[0].mxu0
      %5366 = vmatprep.mubr.bf16.mxu0 0
      %5367 = vmatmul.mubr.bf16.gmra.mrb[0].mxu0 %v5042
      %v5368 = vpop.f32.mrb[0].mxu0
      %v5369 = vadd.f32 0.0, %v5368
      %v5370 = vpop.f32.mrb[0].mxu0
      %v5371 = vpop.f32.mrb[0].mxu0
      %v5372 = vadd.f32 0.0, %v5371
      %v5373 = vpop.f32.mrb[0].mxu0
      %5374 = vmatprep.mubr.bf16.mxu0 0
      %5375 = vmatmul.mubr.bf16.gmra.mrb[0].mxu0 %v5045
      %v5376 = vpop.f32.mrb[0].mxu0
      %v5377 = vadd.f32 0.0, %v5376
      %v5378 = vpop.f32.mrb[0].mxu0
      %v5379 = vpop.f32.mrb[0].mxu0
      %v5380 = vadd.f32 0.0, %v5379
      %v5381 = vpop.f32.mrb[0].mxu0
      %5382 = vmatprep.mubr.bf16.mxu0 0
      %5383 = vmatmul.mubr.bf16.gmra.mrb[0].mxu0 %v5048
      %v5384 = vpop.f32.mrb[0].mxu0
      %v5385 = vadd.f32 0.0, %v5384
      %v5386 = vpop.f32.mrb[0].mxu0
      %v5387 = vpop.f32.mrb[0].mxu0
      %v5388 = vadd.f32 0.0, %v5387
      %v5389 = vpop.f32.mrb[0].mxu0
      %5390 = vmatprep.mubr.bf16.mxu0 0
      %5391 = vmatmul.mubr.bf16.gmra.mrb[0].mxu0 %v5051
      %v5392 = vpop.f32.mrb[0].mxu0
      %v5393 = vadd.f32 0.0, %v5392
      %v5394 = vpop.f32.mrb[0].mxu0
      %v5395 = vpop.f32.mrb[0].mxu0
      %v5396 = vadd.f32 0.0, %v5395
      %v5397 = vpop.f32.mrb[0].mxu0
      %5398 = vmatprep.mubr.bf16.mxu0 0
      %5399 = vmatmul.mubr.bf16.gmra.mrb[0].mxu0 %v5054
      %v5400 = vpop.f32.mrb[0].mxu0
      %v5401 = vadd.f32 0.0, %v5400
      %v5402 = vpop.f32.mrb[0].mxu0
      %v5403 = vpop.f32.mrb[0].mxu0
      %v5404 = vadd.f32 0.0, %v5403
      %v5405 = vpop.f32.mrb[0].mxu0
      %5406 = vmatprep.mubr.bf16.mxu0 0
      %5407 = vmatmul.mubr.bf16.gmra.mrb[0].mxu0 %v5057
      %v5408 = vpop.f32.mrb[0].mxu0
      %v5409 = vadd.f32 0.0, %v5408
      %v5410 = vpop.f32.mrb[0].mxu0
      %v5411 = vpop.f32.mrb[0].mxu0
      %v5412 = vadd.f32 0.0, %v5411
      %v5413 = vpop.f32.mrb[0].mxu0
      %5414 = vdwg.mxu0
      %v5415 = vadd.f32 %v4491, %v5097
      %v5416 = vadd.f32 %v4492, %v5100
      %v5417 = vadd.f32 %v4493, %v5105
      %v5418 = vadd.f32 %v4494, %v5108
      %v5419 = vadd.f32 %v4495, %v5113
      %v5420 = vadd.f32 %v4496, %v5116
      %v5421 = vadd.f32 %v4497, %v5121
      %v5422 = vadd.f32 %v4498, %v5124
      %v5423 = vadd.f32 %v4499, %v5129
      %v5424 = vadd.f32 %v4500, %v5132
      %v5425 = vadd.f32 %v4501, %v5137
      %v5426 = vadd.f32 %v4502, %v5140
      %v5427 = vadd.f32 %v4503, %v5145
      %v5428 = vadd.f32 %v4504, %v5148
      %v5429 = vadd.f32 %v4505, %v5153
      %v5430 = vadd.f32 %v4506, %v5156
      %v5431 = vadd.f32 %v4507, %v5161
      %v5432 = vadd.f32 %v4508, %v5164
      %v5433 = vadd.f32 %v4509, %v5169
      %v5434 = vadd.f32 %v4510, %v5172
      %v5435 = vadd.f32 %v4511, %v5177
      %v5436 = vadd.f32 %v4512, %v5180
      %v5437 = vadd.f32 %v4513, %v5185
      %v5438 = vadd.f32 %v4514, %v5188
      %v5439 = vadd.f32 %v4515, %v5193
      %v5440 = vadd.f32 %v4516, %v5196
      %v5441 = vadd.f32 %v4517, %v5201
      %v5442 = vadd.f32 %v4518, %v5204
      %v5443 = vadd.f32 %v4519, %v5209
      %v5444 = vadd.f32 %v4520, %v5212
      %v5445 = vadd.f32 %v4521, %v5217
      %v5446 = vadd.f32 %v4522, %v5220
      %v5447 = vadd.f32 %v4523, %v5225
      %v5448 = vadd.f32 %v4524, %v5228
      %v5449 = vadd.f32 %v4525, %v5233
      %v5450 = vadd.f32 %v4526, %v5236
      %v5451 = vadd.f32 %v4527, %v5241
      %v5452 = vadd.f32 %v4528, %v5244
      %v5453 = vadd.f32 %v4529, %v5249
      %v5454 = vadd.f32 %v4530, %v5252
      %v5455 = vadd.f32 %v4531, %v5257
      %v5456 = vadd.f32 %v4532, %v5260
      %v5457 = vadd.f32 %v4533, %v5265
      %v5458 = vadd.f32 %v4534, %v5268
      %v5459 = vadd.f32 %v4535, %v5273
      %v5460 = vadd.f32 %v4536, %v5276
      %v5461 = vadd.f32 %v4537, %v5281
      %v5462 = vadd.f32 %v4538, %v5284
      %v5463 = vadd.f32 %v4539, %v5289
      %v5464 = vadd.f32 %v4540, %v5292
      %v5465 = vadd.f32 %v4541, %v5297
      %v5466 = vadd.f32 %v4542, %v5300
      %v5467 = vadd.f32 %v4543, %v5305
      %v5468 = vadd.f32 %v4544, %v5308
      %v5469 = vadd.f32 %v4545, %v5313
      %v5470 = vadd.f32 %v4546, %v5316
      %v5471 = vadd.f32 %v4547, %v5321
      %v5472 = vadd.f32 %v4548, %v5324
      %v5473 = vadd.f32 %v4549, %v5329
      %v5474 = vadd.f32 %v4550, %v5332
      %v5475 = vadd.f32 %v4551, %v5337
      %v5476 = vadd.f32 %v4552, %v5340
      %v5477 = vadd.f32 %v4553, %v5345
      %v5478 = vadd.f32 %v4554, %v5348
      %v5479 = vadd.f32 %v4555, %v5353
      %v5480 = vadd.f32 %v4556, %v5356
      %v5481 = vadd.f32 %v4557, %v5361
      %v5482 = vadd.f32 %v4558, %v5364
      %v5483 = vadd.f32 %v4559, %v5369
      %v5484 = vadd.f32 %v4560, %v5372
      %v5485 = vadd.f32 %v4561, %v5377
      %v5486 = vadd.f32 %v4562, %v5380
      %v5487 = vadd.f32 %v4563, %v5385
      %v5488 = vadd.f32 %v4564, %v5388
      %v5489 = vadd.f32 %v4565, %v5393
      %v5490 = vadd.f32 %v4566, %v5396
      %v5491 = vadd.f32 %v4567, %v5401
      %v5492 = vadd.f32 %v4568, %v5404
      %v5493 = vadd.f32 %v4569, %v5409
      %v5494 = vadd.f32 %v4570, %v5412
      %v5495 = vld [vmem:[#allocation2 + $0x28] sm:$0xf8]
      %v5496 = vld [vmem:[#allocation2 + $0x30] sm:$0xff]
      %v5497 = vld [vmem:[#allocation2 + $0x38] sm:$0xff]
      %v5498 = vld [vmem:[#allocation2 + $0x40] sm:$0xff]
      %v5499 = vld [vmem:[#allocation2 + $0x48] sm:$0xff]
      %v5500 = vld [vmem:[#allocation2 + $0x50] sm:$0xff]
      %v5501 = vld [vmem:[#allocation2 + $0x58] sm:$0xff]
      %v5502 = vld [vmem:[#allocation2 + $0x60] sm:$0xff]
      %v5503 = vld [vmem:[#allocation2 + $0x68] sm:$0xff]
      %v5504 = vld [vmem:[#allocation2 + $0x70] sm:$0xff]
      %v5505 = vld [vmem:[#allocation2 + $0x78] sm:$0xff]
      %v5506 = vld [vmem:[#allocation2 + $0x80] sm:$0xff]
      %v5507 = vld [vmem:[#allocation2 + $0x88] sm:$0xff]
      %v5508 = vld [vmem:[#allocation2 + $0x90] sm:$0xff]
      %v5509 = vld [vmem:[#allocation2 + $0x98] sm:$0xff]
      %v5510 = vld [vmem:[#allocation2 + $0xa0] sm:$0xff]
      %v5511 = vld [vmem:[#allocation2 + $0xa8] sm:$0xff]
      %v5512 = vld [vmem:[#allocation2 + $0xb0] sm:$0xff]
      %v5513 = vld [vmem:[#allocation2 + $0xb8] sm:$0xff]
      %v5514 = vld [vmem:[#allocation2 + $0xc0] sm:$0xff]
      %v5515 = vld [vmem:[#allocation2 + $0xc8] sm:$0xff]
      %v5516 = vld [vmem:[#allocation2 + $0xd0] sm:$0xff]
      %v5517 = vld [vmem:[#allocation2 + $0xd8] sm:$0xff]
      %v5518 = vld [vmem:[#allocation2 + $0xe0] sm:$0xff]
      %v5519 = vld [vmem:[#allocation2 + $0xe8] sm:$0xff]
      %v5520 = vld [vmem:[#allocation2 + $0xf0] sm:$0xff]
      %v5521 = vld [vmem:[#allocation2 + $0xf8] sm:$0xff]
      %v5522 = vld [vmem:[#allocation2 + $0x100] sm:$0xff]
      %v5523 = vld [vmem:[#allocation2 + $0x108] sm:$0xff]
      %v5524 = vld [vmem:[#allocation2 + $0x110] sm:$0xff]
      %v5525 = vld [vmem:[#allocation2 + $0x118] sm:$0xff]
      %v5526 = vld [vmem:[#allocation2 + $0x120] sm:$0xff]
      %v5527 = vld [vmem:[#allocation2 + $0x128] sm:$0xff]
      %v5528 = vld [vmem:[#allocation2 + $0x130] sm:$0xff]
      %v5529 = vld [vmem:[#allocation2 + $0x138] sm:$0xff]
      %v5530 = vld [vmem:[#allocation2 + $0x140] sm:$0xff]
      %v5531 = vld [vmem:[#allocation2 + $0x148] sm:$0xff]
      %v5532 = vld [vmem:[#allocation2 + $0x150] sm:$0xff]
      %v5533 = vld [vmem:[#allocation2 + $0x158] sm:$0xff]
      %v5534 = vld [vmem:[#allocation2 + $0x160] sm:$0xff]
      %v5535 = vld [vmem:[#allocation2 + $0x168] sm:$0xf]
      %s5536 = scalar_lea.vmem %s448, 12
      %v5537 = vld [vmem:[%s5536] sm:$0x3]
      %v5539 = vshrl.u32 %v5495, 16
      %v5541 = vrot.slane %v5539, 3
      %v5542 = vshll.u32 %v5495, 16
      %v5544 = vrot.slane %v5542, 4
      %v5545 = vor.u32 %v5541, %v5544
      %v5547 = vshrl.u32 %v5496, 16
      %v5549 = vrot.slane %v5547, 3
      %v5550 = vshll.u32 %v5496, 16
      %v5552 = vrot.slane %v5550, 4
      %v5553 = vor.u32 %v5549, %v5552
      %v5554 = vsel %vm1551, %v5545, %v5553
      %v5556 = vshrl.u32 %v5497, 16
      %v5558 = vrot.slane %v5556, 3
      %v5559 = vshll.u32 %v5497, 16
      %v5561 = vrot.slane %v5559, 4
      %v5562 = vor.u32 %v5558, %v5561
      %v5563 = vsel %vm1551, %v5553, %v5562
      %v5565 = vshrl.u32 %v5498, 16
      %v5567 = vrot.slane %v5565, 3
      %v5568 = vshll.u32 %v5498, 16
      %v5570 = vrot.slane %v5568, 4
      %v5571 = vor.u32 %v5567, %v5570
      %v5572 = vsel %vm1551, %v5562, %v5571
      %v5574 = vshrl.u32 %v5499, 16
      %v5576 = vrot.slane %v5574, 3
      %v5577 = vshll.u32 %v5499, 16
      %v5579 = vrot.slane %v5577, 4
      %v5580 = vor.u32 %v5576, %v5579
      %v5581 = vsel %vm1551, %v5571, %v5580
      %v5583 = vshrl.u32 %v5500, 16
      %v5585 = vrot.slane %v5583, 3
      %v5586 = vshll.u32 %v5500, 16
      %v5588 = vrot.slane %v5586, 4
      %v5589 = vor.u32 %v5585, %v5588
      %v5590 = vsel %vm1551, %v5580, %v5589
      %v5592 = vshrl.u32 %v5501, 16
      %v5594 = vrot.slane %v5592, 3
      %v5595 = vshll.u32 %v5501, 16
      %v5597 = vrot.slane %v5595, 4
      %v5598 = vor.u32 %v5594, %v5597
      %v5599 = vsel %vm1551, %v5589, %v5598
      %v5601 = vshrl.u32 %v5502, 16
      %v5603 = vrot.slane %v5601, 3
      %v5604 = vshll.u32 %v5502, 16
      %v5606 = vrot.slane %v5604, 4
      %v5607 = vor.u32 %v5603, %v5606
      %v5608 = vsel %vm1551, %v5598, %v5607
      %v5610 = vshrl.u32 %v5503, 16
      %v5612 = vrot.slane %v5610, 3
      %v5613 = vshll.u32 %v5503, 16
      %v5615 = vrot.slane %v5613, 4
      %v5616 = vor.u32 %v5612, %v5615
      %v5617 = vsel %vm1551, %v5607, %v5616
      %v5619 = vshrl.u32 %v5504, 16
      %v5621 = vrot.slane %v5619, 3
      %v5622 = vshll.u32 %v5504, 16
      %v5624 = vrot.slane %v5622, 4
      %v5625 = vor.u32 %v5621, %v5624
      %v5626 = vsel %vm1551, %v5616, %v5625
      %v5628 = vshrl.u32 %v5505, 16
      %v5630 = vrot.slane %v5628, 3
      %v5631 = vshll.u32 %v5505, 16
      %v5633 = vrot.slane %v5631, 4
      %v5634 = vor.u32 %v5630, %v5633
      %v5635 = vsel %vm1551, %v5625, %v5634
      %v5637 = vshrl.u32 %v5506, 16
      %v5639 = vrot.slane %v5637, 3
      %v5640 = vshll.u32 %v5506, 16
      %v5642 = vrot.slane %v5640, 4
      %v5643 = vor.u32 %v5639, %v5642
      %v5644 = vsel %vm1551, %v5634, %v5643
      %v5646 = vshrl.u32 %v5507, 16
      %v5648 = vrot.slane %v5646, 3
      %v5649 = vshll.u32 %v5507, 16
      %v5651 = vrot.slane %v5649, 4
      %v5652 = vor.u32 %v5648, %v5651
      %v5653 = vsel %vm1551, %v5643, %v5652
      %v5655 = vshrl.u32 %v5508, 16
      %v5657 = vrot.slane %v5655, 3
      %v5658 = vshll.u32 %v5508, 16
      %v5660 = vrot.slane %v5658, 4
      %v5661 = vor.u32 %v5657, %v5660
      %v5662 = vsel %vm1551, %v5652, %v5661
      %v5664 = vshrl.u32 %v5509, 16
      %v5666 = vrot.slane %v5664, 3
      %v5667 = vshll.u32 %v5509, 16
      %v5669 = vrot.slane %v5667, 4
      %v5670 = vor.u32 %v5666, %v5669
      %v5671 = vsel %vm1551, %v5661, %v5670
      %v5673 = vshrl.u32 %v5510, 16
      %v5675 = vrot.slane %v5673, 3
      %v5676 = vshll.u32 %v5510, 16
      %v5678 = vrot.slane %v5676, 4
      %v5679 = vor.u32 %v5675, %v5678
      %v5680 = vsel %vm1551, %v5670, %v5679
      %v5682 = vshrl.u32 %v5511, 16
      %v5684 = vrot.slane %v5682, 3
      %v5685 = vshll.u32 %v5511, 16
      %v5687 = vrot.slane %v5685, 4
      %v5688 = vor.u32 %v5684, %v5687
      %v5689 = vsel %vm1551, %v5679, %v5688
      %v5691 = vshrl.u32 %v5512, 16
      %v5693 = vrot.slane %v5691, 3
      %v5694 = vshll.u32 %v5512, 16
      %v5696 = vrot.slane %v5694, 4
      %v5697 = vor.u32 %v5693, %v5696
      %v5698 = vsel %vm1551, %v5688, %v5697
      %v5700 = vshrl.u32 %v5513, 16
      %v5702 = vrot.slane %v5700, 3
      %v5703 = vshll.u32 %v5513, 16
      %v5705 = vrot.slane %v5703, 4
      %v5706 = vor.u32 %v5702, %v5705
      %v5707 = vsel %vm1551, %v5697, %v5706
      %v5709 = vshrl.u32 %v5514, 16
      %v5711 = vrot.slane %v5709, 3
      %v5712 = vshll.u32 %v5514, 16
      %v5714 = vrot.slane %v5712, 4
      %v5715 = vor.u32 %v5711, %v5714
      %v5716 = vsel %vm1551, %v5706, %v5715
      %v5718 = vshrl.u32 %v5515, 16
      %v5720 = vrot.slane %v5718, 3
      %v5721 = vshll.u32 %v5515, 16
      %v5723 = vrot.slane %v5721, 4
      %v5724 = vor.u32 %v5720, %v5723
      %v5725 = vsel %vm1551, %v5715, %v5724
      %v5727 = vshrl.u32 %v5516, 16
      %v5729 = vrot.slane %v5727, 3
      %v5730 = vshll.u32 %v5516, 16
      %v5732 = vrot.slane %v5730, 4
      %v5733 = vor.u32 %v5729, %v5732
      %v5734 = vsel %vm1551, %v5724, %v5733
      %v5736 = vshrl.u32 %v5517, 16
      %v5738 = vrot.slane %v5736, 3
      %v5739 = vshll.u32 %v5517, 16
      %v5741 = vrot.slane %v5739, 4
      %v5742 = vor.u32 %v5738, %v5741
      %v5743 = vsel %vm1551, %v5733, %v5742
      %v5745 = vshrl.u32 %v5518, 16
      %v5747 = vrot.slane %v5745, 3
      %v5748 = vshll.u32 %v5518, 16
      %v5750 = vrot.slane %v5748, 4
      %v5751 = vor.u32 %v5747, %v5750
      %v5752 = vsel %vm1551, %v5742, %v5751
      %v5754 = vshrl.u32 %v5519, 16
      %v5756 = vrot.slane %v5754, 3
      %v5757 = vshll.u32 %v5519, 16
      %v5759 = vrot.slane %v5757, 4
      %v5760 = vor.u32 %v5756, %v5759
      %v5761 = vsel %vm1551, %v5751, %v5760
      %v5763 = vshrl.u32 %v5520, 16
      %v5765 = vrot.slane %v5763, 3
      %v5766 = vshll.u32 %v5520, 16
      %v5768 = vrot.slane %v5766, 4
      %v5769 = vor.u32 %v5765, %v5768
      %v5770 = vsel %vm1551, %v5760, %v5769
      %v5772 = vshrl.u32 %v5521, 16
      %v5774 = vrot.slane %v5772, 3
      %v5775 = vshll.u32 %v5521, 16
      %v5777 = vrot.slane %v5775, 4
      %v5778 = vor.u32 %v5774, %v5777
      %v5779 = vsel %vm1551, %v5769, %v5778
      %v5781 = vshrl.u32 %v5522, 16
      %v5783 = vrot.slane %v5781, 3
      %v5784 = vshll.u32 %v5522, 16
      %v5786 = vrot.slane %v5784, 4
      %v5787 = vor.u32 %v5783, %v5786
      %v5788 = vsel %vm1551, %v5778, %v5787
      %v5790 = vshrl.u32 %v5523, 16
      %v5792 = vrot.slane %v5790, 3
      %v5793 = vshll.u32 %v5523, 16
      %v5795 = vrot.slane %v5793, 4
      %v5796 = vor.u32 %v5792, %v5795
      %v5797 = vsel %vm1551, %v5787, %v5796
      %v5799 = vshrl.u32 %v5524, 16
      %v5801 = vrot.slane %v5799, 3
      %v5802 = vshll.u32 %v5524, 16
      %v5804 = vrot.slane %v5802, 4
      %v5805 = vor.u32 %v5801, %v5804
      %v5806 = vsel %vm1551, %v5796, %v5805
      %v5808 = vshrl.u32 %v5525, 16
      %v5810 = vrot.slane %v5808, 3
      %v5811 = vshll.u32 %v5525, 16
      %v5813 = vrot.slane %v5811, 4
      %v5814 = vor.u32 %v5810, %v5813
      %v5815 = vsel %vm1551, %v5805, %v5814
      %v5817 = vshrl.u32 %v5526, 16
      %v5819 = vrot.slane %v5817, 3
      %v5820 = vshll.u32 %v5526, 16
      %v5822 = vrot.slane %v5820, 4
      %v5823 = vor.u32 %v5819, %v5822
      %v5824 = vsel %vm1551, %v5814, %v5823
      %v5826 = vshrl.u32 %v5527, 16
      %v5828 = vrot.slane %v5826, 3
      %v5829 = vshll.u32 %v5527, 16
      %v5831 = vrot.slane %v5829, 4
      %v5832 = vor.u32 %v5828, %v5831
      %v5833 = vsel %vm1551, %v5823, %v5832
      %v5835 = vshrl.u32 %v5528, 16
      %v5837 = vrot.slane %v5835, 3
      %v5838 = vshll.u32 %v5528, 16
      %v5840 = vrot.slane %v5838, 4
      %v5841 = vor.u32 %v5837, %v5840
      %v5842 = vsel %vm1551, %v5832, %v5841
      %v5844 = vshrl.u32 %v5529, 16
      %v5846 = vrot.slane %v5844, 3
      %v5847 = vshll.u32 %v5529, 16
      %v5849 = vrot.slane %v5847, 4
      %v5850 = vor.u32 %v5846, %v5849
      %v5851 = vsel %vm1551, %v5841, %v5850
      %v5853 = vshrl.u32 %v5530, 16
      %v5855 = vrot.slane %v5853, 3
      %v5856 = vshll.u32 %v5530, 16
      %v5858 = vrot.slane %v5856, 4
      %v5859 = vor.u32 %v5855, %v5858
      %v5860 = vsel %vm1551, %v5850, %v5859
      %v5862 = vshrl.u32 %v5531, 16
      %v5864 = vrot.slane %v5862, 3
      %v5865 = vshll.u32 %v5531, 16
      %v5867 = vrot.slane %v5865, 4
      %v5868 = vor.u32 %v5864, %v5867
      %v5869 = vsel %vm1551, %v5859, %v5868
      %v5871 = vshrl.u32 %v5532, 16
      %v5873 = vrot.slane %v5871, 3
      %v5874 = vshll.u32 %v5532, 16
      %v5876 = vrot.slane %v5874, 4
      %v5877 = vor.u32 %v5873, %v5876
      %v5878 = vsel %vm1551, %v5868, %v5877
      %v5880 = vshrl.u32 %v5533, 16
      %v5882 = vrot.slane %v5880, 3
      %v5883 = vshll.u32 %v5533, 16
      %v5885 = vrot.slane %v5883, 4
      %v5886 = vor.u32 %v5882, %v5885
      %v5887 = vsel %vm1551, %v5877, %v5886
      %v5889 = vshrl.u32 %v5534, 16
      %v5891 = vrot.slane %v5889, 3
      %v5892 = vshll.u32 %v5534, 16
      %v5894 = vrot.slane %v5892, 4
      %v5895 = vor.u32 %v5891, %v5894
      %v5896 = vsel %vm1551, %v5886, %v5895
      %v5898 = vshrl.u32 %v5535, 16
      %v5900 = vrot.slane %v5898, 3
      %v5901 = vshll.u32 %v5535, 16
      %v5903 = vrot.slane %v5901, 4
      %v5904 = vor.u32 %v5900, %v5903
      %v5905 = vsel %vm1551, %v5895, %v5904
      %v5907 = vsel %vm827, %v5554, 0
      %v5910 = vsel %vm827, %v5563, 0
      %v5913 = vsel %vm827, %v5572, 0
      %v5916 = vsel %vm827, %v5581, 0
      %v5919 = vsel %vm827, %v5590, 0
      %v5922 = vsel %vm827, %v5599, 0
      %v5925 = vsel %vm827, %v5608, 0
      %v5928 = vsel %vm827, %v5617, 0
      %v5931 = vsel %vm827, %v5626, 0
      %v5934 = vsel %vm827, %v5635, 0
      %v5937 = vsel %vm827, %v5644, 0
      %v5940 = vsel %vm827, %v5653, 0
      %v5943 = vsel %vm827, %v5662, 0
      %v5946 = vsel %vm827, %v5671, 0
      %v5949 = vsel %vm827, %v5680, 0
      %v5952 = vsel %vm827, %v5689, 0
      %v5955 = vsel %vm827, %v5698, 0
      %v5958 = vsel %vm827, %v5707, 0
      %v5961 = vsel %vm827, %v5716, 0
      %v5964 = vsel %vm827, %v5725, 0
      %v5967 = vsel %vm827, %v5734, 0
      %v5970 = vsel %vm827, %v5743, 0
      %v5973 = vsel %vm827, %v5752, 0
      %v5976 = vsel %vm827, %v5761, 0
      %v5979 = vsel %vm827, %v5770, 0
      %v5982 = vsel %vm827, %v5779, 0
      %v5985 = vsel %vm827, %v5788, 0
      %v5988 = vsel %vm827, %v5797, 0
      %v5991 = vsel %vm827, %v5806, 0
      %v5994 = vsel %vm827, %v5815, 0
      %v5997 = vsel %vm827, %v5824, 0
      %v6000 = vsel %vm827, %v5833, 0
      %v6003 = vsel %vm827, %v5842, 0
      %v6006 = vsel %vm827, %v5851, 0
      %v6009 = vsel %vm827, %v5860, 0
      %v6012 = vsel %vm827, %v5869, 0
      %v6015 = vsel %vm827, %v5878, 0
      %v6018 = vsel %vm827, %v5887, 0
      %v6021 = vsel %vm827, %v5896, 0
      %v6024 = vsel %vm827, %v5905, 0
      %v6027 = vand.u32 %v5537, %v1194
      %6029 = vmatprep.subr.bf16.mxu0 0
      %6030 = vmatpush1.bf16.msra.mxu0 %v6027
      %6031 = vmatprep.subr.bf16.mxu0 0
      %6032 = vmatpush1.bf16.msra.mxu0 0
      %6033 = vmatprep.subr.bf16.mxu0 0
      %6034 = vmatpush1.bf16.msra.mxu0 0
      %6035 = vmatprep.subr.bf16.mxu0 0
      %6036 = vmatpush1.bf16.msra.mxu0 0
      %6037 = vmatprep.subr.bf16.mxu0 0
      %6038 = vmatpush1.bf16.msra.mxu0 0
      %6039 = vmatprep.subr.bf16.mxu0 0
      %6040 = vmatpush1.bf16.msra.mxu0 0
      %6041 = vmatprep.subr.bf16.mxu0 0
      %6042 = vmatpush1.bf16.msra.mxu0 0
      %6043 = vmatprep.subr.bf16.mxu0 0
      %6044 = vmatpush1.bf16.msra.mxu0 0
      %6045 = vmatprep.subr.bf16.mxu0 0
      %6046 = vmatpush1.bf16.msra.mxu0 0
      %6047 = vmatprep.subr.bf16.mxu0 0
      %6048 = vmatpush1.bf16.msra.mxu0 0
      %6049 = vmatprep.subr.bf16.mxu0 0
      %6050 = vmatpush1.bf16.msra.mxu0 0
      %6051 = vmatprep.subr.bf16.mxu0 0
      %6052 = vmatpush1.bf16.msra.mxu0 0
      %6053 = vmatprep.subr.bf16.mxu0 0
      %6054 = vmatpush1.bf16.msra.mxu0 0
      %6055 = vmatprep.subr.bf16.mxu0 0
      %6056 = vmatpush1.bf16.msra.mxu0 0
      %6057 = vmatprep.subr.bf16.mxu0 0
      %6058 = vmatpush1.bf16.msra.mxu0 0
      %6059 = vmatprep.subr.bf16.mxu0 0
      %6060 = vmatpush1.bf16.msra.mxu0 0
      %6061 = vmatprep.mubr.bf16.mxu0 0
      %6062 = vmatmul.mubr.bf16.gmra.mrb[0].mxu0 %v5907
      %v6063 = vpop.f32.mrb[0].mxu0
      %v6064 = vadd.f32 0.0, %v6063
      %v6065 = vpop.f32.mrb[0].mxu0
      %v6066 = vpop.f32.mrb[0].mxu0
      %v6067 = vadd.f32 0.0, %v6066
      %v6068 = vpop.f32.mrb[0].mxu0
      %6069 = vmatprep.mubr.bf16.mxu0 0
      %6070 = vmatmul.mubr.bf16.gmra.mrb[0].mxu0 %v5910
      %v6071 = vpop.f32.mrb[0].mxu0
      %v6072 = vadd.f32 0.0, %v6071
      %v6073 = vpop.f32.mrb[0].mxu0
      %v6074 = vpop.f32.mrb[0].mxu0
      %v6075 = vadd.f32 0.0, %v6074
      %v6076 = vpop.f32.mrb[0].mxu0
      %6077 = vmatprep.mubr.bf16.mxu0 0
      %6078 = vmatmul.mubr.bf16.gmra.mrb[0].mxu0 %v5913
      %v6079 = vpop.f32.mrb[0].mxu0
      %v6080 = vadd.f32 0.0, %v6079
      %v6081 = vpop.f32.mrb[0].mxu0
      %v6082 = vpop.f32.mrb[0].mxu0
      %v6083 = vadd.f32 0.0, %v6082
      %v6084 = vpop.f32.mrb[0].mxu0
      %6085 = vmatprep.mubr.bf16.mxu0 0
      %6086 = vmatmul.mubr.bf16.gmra.mrb[0].mxu0 %v5916
      %v6087 = vpop.f32.mrb[0].mxu0
      %v6088 = vadd.f32 0.0, %v6087
      %v6089 = vpop.f32.mrb[0].mxu0
      %v6090 = vpop.f32.mrb[0].mxu0
      %v6091 = vadd.f32 0.0, %v6090
      %v6092 = vpop.f32.mrb[0].mxu0
      %6093 = vmatprep.mubr.bf16.mxu0 0
      %6094 = vmatmul.mubr.bf16.gmra.mrb[0].mxu0 %v5919
      %v6095 = vpop.f32.mrb[0].mxu0
      %v6096 = vadd.f32 0.0, %v6095
      %v6097 = vpop.f32.mrb[0].mxu0
      %v6098 = vpop.f32.mrb[0].mxu0
      %v6099 = vadd.f32 0.0, %v6098
      %v6100 = vpop.f32.mrb[0].mxu0
      %6101 = vmatprep.mubr.bf16.mxu0 0
      %6102 = vmatmul.mubr.bf16.gmra.mrb[0].mxu0 %v5922
      %v6103 = vpop.f32.mrb[0].mxu0
      %v6104 = vadd.f32 0.0, %v6103
      %v6105 = vpop.f32.mrb[0].mxu0
      %v6106 = vpop.f32.mrb[0].mxu0
      %v6107 = vadd.f32 0.0, %v6106
      %v6108 = vpop.f32.mrb[0].mxu0
      %6109 = vmatprep.mubr.bf16.mxu0 0
      %6110 = vmatmul.mubr.bf16.gmra.mrb[0].mxu0 %v5925
      %v6111 = vpop.f32.mrb[0].mxu0
      %v6112 = vadd.f32 0.0, %v6111
      %v6113 = vpop.f32.mrb[0].mxu0
      %v6114 = vpop.f32.mrb[0].mxu0
      %v6115 = vadd.f32 0.0, %v6114
      %v6116 = vpop.f32.mrb[0].mxu0
      %6117 = vmatprep.mubr.bf16.mxu0 0
      %6118 = vmatmul.mubr.bf16.gmra.mrb[0].mxu0 %v5928
      %v6119 = vpop.f32.mrb[0].mxu0
      %v6120 = vadd.f32 0.0, %v6119
      %v6121 = vpop.f32.mrb[0].mxu0
      %v6122 = vpop.f32.mrb[0].mxu0
      %v6123 = vadd.f32 0.0, %v6122
      %v6124 = vpop.f32.mrb[0].mxu0
      %6125 = vmatprep.mubr.bf16.mxu0 0
      %6126 = vmatmul.mubr.bf16.gmra.mrb[0].mxu0 %v5931
      %v6127 = vpop.f32.mrb[0].mxu0
      %v6128 = vadd.f32 0.0, %v6127
      %v6129 = vpop.f32.mrb[0].mxu0
      %v6130 = vpop.f32.mrb[0].mxu0
      %v6131 = vadd.f32 0.0, %v6130
      %v6132 = vpop.f32.mrb[0].mxu0
      %6133 = vmatprep.mubr.bf16.mxu0 0
      %6134 = vmatmul.mubr.bf16.gmra.mrb[0].mxu0 %v5934
      %v6135 = vpop.f32.mrb[0].mxu0
      %v6136 = vadd.f32 0.0, %v6135
      %v6137 = vpop.f32.mrb[0].mxu0
      %v6138 = vpop.f32.mrb[0].mxu0
      %v6139 = vadd.f32 0.0, %v6138
      %v6140 = vpop.f32.mrb[0].mxu0
      %6141 = vmatprep.mubr.bf16.mxu0 0
      %6142 = vmatmul.mubr.bf16.gmra.mrb[0].mxu0 %v5937
      %v6143 = vpop.f32.mrb[0].mxu0
      %v6144 = vadd.f32 0.0, %v6143
      %v6145 = vpop.f32.mrb[0].mxu0
      %v6146 = vpop.f32.mrb[0].mxu0
      %v6147 = vadd.f32 0.0, %v6146
      %v6148 = vpop.f32.mrb[0].mxu0
      %6149 = vmatprep.mubr.bf16.mxu0 0
      %6150 = vmatmul.mubr.bf16.gmra.mrb[0].mxu0 %v5940
      %v6151 = vpop.f32.mrb[0].mxu0
      %v6152 = vadd.f32 0.0, %v6151
      %v6153 = vpop.f32.mrb[0].mxu0
      %v6154 = vpop.f32.mrb[0].mxu0
      %v6155 = vadd.f32 0.0, %v6154
      %v6156 = vpop.f32.mrb[0].mxu0
      %6157 = vmatprep.mubr.bf16.mxu0 0
      %6158 = vmatmul.mubr.bf16.gmra.mrb[0].mxu0 %v5943
      %v6159 = vpop.f32.mrb[0].mxu0
      %v6160 = vadd.f32 0.0, %v6159
      %v6161 = vpop.f32.mrb[0].mxu0
      %v6162 = vpop.f32.mrb[0].mxu0
      %v6163 = vadd.f32 0.0, %v6162
      %v6164 = vpop.f32.mrb[0].mxu0
      %6165 = vmatprep.mubr.bf16.mxu0 0
      %6166 = vmatmul.mubr.bf16.gmra.mrb[0].mxu0 %v5946
      %v6167 = vpop.f32.mrb[0].mxu0
      %v6168 = vadd.f32 0.0, %v6167
      %v6169 = vpop.f32.mrb[0].mxu0
      %v6170 = vpop.f32.mrb[0].mxu0
      %v6171 = vadd.f32 0.0, %v6170
      %v6172 = vpop.f32.mrb[0].mxu0
      %6173 = vmatprep.mubr.bf16.mxu0 0
      %6174 = vmatmul.mubr.bf16.gmra.mrb[0].mxu0 %v5949
      %v6175 = vpop.f32.mrb[0].mxu0
      %v6176 = vadd.f32 0.0, %v6175
      %v6177 = vpop.f32.mrb[0].mxu0
      %v6178 = vpop.f32.mrb[0].mxu0
      %v6179 = vadd.f32 0.0, %v6178
      %v6180 = vpop.f32.mrb[0].mxu0
      %6181 = vmatprep.mubr.bf16.mxu0 0
      %6182 = vmatmul.mubr.bf16.gmra.mrb[0].mxu0 %v5952
      %v6183 = vpop.f32.mrb[0].mxu0
      %v6184 = vadd.f32 0.0, %v6183
      %v6185 = vpop.f32.mrb[0].mxu0
      %v6186 = vpop.f32.mrb[0].mxu0
      %v6187 = vadd.f32 0.0, %v6186
      %v6188 = vpop.f32.mrb[0].mxu0
      %6189 = vmatprep.mubr.bf16.mxu0 0
      %6190 = vmatmul.mubr.bf16.gmra.mrb[0].mxu0 %v5955
      %v6191 = vpop.f32.mrb[0].mxu0
      %v6192 = vadd.f32 0.0, %v6191
      %v6193 = vpop.f32.mrb[0].mxu0
      %v6194 = vpop.f32.mrb[0].mxu0
      %v6195 = vadd.f32 0.0, %v6194
      %v6196 = vpop.f32.mrb[0].mxu0
      %6197 = vmatprep.mubr.bf16.mxu0 0
      %6198 = vmatmul.mubr.bf16.gmra.mrb[0].mxu0 %v5958
      %v6199 = vpop.f32.mrb[0].mxu0
      %v6200 = vadd.f32 0.0, %v6199
      %v6201 = vpop.f32.mrb[0].mxu0
      %v6202 = vpop.f32.mrb[0].mxu0
      %v6203 = vadd.f32 0.0, %v6202
      %v6204 = vpop.f32.mrb[0].mxu0
      %6205 = vmatprep.mubr.bf16.mxu0 0
      %6206 = vmatmul.mubr.bf16.gmra.mrb[0].mxu0 %v5961
      %v6207 = vpop.f32.mrb[0].mxu0
      %v6208 = vadd.f32 0.0, %v6207
      %v6209 = vpop.f32.mrb[0].mxu0
      %v6210 = vpop.f32.mrb[0].mxu0
      %v6211 = vadd.f32 0.0, %v6210
      %v6212 = vpop.f32.mrb[0].mxu0
      %6213 = vmatprep.mubr.bf16.mxu0 0
      %6214 = vmatmul.mubr.bf16.gmra.mrb[0].mxu0 %v5964
      %v6215 = vpop.f32.mrb[0].mxu0
      %v6216 = vadd.f32 0.0, %v6215
      %v6217 = vpop.f32.mrb[0].mxu0
      %v6218 = vpop.f32.mrb[0].mxu0
      %v6219 = vadd.f32 0.0, %v6218
      %v6220 = vpop.f32.mrb[0].mxu0
      %6221 = vmatprep.mubr.bf16.mxu0 0
      %6222 = vmatmul.mubr.bf16.gmra.mrb[0].mxu0 %v5967
      %v6223 = vpop.f32.mrb[0].mxu0
      %v6224 = vadd.f32 0.0, %v6223
      %v6225 = vpop.f32.mrb[0].mxu0
      %v6226 = vpop.f32.mrb[0].mxu0
      %v6227 = vadd.f32 0.0, %v6226
      %v6228 = vpop.f32.mrb[0].mxu0
      %6229 = vmatprep.mubr.bf16.mxu0 0
      %6230 = vmatmul.mubr.bf16.gmra.mrb[0].mxu0 %v5970
      %v6231 = vpop.f32.mrb[0].mxu0
      %v6232 = vadd.f32 0.0, %v6231
      %v6233 = vpop.f32.mrb[0].mxu0
      %v6234 = vpop.f32.mrb[0].mxu0
      %v6235 = vadd.f32 0.0, %v6234
      %v6236 = vpop.f32.mrb[0].mxu0
      %6237 = vmatprep.mubr.bf16.mxu0 0
      %6238 = vmatmul.mubr.bf16.gmra.mrb[0].mxu0 %v5973
      %v6239 = vpop.f32.mrb[0].mxu0
      %v6240 = vadd.f32 0.0, %v6239
      %v6241 = vpop.f32.mrb[0].mxu0
      %v6242 = vpop.f32.mrb[0].mxu0
      %v6243 = vadd.f32 0.0, %v6242
      %v6244 = vpop.f32.mrb[0].mxu0
      %6245 = vmatprep.mubr.bf16.mxu0 0
      %6246 = vmatmul.mubr.bf16.gmra.mrb[0].mxu0 %v5976
      %v6247 = vpop.f32.mrb[0].mxu0
      %v6248 = vadd.f32 0.0, %v6247
      %v6249 = vpop.f32.mrb[0].mxu0
      %v6250 = vpop.f32.mrb[0].mxu0
      %v6251 = vadd.f32 0.0, %v6250
      %v6252 = vpop.f32.mrb[0].mxu0
      %6253 = vmatprep.mubr.bf16.mxu0 0
      %6254 = vmatmul.mubr.bf16.gmra.mrb[0].mxu0 %v5979
      %v6255 = vpop.f32.mrb[0].mxu0
      %v6256 = vadd.f32 0.0, %v6255
      %v6257 = vpop.f32.mrb[0].mxu0
      %v6258 = vpop.f32.mrb[0].mxu0
      %v6259 = vadd.f32 0.0, %v6258
      %v6260 = vpop.f32.mrb[0].mxu0
      %6261 = vmatprep.mubr.bf16.mxu0 0
      %6262 = vmatmul.mubr.bf16.gmra.mrb[0].mxu0 %v5982
      %v6263 = vpop.f32.mrb[0].mxu0
      %v6264 = vadd.f32 0.0, %v6263
      %v6265 = vpop.f32.mrb[0].mxu0
      %v6266 = vpop.f32.mrb[0].mxu0
      %v6267 = vadd.f32 0.0, %v6266
      %v6268 = vpop.f32.mrb[0].mxu0
      %6269 = vmatprep.mubr.bf16.mxu0 0
      %6270 = vmatmul.mubr.bf16.gmra.mrb[0].mxu0 %v5985
      %v6271 = vpop.f32.mrb[0].mxu0
      %v6272 = vadd.f32 0.0, %v6271
      %v6273 = vpop.f32.mrb[0].mxu0
      %v6274 = vpop.f32.mrb[0].mxu0
      %v6275 = vadd.f32 0.0, %v6274
      %v6276 = vpop.f32.mrb[0].mxu0
      %6277 = vmatprep.mubr.bf16.mxu0 0
      %6278 = vmatmul.mubr.bf16.gmra.mrb[0].mxu0 %v5988
      %v6279 = vpop.f32.mrb[0].mxu0
      %v6280 = vadd.f32 0.0, %v6279
      %v6281 = vpop.f32.mrb[0].mxu0
      %v6282 = vpop.f32.mrb[0].mxu0
      %v6283 = vadd.f32 0.0, %v6282
      %v6284 = vpop.f32.mrb[0].mxu0
      %6285 = vmatprep.mubr.bf16.mxu0 0
      %6286 = vmatmul.mubr.bf16.gmra.mrb[0].mxu0 %v5991
      %v6287 = vpop.f32.mrb[0].mxu0
      %v6288 = vadd.f32 0.0, %v6287
      %v6289 = vpop.f32.mrb[0].mxu0
      %v6290 = vpop.f32.mrb[0].mxu0
      %v6291 = vadd.f32 0.0, %v6290
      %v6292 = vpop.f32.mrb[0].mxu0
      %6293 = vmatprep.mubr.bf16.mxu0 0
      %6294 = vmatmul.mubr.bf16.gmra.mrb[0].mxu0 %v5994
      %v6295 = vpop.f32.mrb[0].mxu0
      %v6296 = vadd.f32 0.0, %v6295
      %v6297 = vpop.f32.mrb[0].mxu0
      %v6298 = vpop.f32.mrb[0].mxu0
      %v6299 = vadd.f32 0.0, %v6298
      %v6300 = vpop.f32.mrb[0].mxu0
      %6301 = vmatprep.mubr.bf16.mxu0 0
      %6302 = vmatmul.mubr.bf16.gmra.mrb[0].mxu0 %v5997
      %v6303 = vpop.f32.mrb[0].mxu0
      %v6304 = vadd.f32 0.0, %v6303
      %v6305 = vpop.f32.mrb[0].mxu0
      %v6306 = vpop.f32.mrb[0].mxu0
      %v6307 = vadd.f32 0.0, %v6306
      %v6308 = vpop.f32.mrb[0].mxu0
      %6309 = vmatprep.mubr.bf16.mxu0 0
      %6310 = vmatmul.mubr.bf16.gmra.mrb[0].mxu0 %v6000
      %v6311 = vpop.f32.mrb[0].mxu0
      %v6312 = vadd.f32 0.0, %v6311
      %v6313 = vpop.f32.mrb[0].mxu0
      %v6314 = vpop.f32.mrb[0].mxu0
      %v6315 = vadd.f32 0.0, %v6314
      %v6316 = vpop.f32.mrb[0].mxu0
      %6317 = vmatprep.mubr.bf16.mxu0 0
      %6318 = vmatmul.mubr.bf16.gmra.mrb[0].mxu0 %v6003
      %v6319 = vpop.f32.mrb[0].mxu0
      %v6320 = vadd.f32 0.0, %v6319
      %v6321 = vpop.f32.mrb[0].mxu0
      %v6322 = vpop.f32.mrb[0].mxu0
      %v6323 = vadd.f32 0.0, %v6322
      %v6324 = vpop.f32.mrb[0].mxu0
      %6325 = vmatprep.mubr.bf16.mxu0 0
      %6326 = vmatmul.mubr.bf16.gmra.mrb[0].mxu0 %v6006
      %v6327 = vpop.f32.mrb[0].mxu0
      %v6328 = vadd.f32 0.0, %v6327
      %v6329 = vpop.f32.mrb[0].mxu0
      %v6330 = vpop.f32.mrb[0].mxu0
      %v6331 = vadd.f32 0.0, %v6330
      %v6332 = vpop.f32.mrb[0].mxu0
      %6333 = vmatprep.mubr.bf16.mxu0 0
      %6334 = vmatmul.mubr.bf16.gmra.mrb[0].mxu0 %v6009
      %v6335 = vpop.f32.mrb[0].mxu0
      %v6336 = vadd.f32 0.0, %v6335
      %v6337 = vpop.f32.mrb[0].mxu0
      %v6338 = vpop.f32.mrb[0].mxu0
      %v6339 = vadd.f32 0.0, %v6338
      %v6340 = vpop.f32.mrb[0].mxu0
      %6341 = vmatprep.mubr.bf16.mxu0 0
      %6342 = vmatmul.mubr.bf16.gmra.mrb[0].mxu0 %v6012
      %v6343 = vpop.f32.mrb[0].mxu0
      %v6344 = vadd.f32 0.0, %v6343
      %v6345 = vpop.f32.mrb[0].mxu0
      %v6346 = vpop.f32.mrb[0].mxu0
      %v6347 = vadd.f32 0.0, %v6346
      %v6348 = vpop.f32.mrb[0].mxu0
      %6349 = vmatprep.mubr.bf16.mxu0 0
      %6350 = vmatmul.mubr.bf16.gmra.mrb[0].mxu0 %v6015
      %v6351 = vpop.f32.mrb[0].mxu0
      %v6352 = vadd.f32 0.0, %v6351
      %v6353 = vpop.f32.mrb[0].mxu0
      %v6354 = vpop.f32.mrb[0].mxu0
      %v6355 = vadd.f32 0.0, %v6354
      %v6356 = vpop.f32.mrb[0].mxu0
      %6357 = vmatprep.mubr.bf16.mxu0 0
      %6358 = vmatmul.mubr.bf16.gmra.mrb[0].mxu0 %v6018
      %v6359 = vpop.f32.mrb[0].mxu0
      %v6360 = vadd.f32 0.0, %v6359
      %v6361 = vpop.f32.mrb[0].mxu0
      %v6362 = vpop.f32.mrb[0].mxu0
      %v6363 = vadd.f32 0.0, %v6362
      %v6364 = vpop.f32.mrb[0].mxu0
      %6365 = vmatprep.mubr.bf16.mxu0 0
      %6366 = vmatmul.mubr.bf16.gmra.mrb[0].mxu0 %v6021
      %v6367 = vpop.f32.mrb[0].mxu0
      %v6368 = vadd.f32 0.0, %v6367
      %v6369 = vpop.f32.mrb[0].mxu0
      %v6370 = vpop.f32.mrb[0].mxu0
      %v6371 = vadd.f32 0.0, %v6370
      %v6372 = vpop.f32.mrb[0].mxu0
      %6373 = vmatprep.mubr.bf16.mxu0 0
      %6374 = vmatmul.mubr.bf16.gmra.mrb[0].mxu0 %v6024
      %v6375 = vpop.f32.mrb[0].mxu0
      %v6376 = vadd.f32 0.0, %v6375
      %v6377 = vpop.f32.mrb[0].mxu0
      %v6378 = vpop.f32.mrb[0].mxu0
      %v6379 = vadd.f32 0.0, %v6378
      %v6380 = vpop.f32.mrb[0].mxu0
      %6381 = vdwg.mxu0
      %v6382 = vadd.f32 %v5415, %v6064
      %v6383 = vadd.f32 %v5416, %v6067
      %v6384 = vadd.f32 %v5417, %v6072
      %v6385 = vadd.f32 %v5418, %v6075
      %v6386 = vadd.f32 %v5419, %v6080
      %v6387 = vadd.f32 %v5420, %v6083
      %v6388 = vadd.f32 %v5421, %v6088
      %v6389 = vadd.f32 %v5422, %v6091
      %v6390 = vadd.f32 %v5423, %v6096
      %v6391 = vadd.f32 %v5424, %v6099
      %v6392 = vadd.f32 %v5425, %v6104
      %v6393 = vadd.f32 %v5426, %v6107
      %v6394 = vadd.f32 %v5427, %v6112
      %v6395 = vadd.f32 %v5428, %v6115
      %v6396 = vadd.f32 %v5429, %v6120
      %v6397 = vadd.f32 %v5430, %v6123
      %v6398 = vadd.f32 %v5431, %v6128
      %v6399 = vadd.f32 %v5432, %v6131
      %v6400 = vadd.f32 %v5433, %v6136
      %v6401 = vadd.f32 %v5434, %v6139
      %v6402 = vadd.f32 %v5435, %v6144
      %v6403 = vadd.f32 %v5436, %v6147
      %v6404 = vadd.f32 %v5437, %v6152
      %v6405 = vadd.f32 %v5438, %v6155
      %v6406 = vadd.f32 %v5439, %v6160
      %v6407 = vadd.f32 %v5440, %v6163
      %v6408 = vadd.f32 %v5441, %v6168
      %v6409 = vadd.f32 %v5442, %v6171
      %v6410 = vadd.f32 %v5443, %v6176
      %v6411 = vadd.f32 %v5444, %v6179
      %v6412 = vadd.f32 %v5445, %v6184
      %v6413 = vadd.f32 %v5446, %v6187
      %v6414 = vadd.f32 %v5447, %v6192
      %v6415 = vadd.f32 %v5448, %v6195
      %v6416 = vadd.f32 %v5449, %v6200
      %v6417 = vadd.f32 %v5450, %v6203
      %v6418 = vadd.f32 %v5451, %v6208
      %v6419 = vadd.f32 %v5452, %v6211
      %v6420 = vadd.f32 %v5453, %v6216
      %v6421 = vadd.f32 %v5454, %v6219
      %v6422 = vadd.f32 %v5455, %v6224
      %v6423 = vadd.f32 %v5456, %v6227
      %v6424 = vadd.f32 %v5457, %v6232
      %v6425 = vadd.f32 %v5458, %v6235
      %v6426 = vadd.f32 %v5459, %v6240
      %v6427 = vadd.f32 %v5460, %v6243
      %v6428 = vadd.f32 %v5461, %v6248
      %v6429 = vadd.f32 %v5462, %v6251
      %v6430 = vadd.f32 %v5463, %v6256
      %v6431 = vadd.f32 %v5464, %v6259
      %v6432 = vadd.f32 %v5465, %v6264
      %v6433 = vadd.f32 %v5466, %v6267
      %v6434 = vadd.f32 %v5467, %v6272
      %v6435 = vadd.f32 %v5468, %v6275
      %v6436 = vadd.f32 %v5469, %v6280
      %v6437 = vadd.f32 %v5470, %v6283
      %v6438 = vadd.f32 %v5471, %v6288
      %v6439 = vadd.f32 %v5472, %v6291
      %v6440 = vadd.f32 %v5473, %v6296
      %v6441 = vadd.f32 %v5474, %v6299
      %v6442 = vadd.f32 %v5475, %v6304
      %v6443 = vadd.f32 %v5476, %v6307
      %v6444 = vadd.f32 %v5477, %v6312
      %v6445 = vadd.f32 %v5478, %v6315
      %v6446 = vadd.f32 %v5479, %v6320
      %v6447 = vadd.f32 %v5480, %v6323
      %v6448 = vadd.f32 %v5481, %v6328
      %v6449 = vadd.f32 %v5482, %v6331
      %v6450 = vadd.f32 %v5483, %v6336
      %v6451 = vadd.f32 %v5484, %v6339
      %v6452 = vadd.f32 %v5485, %v6344
      %v6453 = vadd.f32 %v5486, %v6347
      %v6454 = vadd.f32 %v5487, %v6352
      %v6455 = vadd.f32 %v5488, %v6355
      %v6456 = vadd.f32 %v5489, %v6360
      %v6457 = vadd.f32 %v5490, %v6363
      %v6458 = vadd.f32 %v5491, %v6368
      %v6459 = vadd.f32 %v5492, %v6371
      %v6460 = vadd.f32 %v5493, %v6376
      %v6461 = vadd.f32 %v5494, %v6379
      %v6462 = vld [vmem:[#allocation2 + $0x28] sm:$0xf0]
      %s6463 = scalar_lea.vmem %s448, 14
      %v6464 = vld [vmem:[%s6463] sm:$0x3]
      %v6506 = vrot.slane %v6462, 4
      %v6507 = vrot.slane %v5496, 4
      %v6508 = vsel %vm989, %v6506, %v6507
      %v6509 = vrot.slane %v5497, 4
      %v6510 = vsel %vm989, %v6507, %v6509
      %v6511 = vrot.slane %v5498, 4
      %v6512 = vsel %vm989, %v6509, %v6511
      %v6513 = vrot.slane %v5499, 4
      %v6514 = vsel %vm989, %v6511, %v6513
      %v6515 = vrot.slane %v5500, 4
      %v6516 = vsel %vm989, %v6513, %v6515
      %v6517 = vrot.slane %v5501, 4
      %v6518 = vsel %vm989, %v6515, %v6517
      %v6519 = vrot.slane %v5502, 4
      %v6520 = vsel %vm989, %v6517, %v6519
      %v6521 = vrot.slane %v5503, 4
      %v6522 = vsel %vm989, %v6519, %v6521
      %v6523 = vrot.slane %v5504, 4
      %v6524 = vsel %vm989, %v6521, %v6523
      %v6525 = vrot.slane %v5505, 4
      %v6526 = vsel %vm989, %v6523, %v6525
      %v6527 = vrot.slane %v5506, 4
      %v6528 = vsel %vm989, %v6525, %v6527
      %v6529 = vrot.slane %v5507, 4
      %v6530 = vsel %vm989, %v6527, %v6529
      %v6531 = vrot.slane %v5508, 4
      %v6532 = vsel %vm989, %v6529, %v6531
      %v6533 = vrot.slane %v5509, 4
      %v6534 = vsel %vm989, %v6531, %v6533
      %v6535 = vrot.slane %v5510, 4
      %v6536 = vsel %vm989, %v6533, %v6535
      %v6537 = vrot.slane %v5511, 4
      %v6538 = vsel %vm989, %v6535, %v6537
      %v6539 = vrot.slane %v5512, 4
      %v6540 = vsel %vm989, %v6537, %v6539
      %v6541 = vrot.slane %v5513, 4
      %v6542 = vsel %vm989, %v6539, %v6541
      %v6543 = vrot.slane %v5514, 4
      %v6544 = vsel %vm989, %v6541, %v6543
      %v6545 = vrot.slane %v5515, 4
      %v6546 = vsel %vm989, %v6543, %v6545
      %v6547 = vrot.slane %v5516, 4
      %v6548 = vsel %vm989, %v6545, %v6547
      %v6549 = vrot.slane %v5517, 4
      %v6550 = vsel %vm989, %v6547, %v6549
      %v6551 = vrot.slane %v5518, 4
      %v6552 = vsel %vm989, %v6549, %v6551
      %v6553 = vrot.slane %v5519, 4
      %v6554 = vsel %vm989, %v6551, %v6553
      %v6555 = vrot.slane %v5520, 4
      %v6556 = vsel %vm989, %v6553, %v6555
      %v6557 = vrot.slane %v5521, 4
      %v6558 = vsel %vm989, %v6555, %v6557
      %v6559 = vrot.slane %v5522, 4
      %v6560 = vsel %vm989, %v6557, %v6559
      %v6561 = vrot.slane %v5523, 4
      %v6562 = vsel %vm989, %v6559, %v6561
      %v6563 = vrot.slane %v5524, 4
      %v6564 = vsel %vm989, %v6561, %v6563
      %v6565 = vrot.slane %v5525, 4
      %v6566 = vsel %vm989, %v6563, %v6565
      %v6567 = vrot.slane %v5526, 4
      %v6568 = vsel %vm989, %v6565, %v6567
      %v6569 = vrot.slane %v5527, 4
      %v6570 = vsel %vm989, %v6567, %v6569
      %v6571 = vrot.slane %v5528, 4
      %v6572 = vsel %vm989, %v6569, %v6571
      %v6573 = vrot.slane %v5529, 4
      %v6574 = vsel %vm989, %v6571, %v6573
      %v6575 = vrot.slane %v5530, 4
      %v6576 = vsel %vm989, %v6573, %v6575
      %v6577 = vrot.slane %v5531, 4
      %v6578 = vsel %vm989, %v6575, %v6577
      %v6579 = vrot.slane %v5532, 4
      %v6580 = vsel %vm989, %v6577, %v6579
      %v6581 = vrot.slane %v5533, 4
      %v6582 = vsel %vm989, %v6579, %v6581
      %v6583 = vrot.slane %v5534, 4
      %v6584 = vsel %vm989, %v6581, %v6583
      %v6585 = vrot.slane %v5535, 4
      %v6586 = vsel %vm989, %v6583, %v6585
      %v6588 = vsel %vm827, %v6508, 0
      %v6591 = vsel %vm827, %v6510, 0
      %v6594 = vsel %vm827, %v6512, 0
      %v6597 = vsel %vm827, %v6514, 0
      %v6600 = vsel %vm827, %v6516, 0
      %v6603 = vsel %vm827, %v6518, 0
      %v6606 = vsel %vm827, %v6520, 0
      %v6609 = vsel %vm827, %v6522, 0
      %v6612 = vsel %vm827, %v6524, 0
      %v6615 = vsel %vm827, %v6526, 0
      %v6618 = vsel %vm827, %v6528, 0
      %v6621 = vsel %vm827, %v6530, 0
      %v6624 = vsel %vm827, %v6532, 0
      %v6627 = vsel %vm827, %v6534, 0
      %v6630 = vsel %vm827, %v6536, 0
      %v6633 = vsel %vm827, %v6538, 0
      %v6636 = vsel %vm827, %v6540, 0
      %v6639 = vsel %vm827, %v6542, 0
      %v6642 = vsel %vm827, %v6544, 0
      %v6645 = vsel %vm827, %v6546, 0
      %v6648 = vsel %vm827, %v6548, 0
      %v6651 = vsel %vm827, %v6550, 0
      %v6654 = vsel %vm827, %v6552, 0
      %v6657 = vsel %vm827, %v6554, 0
      %v6660 = vsel %vm827, %v6556, 0
      %v6663 = vsel %vm827, %v6558, 0
      %v6666 = vsel %vm827, %v6560, 0
      %v6669 = vsel %vm827, %v6562, 0
      %v6672 = vsel %vm827, %v6564, 0
      %v6675 = vsel %vm827, %v6566, 0
      %v6678 = vsel %vm827, %v6568, 0
      %v6681 = vsel %vm827, %v6570, 0
      %v6684 = vsel %vm827, %v6572, 0
      %v6687 = vsel %vm827, %v6574, 0
      %v6690 = vsel %vm827, %v6576, 0
      %v6693 = vsel %vm827, %v6578, 0
      %v6696 = vsel %vm827, %v6580, 0
      %v6699 = vsel %vm827, %v6582, 0
      %v6702 = vsel %vm827, %v6584, 0
      %v6705 = vsel %vm827, %v6586, 0
      %v6708 = vand.u32 %v6464, %v1194
      %6710 = vmatprep.subr.bf16.mxu0 0
      %6711 = vmatpush1.bf16.msra.mxu0 %v6708
      %6712 = vmatprep.subr.bf16.mxu0 0
      %6713 = vmatpush1.bf16.msra.mxu0 0
      %6714 = vmatprep.subr.bf16.mxu0 0
      %6715 = vmatpush1.bf16.msra.mxu0 0
      %6716 = vmatprep.subr.bf16.mxu0 0
      %6717 = vmatpush1.bf16.msra.mxu0 0
      %6718 = vmatprep.subr.bf16.mxu0 0
      %6719 = vmatpush1.bf16.msra.mxu0 0
      %6720 = vmatprep.subr.bf16.mxu0 0
      %6721 = vmatpush1.bf16.msra.mxu0 0
      %6722 = vmatprep.subr.bf16.mxu0 0
      %6723 = vmatpush1.bf16.msra.mxu0 0
      %6724 = vmatprep.subr.bf16.mxu0 0
      %6725 = vmatpush1.bf16.msra.mxu0 0
      %6726 = vmatprep.subr.bf16.mxu0 0
      %6727 = vmatpush1.bf16.msra.mxu0 0
      %6728 = vmatprep.subr.bf16.mxu0 0
      %6729 = vmatpush1.bf16.msra.mxu0 0
      %6730 = vmatprep.subr.bf16.mxu0 0
      %6731 = vmatpush1.bf16.msra.mxu0 0
      %6732 = vmatprep.subr.bf16.mxu0 0
      %6733 = vmatpush1.bf16.msra.mxu0 0
      %6734 = vmatprep.subr.bf16.mxu0 0
      %6735 = vmatpush1.bf16.msra.mxu0 0
      %6736 = vmatprep.subr.bf16.mxu0 0
      %6737 = vmatpush1.bf16.msra.mxu0 0
      %6738 = vmatprep.subr.bf16.mxu0 0
      %6739 = vmatpush1.bf16.msra.mxu0 0
      %6740 = vmatprep.subr.bf16.mxu0 0
      %6741 = vmatpush1.bf16.msra.mxu0 0
      %6742 = vmatprep.mubr.bf16.mxu0 0
      %6743 = vmatmul.mubr.bf16.gmra.mrb[0].mxu0 %v6588
      %v6744 = vpop.f32.mrb[0].mxu0
      %v6745 = vadd.f32 0.0, %v6744
      %v6746 = vpop.f32.mrb[0].mxu0
      %v6747 = vpop.f32.mrb[0].mxu0
      %v6748 = vadd.f32 0.0, %v6747
      %v6749 = vpop.f32.mrb[0].mxu0
      %6750 = vmatprep.mubr.bf16.mxu0 0
      %6751 = vmatmul.mubr.bf16.gmra.mrb[0].mxu0 %v6591
      %v6752 = vpop.f32.mrb[0].mxu0
      %v6753 = vadd.f32 0.0, %v6752
      %v6754 = vpop.f32.mrb[0].mxu0
      %v6755 = vpop.f32.mrb[0].mxu0
      %v6756 = vadd.f32 0.0, %v6755
      %v6757 = vpop.f32.mrb[0].mxu0
      %6758 = vmatprep.mubr.bf16.mxu0 0
      %6759 = vmatmul.mubr.bf16.gmra.mrb[0].mxu0 %v6594
      %v6760 = vpop.f32.mrb[0].mxu0
      %v6761 = vadd.f32 0.0, %v6760
      %v6762 = vpop.f32.mrb[0].mxu0
      %v6763 = vpop.f32.mrb[0].mxu0
      %v6764 = vadd.f32 0.0, %v6763
      %v6765 = vpop.f32.mrb[0].mxu0
      %6766 = vmatprep.mubr.bf16.mxu0 0
      %6767 = vmatmul.mubr.bf16.gmra.mrb[0].mxu0 %v6597
      %v6768 = vpop.f32.mrb[0].mxu0
      %v6769 = vadd.f32 0.0, %v6768
      %v6770 = vpop.f32.mrb[0].mxu0
      %v6771 = vpop.f32.mrb[0].mxu0
      %v6772 = vadd.f32 0.0, %v6771
      %v6773 = vpop.f32.mrb[0].mxu0
      %6774 = vmatprep.mubr.bf16.mxu0 0
      %6775 = vmatmul.mubr.bf16.gmra.mrb[0].mxu0 %v6600
      %v6776 = vpop.f32.mrb[0].mxu0
      %v6777 = vadd.f32 0.0, %v6776
      %v6778 = vpop.f32.mrb[0].mxu0
      %v6779 = vpop.f32.mrb[0].mxu0
      %v6780 = vadd.f32 0.0, %v6779
      %v6781 = vpop.f32.mrb[0].mxu0
      %6782 = vmatprep.mubr.bf16.mxu0 0
      %6783 = vmatmul.mubr.bf16.gmra.mrb[0].mxu0 %v6603
      %v6784 = vpop.f32.mrb[0].mxu0
      %v6785 = vadd.f32 0.0, %v6784
      %v6786 = vpop.f32.mrb[0].mxu0
      %v6787 = vpop.f32.mrb[0].mxu0
      %v6788 = vadd.f32 0.0, %v6787
      %v6789 = vpop.f32.mrb[0].mxu0
      %6790 = vmatprep.mubr.bf16.mxu0 0
      %6791 = vmatmul.mubr.bf16.gmra.mrb[0].mxu0 %v6606
      %v6792 = vpop.f32.mrb[0].mxu0
      %v6793 = vadd.f32 0.0, %v6792
      %v6794 = vpop.f32.mrb[0].mxu0
      %v6795 = vpop.f32.mrb[0].mxu0
      %v6796 = vadd.f32 0.0, %v6795
      %v6797 = vpop.f32.mrb[0].mxu0
      %6798 = vmatprep.mubr.bf16.mxu0 0
      %6799 = vmatmul.mubr.bf16.gmra.mrb[0].mxu0 %v6609
      %v6800 = vpop.f32.mrb[0].mxu0
      %v6801 = vadd.f32 0.0, %v6800
      %v6802 = vpop.f32.mrb[0].mxu0
      %v6803 = vpop.f32.mrb[0].mxu0
      %v6804 = vadd.f32 0.0, %v6803
      %v6805 = vpop.f32.mrb[0].mxu0
      %6806 = vmatprep.mubr.bf16.mxu0 0
      %6807 = vmatmul.mubr.bf16.gmra.mrb[0].mxu0 %v6612
      %v6808 = vpop.f32.mrb[0].mxu0
      %v6809 = vadd.f32 0.0, %v6808
      %v6810 = vpop.f32.mrb[0].mxu0
      %v6811 = vpop.f32.mrb[0].mxu0
      %v6812 = vadd.f32 0.0, %v6811
      %v6813 = vpop.f32.mrb[0].mxu0
      %6814 = vmatprep.mubr.bf16.mxu0 0
      %6815 = vmatmul.mubr.bf16.gmra.mrb[0].mxu0 %v6615
      %v6816 = vpop.f32.mrb[0].mxu0
      %v6817 = vadd.f32 0.0, %v6816
      %v6818 = vpop.f32.mrb[0].mxu0
      %v6819 = vpop.f32.mrb[0].mxu0
      %v6820 = vadd.f32 0.0, %v6819
      %v6821 = vpop.f32.mrb[0].mxu0
      %6822 = vmatprep.mubr.bf16.mxu0 0
      %6823 = vmatmul.mubr.bf16.gmra.mrb[0].mxu0 %v6618
      %v6824 = vpop.f32.mrb[0].mxu0
      %v6825 = vadd.f32 0.0, %v6824
      %v6826 = vpop.f32.mrb[0].mxu0
      %v6827 = vpop.f32.mrb[0].mxu0
      %v6828 = vadd.f32 0.0, %v6827
      %v6829 = vpop.f32.mrb[0].mxu0
      %6830 = vmatprep.mubr.bf16.mxu0 0
      %6831 = vmatmul.mubr.bf16.gmra.mrb[0].mxu0 %v6621
      %v6832 = vpop.f32.mrb[0].mxu0
      %v6833 = vadd.f32 0.0, %v6832
      %v6834 = vpop.f32.mrb[0].mxu0
      %v6835 = vpop.f32.mrb[0].mxu0
      %v6836 = vadd.f32 0.0, %v6835
      %v6837 = vpop.f32.mrb[0].mxu0
      %6838 = vmatprep.mubr.bf16.mxu0 0
      %6839 = vmatmul.mubr.bf16.gmra.mrb[0].mxu0 %v6624
      %v6840 = vpop.f32.mrb[0].mxu0
      %v6841 = vadd.f32 0.0, %v6840
      %v6842 = vpop.f32.mrb[0].mxu0
      %v6843 = vpop.f32.mrb[0].mxu0
      %v6844 = vadd.f32 0.0, %v6843
      %v6845 = vpop.f32.mrb[0].mxu0
      %6846 = vmatprep.mubr.bf16.mxu0 0
      %6847 = vmatmul.mubr.bf16.gmra.mrb[0].mxu0 %v6627
      %v6848 = vpop.f32.mrb[0].mxu0
      %v6849 = vadd.f32 0.0, %v6848
      %v6850 = vpop.f32.mrb[0].mxu0
      %v6851 = vpop.f32.mrb[0].mxu0
      %v6852 = vadd.f32 0.0, %v6851
      %v6853 = vpop.f32.mrb[0].mxu0
      %6854 = vmatprep.mubr.bf16.mxu0 0
      %6855 = vmatmul.mubr.bf16.gmra.mrb[0].mxu0 %v6630
      %v6856 = vpop.f32.mrb[0].mxu0
      %v6857 = vadd.f32 0.0, %v6856
      %v6858 = vpop.f32.mrb[0].mxu0
      %v6859 = vpop.f32.mrb[0].mxu0
      %v6860 = vadd.f32 0.0, %v6859
      %v6861 = vpop.f32.mrb[0].mxu0
      %6862 = vmatprep.mubr.bf16.mxu0 0
      %6863 = vmatmul.mubr.bf16.gmra.mrb[0].mxu0 %v6633
      %v6864 = vpop.f32.mrb[0].mxu0
      %v6865 = vadd.f32 0.0, %v6864
      %v6866 = vpop.f32.mrb[0].mxu0
      %v6867 = vpop.f32.mrb[0].mxu0
      %v6868 = vadd.f32 0.0, %v6867
      %v6869 = vpop.f32.mrb[0].mxu0
      %6870 = vmatprep.mubr.bf16.mxu0 0
      %6871 = vmatmul.mubr.bf16.gmra.mrb[0].mxu0 %v6636
      %v6872 = vpop.f32.mrb[0].mxu0
      %v6873 = vadd.f32 0.0, %v6872
      %v6874 = vpop.f32.mrb[0].mxu0
      %v6875 = vpop.f32.mrb[0].mxu0
      %v6876 = vadd.f32 0.0, %v6875
      %v6877 = vpop.f32.mrb[0].mxu0
      %6878 = vmatprep.mubr.bf16.mxu0 0
      %6879 = vmatmul.mubr.bf16.gmra.mrb[0].mxu0 %v6639
      %v6880 = vpop.f32.mrb[0].mxu0
      %v6881 = vadd.f32 0.0, %v6880
      %v6882 = vpop.f32.mrb[0].mxu0
      %v6883 = vpop.f32.mrb[0].mxu0
      %v6884 = vadd.f32 0.0, %v6883
      %v6885 = vpop.f32.mrb[0].mxu0
      %6886 = vmatprep.mubr.bf16.mxu0 0
      %6887 = vmatmul.mubr.bf16.gmra.mrb[0].mxu0 %v6642
      %v6888 = vpop.f32.mrb[0].mxu0
      %v6889 = vadd.f32 0.0, %v6888
      %v6890 = vpop.f32.mrb[0].mxu0
      %v6891 = vpop.f32.mrb[0].mxu0
      %v6892 = vadd.f32 0.0, %v6891
      %v6893 = vpop.f32.mrb[0].mxu0
      %6894 = vmatprep.mubr.bf16.mxu0 0
      %6895 = vmatmul.mubr.bf16.gmra.mrb[0].mxu0 %v6645
      %v6896 = vpop.f32.mrb[0].mxu0
      %v6897 = vadd.f32 0.0, %v6896
      %v6898 = vpop.f32.mrb[0].mxu0
      %v6899 = vpop.f32.mrb[0].mxu0
      %v6900 = vadd.f32 0.0, %v6899
      %v6901 = vpop.f32.mrb[0].mxu0
      %6902 = vmatprep.mubr.bf16.mxu0 0
      %6903 = vmatmul.mubr.bf16.gmra.mrb[0].mxu0 %v6648
      %v6904 = vpop.f32.mrb[0].mxu0
      %v6905 = vadd.f32 0.0, %v6904
      %v6906 = vpop.f32.mrb[0].mxu0
      %v6907 = vpop.f32.mrb[0].mxu0
      %v6908 = vadd.f32 0.0, %v6907
      %v6909 = vpop.f32.mrb[0].mxu0
      %6910 = vmatprep.mubr.bf16.mxu0 0
      %6911 = vmatmul.mubr.bf16.gmra.mrb[0].mxu0 %v6651
      %v6912 = vpop.f32.mrb[0].mxu0
      %v6913 = vadd.f32 0.0, %v6912
      %v6914 = vpop.f32.mrb[0].mxu0
      %v6915 = vpop.f32.mrb[0].mxu0
      %v6916 = vadd.f32 0.0, %v6915
      %v6917 = vpop.f32.mrb[0].mxu0
      %6918 = vmatprep.mubr.bf16.mxu0 0
      %6919 = vmatmul.mubr.bf16.gmra.mrb[0].mxu0 %v6654
      %v6920 = vpop.f32.mrb[0].mxu0
      %v6921 = vadd.f32 0.0, %v6920
      %v6922 = vpop.f32.mrb[0].mxu0
      %v6923 = vpop.f32.mrb[0].mxu0
      %v6924 = vadd.f32 0.0, %v6923
      %v6925 = vpop.f32.mrb[0].mxu0
      %6926 = vmatprep.mubr.bf16.mxu0 0
      %6927 = vmatmul.mubr.bf16.gmra.mrb[0].mxu0 %v6657
      %v6928 = vpop.f32.mrb[0].mxu0
      %v6929 = vadd.f32 0.0, %v6928
      %v6930 = vpop.f32.mrb[0].mxu0
      %v6931 = vpop.f32.mrb[0].mxu0
      %v6932 = vadd.f32 0.0, %v6931
      %v6933 = vpop.f32.mrb[0].mxu0
      %6934 = vmatprep.mubr.bf16.mxu0 0
      %6935 = vmatmul.mubr.bf16.gmra.mrb[0].mxu0 %v6660
      %v6936 = vpop.f32.mrb[0].mxu0
      %v6937 = vadd.f32 0.0, %v6936
      %v6938 = vpop.f32.mrb[0].mxu0
      %v6939 = vpop.f32.mrb[0].mxu0
      %v6940 = vadd.f32 0.0, %v6939
      %v6941 = vpop.f32.mrb[0].mxu0
      %6942 = vmatprep.mubr.bf16.mxu0 0
      %6943 = vmatmul.mubr.bf16.gmra.mrb[0].mxu0 %v6663
      %v6944 = vpop.f32.mrb[0].mxu0
      %v6945 = vadd.f32 0.0, %v6944
      %v6946 = vpop.f32.mrb[0].mxu0
      %v6947 = vpop.f32.mrb[0].mxu0
      %v6948 = vadd.f32 0.0, %v6947
      %v6949 = vpop.f32.mrb[0].mxu0
      %6950 = vmatprep.mubr.bf16.mxu0 0
      %6951 = vmatmul.mubr.bf16.gmra.mrb[0].mxu0 %v6666
      %v6952 = vpop.f32.mrb[0].mxu0
      %v6953 = vadd.f32 0.0, %v6952
      %v6954 = vpop.f32.mrb[0].mxu0
      %v6955 = vpop.f32.mrb[0].mxu0
      %v6956 = vadd.f32 0.0, %v6955
      %v6957 = vpop.f32.mrb[0].mxu0
      %6958 = vmatprep.mubr.bf16.mxu0 0
      %6959 = vmatmul.mubr.bf16.gmra.mrb[0].mxu0 %v6669
      %v6960 = vpop.f32.mrb[0].mxu0
      %v6961 = vadd.f32 0.0, %v6960
      %v6962 = vpop.f32.mrb[0].mxu0
      %v6963 = vpop.f32.mrb[0].mxu0
      %v6964 = vadd.f32 0.0, %v6963
      %v6965 = vpop.f32.mrb[0].mxu0
      %6966 = vmatprep.mubr.bf16.mxu0 0
      %6967 = vmatmul.mubr.bf16.gmra.mrb[0].mxu0 %v6672
      %v6968 = vpop.f32.mrb[0].mxu0
      %v6969 = vadd.f32 0.0, %v6968
      %v6970 = vpop.f32.mrb[0].mxu0
      %v6971 = vpop.f32.mrb[0].mxu0
      %v6972 = vadd.f32 0.0, %v6971
      %v6973 = vpop.f32.mrb[0].mxu0
      %6974 = vmatprep.mubr.bf16.mxu0 0
      %6975 = vmatmul.mubr.bf16.gmra.mrb[0].mxu0 %v6675
      %v6976 = vpop.f32.mrb[0].mxu0
      %v6977 = vadd.f32 0.0, %v6976
      %v6978 = vpop.f32.mrb[0].mxu0
      %v6979 = vpop.f32.mrb[0].mxu0
      %v6980 = vadd.f32 0.0, %v6979
      %v6981 = vpop.f32.mrb[0].mxu0
      %6982 = vmatprep.mubr.bf16.mxu0 0
      %6983 = vmatmul.mubr.bf16.gmra.mrb[0].mxu0 %v6678
      %v6984 = vpop.f32.mrb[0].mxu0
      %v6985 = vadd.f32 0.0, %v6984
      %v6986 = vpop.f32.mrb[0].mxu0
      %v6987 = vpop.f32.mrb[0].mxu0
      %v6988 = vadd.f32 0.0, %v6987
      %v6989 = vpop.f32.mrb[0].mxu0
      %6990 = vmatprep.mubr.bf16.mxu0 0
      %6991 = vmatmul.mubr.bf16.gmra.mrb[0].mxu0 %v6681
      %v6992 = vpop.f32.mrb[0].mxu0
      %v6993 = vadd.f32 0.0, %v6992
      %v6994 = vpop.f32.mrb[0].mxu0
      %v6995 = vpop.f32.mrb[0].mxu0
      %v6996 = vadd.f32 0.0, %v6995
      %v6997 = vpop.f32.mrb[0].mxu0
      %6998 = vmatprep.mubr.bf16.mxu0 0
      %6999 = vmatmul.mubr.bf16.gmra.mrb[0].mxu0 %v6684
      %v7000 = vpop.f32.mrb[0].mxu0
      %v7001 = vadd.f32 0.0, %v7000
      %v7002 = vpop.f32.mrb[0].mxu0
      %v7003 = vpop.f32.mrb[0].mxu0
      %v7004 = vadd.f32 0.0, %v7003
      %v7005 = vpop.f32.mrb[0].mxu0
      %7006 = vmatprep.mubr.bf16.mxu0 0
      %7007 = vmatmul.mubr.bf16.gmra.mrb[0].mxu0 %v6687
      %v7008 = vpop.f32.mrb[0].mxu0
      %v7009 = vadd.f32 0.0, %v7008
      %v7010 = vpop.f32.mrb[0].mxu0
      %v7011 = vpop.f32.mrb[0].mxu0
      %v7012 = vadd.f32 0.0, %v7011
      %v7013 = vpop.f32.mrb[0].mxu0
      %7014 = vmatprep.mubr.bf16.mxu0 0
      %7015 = vmatmul.mubr.bf16.gmra.mrb[0].mxu0 %v6690
      %v7016 = vpop.f32.mrb[0].mxu0
      %v7017 = vadd.f32 0.0, %v7016
      %v7018 = vpop.f32.mrb[0].mxu0
      %v7019 = vpop.f32.mrb[0].mxu0
      %v7020 = vadd.f32 0.0, %v7019
      %v7021 = vpop.f32.mrb[0].mxu0
      %7022 = vmatprep.mubr.bf16.mxu0 0
      %7023 = vmatmul.mubr.bf16.gmra.mrb[0].mxu0 %v6693
      %v7024 = vpop.f32.mrb[0].mxu0
      %v7025 = vadd.f32 0.0, %v7024
      %v7026 = vpop.f32.mrb[0].mxu0
      %v7027 = vpop.f32.mrb[0].mxu0
      %v7028 = vadd.f32 0.0, %v7027
      %v7029 = vpop.f32.mrb[0].mxu0
      %7030 = vmatprep.mubr.bf16.mxu0 0
      %7031 = vmatmul.mubr.bf16.gmra.mrb[0].mxu0 %v6696
      %v7032 = vpop.f32.mrb[0].mxu0
      %v7033 = vadd.f32 0.0, %v7032
      %v7034 = vpop.f32.mrb[0].mxu0
      %v7035 = vpop.f32.mrb[0].mxu0
      %v7036 = vadd.f32 0.0, %v7035
      %v7037 = vpop.f32.mrb[0].mxu0
      %7038 = vmatprep.mubr.bf16.mxu0 0
      %7039 = vmatmul.mubr.bf16.gmra.mrb[0].mxu0 %v6699
      %v7040 = vpop.f32.mrb[0].mxu0
      %v7041 = vadd.f32 0.0, %v7040
      %v7042 = vpop.f32.mrb[0].mxu0
      %v7043 = vpop.f32.mrb[0].mxu0
      %v7044 = vadd.f32 0.0, %v7043
      %v7045 = vpop.f32.mrb[0].mxu0
      %7046 = vmatprep.mubr.bf16.mxu0 0
      %7047 = vmatmul.mubr.bf16.gmra.mrb[0].mxu0 %v6702
      %v7048 = vpop.f32.mrb[0].mxu0
      %v7049 = vadd.f32 0.0, %v7048
      %v7050 = vpop.f32.mrb[0].mxu0
      %v7051 = vpop.f32.mrb[0].mxu0
      %v7052 = vadd.f32 0.0, %v7051
      %v7053 = vpop.f32.mrb[0].mxu0
      %7054 = vmatprep.mubr.bf16.mxu0 0
      %7055 = vmatmul.mubr.bf16.gmra.mrb[0].mxu0 %v6705
      %v7056 = vpop.f32.mrb[0].mxu0
      %v7057 = vadd.f32 0.0, %v7056
      %v7058 = vpop.f32.mrb[0].mxu0
      %v7059 = vpop.f32.mrb[0].mxu0
      %v7060 = vadd.f32 0.0, %v7059
      %v7061 = vpop.f32.mrb[0].mxu0
      %7062 = vdwg.mxu0
      %v7063 = vadd.f32 %v6382, %v6745
      %v7064 = vadd.f32 %v6383, %v6748
      %v7065 = vadd.f32 %v6384, %v6753
      %v7066 = vadd.f32 %v6385, %v6756
      %v7067 = vadd.f32 %v6386, %v6761
      %v7068 = vadd.f32 %v6387, %v6764
      %v7069 = vadd.f32 %v6388, %v6769
      %v7070 = vadd.f32 %v6389, %v6772
      %v7071 = vadd.f32 %v6390, %v6777
      %v7072 = vadd.f32 %v6391, %v6780
      %v7073 = vadd.f32 %v6392, %v6785
      %v7074 = vadd.f32 %v6393, %v6788
      %v7075 = vadd.f32 %v6394, %v6793
      %v7076 = vadd.f32 %v6395, %v6796
      %v7077 = vadd.f32 %v6396, %v6801
      %v7078 = vadd.f32 %v6397, %v6804
      %v7079 = vadd.f32 %v6398, %v6809
      %v7080 = vadd.f32 %v6399, %v6812
      %v7081 = vadd.f32 %v6400, %v6817
      %v7082 = vadd.f32 %v6401, %v6820
      %v7083 = vadd.f32 %v6402, %v6825
      %v7084 = vadd.f32 %v6403, %v6828
      %v7085 = vadd.f32 %v6404, %v6833
      %v7086 = vadd.f32 %v6405, %v6836
      %v7087 = vadd.f32 %v6406, %v6841
      %v7088 = vadd.f32 %v6407, %v6844
      %v7089 = vadd.f32 %v6408, %v6849
      %v7090 = vadd.f32 %v6409, %v6852
      %v7091 = vadd.f32 %v6410, %v6857
      %v7092 = vadd.f32 %v6411, %v6860
      %v7093 = vadd.f32 %v6412, %v6865
      %v7094 = vadd.f32 %v6413, %v6868
      %v7095 = vadd.f32 %v6414, %v6873
      %v7096 = vadd.f32 %v6415, %v6876
      %v7097 = vadd.f32 %v6416, %v6881
      %v7098 = vadd.f32 %v6417, %v6884
      %v7099 = vadd.f32 %v6418, %v6889
      %v7100 = vadd.f32 %v6419, %v6892
      %v7101 = vadd.f32 %v6420, %v6897
      %v7102 = vadd.f32 %v6421, %v6900
      %v7103 = vadd.f32 %v6422, %v6905
      %v7104 = vadd.f32 %v6423, %v6908
      %v7105 = vadd.f32 %v6424, %v6913
      %v7106 = vadd.f32 %v6425, %v6916
      %v7107 = vadd.f32 %v6426, %v6921
      %v7108 = vadd.f32 %v6427, %v6924
      %v7109 = vadd.f32 %v6428, %v6929
      %v7110 = vadd.f32 %v6429, %v6932
      %v7111 = vadd.f32 %v6430, %v6937
      %v7112 = vadd.f32 %v6431, %v6940
      %v7113 = vadd.f32 %v6432, %v6945
      %v7114 = vadd.f32 %v6433, %v6948
      %v7115 = vadd.f32 %v6434, %v6953
      %v7116 = vadd.f32 %v6435, %v6956
      %v7117 = vadd.f32 %v6436, %v6961
      %v7118 = vadd.f32 %v6437, %v6964
      %v7119 = vadd.f32 %v6438, %v6969
      %v7120 = vadd.f32 %v6439, %v6972
      %v7121 = vadd.f32 %v6440, %v6977
      %v7122 = vadd.f32 %v6441, %v6980
      %v7123 = vadd.f32 %v6442, %v6985
      %v7124 = vadd.f32 %v6443, %v6988
      %v7125 = vadd.f32 %v6444, %v6993
      %v7126 = vadd.f32 %v6445, %v6996
      %v7127 = vadd.f32 %v6446, %v7001
      %v7128 = vadd.f32 %v6447, %v7004
      %v7129 = vadd.f32 %v6448, %v7009
      %v7130 = vadd.f32 %v6449, %v7012
      %v7131 = vadd.f32 %v6450, %v7017
      %v7132 = vadd.f32 %v6451, %v7020
      %v7133 = vadd.f32 %v6452, %v7025
      %v7134 = vadd.f32 %v6453, %v7028
      %v7135 = vadd.f32 %v6454, %v7033
      %v7136 = vadd.f32 %v6455, %v7036
      %v7137 = vadd.f32 %v6456, %v7041
      %v7138 = vadd.f32 %v6457, %v7044
      %v7139 = vadd.f32 %v6458, %v7049
      %v7140 = vadd.f32 %v6459, %v7052
      %v7141 = vadd.f32 %v6460, %v7057
      %v7142 = vadd.f32 %v6461, %v7060
      %v7143 = vld [vmem:[#allocation2 + $0x168] sm:$0x1f]
      %s7144 = scalar_lea.vmem %s448, 16
      %v7145 = vld [vmem:[%s7144] sm:$0x3]
      %v7147 = vshrl.u32 %v6462, 16
      %v7149 = vrot.slane %v7147, 4
      %v7150 = vshll.u32 %v6462, 16
      %v7152 = vrot.slane %v7150, 5
      %v7153 = vor.u32 %v7149, %v7152
      %v7154 = vrot.slane %v5547, 4
      %v7155 = vrot.slane %v5550, 5
      %v7156 = vor.u32 %v7154, %v7155
      %v7157 = vsel %vm2399, %v7153, %v7156
      %v7158 = vrot.slane %v5556, 4
      %v7159 = vrot.slane %v5559, 5
      %v7160 = vor.u32 %v7158, %v7159
      %v7161 = vsel %vm2399, %v7156, %v7160
      %v7162 = vrot.slane %v5565, 4
      %v7163 = vrot.slane %v5568, 5
      %v7164 = vor.u32 %v7162, %v7163
      %v7165 = vsel %vm2399, %v7160, %v7164
      %v7166 = vrot.slane %v5574, 4
      %v7167 = vrot.slane %v5577, 5
      %v7168 = vor.u32 %v7166, %v7167
      %v7169 = vsel %vm2399, %v7164, %v7168
      %v7170 = vrot.slane %v5583, 4
      %v7171 = vrot.slane %v5586, 5
      %v7172 = vor.u32 %v7170, %v7171
      %v7173 = vsel %vm2399, %v7168, %v7172
      %v7174 = vrot.slane %v5592, 4
      %v7175 = vrot.slane %v5595, 5
      %v7176 = vor.u32 %v7174, %v7175
      %v7177 = vsel %vm2399, %v7172, %v7176
      %v7178 = vrot.slane %v5601, 4
      %v7179 = vrot.slane %v5604, 5
      %v7180 = vor.u32 %v7178, %v7179
      %v7181 = vsel %vm2399, %v7176, %v7180
      %v7182 = vrot.slane %v5610, 4
      %v7183 = vrot.slane %v5613, 5
      %v7184 = vor.u32 %v7182, %v7183
      %v7185 = vsel %vm2399, %v7180, %v7184
      %v7186 = vrot.slane %v5619, 4
      %v7187 = vrot.slane %v5622, 5
      %v7188 = vor.u32 %v7186, %v7187
      %v7189 = vsel %vm2399, %v7184, %v7188
      %v7190 = vrot.slane %v5628, 4
      %v7191 = vrot.slane %v5631, 5
      %v7192 = vor.u32 %v7190, %v7191
      %v7193 = vsel %vm2399, %v7188, %v7192
      %v7194 = vrot.slane %v5637, 4
      %v7195 = vrot.slane %v5640, 5
      %v7196 = vor.u32 %v7194, %v7195
      %v7197 = vsel %vm2399, %v7192, %v7196
      %v7198 = vrot.slane %v5646, 4
      %v7199 = vrot.slane %v5649, 5
      %v7200 = vor.u32 %v7198, %v7199
      %v7201 = vsel %vm2399, %v7196, %v7200
      %v7202 = vrot.slane %v5655, 4
      %v7203 = vrot.slane %v5658, 5
      %v7204 = vor.u32 %v7202, %v7203
      %v7205 = vsel %vm2399, %v7200, %v7204
      %v7206 = vrot.slane %v5664, 4
      %v7207 = vrot.slane %v5667, 5
      %v7208 = vor.u32 %v7206, %v7207
      %v7209 = vsel %vm2399, %v7204, %v7208
      %v7210 = vrot.slane %v5673, 4
      %v7211 = vrot.slane %v5676, 5
      %v7212 = vor.u32 %v7210, %v7211
      %v7213 = vsel %vm2399, %v7208, %v7212
      %v7214 = vrot.slane %v5682, 4
      %v7215 = vrot.slane %v5685, 5
      %v7216 = vor.u32 %v7214, %v7215
      %v7217 = vsel %vm2399, %v7212, %v7216
      %v7218 = vrot.slane %v5691, 4
      %v7219 = vrot.slane %v5694, 5
      %v7220 = vor.u32 %v7218, %v7219
      %v7221 = vsel %vm2399, %v7216, %v7220
      %v7222 = vrot.slane %v5700, 4
      %v7223 = vrot.slane %v5703, 5
      %v7224 = vor.u32 %v7222, %v7223
      %v7225 = vsel %vm2399, %v7220, %v7224
      %v7226 = vrot.slane %v5709, 4
      %v7227 = vrot.slane %v5712, 5
      %v7228 = vor.u32 %v7226, %v7227
      %v7229 = vsel %vm2399, %v7224, %v7228
      %v7230 = vrot.slane %v5718, 4
      %v7231 = vrot.slane %v5721, 5
      %v7232 = vor.u32 %v7230, %v7231
      %v7233 = vsel %vm2399, %v7228, %v7232
      %v7234 = vrot.slane %v5727, 4
      %v7235 = vrot.slane %v5730, 5
      %v7236 = vor.u32 %v7234, %v7235
      %v7237 = vsel %vm2399, %v7232, %v7236
      %v7238 = vrot.slane %v5736, 4
      %v7239 = vrot.slane %v5739, 5
      %v7240 = vor.u32 %v7238, %v7239
      %v7241 = vsel %vm2399, %v7236, %v7240
      %v7242 = vrot.slane %v5745, 4
      %v7243 = vrot.slane %v5748, 5
      %v7244 = vor.u32 %v7242, %v7243
      %v7245 = vsel %vm2399, %v7240, %v7244
      %v7246 = vrot.slane %v5754, 4
      %v7247 = vrot.slane %v5757, 5
      %v7248 = vor.u32 %v7246, %v7247
      %v7249 = vsel %vm2399, %v7244, %v7248
      %v7250 = vrot.slane %v5763, 4
      %v7251 = vrot.slane %v5766, 5
      %v7252 = vor.u32 %v7250, %v7251
      %v7253 = vsel %vm2399, %v7248, %v7252
      %v7254 = vrot.slane %v5772, 4
      %v7255 = vrot.slane %v5775, 5
      %v7256 = vor.u32 %v7254, %v7255
      %v7257 = vsel %vm2399, %v7252, %v7256
      %v7258 = vrot.slane %v5781, 4
      %v7259 = vrot.slane %v5784, 5
      %v7260 = vor.u32 %v7258, %v7259
      %v7261 = vsel %vm2399, %v7256, %v7260
      %v7262 = vrot.slane %v5790, 4
      %v7263 = vrot.slane %v5793, 5
      %v7264 = vor.u32 %v7262, %v7263
      %v7265 = vsel %vm2399, %v7260, %v7264
      %v7266 = vrot.slane %v5799, 4
      %v7267 = vrot.slane %v5802, 5
      %v7268 = vor.u32 %v7266, %v7267
      %v7269 = vsel %vm2399, %v7264, %v7268
      %v7270 = vrot.slane %v5808, 4
      %v7271 = vrot.slane %v5811, 5
      %v7272 = vor.u32 %v7270, %v7271
      %v7273 = vsel %vm2399, %v7268, %v7272
      %v7274 = vrot.slane %v5817, 4
      %v7275 = vrot.slane %v5820, 5
      %v7276 = vor.u32 %v7274, %v7275
      %v7277 = vsel %vm2399, %v7272, %v7276
      %v7278 = vrot.slane %v5826, 4
      %v7279 = vrot.slane %v5829, 5
      %v7280 = vor.u32 %v7278, %v7279
      %v7281 = vsel %vm2399, %v7276, %v7280
      %v7282 = vrot.slane %v5835, 4
      %v7283 = vrot.slane %v5838, 5
      %v7284 = vor.u32 %v7282, %v7283
      %v7285 = vsel %vm2399, %v7280, %v7284
      %v7286 = vrot.slane %v5844, 4
      %v7287 = vrot.slane %v5847, 5
      %v7288 = vor.u32 %v7286, %v7287
      %v7289 = vsel %vm2399, %v7284, %v7288
      %v7290 = vrot.slane %v5853, 4
      %v7291 = vrot.slane %v5856, 5
      %v7292 = vor.u32 %v7290, %v7291
      %v7293 = vsel %vm2399, %v7288, %v7292
      %v7294 = vrot.slane %v5862, 4
      %v7295 = vrot.slane %v5865, 5
      %v7296 = vor.u32 %v7294, %v7295
      %v7297 = vsel %vm2399, %v7292, %v7296
      %v7298 = vrot.slane %v5871, 4
      %v7299 = vrot.slane %v5874, 5
      %v7300 = vor.u32 %v7298, %v7299
      %v7301 = vsel %vm2399, %v7296, %v7300
      %v7302 = vrot.slane %v5880, 4
      %v7303 = vrot.slane %v5883, 5
      %v7304 = vor.u32 %v7302, %v7303
      %v7305 = vsel %vm2399, %v7300, %v7304
      %v7306 = vrot.slane %v5889, 4
      %v7307 = vrot.slane %v5892, 5
      %v7308 = vor.u32 %v7306, %v7307
      %v7309 = vsel %vm2399, %v7304, %v7308
      %v7311 = vshrl.u32 %v7143, 16
      %v7313 = vrot.slane %v7311, 4
      %v7314 = vshll.u32 %v7143, 16
      %v7316 = vrot.slane %v7314, 5
      %v7317 = vor.u32 %v7313, %v7316
      %v7318 = vsel %vm2399, %v7308, %v7317
      %v7320 = vsel %vm827, %v7157, 0
      %v7323 = vsel %vm827, %v7161, 0
      %v7326 = vsel %vm827, %v7165, 0
      %v7329 = vsel %vm827, %v7169, 0
      %v7332 = vsel %vm827, %v7173, 0
      %v7335 = vsel %vm827, %v7177, 0
      %v7338 = vsel %vm827, %v7181, 0
      %v7341 = vsel %vm827, %v7185, 0
      %v7344 = vsel %vm827, %v7189, 0
      %v7347 = vsel %vm827, %v7193, 0
      %v7350 = vsel %vm827, %v7197, 0
      %v7353 = vsel %vm827, %v7201, 0
      %v7356 = vsel %vm827, %v7205, 0
      %v7359 = vsel %vm827, %v7209, 0
      %v7362 = vsel %vm827, %v7213, 0
      %v7365 = vsel %vm827, %v7217, 0
      %v7368 = vsel %vm827, %v7221, 0
      %v7371 = vsel %vm827, %v7225, 0
      %v7374 = vsel %vm827, %v7229, 0
      %v7377 = vsel %vm827, %v7233, 0
      %v7380 = vsel %vm827, %v7237, 0
      %v7383 = vsel %vm827, %v7241, 0
      %v7386 = vsel %vm827, %v7245, 0
      %v7389 = vsel %vm827, %v7249, 0
      %v7392 = vsel %vm827, %v7253, 0
      %v7395 = vsel %vm827, %v7257, 0
      %v7398 = vsel %vm827, %v7261, 0
      %v7401 = vsel %vm827, %v7265, 0
      %v7404 = vsel %vm827, %v7269, 0
      %v7407 = vsel %vm827, %v7273, 0
      %v7410 = vsel %vm827, %v7277, 0
      %v7413 = vsel %vm827, %v7281, 0
      %v7416 = vsel %vm827, %v7285, 0
      %v7419 = vsel %vm827, %v7289, 0
      %v7422 = vsel %vm827, %v7293, 0
      %v7425 = vsel %vm827, %v7297, 0
      %v7428 = vsel %vm827, %v7301, 0
      %v7431 = vsel %vm827, %v7305, 0
      %v7434 = vsel %vm827, %v7309, 0
      %v7437 = vsel %vm827, %v7318, 0
      %v7440 = vand.u32 %v7145, %v1194
      %7442 = vmatprep.subr.bf16.mxu0 0
      %7443 = vmatpush1.bf16.msra.mxu0 %v7440
      %7444 = vmatprep.subr.bf16.mxu0 0
      %7445 = vmatpush1.bf16.msra.mxu0 0
      %7446 = vmatprep.subr.bf16.mxu0 0
      %7447 = vmatpush1.bf16.msra.mxu0 0
      %7448 = vmatprep.subr.bf16.mxu0 0
      %7449 = vmatpush1.bf16.msra.mxu0 0
      %7450 = vmatprep.subr.bf16.mxu0 0
      %7451 = vmatpush1.bf16.msra.mxu0 0
      %7452 = vmatprep.subr.bf16.mxu0 0
      %7453 = vmatpush1.bf16.msra.mxu0 0
      %7454 = vmatprep.subr.bf16.mxu0 0
      %7455 = vmatpush1.bf16.msra.mxu0 0
      %7456 = vmatprep.subr.bf16.mxu0 0
      %7457 = vmatpush1.bf16.msra.mxu0 0
      %7458 = vmatprep.subr.bf16.mxu0 0
      %7459 = vmatpush1.bf16.msra.mxu0 0
      %7460 = vmatprep.subr.bf16.mxu0 0
      %7461 = vmatpush1.bf16.msra.mxu0 0
      %7462 = vmatprep.subr.bf16.mxu0 0
      %7463 = vmatpush1.bf16.msra.mxu0 0
      %7464 = vmatprep.subr.bf16.mxu0 0
      %7465 = vmatpush1.bf16.msra.mxu0 0
      %7466 = vmatprep.subr.bf16.mxu0 0
      %7467 = vmatpush1.bf16.msra.mxu0 0
      %7468 = vmatprep.subr.bf16.mxu0 0
      %7469 = vmatpush1.bf16.msra.mxu0 0
      %7470 = vmatprep.subr.bf16.mxu0 0
      %7471 = vmatpush1.bf16.msra.mxu0 0
      %7472 = vmatprep.subr.bf16.mxu0 0
      %7473 = vmatpush1.bf16.msra.mxu0 0
      %7474 = vmatprep.mubr.bf16.mxu0 0
      %7475 = vmatmul.mubr.bf16.gmra.mrb[0].mxu0 %v7320
      %v7476 = vpop.f32.mrb[0].mxu0
      %v7477 = vadd.f32 0.0, %v7476
      %v7478 = vpop.f32.mrb[0].mxu0
      %v7479 = vpop.f32.mrb[0].mxu0
      %v7480 = vadd.f32 0.0, %v7479
      %v7481 = vpop.f32.mrb[0].mxu0
      %7482 = vmatprep.mubr.bf16.mxu0 0
      %7483 = vmatmul.mubr.bf16.gmra.mrb[0].mxu0 %v7323
      %v7484 = vpop.f32.mrb[0].mxu0
      %v7485 = vadd.f32 0.0, %v7484
      %v7486 = vpop.f32.mrb[0].mxu0
      %v7487 = vpop.f32.mrb[0].mxu0
      %v7488 = vadd.f32 0.0, %v7487
      %v7489 = vpop.f32.mrb[0].mxu0
      %7490 = vmatprep.mubr.bf16.mxu0 0
      %7491 = vmatmul.mubr.bf16.gmra.mrb[0].mxu0 %v7326
      %v7492 = vpop.f32.mrb[0].mxu0
      %v7493 = vadd.f32 0.0, %v7492
      %v7494 = vpop.f32.mrb[0].mxu0
      %v7495 = vpop.f32.mrb[0].mxu0
      %v7496 = vadd.f32 0.0, %v7495
      %v7497 = vpop.f32.mrb[0].mxu0
      %7498 = vmatprep.mubr.bf16.mxu0 0
      %7499 = vmatmul.mubr.bf16.gmra.mrb[0].mxu0 %v7329
      %v7500 = vpop.f32.mrb[0].mxu0
      %v7501 = vadd.f32 0.0, %v7500
      %v7502 = vpop.f32.mrb[0].mxu0
      %v7503 = vpop.f32.mrb[0].mxu0
      %v7504 = vadd.f32 0.0, %v7503
      %v7505 = vpop.f32.mrb[0].mxu0
      %7506 = vmatprep.mubr.bf16.mxu0 0
      %7507 = vmatmul.mubr.bf16.gmra.mrb[0].mxu0 %v7332
      %v7508 = vpop.f32.mrb[0].mxu0
      %v7509 = vadd.f32 0.0, %v7508
      %v7510 = vpop.f32.mrb[0].mxu0
      %v7511 = vpop.f32.mrb[0].mxu0
      %v7512 = vadd.f32 0.0, %v7511
      %v7513 = vpop.f32.mrb[0].mxu0
      %7514 = vmatprep.mubr.bf16.mxu0 0
      %7515 = vmatmul.mubr.bf16.gmra.mrb[0].mxu0 %v7335
      %v7516 = vpop.f32.mrb[0].mxu0
      %v7517 = vadd.f32 0.0, %v7516
      %v7518 = vpop.f32.mrb[0].mxu0
      %v7519 = vpop.f32.mrb[0].mxu0
      %v7520 = vadd.f32 0.0, %v7519
      %v7521 = vpop.f32.mrb[0].mxu0
      %7522 = vmatprep.mubr.bf16.mxu0 0
      %7523 = vmatmul.mubr.bf16.gmra.mrb[0].mxu0 %v7338
      %v7524 = vpop.f32.mrb[0].mxu0
      %v7525 = vadd.f32 0.0, %v7524
      %v7526 = vpop.f32.mrb[0].mxu0
      %v7527 = vpop.f32.mrb[0].mxu0
      %v7528 = vadd.f32 0.0, %v7527
      %v7529 = vpop.f32.mrb[0].mxu0
      %7530 = vmatprep.mubr.bf16.mxu0 0
      %7531 = vmatmul.mubr.bf16.gmra.mrb[0].mxu0 %v7341
      %v7532 = vpop.f32.mrb[0].mxu0
      %v7533 = vadd.f32 0.0, %v7532
      %v7534 = vpop.f32.mrb[0].mxu0
      %v7535 = vpop.f32.mrb[0].mxu0
      %v7536 = vadd.f32 0.0, %v7535
      %v7537 = vpop.f32.mrb[0].mxu0
      %7538 = vmatprep.mubr.bf16.mxu0 0
      %7539 = vmatmul.mubr.bf16.gmra.mrb[0].mxu0 %v7344
      %v7540 = vpop.f32.mrb[0].mxu0
      %v7541 = vadd.f32 0.0, %v7540
      %v7542 = vpop.f32.mrb[0].mxu0
      %v7543 = vpop.f32.mrb[0].mxu0
      %v7544 = vadd.f32 0.0, %v7543
      %v7545 = vpop.f32.mrb[0].mxu0
      %7546 = vmatprep.mubr.bf16.mxu0 0
      %7547 = vmatmul.mubr.bf16.gmra.mrb[0].mxu0 %v7347
      %v7548 = vpop.f32.mrb[0].mxu0
      %v7549 = vadd.f32 0.0, %v7548
      %v7550 = vpop.f32.mrb[0].mxu0
      %v7551 = vpop.f32.mrb[0].mxu0
      %v7552 = vadd.f32 0.0, %v7551
      %v7553 = vpop.f32.mrb[0].mxu0
      %7554 = vmatprep.mubr.bf16.mxu0 0
      %7555 = vmatmul.mubr.bf16.gmra.mrb[0].mxu0 %v7350
      %v7556 = vpop.f32.mrb[0].mxu0
      %v7557 = vadd.f32 0.0, %v7556
      %v7558 = vpop.f32.mrb[0].mxu0
      %v7559 = vpop.f32.mrb[0].mxu0
      %v7560 = vadd.f32 0.0, %v7559
      %v7561 = vpop.f32.mrb[0].mxu0
      %7562 = vmatprep.mubr.bf16.mxu0 0
      %7563 = vmatmul.mubr.bf16.gmra.mrb[0].mxu0 %v7353
      %v7564 = vpop.f32.mrb[0].mxu0
      %v7565 = vadd.f32 0.0, %v7564
      %v7566 = vpop.f32.mrb[0].mxu0
      %v7567 = vpop.f32.mrb[0].mxu0
      %v7568 = vadd.f32 0.0, %v7567
      %v7569 = vpop.f32.mrb[0].mxu0
      %7570 = vmatprep.mubr.bf16.mxu0 0
      %7571 = vmatmul.mubr.bf16.gmra.mrb[0].mxu0 %v7356
      %v7572 = vpop.f32.mrb[0].mxu0
      %v7573 = vadd.f32 0.0, %v7572
      %v7574 = vpop.f32.mrb[0].mxu0
      %v7575 = vpop.f32.mrb[0].mxu0
      %v7576 = vadd.f32 0.0, %v7575
      %v7577 = vpop.f32.mrb[0].mxu0
      %7578 = vmatprep.mubr.bf16.mxu0 0
      %7579 = vmatmul.mubr.bf16.gmra.mrb[0].mxu0 %v7359
      %v7580 = vpop.f32.mrb[0].mxu0
      %v7581 = vadd.f32 0.0, %v7580
      %v7582 = vpop.f32.mrb[0].mxu0
      %v7583 = vpop.f32.mrb[0].mxu0
      %v7584 = vadd.f32 0.0, %v7583
      %v7585 = vpop.f32.mrb[0].mxu0
      %7586 = vmatprep.mubr.bf16.mxu0 0
      %7587 = vmatmul.mubr.bf16.gmra.mrb[0].mxu0 %v7362
      %v7588 = vpop.f32.mrb[0].mxu0
      %v7589 = vadd.f32 0.0, %v7588
      %v7590 = vpop.f32.mrb[0].mxu0
      %v7591 = vpop.f32.mrb[0].mxu0
      %v7592 = vadd.f32 0.0, %v7591
      %v7593 = vpop.f32.mrb[0].mxu0
      %7594 = vmatprep.mubr.bf16.mxu0 0
      %7595 = vmatmul.mubr.bf16.gmra.mrb[0].mxu0 %v7365
      %v7596 = vpop.f32.mrb[0].mxu0
      %v7597 = vadd.f32 0.0, %v7596
      %v7598 = vpop.f32.mrb[0].mxu0
      %v7599 = vpop.f32.mrb[0].mxu0
      %v7600 = vadd.f32 0.0, %v7599
      %v7601 = vpop.f32.mrb[0].mxu0
      %7602 = vmatprep.mubr.bf16.mxu0 0
      %7603 = vmatmul.mubr.bf16.gmra.mrb[0].mxu0 %v7368
      %v7604 = vpop.f32.mrb[0].mxu0
      %v7605 = vadd.f32 0.0, %v7604
      %v7606 = vpop.f32.mrb[0].mxu0
      %v7607 = vpop.f32.mrb[0].mxu0
      %v7608 = vadd.f32 0.0, %v7607
      %v7609 = vpop.f32.mrb[0].mxu0
      %7610 = vmatprep.mubr.bf16.mxu0 0
      %7611 = vmatmul.mubr.bf16.gmra.mrb[0].mxu0 %v7371
      %v7612 = vpop.f32.mrb[0].mxu0
      %v7613 = vadd.f32 0.0, %v7612
      %v7614 = vpop.f32.mrb[0].mxu0
      %v7615 = vpop.f32.mrb[0].mxu0
      %v7616 = vadd.f32 0.0, %v7615
      %v7617 = vpop.f32.mrb[0].mxu0
      %7618 = vmatprep.mubr.bf16.mxu0 0
      %7619 = vmatmul.mubr.bf16.gmra.mrb[0].mxu0 %v7374
      %v7620 = vpop.f32.mrb[0].mxu0
      %v7621 = vadd.f32 0.0, %v7620
      %v7622 = vpop.f32.mrb[0].mxu0
      %v7623 = vpop.f32.mrb[0].mxu0
      %v7624 = vadd.f32 0.0, %v7623
      %v7625 = vpop.f32.mrb[0].mxu0
      %7626 = vmatprep.mubr.bf16.mxu0 0
      %7627 = vmatmul.mubr.bf16.gmra.mrb[0].mxu0 %v7377
      %v7628 = vpop.f32.mrb[0].mxu0
      %v7629 = vadd.f32 0.0, %v7628
      %v7630 = vpop.f32.mrb[0].mxu0
      %v7631 = vpop.f32.mrb[0].mxu0
      %v7632 = vadd.f32 0.0, %v7631
      %v7633 = vpop.f32.mrb[0].mxu0
      %7634 = vmatprep.mubr.bf16.mxu0 0
      %7635 = vmatmul.mubr.bf16.gmra.mrb[0].mxu0 %v7380
      %v7636 = vpop.f32.mrb[0].mxu0
      %v7637 = vadd.f32 0.0, %v7636
      %v7638 = vpop.f32.mrb[0].mxu0
      %v7639 = vpop.f32.mrb[0].mxu0
      %v7640 = vadd.f32 0.0, %v7639
      %v7641 = vpop.f32.mrb[0].mxu0
      %7642 = vmatprep.mubr.bf16.mxu0 0
      %7643 = vmatmul.mubr.bf16.gmra.mrb[0].mxu0 %v7383
      %v7644 = vpop.f32.mrb[0].mxu0
      %v7645 = vadd.f32 0.0, %v7644
      %v7646 = vpop.f32.mrb[0].mxu0
      %v7647 = vpop.f32.mrb[0].mxu0
      %v7648 = vadd.f32 0.0, %v7647
      %v7649 = vpop.f32.mrb[0].mxu0
      %7650 = vmatprep.mubr.bf16.mxu0 0
      %7651 = vmatmul.mubr.bf16.gmra.mrb[0].mxu0 %v7386
      %v7652 = vpop.f32.mrb[0].mxu0
      %v7653 = vadd.f32 0.0, %v7652
      %v7654 = vpop.f32.mrb[0].mxu0
      %v7655 = vpop.f32.mrb[0].mxu0
      %v7656 = vadd.f32 0.0, %v7655
      %v7657 = vpop.f32.mrb[0].mxu0
      %7658 = vmatprep.mubr.bf16.mxu0 0
      %7659 = vmatmul.mubr.bf16.gmra.mrb[0].mxu0 %v7389
      %v7660 = vpop.f32.mrb[0].mxu0
      %v7661 = vadd.f32 0.0, %v7660
      %v7662 = vpop.f32.mrb[0].mxu0
      %v7663 = vpop.f32.mrb[0].mxu0
      %v7664 = vadd.f32 0.0, %v7663
      %v7665 = vpop.f32.mrb[0].mxu0
      %7666 = vmatprep.mubr.bf16.mxu0 0
      %7667 = vmatmul.mubr.bf16.gmra.mrb[0].mxu0 %v7392
      %v7668 = vpop.f32.mrb[0].mxu0
      %v7669 = vadd.f32 0.0, %v7668
      %v7670 = vpop.f32.mrb[0].mxu0
      %v7671 = vpop.f32.mrb[0].mxu0
      %v7672 = vadd.f32 0.0, %v7671
      %v7673 = vpop.f32.mrb[0].mxu0
      %7674 = vmatprep.mubr.bf16.mxu0 0
      %7675 = vmatmul.mubr.bf16.gmra.mrb[0].mxu0 %v7395
      %v7676 = vpop.f32.mrb[0].mxu0
      %v7677 = vadd.f32 0.0, %v7676
      %v7678 = vpop.f32.mrb[0].mxu0
      %v7679 = vpop.f32.mrb[0].mxu0
      %v7680 = vadd.f32 0.0, %v7679
      %v7681 = vpop.f32.mrb[0].mxu0
      %7682 = vmatprep.mubr.bf16.mxu0 0
      %7683 = vmatmul.mubr.bf16.gmra.mrb[0].mxu0 %v7398
      %v7684 = vpop.f32.mrb[0].mxu0
      %v7685 = vadd.f32 0.0, %v7684
      %v7686 = vpop.f32.mrb[0].mxu0
      %v7687 = vpop.f32.mrb[0].mxu0
      %v7688 = vadd.f32 0.0, %v7687
      %v7689 = vpop.f32.mrb[0].mxu0
      %7690 = vmatprep.mubr.bf16.mxu0 0
      %7691 = vmatmul.mubr.bf16.gmra.mrb[0].mxu0 %v7401
      %v7692 = vpop.f32.mrb[0].mxu0
      %v7693 = vadd.f32 0.0, %v7692
      %v7694 = vpop.f32.mrb[0].mxu0
      %v7695 = vpop.f32.mrb[0].mxu0
      %v7696 = vadd.f32 0.0, %v7695
      %v7697 = vpop.f32.mrb[0].mxu0
      %7698 = vmatprep.mubr.bf16.mxu0 0
      %7699 = vmatmul.mubr.bf16.gmra.mrb[0].mxu0 %v7404
      %v7700 = vpop.f32.mrb[0].mxu0
      %v7701 = vadd.f32 0.0, %v7700
      %v7702 = vpop.f32.mrb[0].mxu0
      %v7703 = vpop.f32.mrb[0].mxu0
      %v7704 = vadd.f32 0.0, %v7703
      %v7705 = vpop.f32.mrb[0].mxu0
      %7706 = vmatprep.mubr.bf16.mxu0 0
      %7707 = vmatmul.mubr.bf16.gmra.mrb[0].mxu0 %v7407
      %v7708 = vpop.f32.mrb[0].mxu0
      %v7709 = vadd.f32 0.0, %v7708
      %v7710 = vpop.f32.mrb[0].mxu0
      %v7711 = vpop.f32.mrb[0].mxu0
      %v7712 = vadd.f32 0.0, %v7711
      %v7713 = vpop.f32.mrb[0].mxu0
      %7714 = vmatprep.mubr.bf16.mxu0 0
      %7715 = vmatmul.mubr.bf16.gmra.mrb[0].mxu0 %v7410
      %v7716 = vpop.f32.mrb[0].mxu0
      %v7717 = vadd.f32 0.0, %v7716
      %v7718 = vpop.f32.mrb[0].mxu0
      %v7719 = vpop.f32.mrb[0].mxu0
      %v7720 = vadd.f32 0.0, %v7719
      %v7721 = vpop.f32.mrb[0].mxu0
      %7722 = vmatprep.mubr.bf16.mxu0 0
      %7723 = vmatmul.mubr.bf16.gmra.mrb[0].mxu0 %v7413
      %v7724 = vpop.f32.mrb[0].mxu0
      %v7725 = vadd.f32 0.0, %v7724
      %v7726 = vpop.f32.mrb[0].mxu0
      %v7727 = vpop.f32.mrb[0].mxu0
      %v7728 = vadd.f32 0.0, %v7727
      %v7729 = vpop.f32.mrb[0].mxu0
      %7730 = vmatprep.mubr.bf16.mxu0 0
      %7731 = vmatmul.mubr.bf16.gmra.mrb[0].mxu0 %v7416
      %v7732 = vpop.f32.mrb[0].mxu0
      %v7733 = vadd.f32 0.0, %v7732
      %v7734 = vpop.f32.mrb[0].mxu0
      %v7735 = vpop.f32.mrb[0].mxu0
      %v7736 = vadd.f32 0.0, %v7735
      %v7737 = vpop.f32.mrb[0].mxu0
      %7738 = vmatprep.mubr.bf16.mxu0 0
      %7739 = vmatmul.mubr.bf16.gmra.mrb[0].mxu0 %v7419
      %v7740 = vpop.f32.mrb[0].mxu0
      %v7741 = vadd.f32 0.0, %v7740
      %v7742 = vpop.f32.mrb[0].mxu0
      %v7743 = vpop.f32.mrb[0].mxu0
      %v7744 = vadd.f32 0.0, %v7743
      %v7745 = vpop.f32.mrb[0].mxu0
      %7746 = vmatprep.mubr.bf16.mxu0 0
      %7747 = vmatmul.mubr.bf16.gmra.mrb[0].mxu0 %v7422
      %v7748 = vpop.f32.mrb[0].mxu0
      %v7749 = vadd.f32 0.0, %v7748
      %v7750 = vpop.f32.mrb[0].mxu0
      %v7751 = vpop.f32.mrb[0].mxu0
      %v7752 = vadd.f32 0.0, %v7751
      %v7753 = vpop.f32.mrb[0].mxu0
      %7754 = vmatprep.mubr.bf16.mxu0 0
      %7755 = vmatmul.mubr.bf16.gmra.mrb[0].mxu0 %v7425
      %v7756 = vpop.f32.mrb[0].mxu0
      %v7757 = vadd.f32 0.0, %v7756
      %v7758 = vpop.f32.mrb[0].mxu0
      %v7759 = vpop.f32.mrb[0].mxu0
      %v7760 = vadd.f32 0.0, %v7759
      %v7761 = vpop.f32.mrb[0].mxu0
      %7762 = vmatprep.mubr.bf16.mxu0 0
      %7763 = vmatmul.mubr.bf16.gmra.mrb[0].mxu0 %v7428
      %v7764 = vpop.f32.mrb[0].mxu0
      %v7765 = vadd.f32 0.0, %v7764
      %v7766 = vpop.f32.mrb[0].mxu0
      %v7767 = vpop.f32.mrb[0].mxu0
      %v7768 = vadd.f32 0.0, %v7767
      %v7769 = vpop.f32.mrb[0].mxu0
      %7770 = vmatprep.mubr.bf16.mxu0 0
      %7771 = vmatmul.mubr.bf16.gmra.mrb[0].mxu0 %v7431
      %v7772 = vpop.f32.mrb[0].mxu0
      %v7773 = vadd.f32 0.0, %v7772
      %v7774 = vpop.f32.mrb[0].mxu0
      %v7775 = vpop.f32.mrb[0].mxu0
      %v7776 = vadd.f32 0.0, %v7775
      %v7777 = vpop.f32.mrb[0].mxu0
      %7778 = vmatprep.mubr.bf16.mxu0 0
      %7779 = vmatmul.mubr.bf16.gmra.mrb[0].mxu0 %v7434
      %v7780 = vpop.f32.mrb[0].mxu0
      %v7781 = vadd.f32 0.0, %v7780
      %v7782 = vpop.f32.mrb[0].mxu0
      %v7783 = vpop.f32.mrb[0].mxu0
      %v7784 = vadd.f32 0.0, %v7783
      %v7785 = vpop.f32.mrb[0].mxu0
      %7786 = vmatprep.mubr.bf16.mxu0 0
      %7787 = vmatmul.mubr.bf16.gmra.mrb[0].mxu0 %v7437
      %v7788 = vpop.f32.mrb[0].mxu0
      %v7789 = vadd.f32 0.0, %v7788
      %v7790 = vpop.f32.mrb[0].mxu0
      %v7791 = vpop.f32.mrb[0].mxu0
      %v7792 = vadd.f32 0.0, %v7791
      %v7793 = vpop.f32.mrb[0].mxu0
      %7794 = vdwg.mxu0
      %v7795 = vadd.f32 %v7063, %v7477
      %v7796 = vadd.f32 %v7064, %v7480
      %v7797 = vadd.f32 %v7065, %v7485
      %v7798 = vadd.f32 %v7066, %v7488
      %v7799 = vadd.f32 %v7067, %v7493
      %v7800 = vadd.f32 %v7068, %v7496
      %v7801 = vadd.f32 %v7069, %v7501
      %v7802 = vadd.f32 %v7070, %v7504
      %v7803 = vadd.f32 %v7071, %v7509
      %v7804 = vadd.f32 %v7072, %v7512
      %v7805 = vadd.f32 %v7073, %v7517
      %v7806 = vadd.f32 %v7074, %v7520
      %v7807 = vadd.f32 %v7075, %v7525
      %v7808 = vadd.f32 %v7076, %v7528
      %v7809 = vadd.f32 %v7077, %v7533
      %v7810 = vadd.f32 %v7078, %v7536
      %v7811 = vadd.f32 %v7079, %v7541
      %v7812 = vadd.f32 %v7080, %v7544
      %v7813 = vadd.f32 %v7081, %v7549
      %v7814 = vadd.f32 %v7082, %v7552
      %v7815 = vadd.f32 %v7083, %v7557
      %v7816 = vadd.f32 %v7084, %v7560
      %v7817 = vadd.f32 %v7085, %v7565
      %v7818 = vadd.f32 %v7086, %v7568
      %v7819 = vadd.f32 %v7087, %v7573
      %v7820 = vadd.f32 %v7088, %v7576
      %v7821 = vadd.f32 %v7089, %v7581
      %v7822 = vadd.f32 %v7090, %v7584
      %v7823 = vadd.f32 %v7091, %v7589
      %v7824 = vadd.f32 %v7092, %v7592
      %v7825 = vadd.f32 %v7093, %v7597
      %v7826 = vadd.f32 %v7094, %v7600
      %v7827 = vadd.f32 %v7095, %v7605
      %v7828 = vadd.f32 %v7096, %v7608
      %v7829 = vadd.f32 %v7097, %v7613
      %v7830 = vadd.f32 %v7098, %v7616
      %v7831 = vadd.f32 %v7099, %v7621
      %v7832 = vadd.f32 %v7100, %v7624
      %v7833 = vadd.f32 %v7101, %v7629
      %v7834 = vadd.f32 %v7102, %v7632
      %v7835 = vadd.f32 %v7103, %v7637
      %v7836 = vadd.f32 %v7104, %v7640
      %v7837 = vadd.f32 %v7105, %v7645
      %v7838 = vadd.f32 %v7106, %v7648
      %v7839 = vadd.f32 %v7107, %v7653
      %v7840 = vadd.f32 %v7108, %v7656
      %v7841 = vadd.f32 %v7109, %v7661
      %v7842 = vadd.f32 %v7110, %v7664
      %v7843 = vadd.f32 %v7111, %v7669
      %v7844 = vadd.f32 %v7112, %v7672
      %v7845 = vadd.f32 %v7113, %v7677
      %v7846 = vadd.f32 %v7114, %v7680
      %v7847 = vadd.f32 %v7115, %v7685
      %v7848 = vadd.f32 %v7116, %v7688
      %v7849 = vadd.f32 %v7117, %v7693
      %v7850 = vadd.f32 %v7118, %v7696
      %v7851 = vadd.f32 %v7119, %v7701
      %v7852 = vadd.f32 %v7120, %v7704
      %v7853 = vadd.f32 %v7121, %v7709
      %v7854 = vadd.f32 %v7122, %v7712
      %v7855 = vadd.f32 %v7123, %v7717
      %v7856 = vadd.f32 %v7124, %v7720
      %v7857 = vadd.f32 %v7125, %v7725
      %v7858 = vadd.f32 %v7126, %v7728
      %v7859 = vadd.f32 %v7127, %v7733
      %v7860 = vadd.f32 %v7128, %v7736
      %v7861 = vadd.f32 %v7129, %v7741
      %v7862 = vadd.f32 %v7130, %v7744
      %v7863 = vadd.f32 %v7131, %v7749
      %v7864 = vadd.f32 %v7132, %v7752
      %v7865 = vadd.f32 %v7133, %v7757
      %v7866 = vadd.f32 %v7134, %v7760
      %v7867 = vadd.f32 %v7135, %v7765
      %v7868 = vadd.f32 %v7136, %v7768
      %v7869 = vadd.f32 %v7137, %v7773
      %v7870 = vadd.f32 %v7138, %v7776
      %v7871 = vadd.f32 %v7139, %v7781
      %v7872 = vadd.f32 %v7140, %v7784
      %v7873 = vadd.f32 %v7141, %v7789
      %v7874 = vadd.f32 %v7142, %v7792
      %v7875 = vld [vmem:[%s451] sm:$0x1]
      %v7877 = vlaneseq
      %v7878 = vshrl.u32 %v7877, 7
      %v7879 = vsub.s32 0, %v7878
      %v7880 = vrot.slane %v7875, %v7879
      %v7882 = vadd.f32 %v7795, %v7880
      %v7883 = vadd.f32 %v7796, %v7880
      %v7884 = vadd.f32 %v7797, %v7880
      %v7885 = vadd.f32 %v7798, %v7880
      %v7886 = vadd.f32 %v7799, %v7880
      %v7887 = vadd.f32 %v7800, %v7880
      %v7888 = vadd.f32 %v7801, %v7880
      %v7889 = vadd.f32 %v7802, %v7880
      %v7890 = vadd.f32 %v7803, %v7880
      %v7891 = vadd.f32 %v7804, %v7880
      %v7892 = vadd.f32 %v7805, %v7880
      %v7893 = vadd.f32 %v7806, %v7880
      %v7894 = vadd.f32 %v7807, %v7880
      %v7895 = vadd.f32 %v7808, %v7880
      %v7896 = vadd.f32 %v7809, %v7880
      %v7897 = vadd.f32 %v7810, %v7880
      %v7898 = vadd.f32 %v7811, %v7880
      %v7899 = vadd.f32 %v7812, %v7880
      %v7900 = vadd.f32 %v7813, %v7880
      %v7901 = vadd.f32 %v7814, %v7880
      %v7902 = vadd.f32 %v7815, %v7880
      %v7903 = vadd.f32 %v7816, %v7880
      %v7904 = vadd.f32 %v7817, %v7880
      %v7905 = vadd.f32 %v7818, %v7880
      %v7906 = vadd.f32 %v7819, %v7880
      %v7907 = vadd.f32 %v7820, %v7880
      %v7908 = vadd.f32 %v7821, %v7880
      %v7909 = vadd.f32 %v7822, %v7880
      %v7910 = vadd.f32 %v7823, %v7880
      %v7911 = vadd.f32 %v7824, %v7880
      %v7912 = vadd.f32 %v7825, %v7880
      %v7913 = vadd.f32 %v7826, %v7880
      %v7914 = vadd.f32 %v7827, %v7880
      %v7915 = vadd.f32 %v7828, %v7880
      %v7916 = vadd.f32 %v7829, %v7880
      %v7917 = vadd.f32 %v7830, %v7880
      %v7918 = vadd.f32 %v7831, %v7880
      %v7919 = vadd.f32 %v7832, %v7880
      %v7920 = vadd.f32 %v7833, %v7880
      %v7921 = vadd.f32 %v7834, %v7880
      %v7922 = vadd.f32 %v7835, %v7880
      %v7923 = vadd.f32 %v7836, %v7880
      %v7924 = vadd.f32 %v7837, %v7880
      %v7925 = vadd.f32 %v7838, %v7880
      %v7926 = vadd.f32 %v7839, %v7880
      %v7927 = vadd.f32 %v7840, %v7880
      %v7928 = vadd.f32 %v7841, %v7880
      %v7929 = vadd.f32 %v7842, %v7880
      %v7930 = vadd.f32 %v7843, %v7880
      %v7931 = vadd.f32 %v7844, %v7880
      %v7932 = vadd.f32 %v7845, %v7880
      %v7933 = vadd.f32 %v7846, %v7880
      %v7934 = vadd.f32 %v7847, %v7880
      %v7935 = vadd.f32 %v7848, %v7880
      %v7936 = vadd.f32 %v7849, %v7880
      %v7937 = vadd.f32 %v7850, %v7880
      %v7938 = vadd.f32 %v7851, %v7880
      %v7939 = vadd.f32 %v7852, %v7880
      %v7940 = vadd.f32 %v7853, %v7880
      %v7941 = vadd.f32 %v7854, %v7880
      %v7942 = vadd.f32 %v7855, %v7880
      %v7943 = vadd.f32 %v7856, %v7880
      %v7944 = vadd.f32 %v7857, %v7880
      %v7945 = vadd.f32 %v7858, %v7880
      %v7946 = vadd.f32 %v7859, %v7880
      %v7947 = vadd.f32 %v7860, %v7880
      %v7948 = vadd.f32 %v7861, %v7880
      %v7949 = vadd.f32 %v7862, %v7880
      %v7950 = vadd.f32 %v7863, %v7880
      %v7951 = vadd.f32 %v7864, %v7880
      %v7952 = vadd.f32 %v7865, %v7880
      %v7953 = vadd.f32 %v7866, %v7880
      %v7954 = vadd.f32 %v7867, %v7880
      %v7955 = vadd.f32 %v7868, %v7880
      %v7956 = vadd.f32 %v7869, %v7880
      %v7957 = vadd.f32 %v7870, %v7880
      %v7958 = vadd.f32 %v7871, %v7880
      %v7959 = vadd.f32 %v7872, %v7880
      %v7960 = vadd.f32 %v7873, %v7880
      %v7961 = vadd.f32 %v7874, %v7880
      %vm7962 = vcmp.ge.f32.partialorder %v7882, 0.0
      %vm7963 = vcmp.ge.f32.partialorder %v7883, 0.0
      %vm7964 = vcmp.ge.f32.partialorder %v7884, 0.0
      %vm7965 = vcmp.ge.f32.partialorder %v7885, 0.0
      %vm7966 = vcmp.ge.f32.partialorder %v7886, 0.0
      %vm7967 = vcmp.ge.f32.partialorder %v7887, 0.0
      %vm7968 = vcmp.ge.f32.partialorder %v7888, 0.0
      %vm7969 = vcmp.ge.f32.partialorder %v7889, 0.0
      %vm7970 = vcmp.ge.f32.partialorder %v7890, 0.0
      %vm7971 = vcmp.ge.f32.partialorder %v7891, 0.0
      %vm7972 = vcmp.ge.f32.partialorder %v7892, 0.0
      %vm7973 = vcmp.ge.f32.partialorder %v7893, 0.0
      %vm7974 = vcmp.ge.f32.partialorder %v7894, 0.0
      %vm7975 = vcmp.ge.f32.partialorder %v7895, 0.0
      %vm7976 = vcmp.ge.f32.partialorder %v7896, 0.0
      %vm7977 = vcmp.ge.f32.partialorder %v7897, 0.0
      %vm7978 = vcmp.ge.f32.partialorder %v7898, 0.0
      %vm7979 = vcmp.ge.f32.partialorder %v7899, 0.0
      %vm7980 = vcmp.ge.f32.partialorder %v7900, 0.0
      %vm7981 = vcmp.ge.f32.partialorder %v7901, 0.0
      %vm7982 = vcmp.ge.f32.partialorder %v7902, 0.0
      %vm7983 = vcmp.ge.f32.partialorder %v7903, 0.0
      %vm7984 = vcmp.ge.f32.partialorder %v7904, 0.0
      %vm7985 = vcmp.ge.f32.partialorder %v7905, 0.0
      %vm7986 = vcmp.ge.f32.partialorder %v7906, 0.0
      %vm7987 = vcmp.ge.f32.partialorder %v7907, 0.0
      %vm7988 = vcmp.ge.f32.partialorder %v7908, 0.0
      %vm7989 = vcmp.ge.f32.partialorder %v7909, 0.0
      %vm7990 = vcmp.ge.f32.partialorder %v7910, 0.0
      %vm7991 = vcmp.ge.f32.partialorder %v7911, 0.0
      %vm7992 = vcmp.ge.f32.partialorder %v7912, 0.0
      %vm7993 = vcmp.ge.f32.partialorder %v7913, 0.0
      %vm7994 = vcmp.ge.f32.partialorder %v7914, 0.0
      %vm7995 = vcmp.ge.f32.partialorder %v7915, 0.0
      %vm7996 = vcmp.ge.f32.partialorder %v7916, 0.0
      %vm7997 = vcmp.ge.f32.partialorder %v7917, 0.0
      %vm7998 = vcmp.ge.f32.partialorder %v7918, 0.0
      %vm7999 = vcmp.ge.f32.partialorder %v7919, 0.0
      %vm8000 = vcmp.ge.f32.partialorder %v7920, 0.0
      %vm8001 = vcmp.ge.f32.partialorder %v7921, 0.0
      %vm8002 = vcmp.ge.f32.partialorder %v7922, 0.0
      %vm8003 = vcmp.ge.f32.partialorder %v7923, 0.0
      %vm8004 = vcmp.ge.f32.partialorder %v7924, 0.0
      %vm8005 = vcmp.ge.f32.partialorder %v7925, 0.0
      %vm8006 = vcmp.ge.f32.partialorder %v7926, 0.0
      %vm8007 = vcmp.ge.f32.partialorder %v7927, 0.0
      %vm8008 = vcmp.ge.f32.partialorder %v7928, 0.0
      %vm8009 = vcmp.ge.f32.partialorder %v7929, 0.0
      %vm8010 = vcmp.ge.f32.partialorder %v7930, 0.0
      %vm8011 = vcmp.ge.f32.partialorder %v7931, 0.0
      %vm8012 = vcmp.ge.f32.partialorder %v7932, 0.0
      %vm8013 = vcmp.ge.f32.partialorder %v7933, 0.0
      %vm8014 = vcmp.ge.f32.partialorder %v7934, 0.0
      %vm8015 = vcmp.ge.f32.partialorder %v7935, 0.0
      %vm8016 = vcmp.ge.f32.partialorder %v7936, 0.0
      %vm8017 = vcmp.ge.f32.partialorder %v7937, 0.0
      %vm8018 = vcmp.ge.f32.partialorder %v7938, 0.0
      %vm8019 = vcmp.ge.f32.partialorder %v7939, 0.0
      %vm8020 = vcmp.ge.f32.partialorder %v7940, 0.0
      %vm8021 = vcmp.ge.f32.partialorder %v7941, 0.0
      %vm8022 = vcmp.ge.f32.partialorder %v7942, 0.0
      %vm8023 = vcmp.ge.f32.partialorder %v7943, 0.0
      %vm8024 = vcmp.ge.f32.partialorder %v7944, 0.0
      %vm8025 = vcmp.ge.f32.partialorder %v7945, 0.0
      %vm8026 = vcmp.ge.f32.partialorder %v7946, 0.0
      %vm8027 = vcmp.ge.f32.partialorder %v7947, 0.0
      %vm8028 = vcmp.ge.f32.partialorder %v7948, 0.0
      %vm8029 = vcmp.ge.f32.partialorder %v7949, 0.0
      %vm8030 = vcmp.ge.f32.partialorder %v7950, 0.0
      %vm8031 = vcmp.ge.f32.partialorder %v7951, 0.0
      %vm8032 = vcmp.ge.f32.partialorder %v7952, 0.0
      %vm8033 = vcmp.ge.f32.partialorder %v7953, 0.0
      %vm8034 = vcmp.ge.f32.partialorder %v7954, 0.0
      %vm8035 = vcmp.ge.f32.partialorder %v7955, 0.0
      %vm8036 = vcmp.ge.f32.partialorder %v7956, 0.0
      %vm8037 = vcmp.ge.f32.partialorder %v7957, 0.0
      %vm8038 = vcmp.ge.f32.partialorder %v7958, 0.0
      %vm8039 = vcmp.ge.f32.partialorder %v7959, 0.0
      %vm8040 = vcmp.ge.f32.partialorder %v7960, 0.0
      %vm8041 = vcmp.ge.f32.partialorder %v7961, 0.0
      %v8042 = vmul.f32 %v7882, 0.1
      %v8043 = vmul.f32 %v7883, 0.1
      %v8044 = vmul.f32 %v7884, 0.1
      %v8045 = vmul.f32 %v7885, 0.1
      %v8046 = vmul.f32 %v7886, 0.1
      %v8047 = vmul.f32 %v7887, 0.1
      %v8048 = vmul.f32 %v7888, 0.1
      %v8049 = vmul.f32 %v7889, 0.1
      %v8050 = vmul.f32 %v7890, 0.1
      %v8051 = vmul.f32 %v7891, 0.1
      %v8052 = vmul.f32 %v7892, 0.1
      %v8053 = vmul.f32 %v7893, 0.1
      %v8054 = vmul.f32 %v7894, 0.1
      %v8055 = vmul.f32 %v7895, 0.1
      %v8056 = vmul.f32 %v7896, 0.1
      %v8057 = vmul.f32 %v7897, 0.1
      %v8058 = vmul.f32 %v7898, 0.1
      %v8059 = vmul.f32 %v7899, 0.1
      %v8060 = vmul.f32 %v7900, 0.1
      %v8061 = vmul.f32 %v7901, 0.1
      %v8062 = vmul.f32 %v7902, 0.1
      %v8063 = vmul.f32 %v7903, 0.1
      %v8064 = vmul.f32 %v7904, 0.1
      %v8065 = vmul.f32 %v7905, 0.1
      %v8066 = vmul.f32 %v7906, 0.1
      %v8067 = vmul.f32 %v7907, 0.1
      %v8068 = vmul.f32 %v7908, 0.1
      %v8069 = vmul.f32 %v7909, 0.1
      %v8070 = vmul.f32 %v7910, 0.1
      %v8071 = vmul.f32 %v7911, 0.1
      %v8072 = vmul.f32 %v7912, 0.1
      %v8073 = vmul.f32 %v7913, 0.1
      %v8074 = vmul.f32 %v7914, 0.1
      %v8075 = vmul.f32 %v7915, 0.1
      %v8076 = vmul.f32 %v7916, 0.1
      %v8077 = vmul.f32 %v7917, 0.1
      %v8078 = vmul.f32 %v7918, 0.1
      %v8079 = vmul.f32 %v7919, 0.1
      %v8080 = vmul.f32 %v7920, 0.1
      %v8081 = vmul.f32 %v7921, 0.1
      %v8082 = vmul.f32 %v7922, 0.1
      %v8083 = vmul.f32 %v7923, 0.1
      %v8084 = vmul.f32 %v7924, 0.1
      %v8085 = vmul.f32 %v7925, 0.1
      %v8086 = vmul.f32 %v7926, 0.1
      %v8087 = vmul.f32 %v7927, 0.1
      %v8088 = vmul.f32 %v7928, 0.1
      %v8089 = vmul.f32 %v7929, 0.1
      %v8090 = vmul.f32 %v7930, 0.1
      %v8091 = vmul.f32 %v7931, 0.1
      %v8092 = vmul.f32 %v7932, 0.1
      %v8093 = vmul.f32 %v7933, 0.1
      %v8094 = vmul.f32 %v7934, 0.1
      %v8095 = vmul.f32 %v7935, 0.1
      %v8096 = vmul.f32 %v7936, 0.1
      %v8097 = vmul.f32 %v7937, 0.1
      %v8098 = vmul.f32 %v7938, 0.1
      %v8099 = vmul.f32 %v7939, 0.1
      %v8100 = vmul.f32 %v7940, 0.1
      %v8101 = vmul.f32 %v7941, 0.1
      %v8102 = vmul.f32 %v7942, 0.1
      %v8103 = vmul.f32 %v7943, 0.1
      %v8104 = vmul.f32 %v7944, 0.1
      %v8105 = vmul.f32 %v7945, 0.1
      %v8106 = vmul.f32 %v7946, 0.1
      %v8107 = vmul.f32 %v7947, 0.1
      %v8108 = vmul.f32 %v7948, 0.1
      %v8109 = vmul.f32 %v7949, 0.1
      %v8110 = vmul.f32 %v7950, 0.1
      %v8111 = vmul.f32 %v7951, 0.1
      %v8112 = vmul.f32 %v7952, 0.1
      %v8113 = vmul.f32 %v7953, 0.1
      %v8114 = vmul.f32 %v7954, 0.1
      %v8115 = vmul.f32 %v7955, 0.1
      %v8116 = vmul.f32 %v7956, 0.1
      %v8117 = vmul.f32 %v7957, 0.1
      %v8118 = vmul.f32 %v7958, 0.1
      %v8119 = vmul.f32 %v7959, 0.1
      %v8120 = vmul.f32 %v7960, 0.1
      %v8121 = vmul.f32 %v7961, 0.1
      %v8122 = vsel %vm7962, %v7882, %v8042
      %v8123 = vsel %vm7963, %v7883, %v8043
      %v8124 = vsel %vm7964, %v7884, %v8044
      %v8125 = vsel %vm7965, %v7885, %v8045
      %v8126 = vsel %vm7966, %v7886, %v8046
      %v8127 = vsel %vm7967, %v7887, %v8047
      %v8128 = vsel %vm7968, %v7888, %v8048
      %v8129 = vsel %vm7969, %v7889, %v8049
      %v8130 = vsel %vm7970, %v7890, %v8050
      %v8131 = vsel %vm7971, %v7891, %v8051
      %v8132 = vsel %vm7972, %v7892, %v8052
      %v8133 = vsel %vm7973, %v7893, %v8053
      %v8134 = vsel %vm7974, %v7894, %v8054
      %v8135 = vsel %vm7975, %v7895, %v8055
      %v8136 = vsel %vm7976, %v7896, %v8056
      %v8137 = vsel %vm7977, %v7897, %v8057
      %v8138 = vsel %vm7978, %v7898, %v8058
      %v8139 = vsel %vm7979, %v7899, %v8059
      %v8140 = vsel %vm7980, %v7900, %v8060
      %v8141 = vsel %vm7981, %v7901, %v8061
      %v8142 = vsel %vm7982, %v7902, %v8062
      %v8143 = vsel %vm7983, %v7903, %v8063
      %v8144 = vsel %vm7984, %v7904, %v8064
      %v8145 = vsel %vm7985, %v7905, %v8065
      %v8146 = vsel %vm7986, %v7906, %v8066
      %v8147 = vsel %vm7987, %v7907, %v8067
      %v8148 = vsel %vm7988, %v7908, %v8068
      %v8149 = vsel %vm7989, %v7909, %v8069
      %v8150 = vsel %vm7990, %v7910, %v8070
      %v8151 = vsel %vm7991, %v7911, %v8071
      %v8152 = vsel %vm7992, %v7912, %v8072
      %v8153 = vsel %vm7993, %v7913, %v8073
      %v8154 = vsel %vm7994, %v7914, %v8074
      %v8155 = vsel %vm7995, %v7915, %v8075
      %v8156 = vsel %vm7996, %v7916, %v8076
      %v8157 = vsel %vm7997, %v7917, %v8077
      %v8158 = vsel %vm7998, %v7918, %v8078
      %v8159 = vsel %vm7999, %v7919, %v8079
      %v8160 = vsel %vm8000, %v7920, %v8080
      %v8161 = vsel %vm8001, %v7921, %v8081
      %v8162 = vsel %vm8002, %v7922, %v8082
      %v8163 = vsel %vm8003, %v7923, %v8083
      %v8164 = vsel %vm8004, %v7924, %v8084
      %v8165 = vsel %vm8005, %v7925, %v8085
      %v8166 = vsel %vm8006, %v7926, %v8086
      %v8167 = vsel %vm8007, %v7927, %v8087
      %v8168 = vsel %vm8008, %v7928, %v8088
      %v8169 = vsel %vm8009, %v7929, %v8089
      %v8170 = vsel %vm8010, %v7930, %v8090
      %v8171 = vsel %vm8011, %v7931, %v8091
      %v8172 = vsel %vm8012, %v7932, %v8092
      %v8173 = vsel %vm8013, %v7933, %v8093
      %v8174 = vsel %vm8014, %v7934, %v8094
      %v8175 = vsel %vm8015, %v7935, %v8095
      %v8176 = vsel %vm8016, %v7936, %v8096
      %v8177 = vsel %vm8017, %v7937, %v8097
      %v8178 = vsel %vm8018, %v7938, %v8098
      %v8179 = vsel %vm8019, %v7939, %v8099
      %v8180 = vsel %vm8020, %v7940, %v8100
      %v8181 = vsel %vm8021, %v7941, %v8101
      %v8182 = vsel %vm8022, %v7942, %v8102
      %v8183 = vsel %vm8023, %v7943, %v8103
      %v8184 = vsel %vm8024, %v7944, %v8104
      %v8185 = vsel %vm8025, %v7945, %v8105
      %v8186 = vsel %vm8026, %v7946, %v8106
      %v8187 = vsel %vm8027, %v7947, %v8107
      %v8188 = vsel %vm8028, %v7948, %v8108
      %v8189 = vsel %vm8029, %v7949, %v8109
      %v8190 = vsel %vm8030, %v7950, %v8110
      %v8191 = vsel %vm8031, %v7951, %v8111
      %v8192 = vsel %vm8032, %v7952, %v8112
      %v8193 = vsel %vm8033, %v7953, %v8113
      %v8194 = vsel %vm8034, %v7954, %v8114
      %v8195 = vsel %vm8035, %v7955, %v8115
      %v8196 = vsel %vm8036, %v7956, %v8116
      %v8197 = vsel %vm8037, %v7957, %v8117
      %v8198 = vsel %vm8038, %v7958, %v8118
      %v8199 = vsel %vm8039, %v7959, %v8119
      %v8200 = vsel %vm8040, %v7960, %v8120
      %v8201 = vsel %vm8041, %v7961, %v8121
      %v8202 = vld [vmem:[%s5] sm:$0xff]
      %v8203 = vld [vmem:[%s5 + $0x8] sm:$0xff]
      %v8204 = vld [vmem:[%s5 + $0x10] sm:$0xff]
      %v8205 = vld [vmem:[%s5 + $0x18] sm:$0xff]
      %v8206 = vld [vmem:[%s5 + $0x20] sm:$0xff]
      %v8207 = vld [vmem:[%s5 + $0x28] sm:$0xff]
      %v8208 = vld [vmem:[%s5 + $0x30] sm:$0xff]
      %v8209 = vld [vmem:[%s5 + $0x38] sm:$0xff]
      %v8210 = vld [vmem:[%s5 + $0x40] sm:$0xff]
      %v8211 = vld [vmem:[%s5 + $0x48] sm:$0xff]
      %v8212 = vld [vmem:[%s5 + $0x50] sm:$0xff]
      %v8213 = vld [vmem:[%s5 + $0x58] sm:$0xff]
      %v8214 = vld [vmem:[%s5 + $0x60] sm:$0xff]
      %v8215 = vld [vmem:[%s5 + $0x68] sm:$0xff]
      %v8216 = vld [vmem:[%s5 + $0x70] sm:$0xff]
      %v8217 = vld [vmem:[%s5 + $0x78] sm:$0xff]
      %v8218 = vld [vmem:[%s5 + $0x80] sm:$0xff]
      %v8219 = vld [vmem:[%s5 + $0x88] sm:$0xff]
      %v8220 = vld [vmem:[%s5 + $0x90] sm:$0xff]
      %v8221 = vld [vmem:[%s5 + $0x98] sm:$0xff]
      %v8222 = vld [vmem:[%s5 + $0xa0] sm:$0xff]
      %v8223 = vld [vmem:[%s5 + $0xa8] sm:$0xff]
      %v8224 = vld [vmem:[%s5 + $0xb0] sm:$0xff]
      %v8225 = vld [vmem:[%s5 + $0xb8] sm:$0xff]
      %v8226 = vld [vmem:[%s5 + $0xc0] sm:$0xff]
      %v8227 = vld [vmem:[%s5 + $0xc8] sm:$0xff]
      %v8228 = vld [vmem:[%s5 + $0xd0] sm:$0xff]
      %v8229 = vld [vmem:[%s5 + $0xd8] sm:$0xff]
      %v8230 = vld [vmem:[%s5 + $0xe0] sm:$0xff]
      %v8231 = vld [vmem:[%s5 + $0xe8] sm:$0xff]
      %v8232 = vld [vmem:[%s5 + $0xf0] sm:$0xff]
      %v8233 = vld [vmem:[%s5 + $0xf8] sm:$0xff]
      %v8234 = vld [vmem:[%s5 + $0x100] sm:$0xff]
      %v8235 = vld [vmem:[%s5 + $0x108] sm:$0xff]
      %v8236 = vld [vmem:[%s5 + $0x110] sm:$0xff]
      %v8237 = vld [vmem:[%s5 + $0x118] sm:$0xff]
      %v8238 = vld [vmem:[%s5 + $0x120] sm:$0xff]
      %v8239 = vld [vmem:[%s5 + $0x128] sm:$0xff]
      %v8240 = vld [vmem:[%s5 + $0x130] sm:$0xff]
      %v8241 = vld [vmem:[%s5 + $0x138] sm:$0xff]
      %v8242 = vld [vmem:[%s5 + $0x140] sm:$0xff]
      %v8243 = vld [vmem:[%s5 + $0x148] sm:$0xff]
      %v8244 = vld [vmem:[%s5 + $0x150] sm:$0xff]
      %v8245 = vld [vmem:[%s5 + $0x158] sm:$0xff]
      %v8246 = vld [vmem:[%s5 + $0x160] sm:$0xff]
      %v8247 = vld [vmem:[%s5 + $0x168] sm:$0xff]
      %v8248 = vld [vmem:[%s5 + $0x170] sm:$0xff]
      %v8249 = vld [vmem:[%s5 + $0x178] sm:$0xff]
      %v8250 = vld [vmem:[%s5 + $0x180] sm:$0xff]
      %v8251 = vld [vmem:[%s5 + $0x188] sm:$0xff]
      %v8252 = vld [vmem:[%s5 + $0x190] sm:$0xff]
      %v8253 = vld [vmem:[%s5 + $0x198] sm:$0xff]
      %v8254 = vld [vmem:[%s5 + $0x1a0] sm:$0xff]
      %v8255 = vld [vmem:[%s5 + $0x1a8] sm:$0xff]
      %v8256 = vld [vmem:[%s5 + $0x1b0] sm:$0xff]
      %v8257 = vld [vmem:[%s5 + $0x1b8] sm:$0xff]
      %v8258 = vld [vmem:[%s5 + $0x1c0] sm:$0xff]
      %v8259 = vld [vmem:[%s5 + $0x1c8] sm:$0xff]
      %v8260 = vld [vmem:[%s5 + $0x1d0] sm:$0xff]
      %v8261 = vld [vmem:[%s5 + $0x1d8] sm:$0xff]
      %v8262 = vld [vmem:[%s5 + $0x1e0] sm:$0xff]
      %v8263 = vld [vmem:[%s5 + $0x1e8] sm:$0xff]
      %v8264 = vld [vmem:[%s5 + $0x1f0] sm:$0xff]
      %v8265 = vld [vmem:[%s5 + $0x1f8] sm:$0xff]
      %v8266 = vld [vmem:[%s5 + $0x200] sm:$0xff]
      %v8267 = vld [vmem:[%s5 + $0x208] sm:$0xff]
      %v8268 = vld [vmem:[%s5 + $0x210] sm:$0xff]
      %v8269 = vld [vmem:[%s5 + $0x218] sm:$0xff]
      %v8270 = vld [vmem:[%s5 + $0x220] sm:$0xff]
      %v8271 = vld [vmem:[%s5 + $0x228] sm:$0xff]
      %v8272 = vld [vmem:[%s5 + $0x230] sm:$0xff]
      %v8273 = vld [vmem:[%s5 + $0x238] sm:$0xff]
      %v8274 = vld [vmem:[%s5 + $0x240] sm:$0xff]
      %v8275 = vld [vmem:[%s5 + $0x248] sm:$0xff]
      %v8276 = vld [vmem:[%s5 + $0x250] sm:$0xff]
      %v8277 = vld [vmem:[%s5 + $0x258] sm:$0xff]
      %v8278 = vld [vmem:[%s5 + $0x260] sm:$0xff]
      %v8279 = vld [vmem:[%s5 + $0x268] sm:$0xff]
      %v8280 = vld [vmem:[%s5 + $0x270] sm:$0xff]
      %v8281 = vld [vmem:[%s5 + $0x278] sm:$0xff]
      %vm8282 = vcmp.ne.f32.partialorder %v8202, 0.0
      %vm8283 = vcmp.ne.f32.partialorder %v8203, 0.0
      %vm8284 = vcmp.ne.f32.partialorder %v8204, 0.0
      %vm8285 = vcmp.ne.f32.partialorder %v8205, 0.0
      %vm8286 = vcmp.ne.f32.partialorder %v8206, 0.0
      %vm8287 = vcmp.ne.f32.partialorder %v8207, 0.0
      %vm8288 = vcmp.ne.f32.partialorder %v8208, 0.0
      %vm8289 = vcmp.ne.f32.partialorder %v8209, 0.0
      %vm8290 = vcmp.ne.f32.partialorder %v8210, 0.0
      %vm8291 = vcmp.ne.f32.partialorder %v8211, 0.0
      %vm8292 = vcmp.ne.f32.partialorder %v8212, 0.0
      %vm8293 = vcmp.ne.f32.partialorder %v8213, 0.0
      %vm8294 = vcmp.ne.f32.partialorder %v8214, 0.0
      %vm8295 = vcmp.ne.f32.partialorder %v8215, 0.0
      %vm8296 = vcmp.ne.f32.partialorder %v8216, 0.0
      %vm8297 = vcmp.ne.f32.partialorder %v8217, 0.0
      %vm8298 = vcmp.ne.f32.partialorder %v8218, 0.0
      %vm8299 = vcmp.ne.f32.partialorder %v8219, 0.0
      %vm8300 = vcmp.ne.f32.partialorder %v8220, 0.0
      %vm8301 = vcmp.ne.f32.partialorder %v8221, 0.0
      %vm8302 = vcmp.ne.f32.partialorder %v8222, 0.0
      %vm8303 = vcmp.ne.f32.partialorder %v8223, 0.0
      %vm8304 = vcmp.ne.f32.partialorder %v8224, 0.0
      %vm8305 = vcmp.ne.f32.partialorder %v8225, 0.0
      %vm8306 = vcmp.ne.f32.partialorder %v8226, 0.0
      %vm8307 = vcmp.ne.f32.partialorder %v8227, 0.0
      %vm8308 = vcmp.ne.f32.partialorder %v8228, 0.0
      %vm8309 = vcmp.ne.f32.partialorder %v8229, 0.0
      %vm8310 = vcmp.ne.f32.partialorder %v8230, 0.0
      %vm8311 = vcmp.ne.f32.partialorder %v8231, 0.0
      %vm8312 = vcmp.ne.f32.partialorder %v8232, 0.0
      %vm8313 = vcmp.ne.f32.partialorder %v8233, 0.0
      %vm8314 = vcmp.ne.f32.partialorder %v8234, 0.0
      %vm8315 = vcmp.ne.f32.partialorder %v8235, 0.0
      %vm8316 = vcmp.ne.f32.partialorder %v8236, 0.0
      %vm8317 = vcmp.ne.f32.partialorder %v8237, 0.0
      %vm8318 = vcmp.ne.f32.partialorder %v8238, 0.0
      %vm8319 = vcmp.ne.f32.partialorder %v8239, 0.0
      %vm8320 = vcmp.ne.f32.partialorder %v8240, 0.0
      %vm8321 = vcmp.ne.f32.partialorder %v8241, 0.0
      %vm8322 = vcmp.ne.f32.partialorder %v8242, 0.0
      %vm8323 = vcmp.ne.f32.partialorder %v8243, 0.0
      %vm8324 = vcmp.ne.f32.partialorder %v8244, 0.0
      %vm8325 = vcmp.ne.f32.partialorder %v8245, 0.0
      %vm8326 = vcmp.ne.f32.partialorder %v8246, 0.0
      %vm8327 = vcmp.ne.f32.partialorder %v8247, 0.0
      %vm8328 = vcmp.ne.f32.partialorder %v8248, 0.0
      %vm8329 = vcmp.ne.f32.partialorder %v8249, 0.0
      %vm8330 = vcmp.ne.f32.partialorder %v8250, 0.0
      %vm8331 = vcmp.ne.f32.partialorder %v8251, 0.0
      %vm8332 = vcmp.ne.f32.partialorder %v8252, 0.0
      %vm8333 = vcmp.ne.f32.partialorder %v8253, 0.0
      %vm8334 = vcmp.ne.f32.partialorder %v8254, 0.0
      %vm8335 = vcmp.ne.f32.partialorder %v8255, 0.0
      %vm8336 = vcmp.ne.f32.partialorder %v8256, 0.0
      %vm8337 = vcmp.ne.f32.partialorder %v8257, 0.0
      %vm8338 = vcmp.ne.f32.partialorder %v8258, 0.0
      %vm8339 = vcmp.ne.f32.partialorder %v8259, 0.0
      %vm8340 = vcmp.ne.f32.partialorder %v8260, 0.0
      %vm8341 = vcmp.ne.f32.partialorder %v8261, 0.0
      %vm8342 = vcmp.ne.f32.partialorder %v8262, 0.0
      %vm8343 = vcmp.ne.f32.partialorder %v8263, 0.0
      %vm8344 = vcmp.ne.f32.partialorder %v8264, 0.0
      %vm8345 = vcmp.ne.f32.partialorder %v8265, 0.0
      %vm8346 = vcmp.ne.f32.partialorder %v8266, 0.0
      %vm8347 = vcmp.ne.f32.partialorder %v8267, 0.0
      %vm8348 = vcmp.ne.f32.partialorder %v8268, 0.0
      %vm8349 = vcmp.ne.f32.partialorder %v8269, 0.0
      %vm8350 = vcmp.ne.f32.partialorder %v8270, 0.0
      %vm8351 = vcmp.ne.f32.partialorder %v8271, 0.0
      %vm8352 = vcmp.ne.f32.partialorder %v8272, 0.0
      %vm8353 = vcmp.ne.f32.partialorder %v8273, 0.0
      %vm8354 = vcmp.ne.f32.partialorder %v8274, 0.0
      %vm8355 = vcmp.ne.f32.partialorder %v8275, 0.0
      %vm8356 = vcmp.ne.f32.partialorder %v8276, 0.0
      %vm8357 = vcmp.ne.f32.partialorder %v8277, 0.0
      %vm8358 = vcmp.ne.f32.partialorder %v8278, 0.0
      %vm8359 = vcmp.ne.f32.partialorder %v8279, 0.0
      %vm8360 = vcmp.ne.f32.partialorder %v8280, 0.0
      %vm8361 = vcmp.ne.f32.partialorder %v8281, 0.0
      %v8362 = vsel %vm8282, 1, 0
      %v8363 = vsel %vm8283, 1, 0
      %v8364 = vsel %vm8284, 1, 0
      %v8365 = vsel %vm8285, 1, 0
      %v8366 = vsel %vm8286, 1, 0
      %v8367 = vsel %vm8287, 1, 0
      %v8368 = vsel %vm8288, 1, 0
      %v8369 = vsel %vm8289, 1, 0
      %v8370 = vsel %vm8290, 1, 0
      %v8371 = vsel %vm8291, 1, 0
      %v8372 = vsel %vm8292, 1, 0
      %v8373 = vsel %vm8293, 1, 0
      %v8374 = vsel %vm8294, 1, 0
      %v8375 = vsel %vm8295, 1, 0
      %v8376 = vsel %vm8296, 1, 0
      %v8377 = vsel %vm8297, 1, 0
      %v8378 = vsel %vm8298, 1, 0
      %v8379 = vsel %vm8299, 1, 0
      %v8380 = vsel %vm8300, 1, 0
      %v8381 = vsel %vm8301, 1, 0
      %v8382 = vsel %vm8302, 1, 0
      %v8383 = vsel %vm8303, 1, 0
      %v8384 = vsel %vm8304, 1, 0
      %v8385 = vsel %vm8305, 1, 0
      %v8386 = vsel %vm8306, 1, 0
      %v8387 = vsel %vm8307, 1, 0
      %v8388 = vsel %vm8308, 1, 0
      %v8389 = vsel %vm8309, 1, 0
      %v8390 = vsel %vm8310, 1, 0
      %v8391 = vsel %vm8311, 1, 0
      %v8392 = vsel %vm8312, 1, 0
      %v8393 = vsel %vm8313, 1, 0
      %v8394 = vsel %vm8314, 1, 0
      %v8395 = vsel %vm8315, 1, 0
      %v8396 = vsel %vm8316, 1, 0
      %v8397 = vsel %vm8317, 1, 0
      %v8398 = vsel %vm8318, 1, 0
      %v8399 = vsel %vm8319, 1, 0
      %v8400 = vsel %vm8320, 1, 0
      %v8401 = vsel %vm8321, 1, 0
      %v8402 = vsel %vm8322, 1, 0
      %v8403 = vsel %vm8323, 1, 0
      %v8404 = vsel %vm8324, 1, 0
      %v8405 = vsel %vm8325, 1, 0
      %v8406 = vsel %vm8326, 1, 0
      %v8407 = vsel %vm8327, 1, 0
      %v8408 = vsel %vm8328, 1, 0
      %v8409 = vsel %vm8329, 1, 0
      %v8410 = vsel %vm8330, 1, 0
      %v8411 = vsel %vm8331, 1, 0
      %v8412 = vsel %vm8332, 1, 0
      %v8413 = vsel %vm8333, 1, 0
      %v8414 = vsel %vm8334, 1, 0
      %v8415 = vsel %vm8335, 1, 0
      %v8416 = vsel %vm8336, 1, 0
      %v8417 = vsel %vm8337, 1, 0
      %v8418 = vsel %vm8338, 1, 0
      %v8419 = vsel %vm8339, 1, 0
      %v8420 = vsel %vm8340, 1, 0
      %v8421 = vsel %vm8341, 1, 0
      %v8422 = vsel %vm8342, 1, 0
      %v8423 = vsel %vm8343, 1, 0
      %v8424 = vsel %vm8344, 1, 0
      %v8425 = vsel %vm8345, 1, 0
      %v8426 = vsel %vm8346, 1, 0
      %v8427 = vsel %vm8347, 1, 0
      %v8428 = vsel %vm8348, 1, 0
      %v8429 = vsel %vm8349, 1, 0
      %v8430 = vsel %vm8350, 1, 0
      %v8431 = vsel %vm8351, 1, 0
      %v8432 = vsel %vm8352, 1, 0
      %v8433 = vsel %vm8353, 1, 0
      %v8434 = vsel %vm8354, 1, 0
      %v8435 = vsel %vm8355, 1, 0
      %v8436 = vsel %vm8356, 1, 0
      %v8437 = vsel %vm8357, 1, 0
      %v8438 = vsel %vm8358, 1, 0
      %v8439 = vsel %vm8359, 1, 0
      %v8440 = vsel %vm8360, 1, 0
      %v8441 = vsel %vm8361, 1, 0
      %8442 = vset.pattern.permute.xlu0 0
      %8443 = vperm.xlu0 %8442, %v8362
      %v8444 = vpop.permute.xlu0 %8443
      %8445 = vset.pattern.permute.xlu0 0
      %8446 = vperm.xlu0 %8445, %v8363
      %v8447 = vpop.permute.xlu0 %8446
      %8448 = vset.pattern.permute.xlu0 0
      %8449 = vperm.xlu0 %8448, %v8364
      %v8450 = vpop.permute.xlu0 %8449
      %8451 = vset.pattern.permute.xlu0 0
      %8452 = vperm.xlu0 %8451, %v8365
      %v8453 = vpop.permute.xlu0 %8452
      %8454 = vset.pattern.permute.xlu0 0
      %8455 = vperm.xlu0 %8454, %v8366
      %v8456 = vpop.permute.xlu0 %8455
      %8457 = vset.pattern.permute.xlu0 0
      %8458 = vperm.xlu0 %8457, %v8367
      %v8459 = vpop.permute.xlu0 %8458
      %8460 = vset.pattern.permute.xlu0 0
      %8461 = vperm.xlu0 %8460, %v8368
      %v8462 = vpop.permute.xlu0 %8461
      %8463 = vset.pattern.permute.xlu0 0
      %8464 = vperm.xlu0 %8463, %v8369
      %v8465 = vpop.permute.xlu0 %8464
      %8466 = vset.pattern.permute.xlu0 0
      %8467 = vperm.xlu0 %8466, %v8370
      %v8468 = vpop.permute.xlu0 %8467
      %8469 = vset.pattern.permute.xlu0 0
      %8470 = vperm.xlu0 %8469, %v8371
      %v8471 = vpop.permute.xlu0 %8470
      %8472 = vset.pattern.permute.xlu0 0
      %8473 = vperm.xlu0 %8472, %v8372
      %v8474 = vpop.permute.xlu0 %8473
      %8475 = vset.pattern.permute.xlu0 0
      %8476 = vperm.xlu0 %8475, %v8373
      %v8477 = vpop.permute.xlu0 %8476
      %8478 = vset.pattern.permute.xlu0 0
      %8479 = vperm.xlu0 %8478, %v8374
      %v8480 = vpop.permute.xlu0 %8479
      %8481 = vset.pattern.permute.xlu0 0
      %8482 = vperm.xlu0 %8481, %v8375
      %v8483 = vpop.permute.xlu0 %8482
      %8484 = vset.pattern.permute.xlu0 0
      %8485 = vperm.xlu0 %8484, %v8376
      %v8486 = vpop.permute.xlu0 %8485
      %8487 = vset.pattern.permute.xlu0 0
      %8488 = vperm.xlu0 %8487, %v8377
      %v8489 = vpop.permute.xlu0 %8488
      %8490 = vset.pattern.permute.xlu0 0
      %8491 = vperm.xlu0 %8490, %v8378
      %v8492 = vpop.permute.xlu0 %8491
      %8493 = vset.pattern.permute.xlu0 0
      %8494 = vperm.xlu0 %8493, %v8379
      %v8495 = vpop.permute.xlu0 %8494
      %8496 = vset.pattern.permute.xlu0 0
      %8497 = vperm.xlu0 %8496, %v8380
      %v8498 = vpop.permute.xlu0 %8497
      %8499 = vset.pattern.permute.xlu0 0
      %8500 = vperm.xlu0 %8499, %v8381
      %v8501 = vpop.permute.xlu0 %8500
      %8502 = vset.pattern.permute.xlu0 0
      %8503 = vperm.xlu0 %8502, %v8382
      %v8504 = vpop.permute.xlu0 %8503
      %8505 = vset.pattern.permute.xlu0 0
      %8506 = vperm.xlu0 %8505, %v8383
      %v8507 = vpop.permute.xlu0 %8506
      %8508 = vset.pattern.permute.xlu0 0
      %8509 = vperm.xlu0 %8508, %v8384
      %v8510 = vpop.permute.xlu0 %8509
      %8511 = vset.pattern.permute.xlu0 0
      %8512 = vperm.xlu0 %8511, %v8385
      %v8513 = vpop.permute.xlu0 %8512
      %8514 = vset.pattern.permute.xlu0 0
      %8515 = vperm.xlu0 %8514, %v8386
      %v8516 = vpop.permute.xlu0 %8515
      %8517 = vset.pattern.permute.xlu0 0
      %8518 = vperm.xlu0 %8517, %v8387
      %v8519 = vpop.permute.xlu0 %8518
      %8520 = vset.pattern.permute.xlu0 0
      %8521 = vperm.xlu0 %8520, %v8388
      %v8522 = vpop.permute.xlu0 %8521
      %8523 = vset.pattern.permute.xlu0 0
      %8524 = vperm.xlu0 %8523, %v8389
      %v8525 = vpop.permute.xlu0 %8524
      %8526 = vset.pattern.permute.xlu0 0
      %8527 = vperm.xlu0 %8526, %v8390
      %v8528 = vpop.permute.xlu0 %8527
      %8529 = vset.pattern.permute.xlu0 0
      %8530 = vperm.xlu0 %8529, %v8391
      %v8531 = vpop.permute.xlu0 %8530
      %8532 = vset.pattern.permute.xlu0 0
      %8533 = vperm.xlu0 %8532, %v8392
      %v8534 = vpop.permute.xlu0 %8533
      %8535 = vset.pattern.permute.xlu0 0
      %8536 = vperm.xlu0 %8535, %v8393
      %v8537 = vpop.permute.xlu0 %8536
      %8538 = vset.pattern.permute.xlu0 0
      %8539 = vperm.xlu0 %8538, %v8394
      %v8540 = vpop.permute.xlu0 %8539
      %8541 = vset.pattern.permute.xlu0 0
      %8542 = vperm.xlu0 %8541, %v8395
      %v8543 = vpop.permute.xlu0 %8542
      %8544 = vset.pattern.permute.xlu0 0
      %8545 = vperm.xlu0 %8544, %v8396
      %v8546 = vpop.permute.xlu0 %8545
      %8547 = vset.pattern.permute.xlu0 0
      %8548 = vperm.xlu0 %8547, %v8397
      %v8549 = vpop.permute.xlu0 %8548
      %8550 = vset.pattern.permute.xlu0 0
      %8551 = vperm.xlu0 %8550, %v8398
      %v8552 = vpop.permute.xlu0 %8551
      %8553 = vset.pattern.permute.xlu0 0
      %8554 = vperm.xlu0 %8553, %v8399
      %v8555 = vpop.permute.xlu0 %8554
      %8556 = vset.pattern.permute.xlu0 0
      %8557 = vperm.xlu0 %8556, %v8400
      %v8558 = vpop.permute.xlu0 %8557
      %8559 = vset.pattern.permute.xlu0 0
      %8560 = vperm.xlu0 %8559, %v8401
      %v8561 = vpop.permute.xlu0 %8560
      %8562 = vset.pattern.permute.xlu0 0
      %8563 = vperm.xlu0 %8562, %v8402
      %v8564 = vpop.permute.xlu0 %8563
      %8565 = vset.pattern.permute.xlu0 0
      %8566 = vperm.xlu0 %8565, %v8403
      %v8567 = vpop.permute.xlu0 %8566
      %8568 = vset.pattern.permute.xlu0 0
      %8569 = vperm.xlu0 %8568, %v8404
      %v8570 = vpop.permute.xlu0 %8569
      %8571 = vset.pattern.permute.xlu0 0
      %8572 = vperm.xlu0 %8571, %v8405
      %v8573 = vpop.permute.xlu0 %8572
      %8574 = vset.pattern.permute.xlu0 0
      %8575 = vperm.xlu0 %8574, %v8406
      %v8576 = vpop.permute.xlu0 %8575
      %8577 = vset.pattern.permute.xlu0 0
      %8578 = vperm.xlu0 %8577, %v8407
      %v8579 = vpop.permute.xlu0 %8578
      %8580 = vset.pattern.permute.xlu0 0
      %8581 = vperm.xlu0 %8580, %v8408
      %v8582 = vpop.permute.xlu0 %8581
      %8583 = vset.pattern.permute.xlu0 0
      %8584 = vperm.xlu0 %8583, %v8409
      %v8585 = vpop.permute.xlu0 %8584
      %8586 = vset.pattern.permute.xlu0 0
      %8587 = vperm.xlu0 %8586, %v8410
      %v8588 = vpop.permute.xlu0 %8587
      %8589 = vset.pattern.permute.xlu0 0
      %8590 = vperm.xlu0 %8589, %v8411
      %v8591 = vpop.permute.xlu0 %8590
      %8592 = vset.pattern.permute.xlu0 0
      %8593 = vperm.xlu0 %8592, %v8412
      %v8594 = vpop.permute.xlu0 %8593
      %8595 = vset.pattern.permute.xlu0 0
      %8596 = vperm.xlu0 %8595, %v8413
      %v8597 = vpop.permute.xlu0 %8596
      %8598 = vset.pattern.permute.xlu0 0
      %8599 = vperm.xlu0 %8598, %v8414
      %v8600 = vpop.permute.xlu0 %8599
      %8601 = vset.pattern.permute.xlu0 0
      %8602 = vperm.xlu0 %8601, %v8415
      %v8603 = vpop.permute.xlu0 %8602
      %8604 = vset.pattern.permute.xlu0 0
      %8605 = vperm.xlu0 %8604, %v8416
      %v8606 = vpop.permute.xlu0 %8605
      %8607 = vset.pattern.permute.xlu0 0
      %8608 = vperm.xlu0 %8607, %v8417
      %v8609 = vpop.permute.xlu0 %8608
      %8610 = vset.pattern.permute.xlu0 0
      %8611 = vperm.xlu0 %8610, %v8418
      %v8612 = vpop.permute.xlu0 %8611
      %8613 = vset.pattern.permute.xlu0 0
      %8614 = vperm.xlu0 %8613, %v8419
      %v8615 = vpop.permute.xlu0 %8614
      %8616 = vset.pattern.permute.xlu0 0
      %8617 = vperm.xlu0 %8616, %v8420
      %v8618 = vpop.permute.xlu0 %8617
      %8619 = vset.pattern.permute.xlu0 0
      %8620 = vperm.xlu0 %8619, %v8421
      %v8621 = vpop.permute.xlu0 %8620
      %8622 = vset.pattern.permute.xlu0 0
      %8623 = vperm.xlu0 %8622, %v8422
      %v8624 = vpop.permute.xlu0 %8623
      %8625 = vset.pattern.permute.xlu0 0
      %8626 = vperm.xlu0 %8625, %v8423
      %v8627 = vpop.permute.xlu0 %8626
      %8628 = vset.pattern.permute.xlu0 0
      %8629 = vperm.xlu0 %8628, %v8424
      %v8630 = vpop.permute.xlu0 %8629
      %8631 = vset.pattern.permute.xlu0 0
      %8632 = vperm.xlu0 %8631, %v8425
      %v8633 = vpop.permute.xlu0 %8632
      %8634 = vset.pattern.permute.xlu0 0
      %8635 = vperm.xlu0 %8634, %v8426
      %v8636 = vpop.permute.xlu0 %8635
      %8637 = vset.pattern.permute.xlu0 0
      %8638 = vperm.xlu0 %8637, %v8427
      %v8639 = vpop.permute.xlu0 %8638
      %8640 = vset.pattern.permute.xlu0 0
      %8641 = vperm.xlu0 %8640, %v8428
      %v8642 = vpop.permute.xlu0 %8641
      %8643 = vset.pattern.permute.xlu0 0
      %8644 = vperm.xlu0 %8643, %v8429
      %v8645 = vpop.permute.xlu0 %8644
      %8646 = vset.pattern.permute.xlu0 0
      %8647 = vperm.xlu0 %8646, %v8430
      %v8648 = vpop.permute.xlu0 %8647
      %8649 = vset.pattern.permute.xlu0 0
      %8650 = vperm.xlu0 %8649, %v8431
      %v8651 = vpop.permute.xlu0 %8650
      %8652 = vset.pattern.permute.xlu0 0
      %8653 = vperm.xlu0 %8652, %v8432
      %v8654 = vpop.permute.xlu0 %8653
      %8655 = vset.pattern.permute.xlu0 0
      %8656 = vperm.xlu0 %8655, %v8433
      %v8657 = vpop.permute.xlu0 %8656
      %8658 = vset.pattern.permute.xlu0 0
      %8659 = vperm.xlu0 %8658, %v8434
      %v8660 = vpop.permute.xlu0 %8659
      %8661 = vset.pattern.permute.xlu0 0
      %8662 = vperm.xlu0 %8661, %v8435
      %v8663 = vpop.permute.xlu0 %8662
      %8664 = vset.pattern.permute.xlu0 0
      %8665 = vperm.xlu0 %8664, %v8436
      %v8666 = vpop.permute.xlu0 %8665
      %8667 = vset.pattern.permute.xlu0 0
      %8668 = vperm.xlu0 %8667, %v8437
      %v8669 = vpop.permute.xlu0 %8668
      %8670 = vset.pattern.permute.xlu0 0
      %8671 = vperm.xlu0 %8670, %v8438
      %v8672 = vpop.permute.xlu0 %8671
      %8673 = vset.pattern.permute.xlu0 0
      %8674 = vperm.xlu0 %8673, %v8439
      %v8675 = vpop.permute.xlu0 %8674
      %8676 = vset.pattern.permute.xlu0 0
      %8677 = vperm.xlu0 %8676, %v8440
      %v8678 = vpop.permute.xlu0 %8677
      %8679 = vset.pattern.permute.xlu0 0
      %8680 = vperm.xlu0 %8679, %v8441
      %v8681 = vpop.permute.xlu0 %8680
      %vm8682 = vcmp.eq.s32.totalorder %v8444, 1
      %vm8683 = vcmp.eq.s32.totalorder %v8447, 1
      %vm8684 = vcmp.eq.s32.totalorder %v8450, 1
      %vm8685 = vcmp.eq.s32.totalorder %v8453, 1
      %vm8686 = vcmp.eq.s32.totalorder %v8456, 1
      %vm8687 = vcmp.eq.s32.totalorder %v8459, 1
      %vm8688 = vcmp.eq.s32.totalorder %v8462, 1
      %vm8689 = vcmp.eq.s32.totalorder %v8465, 1
      %vm8690 = vcmp.eq.s32.totalorder %v8468, 1
      %vm8691 = vcmp.eq.s32.totalorder %v8471, 1
      %vm8692 = vcmp.eq.s32.totalorder %v8474, 1
      %vm8693 = vcmp.eq.s32.totalorder %v8477, 1
      %vm8694 = vcmp.eq.s32.totalorder %v8480, 1
      %vm8695 = vcmp.eq.s32.totalorder %v8483, 1
      %vm8696 = vcmp.eq.s32.totalorder %v8486, 1
      %vm8697 = vcmp.eq.s32.totalorder %v8489, 1
      %vm8698 = vcmp.eq.s32.totalorder %v8492, 1
      %vm8699 = vcmp.eq.s32.totalorder %v8495, 1
      %vm8700 = vcmp.eq.s32.totalorder %v8498, 1
      %vm8701 = vcmp.eq.s32.totalorder %v8501, 1
      %vm8702 = vcmp.eq.s32.totalorder %v8504, 1
      %vm8703 = vcmp.eq.s32.totalorder %v8507, 1
      %vm8704 = vcmp.eq.s32.totalorder %v8510, 1
      %vm8705 = vcmp.eq.s32.totalorder %v8513, 1
      %vm8706 = vcmp.eq.s32.totalorder %v8516, 1
      %vm8707 = vcmp.eq.s32.totalorder %v8519, 1
      %vm8708 = vcmp.eq.s32.totalorder %v8522, 1
      %vm8709 = vcmp.eq.s32.totalorder %v8525, 1
      %vm8710 = vcmp.eq.s32.totalorder %v8528, 1
      %vm8711 = vcmp.eq.s32.totalorder %v8531, 1
      %vm8712 = vcmp.eq.s32.totalorder %v8534, 1
      %vm8713 = vcmp.eq.s32.totalorder %v8537, 1
      %vm8714 = vcmp.eq.s32.totalorder %v8540, 1
      %vm8715 = vcmp.eq.s32.totalorder %v8543, 1
      %vm8716 = vcmp.eq.s32.totalorder %v8546, 1
      %vm8717 = vcmp.eq.s32.totalorder %v8549, 1
      %vm8718 = vcmp.eq.s32.totalorder %v8552, 1
      %vm8719 = vcmp.eq.s32.totalorder %v8555, 1
      %vm8720 = vcmp.eq.s32.totalorder %v8558, 1
      %vm8721 = vcmp.eq.s32.totalorder %v8561, 1
      %vm8722 = vcmp.eq.s32.totalorder %v8564, 1
      %vm8723 = vcmp.eq.s32.totalorder %v8567, 1
      %vm8724 = vcmp.eq.s32.totalorder %v8570, 1
      %vm8725 = vcmp.eq.s32.totalorder %v8573, 1
      %vm8726 = vcmp.eq.s32.totalorder %v8576, 1
      %vm8727 = vcmp.eq.s32.totalorder %v8579, 1
      %vm8728 = vcmp.eq.s32.totalorder %v8582, 1
      %vm8729 = vcmp.eq.s32.totalorder %v8585, 1
      %vm8730 = vcmp.eq.s32.totalorder %v8588, 1
      %vm8731 = vcmp.eq.s32.totalorder %v8591, 1
      %vm8732 = vcmp.eq.s32.totalorder %v8594, 1
      %vm8733 = vcmp.eq.s32.totalorder %v8597, 1
      %vm8734 = vcmp.eq.s32.totalorder %v8600, 1
      %vm8735 = vcmp.eq.s32.totalorder %v8603, 1
      %vm8736 = vcmp.eq.s32.totalorder %v8606, 1
      %vm8737 = vcmp.eq.s32.totalorder %v8609, 1
      %vm8738 = vcmp.eq.s32.totalorder %v8612, 1
      %vm8739 = vcmp.eq.s32.totalorder %v8615, 1
      %vm8740 = vcmp.eq.s32.totalorder %v8618, 1
      %vm8741 = vcmp.eq.s32.totalorder %v8621, 1
      %vm8742 = vcmp.eq.s32.totalorder %v8624, 1
      %vm8743 = vcmp.eq.s32.totalorder %v8627, 1
      %vm8744 = vcmp.eq.s32.totalorder %v8630, 1
      %vm8745 = vcmp.eq.s32.totalorder %v8633, 1
      %vm8746 = vcmp.eq.s32.totalorder %v8636, 1
      %vm8747 = vcmp.eq.s32.totalorder %v8639, 1
      %vm8748 = vcmp.eq.s32.totalorder %v8642, 1
      %vm8749 = vcmp.eq.s32.totalorder %v8645, 1
      %vm8750 = vcmp.eq.s32.totalorder %v8648, 1
      %vm8751 = vcmp.eq.s32.totalorder %v8651, 1
      %vm8752 = vcmp.eq.s32.totalorder %v8654, 1
      %vm8753 = vcmp.eq.s32.totalorder %v8657, 1
      %vm8754 = vcmp.eq.s32.totalorder %v8660, 1
      %vm8755 = vcmp.eq.s32.totalorder %v8663, 1
      %vm8756 = vcmp.eq.s32.totalorder %v8666, 1
      %vm8757 = vcmp.eq.s32.totalorder %v8669, 1
      %vm8758 = vcmp.eq.s32.totalorder %v8672, 1
      %vm8759 = vcmp.eq.s32.totalorder %v8675, 1
      %vm8760 = vcmp.eq.s32.totalorder %v8678, 1
      %vm8761 = vcmp.eq.s32.totalorder %v8681, 1
      %v8762 = vsel %vm8682, %v8122, 0.0
      %v8763 = vsel %vm8683, %v8123, 0.0
      %v8764 = vsel %vm8684, %v8124, 0.0
      %v8765 = vsel %vm8685, %v8125, 0.0
      %v8766 = vsel %vm8686, %v8126, 0.0
      %v8767 = vsel %vm8687, %v8127, 0.0
      %v8768 = vsel %vm8688, %v8128, 0.0
      %v8769 = vsel %vm8689, %v8129, 0.0
      %v8770 = vsel %vm8690, %v8130, 0.0
      %v8771 = vsel %vm8691, %v8131, 0.0
      %v8772 = vsel %vm8692, %v8132, 0.0
      %v8773 = vsel %vm8693, %v8133, 0.0
      %v8774 = vsel %vm8694, %v8134, 0.0
      %v8775 = vsel %vm8695, %v8135, 0.0
      %v8776 = vsel %vm8696, %v8136, 0.0
      %v8777 = vsel %vm8697, %v8137, 0.0
      %v8778 = vsel %vm8698, %v8138, 0.0
      %v8779 = vsel %vm8699, %v8139, 0.0
      %v8780 = vsel %vm8700, %v8140, 0.0
      %v8781 = vsel %vm8701, %v8141, 0.0
      %v8782 = vsel %vm8702, %v8142, 0.0
      %v8783 = vsel %vm8703, %v8143, 0.0
      %v8784 = vsel %vm8704, %v8144, 0.0
      %v8785 = vsel %vm8705, %v8145, 0.0
      %v8786 = vsel %vm8706, %v8146, 0.0
      %v8787 = vsel %vm8707, %v8147, 0.0
      %v8788 = vsel %vm8708, %v8148, 0.0
      %v8789 = vsel %vm8709, %v8149, 0.0
      %v8790 = vsel %vm8710, %v8150, 0.0
      %v8791 = vsel %vm8711, %v8151, 0.0
      %v8792 = vsel %vm8712, %v8152, 0.0
      %v8793 = vsel %vm8713, %v8153, 0.0
      %v8794 = vsel %vm8714, %v8154, 0.0
      %v8795 = vsel %vm8715, %v8155, 0.0
      %v8796 = vsel %vm8716, %v8156, 0.0
      %v8797 = vsel %vm8717, %v8157, 0.0
      %v8798 = vsel %vm8718, %v8158, 0.0
      %v8799 = vsel %vm8719, %v8159, 0.0
      %v8800 = vsel %vm8720, %v8160, 0.0
      %v8801 = vsel %vm8721, %v8161, 0.0
      %v8802 = vsel %vm8722, %v8162, 0.0
      %v8803 = vsel %vm8723, %v8163, 0.0
      %v8804 = vsel %vm8724, %v8164, 0.0
      %v8805 = vsel %vm8725, %v8165, 0.0
      %v8806 = vsel %vm8726, %v8166, 0.0
      %v8807 = vsel %vm8727, %v8167, 0.0
      %v8808 = vsel %vm8728, %v8168, 0.0
      %v8809 = vsel %vm8729, %v8169, 0.0
      %v8810 = vsel %vm8730, %v8170, 0.0
      %v8811 = vsel %vm8731, %v8171, 0.0
      %v8812 = vsel %vm8732, %v8172, 0.0
      %v8813 = vsel %vm8733, %v8173, 0.0
      %v8814 = vsel %vm8734, %v8174, 0.0
      %v8815 = vsel %vm8735, %v8175, 0.0
      %v8816 = vsel %vm8736, %v8176, 0.0
      %v8817 = vsel %vm8737, %v8177, 0.0
      %v8818 = vsel %vm8738, %v8178, 0.0
      %v8819 = vsel %vm8739, %v8179, 0.0
      %v8820 = vsel %vm8740, %v8180, 0.0
      %v8821 = vsel %vm8741, %v8181, 0.0
      %v8822 = vsel %vm8742, %v8182, 0.0
      %v8823 = vsel %vm8743, %v8183, 0.0
      %v8824 = vsel %vm8744, %v8184, 0.0
      %v8825 = vsel %vm8745, %v8185, 0.0
      %v8826 = vsel %vm8746, %v8186, 0.0
      %v8827 = vsel %vm8747, %v8187, 0.0
      %v8828 = vsel %vm8748, %v8188, 0.0
      %v8829 = vsel %vm8749, %v8189, 0.0
      %v8830 = vsel %vm8750, %v8190, 0.0
      %v8831 = vsel %vm8751, %v8191, 0.0
      %v8832 = vsel %vm8752, %v8192, 0.0
      %v8833 = vsel %vm8753, %v8193, 0.0
      %v8834 = vsel %vm8754, %v8194, 0.0
      %v8835 = vsel %vm8755, %v8195, 0.0
      %v8836 = vsel %vm8756, %v8196, 0.0
      %v8837 = vsel %vm8757, %v8197, 0.0
      %v8838 = vsel %vm8758, %v8198, 0.0
      %v8839 = vsel %vm8759, %v8199, 0.0
      %v8840 = vsel %vm8760, %v8200, 0.0
      %v8841 = vsel %vm8761, %v8201, 0.0
      %v8842 = vpack.c.bf16 %v8763, %v8762
      %v8843 = vpack.c.bf16 %v8765, %v8764
      %v8844 = vpack.c.bf16 %v8767, %v8766
      %v8845 = vpack.c.bf16 %v8769, %v8768
      %v8846 = vpack.c.bf16 %v8771, %v8770
      %v8847 = vpack.c.bf16 %v8773, %v8772
      %v8848 = vpack.c.bf16 %v8775, %v8774
      %v8849 = vpack.c.bf16 %v8777, %v8776
      %v8850 = vpack.c.bf16 %v8779, %v8778
      %v8851 = vpack.c.bf16 %v8781, %v8780
      %v8852 = vpack.c.bf16 %v8783, %v8782
      %v8853 = vpack.c.bf16 %v8785, %v8784
      %v8854 = vpack.c.bf16 %v8787, %v8786
      %v8855 = vpack.c.bf16 %v8789, %v8788
      %v8856 = vpack.c.bf16 %v8791, %v8790
      %v8857 = vpack.c.bf16 %v8793, %v8792
      %v8858 = vpack.c.bf16 %v8795, %v8794
      %v8859 = vpack.c.bf16 %v8797, %v8796
      %v8860 = vpack.c.bf16 %v8799, %v8798
      %v8861 = vpack.c.bf16 %v8801, %v8800
      %v8862 = vpack.c.bf16 %v8803, %v8802
      %v8863 = vpack.c.bf16 %v8805, %v8804
      %v8864 = vpack.c.bf16 %v8807, %v8806
      %v8865 = vpack.c.bf16 %v8809, %v8808
      %v8866 = vpack.c.bf16 %v8811, %v8810
      %v8867 = vpack.c.bf16 %v8813, %v8812
      %v8868 = vpack.c.bf16 %v8815, %v8814
      %v8869 = vpack.c.bf16 %v8817, %v8816
      %v8870 = vpack.c.bf16 %v8819, %v8818
      %v8871 = vpack.c.bf16 %v8821, %v8820
      %v8872 = vpack.c.bf16 %v8823, %v8822
      %v8873 = vpack.c.bf16 %v8825, %v8824
      %v8874 = vpack.c.bf16 %v8827, %v8826
      %v8875 = vpack.c.bf16 %v8829, %v8828
      %v8876 = vpack.c.bf16 %v8831, %v8830
      %v8877 = vpack.c.bf16 %v8833, %v8832
      %v8878 = vpack.c.bf16 %v8835, %v8834
      %v8879 = vpack.c.bf16 %v8837, %v8836
      %v8880 = vpack.c.bf16 %v8839, %v8838
      %v8881 = vpack.c.bf16 %v8841, %v8840
      %v8922 = vunpack.c.l.b16 %v8842
      %v8923 = vunpack.c.h.b16 %v8842
      %v8924 = vunpack.c.l.b16 %v8843
      %v8925 = vunpack.c.h.b16 %v8843
      %v8926 = vunpack.c.l.b16 %v8844
      %v8927 = vunpack.c.h.b16 %v8844
      %v8928 = vunpack.c.l.b16 %v8845
      %v8929 = vunpack.c.h.b16 %v8845
      %v8930 = vunpack.c.l.b16 %v8846
      %v8931 = vunpack.c.h.b16 %v8846
      %v8932 = vunpack.c.l.b16 %v8847
      %v8933 = vunpack.c.h.b16 %v8847
      %v8934 = vunpack.c.l.b16 %v8848
      %v8935 = vunpack.c.h.b16 %v8848
      %v8936 = vunpack.c.l.b16 %v8849
      %v8937 = vunpack.c.h.b16 %v8849
      %v8938 = vunpack.c.l.b16 %v8850
      %v8939 = vunpack.c.h.b16 %v8850
      %v8940 = vunpack.c.l.b16 %v8851
      %v8941 = vunpack.c.h.b16 %v8851
      %v8942 = vunpack.c.l.b16 %v8852
      %v8943 = vunpack.c.h.b16 %v8852
      %v8944 = vunpack.c.l.b16 %v8853
      %v8945 = vunpack.c.h.b16 %v8853
      %v8946 = vunpack.c.l.b16 %v8854
      %v8947 = vunpack.c.h.b16 %v8854
      %v8948 = vunpack.c.l.b16 %v8855
      %v8949 = vunpack.c.h.b16 %v8855
      %v8950 = vunpack.c.l.b16 %v8856
      %v8951 = vunpack.c.h.b16 %v8856
      %v8952 = vunpack.c.l.b16 %v8857
      %v8953 = vunpack.c.h.b16 %v8857
      %v8954 = vunpack.c.l.b16 %v8858
      %v8955 = vunpack.c.h.b16 %v8858
      %v8956 = vunpack.c.l.b16 %v8859
      %v8957 = vunpack.c.h.b16 %v8859
      %v8958 = vunpack.c.l.b16 %v8860
      %v8959 = vunpack.c.h.b16 %v8860
      %v8960 = vunpack.c.l.b16 %v8861
      %v8961 = vunpack.c.h.b16 %v8861
      %v8962 = vunpack.c.l.b16 %v8862
      %v8963 = vunpack.c.h.b16 %v8862
      %v8964 = vunpack.c.l.b16 %v8863
      %v8965 = vunpack.c.h.b16 %v8863
      %v8966 = vunpack.c.l.b16 %v8864
      %v8967 = vunpack.c.h.b16 %v8864
      %v8968 = vunpack.c.l.b16 %v8865
      %v8969 = vunpack.c.h.b16 %v8865
      %v8970 = vunpack.c.l.b16 %v8866
      %v8971 = vunpack.c.h.b16 %v8866
      %v8972 = vunpack.c.l.b16 %v8867
      %v8973 = vunpack.c.h.b16 %v8867
      %v8974 = vunpack.c.l.b16 %v8868
      %v8975 = vunpack.c.h.b16 %v8868
      %v8976 = vunpack.c.l.b16 %v8869
      %v8977 = vunpack.c.h.b16 %v8869
      %v8978 = vunpack.c.l.b16 %v8870
      %v8979 = vunpack.c.h.b16 %v8870
      %v8980 = vunpack.c.l.b16 %v8871
      %v8981 = vunpack.c.h.b16 %v8871
      %v8982 = vunpack.c.l.b16 %v8872
      %v8983 = vunpack.c.h.b16 %v8872
      %v8984 = vunpack.c.l.b16 %v8873
      %v8985 = vunpack.c.h.b16 %v8873
      %v8986 = vunpack.c.l.b16 %v8874
      %v8987 = vunpack.c.h.b16 %v8874
      %v8988 = vunpack.c.l.b16 %v8875
      %v8989 = vunpack.c.h.b16 %v8875
      %v8990 = vunpack.c.l.b16 %v8876
      %v8991 = vunpack.c.h.b16 %v8876
      %v8992 = vunpack.c.l.b16 %v8877
      %v8993 = vunpack.c.h.b16 %v8877
      %v8994 = vunpack.c.l.b16 %v8878
      %v8995 = vunpack.c.h.b16 %v8878
      %v8996 = vunpack.c.l.b16 %v8879
      %v8997 = vunpack.c.h.b16 %v8879
      %v8998 = vunpack.c.l.b16 %v8880
      %v8999 = vunpack.c.h.b16 %v8880
      %v9000 = vunpack.c.l.b16 %v8881
      %v9001 = vunpack.c.h.b16 %v8881
      %v9002 = vpack.c.b16 %v8922, %v8922
      %v9003 = vpack.c.b16 %v8923, %v8923
      %v9004 = vpack.c.b16 %v8924, %v8924
      %v9005 = vpack.c.b16 %v8925, %v8925
      %v9006 = vpack.c.b16 %v8926, %v8926
      %v9007 = vpack.c.b16 %v8927, %v8927
      %v9008 = vpack.c.b16 %v8928, %v8928
      %v9009 = vpack.c.b16 %v8929, %v8929
      %v9010 = vpack.c.b16 %v8930, %v8930
      %v9011 = vpack.c.b16 %v8931, %v8931
      %v9012 = vpack.c.b16 %v8932, %v8932
      %v9013 = vpack.c.b16 %v8933, %v8933
      %v9014 = vpack.c.b16 %v8934, %v8934
      %v9015 = vpack.c.b16 %v8935, %v8935
      %v9016 = vpack.c.b16 %v8936, %v8936
      %v9017 = vpack.c.b16 %v8937, %v8937
      %v9018 = vpack.c.b16 %v8938, %v8938
      %v9019 = vpack.c.b16 %v8939, %v8939
      %v9020 = vpack.c.b16 %v8940, %v8940
      %v9021 = vpack.c.b16 %v8941, %v8941
      %v9022 = vpack.c.b16 %v8942, %v8942
      %v9023 = vpack.c.b16 %v8943, %v8943
      %v9024 = vpack.c.b16 %v8944, %v8944
      %v9025 = vpack.c.b16 %v8945, %v8945
      %v9026 = vpack.c.b16 %v8946, %v8946
      %v9027 = vpack.c.b16 %v8947, %v8947
      %v9028 = vpack.c.b16 %v8948, %v8948
      %v9029 = vpack.c.b16 %v8949, %v8949
      %v9030 = vpack.c.b16 %v8950, %v8950
      %v9031 = vpack.c.b16 %v8951, %v8951
      %v9032 = vpack.c.b16 %v8952, %v8952
      %v9033 = vpack.c.b16 %v8953, %v8953
      %v9034 = vpack.c.b16 %v8954, %v8954
      %v9035 = vpack.c.b16 %v8955, %v8955
      %v9036 = vpack.c.b16 %v8956, %v8956
      %v9037 = vpack.c.b16 %v8957, %v8957
      %v9038 = vpack.c.b16 %v8958, %v8958
      %v9039 = vpack.c.b16 %v8959, %v8959
      %v9040 = vpack.c.b16 %v8960, %v8960
      %v9041 = vpack.c.b16 %v8961, %v8961
      %v9042 = vpack.c.b16 %v8962, %v8962
      %v9043 = vpack.c.b16 %v8963, %v8963
      %v9044 = vpack.c.b16 %v8964, %v8964
      %v9045 = vpack.c.b16 %v8965, %v8965
      %v9046 = vpack.c.b16 %v8966, %v8966
      %v9047 = vpack.c.b16 %v8967, %v8967
      %v9048 = vpack.c.b16 %v8968, %v8968
      %v9049 = vpack.c.b16 %v8969, %v8969
      %v9050 = vpack.c.b16 %v8970, %v8970
      %v9051 = vpack.c.b16 %v8971, %v8971
      %v9052 = vpack.c.b16 %v8972, %v8972
      %v9053 = vpack.c.b16 %v8973, %v8973
      %v9054 = vpack.c.b16 %v8974, %v8974
      %v9055 = vpack.c.b16 %v8975, %v8975
      %v9056 = vpack.c.b16 %v8976, %v8976
      %v9057 = vpack.c.b16 %v8977, %v8977
      %v9058 = vpack.c.b16 %v8978, %v8978
      %v9059 = vpack.c.b16 %v8979, %v8979
      %v9060 = vpack.c.b16 %v8980, %v8980
      %v9061 = vpack.c.b16 %v8981, %v8981
      %v9062 = vpack.c.b16 %v8982, %v8982
      %v9063 = vpack.c.b16 %v8983, %v8983
      %v9064 = vpack.c.b16 %v8984, %v8984
      %v9065 = vpack.c.b16 %v8985, %v8985
      %v9066 = vpack.c.b16 %v8986, %v8986
      %v9067 = vpack.c.b16 %v8987, %v8987
      %v9068 = vpack.c.b16 %v8988, %v8988
      %v9069 = vpack.c.b16 %v8989, %v8989
      %v9070 = vpack.c.b16 %v8990, %v8990
      %v9071 = vpack.c.b16 %v8991, %v8991
      %v9072 = vpack.c.b16 %v8992, %v8992
      %v9073 = vpack.c.b16 %v8993, %v8993
      %v9074 = vpack.c.b16 %v8994, %v8994
      %v9075 = vpack.c.b16 %v8995, %v8995
      %v9076 = vpack.c.b16 %v8996, %v8996
      %v9077 = vpack.c.b16 %v8997, %v8997
      %v9078 = vpack.c.b16 %v8998, %v8998
      %v9079 = vpack.c.b16 %v8999, %v8999
      %v9080 = vpack.c.b16 %v9000, %v9000
      %v9081 = vpack.c.b16 %v9001, %v9001
      %vm9162 = vcmask 257024
      %9163 = vst.msk [vmem:[%s463] sm:$0xf] %vm9162, %v9002
      %9164 = vst.msk [vmem:[%s463 + $0x4] sm:$0xf] %vm9162, %v9003
      %9165 = vst.msk [vmem:[%s463 + $0x8] sm:$0xf] %vm9162, %v9004
      %9166 = vst.msk [vmem:[%s463 + $0xc] sm:$0xf] %vm9162, %v9005
      %9167 = vst.msk [vmem:[%s463 + $0x10] sm:$0xf] %vm9162, %v9006
      %9168 = vst.msk [vmem:[%s463 + $0x14] sm:$0xf] %vm9162, %v9007
      %9169 = vst.msk [vmem:[%s463 + $0x18] sm:$0xf] %vm9162, %v9008
      %9170 = vst.msk [vmem:[%s463 + $0x1c] sm:$0xf] %vm9162, %v9009
      %9171 = vst.msk [vmem:[%s463 + $0x20] sm:$0xf] %vm9162, %v9010
      %9172 = vst.msk [vmem:[%s463 + $0x24] sm:$0xf] %vm9162, %v9011
      %9173 = vst.msk [vmem:[%s463 + $0x28] sm:$0xf] %vm9162, %v9012
      %9174 = vst.msk [vmem:[%s463 + $0x2c] sm:$0xf] %vm9162, %v9013
      %9175 = vst.msk [vmem:[%s463 + $0x30] sm:$0xf] %vm9162, %v9014
      %9176 = vst.msk [vmem:[%s463 + $0x34] sm:$0xf] %vm9162, %v9015
      %9177 = vst.msk [vmem:[%s463 + $0x38] sm:$0xf] %vm9162, %v9016
      %9178 = vst.msk [vmem:[%s463 + $0x3c] sm:$0xf] %vm9162, %v9017
      %9179 = vst.msk [vmem:[%s463 + $0x40] sm:$0xf] %vm9162, %v9018
      %9180 = vst.msk [vmem:[%s463 + $0x44] sm:$0xf] %vm9162, %v9019
      %9181 = vst.msk [vmem:[%s463 + $0x48] sm:$0xf] %vm9162, %v9020
      %9182 = vst.msk [vmem:[%s463 + $0x4c] sm:$0xf] %vm9162, %v9021
      %9183 = vst.msk [vmem:[%s463 + $0x50] sm:$0xf] %vm9162, %v9022
      %9184 = vst.msk [vmem:[%s463 + $0x54] sm:$0xf] %vm9162, %v9023
      %9185 = vst.msk [vmem:[%s463 + $0x58] sm:$0xf] %vm9162, %v9024
      %9186 = vst.msk [vmem:[%s463 + $0x5c] sm:$0xf] %vm9162, %v9025
      %9187 = vst.msk [vmem:[%s463 + $0x60] sm:$0xf] %vm9162, %v9026
      %9188 = vst.msk [vmem:[%s463 + $0x64] sm:$0xf] %vm9162, %v9027
      %9189 = vst.msk [vmem:[%s463 + $0x68] sm:$0xf] %vm9162, %v9028
      %9190 = vst.msk [vmem:[%s463 + $0x6c] sm:$0xf] %vm9162, %v9029
      %9191 = vst.msk [vmem:[%s463 + $0x70] sm:$0xf] %vm9162, %v9030
      %9192 = vst.msk [vmem:[%s463 + $0x74] sm:$0xf] %vm9162, %v9031
      %9193 = vst.msk [vmem:[%s463 + $0x78] sm:$0xf] %vm9162, %v9032
      %9194 = vst.msk [vmem:[%s463 + $0x7c] sm:$0xf] %vm9162, %v9033
      %9195 = vst.msk [vmem:[%s463 + $0x80] sm:$0xf] %vm9162, %v9034
      %9196 = vst.msk [vmem:[%s463 + $0x84] sm:$0xf] %vm9162, %v9035
      %9197 = vst.msk [vmem:[%s463 + $0x88] sm:$0xf] %vm9162, %v9036
      %9198 = vst.msk [vmem:[%s463 + $0x8c] sm:$0xf] %vm9162, %v9037
      %9199 = vst.msk [vmem:[%s463 + $0x90] sm:$0xf] %vm9162, %v9038
      %9200 = vst.msk [vmem:[%s463 + $0x94] sm:$0xf] %vm9162, %v9039
      %9201 = vst.msk [vmem:[%s463 + $0x98] sm:$0xf] %vm9162, %v9040
      %9202 = vst.msk [vmem:[%s463 + $0x9c] sm:$0xf] %vm9162, %v9041
      %9203 = vst.msk [vmem:[%s463 + $0xa0] sm:$0xf] %vm9162, %v9042
      %9204 = vst.msk [vmem:[%s463 + $0xa4] sm:$0xf] %vm9162, %v9043
      %9205 = vst.msk [vmem:[%s463 + $0xa8] sm:$0xf] %vm9162, %v9044
      %9206 = vst.msk [vmem:[%s463 + $0xac] sm:$0xf] %vm9162, %v9045
      %9207 = vst.msk [vmem:[%s463 + $0xb0] sm:$0xf] %vm9162, %v9046
      %9208 = vst.msk [vmem:[%s463 + $0xb4] sm:$0xf] %vm9162, %v9047
      %9209 = vst.msk [vmem:[%s463 + $0xb8] sm:$0xf] %vm9162, %v9048
      %9210 = vst.msk [vmem:[%s463 + $0xbc] sm:$0xf] %vm9162, %v9049
      %9211 = vst.msk [vmem:[%s463 + $0xc0] sm:$0xf] %vm9162, %v9050
      %9212 = vst.msk [vmem:[%s463 + $0xc4] sm:$0xf] %vm9162, %v9051
      %9213 = vst.msk [vmem:[%s463 + $0xc8] sm:$0xf] %vm9162, %v9052
      %9214 = vst.msk [vmem:[%s463 + $0xcc] sm:$0xf] %vm9162, %v9053
      %9215 = vst.msk [vmem:[%s463 + $0xd0] sm:$0xf] %vm9162, %v9054
      %9216 = vst.msk [vmem:[%s463 + $0xd4] sm:$0xf] %vm9162, %v9055
      %9217 = vst.msk [vmem:[%s463 + $0xd8] sm:$0xf] %vm9162, %v9056
      %9218 = vst.msk [vmem:[%s463 + $0xdc] sm:$0xf] %vm9162, %v9057
      %9219 = vst.msk [vmem:[%s463 + $0xe0] sm:$0xf] %vm9162, %v9058
      %9220 = vst.msk [vmem:[%s463 + $0xe4] sm:$0xf] %vm9162, %v9059
      %9221 = vst.msk [vmem:[%s463 + $0xe8] sm:$0xf] %vm9162, %v9060
      %9222 = vst.msk [vmem:[%s463 + $0xec] sm:$0xf] %vm9162, %v9061
      %9223 = vst.msk [vmem:[%s463 + $0xf0] sm:$0xf] %vm9162, %v9062
      %9224 = vst.msk [vmem:[%s463 + $0xf4] sm:$0xf] %vm9162, %v9063
      %9225 = vst.msk [vmem:[%s463 + $0xf8] sm:$0xf] %vm9162, %v9064
      %9226 = vst.msk [vmem:[%s463 + $0xfc] sm:$0xf] %vm9162, %v9065
      %9227 = vst.msk [vmem:[%s463 + $0x100] sm:$0xf] %vm9162, %v9066
      %9228 = vst.msk [vmem:[%s463 + $0x104] sm:$0xf] %vm9162, %v9067
      %9229 = vst.msk [vmem:[%s463 + $0x108] sm:$0xf] %vm9162, %v9068
      %9230 = vst.msk [vmem:[%s463 + $0x10c] sm:$0xf] %vm9162, %v9069
      %9231 = vst.msk [vmem:[%s463 + $0x110] sm:$0xf] %vm9162, %v9070
      %9232 = vst.msk [vmem:[%s463 + $0x114] sm:$0xf] %vm9162, %v9071
      %9233 = vst.msk [vmem:[%s463 + $0x118] sm:$0xf] %vm9162, %v9072
      %9234 = vst.msk [vmem:[%s463 + $0x11c] sm:$0xf] %vm9162, %v9073
      %9235 = vst.msk [vmem:[%s463 + $0x120] sm:$0xf] %vm9162, %v9074
      %9236 = vst.msk [vmem:[%s463 + $0x124] sm:$0xf] %vm9162, %v9075
      %9237 = vst.msk [vmem:[%s463 + $0x128] sm:$0xf] %vm9162, %v9076
      %9238 = vst.msk [vmem:[%s463 + $0x12c] sm:$0xf] %vm9162, %v9077
      %9239 = vst.msk [vmem:[%s463 + $0x130] sm:$0xf] %vm9162, %v9078
      %9240 = vst.msk [vmem:[%s463 + $0x134] sm:$0xf] %vm9162, %v9079
      %9241 = vst.msk [vmem:[%s463 + $0x138] sm:$0xf] %vm9162, %v9080
      %9242 = vst.msk [vmem:[%s463 + $0x13c] sm:$0xf] %vm9162, %v9081
      %s9243 = smul.u32 80, %s24
      %p9244 = scmp.lt.s32.totalorder %s22, 1
      %s9245 = scalar_select %p9244, %s22, 1
      %p9246 = scmp.lt.s32.totalorder %s9243, 159
      %s9247 = scalar_select %p9246, %s9243, 159
      %p9248 = scmp.lt.s32.totalorder %s23, 0
      %s9249 = scalar_select %p9248, %s23, 0
      %s9250 = sadd.s32 %s9249, %s9247
      %s9251 = smul.addr %s9245, 160
      %s9252 = sadd.s32 %s9250, %s9251
      %s9253 = smul.addr %s9252, 4
      %s9254 = scalar_lea.vmem %s6, %s9253
      // Predicated region
      $region61: #{tpu_custom_call.1} parent=43 // pred_check
        %p9255 = pneg %p231
      $region62: #{tpu_custom_call.1} parent=43 // pred_check_branch
        %9257 = sbr.rel (%p9255) target = $region64
      $region63: #{tpu_custom_call.1} parent=43 // pred_region
        %s9258 = smul.u32 80, %s24
      $region64: #{tpu_custom_call.1} parent=43 // pred_fallthru
        _
    $region44: #{tpu_custom_call.1} parent=5 // pred_fallthru
      _
    %p9259 = scmp.le.s32.totalorder 2, %s12
    // Predicated region
    $region65: #{tpu_custom_call.1} parent=5 // pred_check
      %p9260 = pneg %p9259
    $region66: #{tpu_custom_call.1} parent=5 // pred_check_branch
      %9262 = sbr.rel (%p9260) target = $region68
    $region67: #{tpu_custom_call.1} parent=5 // pred_region
      %s9263 = ssub.s32 %s12, 2
      // Predicated region
      $region69: #{tpu_custom_call.1} parent=67 // pred_check
        %p9264 = pneg %p237
      $region70: #{tpu_custom_call.1} parent=67 // pred_check_branch
        %9266 = sbr.rel (%p9264) target = $region72
      $region71: #{tpu_custom_call.1} parent=67 // pred_region
        %s9267 = smul.u32 80, %s27
        %p9268 = scmp.lt.s32.totalorder %s25, 1
        %s9269 = scalar_select %p9268, %s25, 1
        %p9270 = scmp.lt.s32.totalorder %s9267, 159
        %s9271 = scalar_select %p9270, %s9267, 159
        %p9272 = scmp.lt.s32.totalorder %s26, 0
        %s9273 = scalar_select %p9272, %s26, 0
        %s9274 = sadd.s32 %s9273, %s9271
        %s9275 = smul.addr %s9269, 160
        %s9276 = sadd.s32 %s9274, %s9275
        %s9277 = smul.addr %s9276, 4
        %s9278 = scalar_lea.vmem %s6, %s9277
      $region72: #{tpu_custom_call.1} parent=67 // pred_fallthru
        _
    $region68: #{tpu_custom_call.1} parent=5 // pred_fallthru
      _
  $region6: #{tpu_custom_call.1} parent=0 // loop_footer
    %s16 = sadd.s32 1, %s12
  $region7: #{tpu_custom_call.1} parent=0 // loop_footer_branch
    %11 = sbr.rel target = $region3
  $region8: #{tpu_custom_call.1} parent=0 // loop_exit
    _

</llo_original>
